<compile_context>
chip_gen: v6e
topology: v6e:2x2x1
jax: 0.10.0
libtpu: 0.0.40
codegen_flags: <defaults>
</compile_context>

<pallas_src>
import functools
import math

import jax
import jax.numpy as jnp
from jax import lax
from jax.experimental import pallas as pl
from jax.experimental.pallas import tpu as pltpu


# ----------------------------------------------------------------------------
# Fused ConvBlock kernel: 3x3 conv + bias + batch-stat BN + ReLU + (maxpool 2)
# ----------------------------------------------------------------------------
def _conv_block_kernel(x_ref, w_ref, b_ref, g_ref, bt_ref, o_ref,
                       conv_ref, sum_ref, ssq_ref, *, pool, eps):
    """Grid is (N, Ho).  Each step computes one conv output row; the last step
    applies BatchNorm (training statistics), ReLU and the optional 2x2 maxpool.

    x_ref   : (N, Hp, Wp, Cin)   padded input, resident block
    w_ref   : (9, Cin, Cout)     conv weight, tap-major (kh*3 + kw)
    b_ref   : (1, Cout) f32      conv bias
    g_ref   : (1, Cout) f32      BN gamma
    bt_ref  : (1, Cout) f32      BN beta
    o_ref   : (N, Hout, Wout, Cout)  block output
    conv_ref: (N, Ho, Wo, Cout) f32  VMEM scratch (pre-BN conv activation)
    sum_ref : (1, Cout) f32          VMEM scratch (BN sum accumulator)
    ssq_ref : (1, Cout) f32          VMEM scratch (BN sum-of-squares accum.)
    """
    n = pl.program_id(0)
    h = pl.program_id(1)

    N = x_ref.shape[0]
    Hp, Wp = x_ref.shape[1], x_ref.shape[2]
    Ho, Wo = Hp - 2, Wp - 2
    Cout = w_ref.shape[2]
    Hout, Wout = o_ref.shape[1], o_ref.shape[2]

    # ---- first grid step: zero the BN statistic accumulators ----------------
    @pl.when(jnp.logical_and(n == 0, h == 0))
    def _init():
        sum_ref[...] = jnp.zeros_like(sum_ref)
        ssq_ref[...] = jnp.zeros_like(ssq_ref)

    # ---- conv phase: one output row = 9 shifted matmuls (f32 accumulation) --
    acc = jnp.zeros((Wo, Cout), jnp.float32)
    for kh in range(3):
        for kw in range(3):
            xs = x_ref[n, h + kh, kw:kw + Wo, :]              # (Wo, Cin)
            acc = acc + jnp.dot(xs, w_ref[kh * 3 + kw],
                                preferred_element_type=jnp.float32)
    acc = acc + b_ref[...]                                    # (1,Cout) broadcast
    conv_ref[n, h] = acc

    # running per-channel batch statistics
    sum_ref[...] = sum_ref[...] + jnp.sum(acc, axis=0, keepdims=True)
    ssq_ref[...] = ssq_ref[...] + jnp.sum(acc * acc, axis=0, keepdims=True)

    # ---- last grid step: BN (batch stats) + ReLU + optional 2x2 maxpool -----
    @pl.when(jnp.logical_and(n == N - 1, h == Ho - 1))
    def _finalize():
        count = float(N * Ho * Wo)
        mean = sum_ref[...] / count                           # (1, Cout)
        var = ssq_ref[...] / count - mean * mean              # biased variance
        scale = g_ref[...] * lax.rsqrt(var + eps)             # (1, Cout)
        shift = bt_ref[...] - mean * scale                    # (1, Cout)

        if pool:
            # Exact even / odd column selection via one-hot MXU matmuls
            # (avoids strided value slicing; 1.0/0.0 matmul copies are exact).
            r = lax.broadcasted_iota(jnp.int32, (Wout, Wo), 0)
            c = lax.broadcasted_iota(jnp.int32, (Wout, Wo), 1)
            p_even = (c == 2 * r).astype(jnp.float32)
            p_odd = (c == 2 * r + 1).astype(jnp.float32)

        for nn in range(N):
            for ho in range(Hout):
                if pool:
                    a0 = conv_ref[nn, 2 * ho]                 # (Wo, Cout)
                    a1 = conv_ref[nn, 2 * ho + 1]
                    z0 = jnp.maximum(a0 * scale + shift, 0.0)
                    z1 = jnp.maximum(a1 * scale + shift, 0.0)
                    m = jnp.maximum(z0, z1)                   # vertical 2-max
                    y = jnp.maximum(
                        jnp.dot(p_even, m, preferred_element_type=jnp.float32),
                        jnp.dot(p_odd, m, preferred_element_type=jnp.float32))
                else:
                    a0 = conv_ref[nn, ho]
                    y = jnp.maximum(a0 * scale + shift, 0.0)
                o_ref[nn, ho] = y.astype(o_ref.dtype)


def conv_block_apply(x_nhwc, blk, *, compute_dtype, eps=1e-5):
    """One ConvBlock: conv3x3(stride 1, pad in {0,1}) + BN(train) + ReLU [+ pool]."""
    pool, padding = blk["pool"], blk["padding"]
    w = blk["w"]                                              # (Cout, Cin, 3, 3) torch layout
    Cout, Cin = int(w.shape[0]), int(w.shape[1])

    # one-time layout prep (tiny): tap-major weight, 2-D bias / BN params
    w9 = jnp.transpose(w, (2, 3, 1, 0)).reshape(9, Cin, Cout).astype(compute_dtype)
    b = blk["b"].reshape(1, Cout).astype(jnp.float32)
    gamma = blk["gamma"].reshape(1, Cout).astype(jnp.float32)
    beta = blk["beta"].reshape(1, Cout).astype(jnp.float32)

    if padding:
        x_nhwc = jnp.pad(
            x_nhwc, ((0, 0), (padding, padding), (padding, padding), (0, 0)))
    x_nhwc = x_nhwc.astype(compute_dtype)

    N, Hp, Wp, _ = x_nhwc.shape
    N, Hp, Wp = int(N), int(Hp), int(Wp)
    Ho, Wo = Hp - 2, Wp - 2
    Hout, Wout = (Ho // 2, Wo // 2) if pool else (Ho, Wo)

    kern = functools.partial(_conv_block_kernel, pool=pool, eps=eps)

    itemsize = jnp.dtype(compute_dtype).itemsize
    flops = int(2 * N * Ho * Wo * 9 * Cin * Cout)
    bytes_accessed = int(x_nhwc.size * itemsize + w9.size * itemsize
                         + (b.size + gamma.size + beta.size) * 4
                         + N * Hout * Wout * Cout * itemsize)

    return pl.pallas_call(
        kern,
        out_shape=jax.ShapeDtypeStruct((N, Hout, Wout, Cout), compute_dtype),
        grid=(N, Ho),
        in_specs=[
            pl.BlockSpec((N, Hp, Wp, Cin), lambda n, h: (0, 0, 0, 0)),  # resident
            pl.BlockSpec((9, Cin, Cout), lambda n, h: (0, 0, 0)),       # resident
            pl.BlockSpec((1, Cout), lambda n, h: (0, 0)),
            pl.BlockSpec((1, Cout), lambda n, h: (0, 0)),
            pl.BlockSpec((1, Cout), lambda n, h: (0, 0)),
        ],
        out_specs=pl.BlockSpec((N, Hout, Wout, Cout), lambda n, h: (0, 0, 0, 0)),
        scratch_shapes=[
            pltpu.VMEM((N, Ho, Wo, Cout), jnp.float32),   # pre-BN conv activation
            pltpu.VMEM((1, Cout), jnp.float32),           # BN sum
            pltpu.VMEM((1, Cout), jnp.float32),           # BN sum of squares
        ],
        compiler_params=pltpu.CompilerParams(
            # BN batch statistics are reduced across the grid inside the
            # kernel, so the grid must run sequentially ("arbitrary").
            dimension_semantics=("arbitrary", "arbitrary"),
            # Explicit VMEM budget: safe on v5e (16 MiB default scoped) and
            # well under v7x's 64 MiB physical VMEM.
            vmem_limit_bytes=32 * 1024 * 1024,
        ),
        cost_estimate=pl.CostEstimate(
            flops=flops, transcendentals=int(Cout), bytes_accessed=bytes_accessed),
    )(x_nhwc, w9, b, gamma, beta)


# ----------------------------------------------------------------------------
# Full ConvNetNopool forward (Pallas path)
# ----------------------------------------------------------------------------
def convnet_nopool_forward(x_nchw, params, *, compute_dtype=jnp.bfloat16):
    """x_nchw: (N, 3, H, W) f32 -> (N, 64, H', W') f32 (same semantics as torch)."""
    x = jnp.transpose(x_nchw, (0, 2, 3, 1)).astype(compute_dtype)   # NHWC once
    for blk in params:
        x = conv_block_apply(x, blk, compute_dtype=compute_dtype)
    return jnp.transpose(x, (0, 3, 1, 2)).astype(jnp.float32)       # back to NCHW once


# ----------------------------------------------------------------------------
# Parameter construction mirroring ConvNetNopool(depth).__init__ / init_layer
# ----------------------------------------------------------------------------
def init_convnet_nopool_params(key, depth):
    params = []
    for i in range(depth):
        indim = 3 if i == 0 else 64
        outdim = 64
        pool = i in (0, 1)
        padding = 0 if i in (0, 1) else 1
        key, kw_, kb_, kg_, kbt_ = jax.random.split(key, 5)
        fan = 3 * 3 * outdim
        w = jax.random.normal(kw_, (outdim, indim, 3, 3), jnp.float32) * math.sqrt(2.0 / fan)
        b = 0.05 * jax.random.normal(kb_, (outdim,), jnp.float32)
        # init_layer sets BN weight=1 / bias=0; use mild perturbations so the
        # affine path of the forward semantics is actually exercised.
        gamma = 1.0 + 0.1 * jax.random.normal(kg_, (outdim,), jnp.float32)
        beta = 0.1 * jax.random.normal(kbt_, (outdim,), jnp.float32)
        params.append(dict(w=w, b=b, gamma=gamma, beta=beta,
                           pool=pool, padding=padding))
    return params


# ----------------------------------------------------------------------------
# Pure-JAX reference (torch semantics).  operand_dtype=bfloat16 reproduces the
# kernel's bf16 operand rounding (accumulation stays f32), so the bf16 check
# isolates kernel correctness from expected quantization drift.
# ----------------------------------------------------------------------------
def reference_forward(x_nchw, params, *, operand_dtype=jnp.float32, eps=1e-5):
    x = x_nchw.astype(operand_dtype).astype(jnp.float32)
    for blk in params:
        w = blk["w"].astype(operand_dtype).astype(jnp.float32)
        p = blk["padding"]
        y = lax.conv_general_dilated(
            x, w, window_strides=(1, 1), padding=[(p, p), (p, p)],
            dimension_numbers=("NCHW", "OIHW", "NCHW"))
        y = y + blk["b"][None, :, None, None]
        mean = jnp.mean(y, axis=(0, 2, 3), keepdims=True)
        var = jnp.mean(jnp.square(y - mean), axis=(0, 2, 3), keepdims=True)
        y = (y - mean) * lax.rsqrt(var + eps)
        y = y * blk["gamma"][None, :, None, None] + blk["beta"][None, :, None, None]
        y = jnp.maximum(y, 0.0)
        if blk["pool"]:
            y = lax.reduce_window(y, -jnp.inf, lax.max,
                                  window_dimensions=(1, 1, 2, 2),
                                  window_strides=(1, 1, 2, 2), padding="VALID")
        x = y.astype(operand_dtype).astype(jnp.float32)
    return x


if __name__ == "__main__":
    DEPTH = 4                     # canonical ConvNetNopool / Conv4NP
    N, H, W = 2, 28, 28           # small shapes; channels=3 implied by the module

    key = jax.random.PRNGKey(0)
    key, kx = jax.random.split(key)
    x = jax.random.normal(kx, (N, 3, H, W), dtype=jnp.float32)
    params = init_convnet_nopool_params(key, DEPTH)

    # 28 -> conv(p0) 26 -> pool 13 -> conv(p0) 11 -> pool 5 -> conv(p1) 5 -> conv(p1) 5
    expected_shape = (N, 64, 5, 5)

    # --- check 1: f32 compute path vs pure f32 reference (tight) -------------
    out_f32 = jax.block_until_ready(
        convnet_nopool_forward(x, params, compute_dtype=jnp.float32))
    ref_f32 = jax.block_until_ready(
        reference_forward(x, params, operand_dtype=jnp.float32))
    assert out_f32.shape == expected_shape, out_f32.shape
    err_f32 = float(jnp.max(jnp.abs(out_f32 - ref_f32)))
    assert err_f32 < 1e-3, f"f32 path mismatch vs reference: max|diff|={err_f32}"

    # --- check 2: bf16 compute path (performance configuration) --------------
    out_bf16 = jax.block_until_ready(
        convnet_nopool_forward(x, params, compute_dtype=jnp.bfloat16))
    ref_bf16 = jax.block_until_ready(
        reference_forward(x, params, operand_dtype=jnp.bfloat16))
    assert out_bf16.shape == expected_shape, out_bf16.shape
    err_bf16 = float(jnp.max(jnp.abs(out_bf16 - ref_bf16)))
    assert err_bf16 < 3e-2, \
        f"bf16 path mismatch vs bf16-rounded reference: max|diff|={err_bf16}"

    print("KERNEL_OK")
</pallas_src>

<mosaic_0001>
module attributes {stable_mosaic.version = 11 : i64} {
  func.func @_conv_block_kernel(%arg0: i32, %arg1: i32, %arg2: memref<2x28x28x3xf32, #tpu.memory_space<vmem>>, %arg3: memref<9x3x64xf32, #tpu.memory_space<vmem>>, %arg4: memref<1x64xf32, #tpu.memory_space<vmem>>, %arg5: memref<1x64xf32, #tpu.memory_space<vmem>>, %arg6: memref<1x64xf32, #tpu.memory_space<vmem>>, %arg7: memref<2x13x13x64xf32, #tpu.memory_space<vmem>>, %arg8: memref<2x26x26x64xf32, #tpu.memory_space<vmem>>, %arg9: memref<1x64xf32, #tpu.memory_space<vmem>>, %arg10: memref<1x64xf32, #tpu.memory_space<vmem>>) attributes {dimension_semantics = [#tpu.dimension_semantics<arbitrary>, #tpu.dimension_semantics<arbitrary>], iteration_bounds = array<i64: 2, 26>, scalar_prefetch = 0 : i64, scratch_operands = 3 : i64, tpu.core_type = #tpu.core_type<tc>, window_params = [{pipeline_mode = #tpu.pipeline_mode<synchronous>, transform_indices = @transform_0, window_bounds = array<i64: 2, 28, 28, 3>}, {pipeline_mode = #tpu.pipeline_mode<synchronous>, transform_indices = @transform_1, window_bounds = array<i64: 9, 3, 64>}, {pipeline_mode = #tpu.pipeline_mode<synchronous>, transform_indices = @transform_2, window_bounds = array<i64: 1, 64>}, {pipeline_mode = #tpu.pipeline_mode<synchronous>, transform_indices = @transform_3, window_bounds = array<i64: 1, 64>}, {pipeline_mode = #tpu.pipeline_mode<synchronous>, transform_indices = @transform_4, window_bounds = array<i64: 1, 64>}, {pipeline_mode = #tpu.pipeline_mode<synchronous>, transform_indices = @transform_5, window_bounds = array<i64: 2, 13, 13, 64>}]} {
    %c0_i32 = arith.constant 0 : i32
    %0 = arith.cmpi eq, %arg0, %c0_i32 : i32
    %c0_i32_0 = arith.constant 0 : i32
    %1 = arith.cmpi eq, %arg1, %c0_i32_0 : i32
    %2 = arith.andi %0, %1 : i1
    %3 = arith.extui %2 : i1 to i32
    %c0_i32_1 = arith.constant 0 : i32
    %4 = arith.cmpi ne, %3, %c0_i32_1 : i32
    scf.if %4 {
      %cst_70 = arith.constant 0.000000e+00 : f32
      %111 = vector.broadcast %cst_70 : f32 to vector<1x64xf32>
      %c0_71 = arith.constant 0 : index
      %c0_72 = arith.constant 0 : index
      %112 = vector.load %arg9[%c0_71, %c0_72] : memref<1x64xf32, #tpu.memory_space<vmem>>, vector<1x64xf32>
      tpu.vector_store %arg9[%c0_71, %c0_72], %111 {strides = array<i32>} : memref<1x64xf32, #tpu.memory_space<vmem>>, vector<1x64xf32>,
      %cst_73 = arith.constant 0.000000e+00 : f32
      %113 = vector.broadcast %cst_73 : f32 to vector<1x64xf32>
      %c0_74 = arith.constant 0 : index
      %c0_75 = arith.constant 0 : index
      %114 = vector.load %arg10[%c0_74, %c0_75] : memref<1x64xf32, #tpu.memory_space<vmem>>, vector<1x64xf32>
      tpu.vector_store %arg10[%c0_74, %c0_75], %113 {strides = array<i32>} : memref<1x64xf32, #tpu.memory_space<vmem>>, vector<1x64xf32>,
    } else {
    }
    %cst = arith.constant 0.000000e+00 : f32
    %5 = vector.broadcast %cst : f32 to vector<26x64xf32>
    %c0_i32_2 = arith.constant 0 : i32
    %6 = arith.addi %arg1, %c0_i32_2 : i32
    %7 = arith.index_cast %arg0 : i32 to index
    %8 = arith.index_cast %6 : i32 to index
    %c0 = arith.constant 0 : index
    %c0_3 = arith.constant 0 : index
    %9 = vector.load %arg2[%7, %8, %c0, %c0_3] : memref<2x28x28x3xf32, #tpu.memory_space<vmem>>, vector<1x1x26x3xf32>
    %10 = vector.shape_cast %9 : vector<1x1x26x3xf32> to vector<26x3xf32>
    %c0_4 = arith.constant 0 : index
    %c0_5 = arith.constant 0 : index
    %c0_6 = arith.constant 0 : index
    %11 = vector.load %arg3[%c0_4, %c0_5, %c0_6] : memref<9x3x64xf32, #tpu.memory_space<vmem>>, vector<1x3x64xf32>
    %12 = vector.shape_cast %11 : vector<1x3x64xf32> to vector<3x64xf32>
    %cst_7 = arith.constant dense<0.000000e+00> : vector<26x64xf32>
    %13 = tpu.matmul %10, %12, %cst_7 {dimension_numbers = #tpu.dot_dimension_numbers<[1], [0], [0], [1], [0, 0, 1, 1], [], []>} : vector<26x3xf32>, vector<3x64xf32>, vector<26x64xf32> -> vector<26x64xf32>
    %14 = arith.addf %5, %13 : vector<26x64xf32>
    %c0_i32_8 = arith.constant 0 : i32
    %15 = arith.addi %arg1, %c0_i32_8 : i32
    %16 = arith.index_cast %arg0 : i32 to index
    %17 = arith.index_cast %15 : i32 to index
    %c1 = arith.constant 1 : index
    %c0_9 = arith.constant 0 : index
    %18 = vector.load %arg2[%16, %17, %c1, %c0_9] : memref<2x28x28x3xf32, #tpu.memory_space<vmem>>, vector<1x1x26x3xf32>
    %19 = vector.shape_cast %18 : vector<1x1x26x3xf32> to vector<26x3xf32>
    %c1_10 = arith.constant 1 : index
    %c0_11 = arith.constant 0 : index
    %c0_12 = arith.constant 0 : index
    %20 = vector.load %arg3[%c1_10, %c0_11, %c0_12] : memref<9x3x64xf32, #tpu.memory_space<vmem>>, vector<1x3x64xf32>
    %21 = vector.shape_cast %20 : vector<1x3x64xf32> to vector<3x64xf32>
    %cst_13 = arith.constant dense<0.000000e+00> : vector<26x64xf32>
    %22 = tpu.matmul %19, %21, %cst_13 {dimension_numbers = #tpu.dot_dimension_numbers<[1], [0], [0], [1], [0, 0, 1, 1], [], []>} : vector<26x3xf32>, vector<3x64xf32>, vector<26x64xf32> -> vector<26x64xf32>
    %23 = arith.addf %14, %22 : vector<26x64xf32>
    %c0_i32_14 = arith.constant 0 : i32
    %24 = arith.addi %arg1, %c0_i32_14 : i32
    %25 = arith.index_cast %arg0 : i32 to index
    %26 = arith.index_cast %24 : i32 to index
    %c2 = arith.constant 2 : index
    %c0_15 = arith.constant 0 : index
    %27 = vector.load %arg2[%25, %26, %c2, %c0_15] : memref<2x28x28x3xf32, #tpu.memory_space<vmem>>, vector<1x1x26x3xf32>
    %28 = vector.shape_cast %27 : vector<1x1x26x3xf32> to vector<26x3xf32>
    %c2_16 = arith.constant 2 : index
    %c0_17 = arith.constant 0 : index
    %c0_18 = arith.constant 0 : index
    %29 = vector.load %arg3[%c2_16, %c0_17, %c0_18] : memref<9x3x64xf32, #tpu.memory_space<vmem>>, vector<1x3x64xf32>
    %30 = vector.shape_cast %29 : vector<1x3x64xf32> to vector<3x64xf32>
    %cst_19 = arith.constant dense<0.000000e+00> : vector<26x64xf32>
    %31 = tpu.matmul %28, %30, %cst_19 {dimension_numbers = #tpu.dot_dimension_numbers<[1], [0], [0], [1], [0, 0, 1, 1], [], []>} : vector<26x3xf32>, vector<3x64xf32>, vector<26x64xf32> -> vector<26x64xf32>
    %32 = arith.addf %23, %31 : vector<26x64xf32>
    %c1_i32 = arith.constant 1 : i32
    %33 = arith.addi %arg1, %c1_i32 : i32
    %34 = arith.index_cast %arg0 : i32 to index
    %35 = arith.index_cast %33 : i32 to index
    %c0_20 = arith.constant 0 : index
    %c0_21 = arith.constant 0 : index
    %36 = vector.load %arg2[%34, %35, %c0_20, %c0_21] : memref<2x28x28x3xf32, #tpu.memory_space<vmem>>, vector<1x1x26x3xf32>
    %37 = vector.shape_cast %36 : vector<1x1x26x3xf32> to vector<26x3xf32>
    %c3 = arith.constant 3 : index
    %c0_22 = arith.constant 0 : index
    %c0_23 = arith.constant 0 : index
    %38 = vector.load %arg3[%c3, %c0_22, %c0_23] : memref<9x3x64xf32, #tpu.memory_space<vmem>>, vector<1x3x64xf32>
    %39 = vector.shape_cast %38 : vector<1x3x64xf32> to vector<3x64xf32>
    %cst_24 = arith.constant dense<0.000000e+00> : vector<26x64xf32>
    %40 = tpu.matmul %37, %39, %cst_24 {dimension_numbers = #tpu.dot_dimension_numbers<[1], [0], [0], [1], [0, 0, 1, 1], [], []>} : vector<26x3xf32>, vector<3x64xf32>, vector<26x64xf32> -> vector<26x64xf32>
    %41 = arith.addf %32, %40 : vector<26x64xf32>
    %c1_i32_25 = arith.constant 1 : i32
    %42 = arith.addi %arg1, %c1_i32_25 : i32
    %43 = arith.index_cast %arg0 : i32 to index
    %44 = arith.index_cast %42 : i32 to index
    %c1_26 = arith.constant 1 : index
    %c0_27 = arith.constant 0 : index
    %45 = vector.load %arg2[%43, %44, %c1_26, %c0_27] : memref<2x28x28x3xf32, #tpu.memory_space<vmem>>, vector<1x1x26x3xf32>
    %46 = vector.shape_cast %45 : vector<1x1x26x3xf32> to vector<26x3xf32>
    %c4 = arith.constant 4 : index
    %c0_28 = arith.constant 0 : index
    %c0_29 = arith.constant 0 : index
    %47 = vector.load %arg3[%c4, %c0_28, %c0_29] : memref<9x3x64xf32, #tpu.memory_space<vmem>>, vector<1x3x64xf32>
    %48 = vector.shape_cast %47 : vector<1x3x64xf32> to vector<3x64xf32>
    %cst_30 = arith.constant dense<0.000000e+00> : vector<26x64xf32>
    %49 = tpu.matmul %46, %48, %cst_30 {dimension_numbers = #tpu.dot_dimension_numbers<[1], [0], [0], [1], [0, 0, 1, 1], [], []>} : vector<26x3xf32>, vector<3x64xf32>, vector<26x64xf32> -> vector<26x64xf32>
    %50 = arith.addf %41, %49 : vector<26x64xf32>
    %c1_i32_31 = arith.constant 1 : i32
    %51 = arith.addi %arg1, %c1_i32_31 : i32
    %52 = arith.index_cast %arg0 : i32 to index
    %53 = arith.index_cast %51 : i32 to index
    %c2_32 = arith.constant 2 : index
    %c0_33 = arith.constant 0 : index
    %54 = vector.load %arg2[%52, %53, %c2_32, %c0_33] : memref<2x28x28x3xf32, #tpu.memory_space<vmem>>, vector<1x1x26x3xf32>
    %55 = vector.shape_cast %54 : vector<1x1x26x3xf32> to vector<26x3xf32>
    %c5 = arith.constant 5 : index
    %c0_34 = arith.constant 0 : index
    %c0_35 = arith.constant 0 : index
    %56 = vector.load %arg3[%c5, %c0_34, %c0_35] : memref<9x3x64xf32, #tpu.memory_space<vmem>>, vector<1x3x64xf32>
    %57 = vector.shape_cast %56 : vector<1x3x64xf32> to vector<3x64xf32>
    %cst_36 = arith.constant dense<0.000000e+00> : vector<26x64xf32>
    %58 = tpu.matmul %55, %57, %cst_36 {dimension_numbers = #tpu.dot_dimension_numbers<[1], [0], [0], [1], [0, 0, 1, 1], [], []>} : vector<26x3xf32>, vector<3x64xf32>, vector<26x64xf32> -> vector<26x64xf32>
    %59 = arith.addf %50, %58 : vector<26x64xf32>
    %c2_i32 = arith.constant 2 : i32
    %60 = arith.addi %arg1, %c2_i32 : i32
    %61 = arith.index_cast %arg0 : i32 to index
    %62 = arith.index_cast %60 : i32 to index
    %c0_37 = arith.constant 0 : index
    %c0_38 = arith.constant 0 : index
    %63 = vector.load %arg2[%61, %62, %c0_37, %c0_38] : memref<2x28x28x3xf32, #tpu.memory_space<vmem>>, vector<1x1x26x3xf32>
    %64 = vector.shape_cast %63 : vector<1x1x26x3xf32> to vector<26x3xf32>
    %c6 = arith.constant 6 : index
    %c0_39 = arith.constant 0 : index
    %c0_40 = arith.constant 0 : index
    %65 = vector.load %arg3[%c6, %c0_39, %c0_40] : memref<9x3x64xf32, #tpu.memory_space<vmem>>, vector<1x3x64xf32>
    %66 = vector.shape_cast %65 : vector<1x3x64xf32> to vector<3x64xf32>
    %cst_41 = arith.constant dense<0.000000e+00> : vector<26x64xf32>
    %67 = tpu.matmul %64, %66, %cst_41 {dimension_numbers = #tpu.dot_dimension_numbers<[1], [0], [0], [1], [0, 0, 1, 1], [], []>} : vector<26x3xf32>, vector<3x64xf32>, vector<26x64xf32> -> vector<26x64xf32>
    %68 = arith.addf %59, %67 : vector<26x64xf32>
    %c2_i32_42 = arith.constant 2 : i32
    %69 = arith.addi %arg1, %c2_i32_42 : i32
    %70 = arith.index_cast %arg0 : i32 to index
    %71 = arith.index_cast %69 : i32 to index
    %c1_43 = arith.constant 1 : index
    %c0_44 = arith.constant 0 : index
    %72 = vector.load %arg2[%70, %71, %c1_43, %c0_44] : memref<2x28x28x3xf32, #tpu.memory_space<vmem>>, vector<1x1x26x3xf32>
    %73 = vector.shape_cast %72 : vector<1x1x26x3xf32> to vector<26x3xf32>
    %c7 = arith.constant 7 : index
    %c0_45 = arith.constant 0 : index
    %c0_46 = arith.constant 0 : index
    %74 = vector.load %arg3[%c7, %c0_45, %c0_46] : memref<9x3x64xf32, #tpu.memory_space<vmem>>, vector<1x3x64xf32>
    %75 = vector.shape_cast %74 : vector<1x3x64xf32> to vector<3x64xf32>
    %cst_47 = arith.constant dense<0.000000e+00> : vector<26x64xf32>
    %76 = tpu.matmul %73, %75, %cst_47 {dimension_numbers = #tpu.dot_dimension_numbers<[1], [0], [0], [1], [0, 0, 1, 1], [], []>} : vector<26x3xf32>, vector<3x64xf32>, vector<26x64xf32> -> vector<26x64xf32>
    %77 = arith.addf %68, %76 : vector<26x64xf32>
    %c2_i32_48 = arith.constant 2 : i32
    %78 = arith.addi %arg1, %c2_i32_48 : i32
    %79 = arith.index_cast %arg0 : i32 to index
    %80 = arith.index_cast %78 : i32 to index
    %c2_49 = arith.constant 2 : index
    %c0_50 = arith.constant 0 : index
    %81 = vector.load %arg2[%79, %80, %c2_49, %c0_50] : memref<2x28x28x3xf32, #tpu.memory_space<vmem>>, vector<1x1x26x3xf32>
    %82 = vector.shape_cast %81 : vector<1x1x26x3xf32> to vector<26x3xf32>
    %c8 = arith.constant 8 : index
    %c0_51 = arith.constant 0 : index
    %c0_52 = arith.constant 0 : index
    %83 = vector.load %arg3[%c8, %c0_51, %c0_52] : memref<9x3x64xf32, #tpu.memory_space<vmem>>, vector<1x3x64xf32>
    %84 = vector.shape_cast %83 : vector<1x3x64xf32> to vector<3x64xf32>
    %cst_53 = arith.constant dense<0.000000e+00> : vector<26x64xf32>
    %85 = tpu.matmul %82, %84, %cst_53 {dimension_numbers = #tpu.dot_dimension_numbers<[1], [0], [0], [1], [0, 0, 1, 1], [], []>} : vector<26x3xf32>, vector<3x64xf32>, vector<26x64xf32> -> vector<26x64xf32>
    %86 = arith.addf %77, %85 : vector<26x64xf32>
    %c0_54 = arith.constant 0 : index
    %c0_55 = arith.constant 0 : index
    %87 = vector.load %arg4[%c0_54, %c0_55] : memref<1x64xf32, #tpu.memory_space<vmem>>, vector<1x64xf32>
    %88 = vector.broadcast %87 : vector<1x64xf32> to vector<26x64xf32>
    %89 = arith.addf %86, %88 : vector<26x64xf32>
    %90 = arith.index_cast %arg0 : i32 to index
    %91 = arith.index_cast %arg1 : i32 to index
    %c0_56 = arith.constant 0 : index
    %c0_57 = arith.constant 0 : index
    %92 = vector.load %arg8[%90, %91, %c0_56, %c0_57] : memref<2x26x26x64xf32, #tpu.memory_space<vmem>>, vector<1x1x26x64xf32>
    %93 = vector.shape_cast %92 : vector<1x1x26x64xf32> to vector<26x64xf32>
    %94 = vector.shape_cast %89 : vector<26x64xf32> to vector<1x1x26x64xf32>
    tpu.vector_store %arg8[%90, %91, %c0_56, %c0_57], %94 {strides = array<i32>} : memref<2x26x26x64xf32, #tpu.memory_space<vmem>>, vector<1x1x26x64xf32>,
    %c0_58 = arith.constant 0 : index
    %c0_59 = arith.constant 0 : index
    %95 = vector.load %arg9[%c0_58, %c0_59] : memref<1x64xf32, #tpu.memory_space<vmem>>, vector<1x64xf32>
    %cst_60 = arith.constant dense<0.000000e+00> : vector<64xf32>
    %96 = vector.multi_reduction <add>, %89, %cst_60 [0] : vector<26x64xf32> to vector<64xf32>
    %97 = vector.shape_cast %96 : vector<64xf32> to vector<1x64xf32>
    %98 = arith.addf %95, %97 : vector<1x64xf32>
    %c0_61 = arith.constant 0 : index
    %c0_62 = arith.constant 0 : index
    %99 = vector.load %arg9[%c0_61, %c0_62] : memref<1x64xf32, #tpu.memory_space<vmem>>, vector<1x64xf32>
    tpu.vector_store %arg9[%c0_61, %c0_62], %98 {strides = array<i32>} : memref<1x64xf32, #tpu.memory_space<vmem>>, vector<1x64xf32>,
    %c0_63 = arith.constant 0 : index
    %c0_64 = arith.constant 0 : index
    %100 = vector.load %arg10[%c0_63, %c0_64] : memref<1x64xf32, #tpu.memory_space<vmem>>, vector<1x64xf32>
    %101 = arith.mulf %89, %89 : vector<26x64xf32>
    %cst_65 = arith.constant dense<0.000000e+00> : vector<64xf32>
    %102 = vector.multi_reduction <add>, %101, %cst_65 [0] : vector<26x64xf32> to vector<64xf32>
    %103 = vector.shape_cast %102 : vector<64xf32> to vector<1x64xf32>
    %104 = arith.addf %100, %103 : vector<1x64xf32>
    %c0_66 = arith.constant 0 : index
    %c0_67 = arith.constant 0 : index
    %105 = vector.load %arg10[%c0_66, %c0_67] : memref<1x64xf32, #tpu.memory_space<vmem>>, vector<1x64xf32>
    tpu.vector_store %arg10[%c0_66, %c0_67], %104 {strides = array<i32>} : memref<1x64xf32, #tpu.memory_space<vmem>>, vector<1x64xf32>,
    %c1_i32_68 = arith.constant 1 : i32
    %106 = arith.cmpi eq, %arg0, %c1_i32_68 : i32
    %c25_i32 = arith.constant 25 : i32
    %107 = arith.cmpi eq, %arg1, %c25_i32 : i32
    %108 = arith.andi %106, %107 : i1
    %109 = arith.extui %108 : i1 to i32
    %c0_i32_69 = arith.constant 0 : i32
    %110 = arith.cmpi ne, %109, %c0_i32_69 : i32
    scf.if %110 {
      %c0_70 = arith.constant 0 : index
      %c0_71 = arith.constant 0 : index
      %111 = vector.load %arg9[%c0_70, %c0_71] : memref<1x64xf32, #tpu.memory_space<vmem>>, vector<1x64xf32>
      %cst_72 = arith.constant 1.352000e+03 : f32
      %112 = vector.broadcast %cst_72 : f32 to vector<1x64xf32>
      %113 = arith.divf %111, %112 : vector<1x64xf32>
      %c0_73 = arith.constant 0 : index
      %c0_74 = arith.constant 0 : index
      %114 = vector.load %arg10[%c0_73, %c0_74] : memref<1x64xf32, #tpu.memory_space<vmem>>, vector<1x64xf32>
      %cst_75 = arith.constant 1.352000e+03 : f32
      %115 = vector.broadcast %cst_75 : f32 to vector<1x64xf32>
      %116 = arith.divf %114, %115 : vector<1x64xf32>
      %117 = arith.mulf %113, %113 : vector<1x64xf32>
      %118 = arith.subf %116, %117 : vector<1x64xf32>
      %c0_76 = arith.constant 0 : index
      %c0_77 = arith.constant 0 : index
      %119 = vector.load %arg5[%c0_76, %c0_77] : memref<1x64xf32, #tpu.memory_space<vmem>>, vector<1x64xf32>
      %cst_78 = arith.constant 9.99999974E-6 : f32
      %120 = vector.broadcast %cst_78 : f32 to vector<1x64xf32>
      %121 = arith.addf %118, %120 : vector<1x64xf32>
      %122 = math.rsqrt %121 : vector<1x64xf32>
      %123 = arith.mulf %119, %122 : vector<1x64xf32>
      %c0_79 = arith.constant 0 : index
      %c0_80 = arith.constant 0 : index
      %124 = vector.load %arg6[%c0_79, %c0_80] : memref<1x64xf32, #tpu.memory_space<vmem>>, vector<1x64xf32>
      %125 = arith.mulf %113, %123 : vector<1x64xf32>
      %126 = arith.subf %124, %125 : vector<1x64xf32>
      %127 = tpu.iota {dimensions = array<i32: 0>} : vector<13x26xi32>
      %128 = tpu.iota {dimensions = array<i32: 1>} : vector<13x26xi32>
      %c2_i32_81 = arith.constant 2 : i32
      %129 = vector.broadcast %c2_i32_81 : i32 to vector<13x26xi32>
      %130 = arith.muli %129, %127 : vector<13x26xi32>
      %131 = arith.cmpi eq, %128, %130 : vector<13x26xi32>
      %132 = arith.extui %131 : vector<13x26xi1> to vector<13x26xi32>
      %133 = arith.sitofp %132 : vector<13x26xi32> to vector<13x26xf32>
      %c2_i32_82 = arith.constant 2 : i32
      %134 = vector.broadcast %c2_i32_82 : i32 to vector<13x26xi32>
      %135 = arith.muli %134, %127 : vector<13x26xi32>
      %c1_i32_83 = arith.constant 1 : i32
      %136 = vector.broadcast %c1_i32_83 : i32 to vector<13x26xi32>
      %137 = arith.addi %135, %136 : vector<13x26xi32>
      %138 = arith.cmpi eq, %128, %137 : vector<13x26xi32>
      %139 = arith.extui %138 : vector<13x26xi1> to vector<13x26xi32>
      %140 = arith.sitofp %139 : vector<13x26xi32> to vector<13x26xf32>
      %c0_84 = arith.constant 0 : index
      %c0_85 = arith.constant 0 : index
      %c0_86 = arith.constant 0 : index
      %c0_87 = arith.constant 0 : index
      %141 = vector.load %arg8[%c0_84, %c0_85, %c0_86, %c0_87] : memref<2x26x26x64xf32, #tpu.memory_space<vmem>>, vector<1x1x26x64xf32>
      %142 = vector.shape_cast %141 : vector<1x1x26x64xf32> to vector<26x64xf32>
      %c0_88 = arith.constant 0 : index
      %c1_89 = arith.constant 1 : index
      %c0_90 = arith.constant 0 : index
      %c0_91 = arith.constant 0 : index
      %143 = vector.load %arg8[%c0_88, %c1_89, %c0_90, %c0_91] : memref<2x26x26x64xf32, #tpu.memory_space<vmem>>, vector<1x1x26x64xf32>
      %144 = vector.shape_cast %143 : vector<1x1x26x64xf32> to vector<26x64xf32>
      %145 = vector.broadcast %123 : vector<1x64xf32> to vector<26x64xf32>
      %146 = arith.mulf %142, %145 : vector<26x64xf32>
      %147 = vector.broadcast %126 : vector<1x64xf32> to vector<26x64xf32>
      %148 = arith.addf %146, %147 : vector<26x64xf32>
      %cst_92 = arith.constant 0.000000e+00 : f32
      %149 = vector.broadcast %cst_92 : f32 to vector<26x64xf32>
      %150 = arith.maximumf %148, %149 : vector<26x64xf32>
      %151 = vector.broadcast %123 : vector<1x64xf32> to vector<26x64xf32>
      %152 = arith.mulf %144, %151 : vector<26x64xf32>
      %153 = vector.broadcast %126 : vector<1x64xf32> to vector<26x64xf32>
      %154 = arith.addf %152, %153 : vector<26x64xf32>
      %cst_93 = arith.constant 0.000000e+00 : f32
      %155 = vector.broadcast %cst_93 : f32 to vector<26x64xf32>
      %156 = arith.maximumf %154, %155 : vector<26x64xf32>
      %157 = arith.maximumf %150, %156 : vector<26x64xf32>
      %cst_94 = arith.constant dense<0.000000e+00> : vector<13x64xf32>
      %158 = tpu.matmul %133, %157, %cst_94 {dimension_numbers = #tpu.dot_dimension_numbers<[1], [0], [0], [1], [0, 0, 1, 1], [], []>} : vector<13x26xf32>, vector<26x64xf32>, vector<13x64xf32> -> vector<13x64xf32>
      %cst_95 = arith.constant dense<0.000000e+00> : vector<13x64xf32>
      %159 = tpu.matmul %140, %157, %cst_95 {dimension_numbers = #tpu.dot_dimension_numbers<[1], [0], [0], [1], [0, 0, 1, 1], [], []>} : vector<13x26xf32>, vector<26x64xf32>, vector<13x64xf32> -> vector<13x64xf32>
      %160 = arith.maximumf %158, %159 : vector<13x64xf32>
      %c0_96 = arith.constant 0 : index
      %c0_97 = arith.constant 0 : index
      %c0_98 = arith.constant 0 : index
      %c0_99 = arith.constant 0 : index
      %161 = vector.load %arg7[%c0_96, %c0_97, %c0_98, %c0_99] : memref<2x13x13x64xf32, #tpu.memory_space<vmem>>, vector<1x1x13x64xf32>
      %162 = vector.shape_cast %161 : vector<1x1x13x64xf32> to vector<13x64xf32>
      %163 = vector.shape_cast %160 : vector<13x64xf32> to vector<1x1x13x64xf32>
      tpu.vector_store %arg7[%c0_96, %c0_97, %c0_98, %c0_99], %163 {strides = array<i32>} : memref<2x13x13x64xf32, #tpu.memory_space<vmem>>, vector<1x1x13x64xf32>,
      %c0_100 = arith.constant 0 : index
      %c2_101 = arith.constant 2 : index
      %c0_102 = arith.constant 0 : index
      %c0_103 = arith.constant 0 : index
      %164 = vector.load %arg8[%c0_100, %c2_101, %c0_102, %c0_103] : memref<2x26x26x64xf32, #tpu.memory_space<vmem>>, vector<1x1x26x64xf32>
      %165 = vector.shape_cast %164 : vector<1x1x26x64xf32> to vector<26x64xf32>
      %c0_104 = arith.constant 0 : index
      %c3_105 = arith.constant 3 : index
      %c0_106 = arith.constant 0 : index
      %c0_107 = arith.constant 0 : index
      %166 = vector.load %arg8[%c0_104, %c3_105, %c0_106, %c0_107] : memref<2x26x26x64xf32, #tpu.memory_space<vmem>>, vector<1x1x26x64xf32>
      %167 = vector.shape_cast %166 : vector<1x1x26x64xf32> to vector<26x64xf32>
      %168 = vector.broadcast %123 : vector<1x64xf32> to vector<26x64xf32>
      %169 = arith.mulf %165, %168 : vector<26x64xf32>
      %170 = vector.broadcast %126 : vector<1x64xf32> to vector<26x64xf32>
      %171 = arith.addf %169, %170 : vector<26x64xf32>
      %cst_108 = arith.constant 0.000000e+00 : f32
      %172 = vector.broadcast %cst_108 : f32 to vector<26x64xf32>
      %173 = arith.maximumf %171, %172 : vector<26x64xf32>
      %174 = vector.broadcast %123 : vector<1x64xf32> to vector<26x64xf32>
      %175 = arith.mulf %167, %174 : vector<26x64xf32>
      %176 = vector.broadcast %126 : vector<1x64xf32> to vector<26x64xf32>
      %177 = arith.addf %175, %176 : vector<26x64xf32>
      %cst_109 = arith.constant 0.000000e+00 : f32
      %178 = vector.broadcast %cst_109 : f32 to vector<26x64xf32>
      %179 = arith.maximumf %177, %178 : vector<26x64xf32>
      %180 = arith.maximumf %173, %179 : vector<26x64xf32>
      %cst_110 = arith.constant dense<0.000000e+00> : vector<13x64xf32>
      %181 = tpu.matmul %133, %180, %cst_110 {dimension_numbers = #tpu.dot_dimension_numbers<[1], [0], [0], [1], [0, 0, 1, 1], [], []>} : vector<13x26xf32>, vector<26x64xf32>, vector<13x64xf32> -> vector<13x64xf32>
      %cst_111 = arith.constant dense<0.000000e+00> : vector<13x64xf32>
      %182 = tpu.matmul %140, %180, %cst_111 {dimension_numbers = #tpu.dot_dimension_numbers<[1], [0], [0], [1], [0, 0, 1, 1], [], []>} : vector<13x26xf32>, vector<26x64xf32>, vector<13x64xf32> -> vector<13x64xf32>
      %183 = arith.maximumf %181, %182 : vector<13x64xf32>
      %c0_112 = arith.constant 0 : index
      %c1_113 = arith.constant 1 : index
      %c0_114 = arith.constant 0 : index
      %c0_115 = arith.constant 0 : index
      %184 = vector.load %arg7[%c0_112, %c1_113, %c0_114, %c0_115] : memref<2x13x13x64xf32, #tpu.memory_space<vmem>>, vector<1x1x13x64xf32>
      %185 = vector.shape_cast %184 : vector<1x1x13x64xf32> to vector<13x64xf32>
      %186 = vector.shape_cast %183 : vector<13x64xf32> to vector<1x1x13x64xf32>
      tpu.vector_store %arg7[%c0_112, %c1_113, %c0_114, %c0_115], %186 {strides = array<i32>} : memref<2x13x13x64xf32, #tpu.memory_space<vmem>>, vector<1x1x13x64xf32>,
      %c0_116 = arith.constant 0 : index
      %c4_117 = arith.constant 4 : index
      %c0_118 = arith.constant 0 : index
      %c0_119 = arith.constant 0 : index
      %187 = vector.load %arg8[%c0_116, %c4_117, %c0_118, %c0_119] : memref<2x26x26x64xf32, #tpu.memory_space<vmem>>, vector<1x1x26x64xf32>
      %188 = vector.shape_cast %187 : vector<1x1x26x64xf32> to vector<26x64xf32>
      %c0_120 = arith.constant 0 : index
      %c5_121 = arith.constant 5 : index
      %c0_122 = arith.constant 0 : index
      %c0_123 = arith.constant 0 : index
      %189 = vector.load %arg8[%c0_120, %c5_121, %c0_122, %c0_123] : memref<2x26x26x64xf32, #tpu.memory_space<vmem>>, vector<1x1x26x64xf32>
      %190 = vector.shape_cast %189 : vector<1x1x26x64xf32> to vector<26x64xf32>
      %191 = vector.broadcast %123 : vector<1x64xf32> to vector<26x64xf32>
      %192 = arith.mulf %188, %191 : vector<26x64xf32>
      %193 = vector.broadcast %126 : vector<1x64xf32> to vector<26x64xf32>
      %194 = arith.addf %192, %193 : vector<26x64xf32>
      %cst_124 = arith.constant 0.000000e+00 : f32
      %195 = vector.broadcast %cst_124 : f32 to vector<26x64xf32>
      %196 = arith.maximumf %194, %195 : vector<26x64xf32>
      %197 = vector.broadcast %123 : vector<1x64xf32> to vector<26x64xf32>
      %198 = arith.mulf %190, %197 : vector<26x64xf32>
      %199 = vector.broadcast %126 : vector<1x64xf32> to vector<26x64xf32>
      %200 = arith.addf %198, %199 : vector<26x64xf32>
      %cst_125 = arith.constant 0.000000e+00 : f32
      %201 = vector.broadcast %cst_125 : f32 to vector<26x64xf32>
      %202 = arith.maximumf %200, %201 : vector<26x64xf32>
      %203 = arith.maximumf %196, %202 : vector<26x64xf32>
      %cst_126 = arith.constant dense<0.000000e+00> : vector<13x64xf32>
      %204 = tpu.matmul %133, %203, %cst_126 {dimension_numbers = #tpu.dot_dimension_numbers<[1], [0], [0], [1], [0, 0, 1, 1], [], []>} : vector<13x26xf32>, vector<26x64xf32>, vector<13x64xf32> -> vector<13x64xf32>
      %cst_127 = arith.constant dense<0.000000e+00> : vector<13x64xf32>
      %205 = tpu.matmul %140, %203, %cst_127 {dimension_numbers = #tpu.dot_dimension_numbers<[1], [0], [0], [1], [0, 0, 1, 1], [], []>} : vector<13x26xf32>, vector<26x64xf32>, vector<13x64xf32> -> vector<13x64xf32>
      %206 = arith.maximumf %204, %205 : vector<13x64xf32>
      %c0_128 = arith.constant 0 : index
      %c2_129 = arith.constant 2 : index
      %c0_130 = arith.constant 0 : index
      %c0_131 = arith.constant 0 : index
      %207 = vector.load %arg7[%c0_128, %c2_129, %c0_130, %c0_131] : memref<2x13x13x64xf32, #tpu.memory_space<vmem>>, vector<1x1x13x64xf32>
      %208 = vector.shape_cast %207 : vector<1x1x13x64xf32> to vector<13x64xf32>
      %209 = vector.shape_cast %206 : vector<13x64xf32> to vector<1x1x13x64xf32>
      tpu.vector_store %arg7[%c0_128, %c2_129, %c0_130, %c0_131], %209 {strides = array<i32>} : memref<2x13x13x64xf32, #tpu.memory_space<vmem>>, vector<1x1x13x64xf32>,
      %c0_132 = arith.constant 0 : index
      %c6_133 = arith.constant 6 : index
      %c0_134 = arith.constant 0 : index
      %c0_135 = arith.constant 0 : index
      %210 = vector.load %arg8[%c0_132, %c6_133, %c0_134, %c0_135] : memref<2x26x26x64xf32, #tpu.memory_space<vmem>>, vector<1x1x26x64xf32>
      %211 = vector.shape_cast %210 : vector<1x1x26x64xf32> to vector<26x64xf32>
      %c0_136 = arith.constant 0 : index
      %c7_137 = arith.constant 7 : index
      %c0_138 = arith.constant 0 : index
      %c0_139 = arith.constant 0 : index
      %212 = vector.load %arg8[%c0_136, %c7_137, %c0_138, %c0_139] : memref<2x26x26x64xf32, #tpu.memory_space<vmem>>, vector<1x1x26x64xf32>
      %213 = vector.shape_cast %212 : vector<1x1x26x64xf32> to vector<26x64xf32>
      %214 = vector.broadcast %123 : vector<1x64xf32> to vector<26x64xf32>
      %215 = arith.mulf %211, %214 : vector<26x64xf32>
      %216 = vector.broadcast %126 : vector<1x64xf32> to vector<26x64xf32>
      %217 = arith.addf %215, %216 : vector<26x64xf32>
      %cst_140 = arith.constant 0.000000e+00 : f32
      %218 = vector.broadcast %cst_140 : f32 to vector<26x64xf32>
      %219 = arith.maximumf %217, %218 : vector<26x64xf32>
      %220 = vector.broadcast %123 : vector<1x64xf32> to vector<26x64xf32>
      %221 = arith.mulf %213, %220 : vector<26x64xf32>
      %222 = vector.broadcast %126 : vector<1x64xf32> to vector<26x64xf32>
      %223 = arith.addf %221, %222 : vector<26x64xf32>
      %cst_141 = arith.constant 0.000000e+00 : f32
      %224 = vector.broadcast %cst_141 : f32 to vector<26x64xf32>
      %225 = arith.maximumf %223, %224 : vector<26x64xf32>
      %226 = arith.maximumf %219, %225 : vector<26x64xf32>
      %cst_142 = arith.constant dense<0.000000e+00> : vector<13x64xf32>
      %227 = tpu.matmul %133, %226, %cst_142 {dimension_numbers = #tpu.dot_dimension_numbers<[1], [0], [0], [1], [0, 0, 1, 1], [], []>} : vector<13x26xf32>, vector<26x64xf32>, vector<13x64xf32> -> vector<13x64xf32>
      %cst_143 = arith.constant dense<0.000000e+00> : vector<13x64xf32>
      %228 = tpu.matmul %140, %226, %cst_143 {dimension_numbers = #tpu.dot_dimension_numbers<[1], [0], [0], [1], [0, 0, 1, 1], [], []>} : vector<13x26xf32>, vector<26x64xf32>, vector<13x64xf32> -> vector<13x64xf32>
      %229 = arith.maximumf %227, %228 : vector<13x64xf32>
      %c0_144 = arith.constant 0 : index
      %c3_145 = arith.constant 3 : index
      %c0_146 = arith.constant 0 : index
      %c0_147 = arith.constant 0 : index
      %230 = vector.load %arg7[%c0_144, %c3_145, %c0_146, %c0_147] : memref<2x13x13x64xf32, #tpu.memory_space<vmem>>, vector<1x1x13x64xf32>
      %231 = vector.shape_cast %230 : vector<1x1x13x64xf32> to vector<13x64xf32>
      %232 = vector.shape_cast %229 : vector<13x64xf32> to vector<1x1x13x64xf32>
      tpu.vector_store %arg7[%c0_144, %c3_145, %c0_146, %c0_147], %232 {strides = array<i32>} : memref<2x13x13x64xf32, #tpu.memory_space<vmem>>, vector<1x1x13x64xf32>,
      %c0_148 = arith.constant 0 : index
      %c8_149 = arith.constant 8 : index
      %c0_150 = arith.constant 0 : index
      %c0_151 = arith.constant 0 : index
      %233 = vector.load %arg8[%c0_148, %c8_149, %c0_150, %c0_151] : memref<2x26x26x64xf32, #tpu.memory_space<vmem>>, vector<1x1x26x64xf32>
      %234 = vector.shape_cast %233 : vector<1x1x26x64xf32> to vector<26x64xf32>
      %c0_152 = arith.constant 0 : index
      %c9 = arith.constant 9 : index
      %c0_153 = arith.constant 0 : index
      %c0_154 = arith.constant 0 : index
      %235 = vector.load %arg8[%c0_152, %c9, %c0_153, %c0_154] : memref<2x26x26x64xf32, #tpu.memory_space<vmem>>, vector<1x1x26x64xf32>
      %236 = vector.shape_cast %235 : vector<1x1x26x64xf32> to vector<26x64xf32>
      %237 = vector.broadcast %123 : vector<1x64xf32> to vector<26x64xf32>
      %238 = arith.mulf %234, %237 : vector<26x64xf32>
      %239 = vector.broadcast %126 : vector<1x64xf32> to vector<26x64xf32>
      %240 = arith.addf %238, %239 : vector<26x64xf32>
      %cst_155 = arith.constant 0.000000e+00 : f32
      %241 = vector.broadcast %cst_155 : f32 to vector<26x64xf32>
      %242 = arith.maximumf %240, %241 : vector<26x64xf32>
      %243 = vector.broadcast %123 : vector<1x64xf32> to vector<26x64xf32>
      %244 = arith.mulf %236, %243 : vector<26x64xf32>
      %245 = vector.broadcast %126 : vector<1x64xf32> to vector<26x64xf32>
      %246 = arith.addf %244, %245 : vector<26x64xf32>
      %cst_156 = arith.constant 0.000000e+00 : f32
      %247 = vector.broadcast %cst_156 : f32 to vector<26x64xf32>
      %248 = arith.maximumf %246, %247 : vector<26x64xf32>
      %249 = arith.maximumf %242, %248 : vector<26x64xf32>
      %cst_157 = arith.constant dense<0.000000e+00> : vector<13x64xf32>
      %250 = tpu.matmul %133, %249, %cst_157 {dimension_numbers = #tpu.dot_dimension_numbers<[1], [0], [0], [1], [0, 0, 1, 1], [], []>} : vector<13x26xf32>, vector<26x64xf32>, vector<13x64xf32> -> vector<13x64xf32>
      %cst_158 = arith.constant dense<0.000000e+00> : vector<13x64xf32>
      %251 = tpu.matmul %140, %249, %cst_158 {dimension_numbers = #tpu.dot_dimension_numbers<[1], [0], [0], [1], [0, 0, 1, 1], [], []>} : vector<13x26xf32>, vector<26x64xf32>, vector<13x64xf32> -> vector<13x64xf32>
      %252 = arith.maximumf %250, %251 : vector<13x64xf32>
      %c0_159 = arith.constant 0 : index
      %c4_160 = arith.constant 4 : index
      %c0_161 = arith.constant 0 : index
      %c0_162 = arith.constant 0 : index
      %253 = vector.load %arg7[%c0_159, %c4_160, %c0_161, %c0_162] : memref<2x13x13x64xf32, #tpu.memory_space<vmem>>, vector<1x1x13x64xf32>
      %254 = vector.shape_cast %253 : vector<1x1x13x64xf32> to vector<13x64xf32>
      %255 = vector.shape_cast %252 : vector<13x64xf32> to vector<1x1x13x64xf32>
      tpu.vector_store %arg7[%c0_159, %c4_160, %c0_161, %c0_162], %255 {strides = array<i32>} : memref<2x13x13x64xf32, #tpu.memory_space<vmem>>, vector<1x1x13x64xf32>,
      %c0_163 = arith.constant 0 : index
      %c10 = arith.constant 10 : index
      %c0_164 = arith.constant 0 : index
      %c0_165 = arith.constant 0 : index
      %256 = vector.load %arg8[%c0_163, %c10, %c0_164, %c0_165] : memref<2x26x26x64xf32, #tpu.memory_space<vmem>>, vector<1x1x26x64xf32>
      %257 = vector.shape_cast %256 : vector<1x1x26x64xf32> to vector<26x64xf32>
      %c0_166 = arith.constant 0 : index
      %c11 = arith.constant 11 : index
      %c0_167 = arith.constant 0 : index
      %c0_168 = arith.constant 0 : index
      %258 = vector.load %arg8[%c0_166, %c11, %c0_167, %c0_168] : memref<2x26x26x64xf32, #tpu.memory_space<vmem>>, vector<1x1x26x64xf32>
      %259 = vector.shape_cast %258 : vector<1x1x26x64xf32> to vector<26x64xf32>
      %260 = vector.broadcast %123 : vector<1x64xf32> to vector<26x64xf32>
      %261 = arith.mulf %257, %260 : vector<26x64xf32>
      %262 = vector.broadcast %126 : vector<1x64xf32> to vector<26x64xf32>
      %263 = arith.addf %261, %262 : vector<26x64xf32>
      %cst_169 = arith.constant 0.000000e+00 : f32
      %264 = vector.broadcast %cst_169 : f32 to vector<26x64xf32>
      %265 = arith.maximumf %263, %264 : vector<26x64xf32>
      %266 = vector.broadcast %123 : vector<1x64xf32> to vector<26x64xf32>
      %267 = arith.mulf %259, %266 : vector<26x64xf32>
      %268 = vector.broadcast %126 : vector<1x64xf32> to vector<26x64xf32>
      %269 = arith.addf %267, %268 : vector<26x64xf32>
      %cst_170 = arith.constant 0.000000e+00 : f32
      %270 = vector.broadcast %cst_170 : f32 to vector<26x64xf32>
      %271 = arith.maximumf %269, %270 : vector<26x64xf32>
      %272 = arith.maximumf %265, %271 : vector<26x64xf32>
      %cst_171 = arith.constant dense<0.000000e+00> : vector<13x64xf32>
      %273 = tpu.matmul %133, %272, %cst_171 {dimension_numbers = #tpu.dot_dimension_numbers<[1], [0], [0], [1], [0, 0, 1, 1], [], []>} : vector<13x26xf32>, vector<26x64xf32>, vector<13x64xf32> -> vector<13x64xf32>
      %cst_172 = arith.constant dense<0.000000e+00> : vector<13x64xf32>
      %274 = tpu.matmul %140, %272, %cst_172 {dimension_numbers = #tpu.dot_dimension_numbers<[1], [0], [0], [1], [0, 0, 1, 1], [], []>} : vector<13x26xf32>, vector<26x64xf32>, vector<13x64xf32> -> vector<13x64xf32>
      %275 = arith.maximumf %273, %274 : vector<13x64xf32>
      %c0_173 = arith.constant 0 : index
      %c5_174 = arith.constant 5 : index
      %c0_175 = arith.constant 0 : index
      %c0_176 = arith.constant 0 : index
      %276 = vector.load %arg7[%c0_173, %c5_174, %c0_175, %c0_176] : memref<2x13x13x64xf32, #tpu.memory_space<vmem>>, vector<1x1x13x64xf32>
      %277 = vector.shape_cast %276 : vector<1x1x13x64xf32> to vector<13x64xf32>
      %278 = vector.shape_cast %275 : vector<13x64xf32> to vector<1x1x13x64xf32>
      tpu.vector_store %arg7[%c0_173, %c5_174, %c0_175, %c0_176], %278 {strides = array<i32>} : memref<2x13x13x64xf32, #tpu.memory_space<vmem>>, vector<1x1x13x64xf32>,
      %c0_177 = arith.constant 0 : index
      %c12 = arith.constant 12 : index
      %c0_178 = arith.constant 0 : index
      %c0_179 = arith.constant 0 : index
      %279 = vector.load %arg8[%c0_177, %c12, %c0_178, %c0_179] : memref<2x26x26x64xf32, #tpu.memory_space<vmem>>, vector<1x1x26x64xf32>
      %280 = vector.shape_cast %279 : vector<1x1x26x64xf32> to vector<26x64xf32>
      %c0_180 = arith.constant 0 : index
      %c13 = arith.constant 13 : index
      %c0_181 = arith.constant 0 : index
      %c0_182 = arith.constant 0 : index
      %281 = vector.load %arg8[%c0_180, %c13, %c0_181, %c0_182] : memref<2x26x26x64xf32, #tpu.memory_space<vmem>>, vector<1x1x26x64xf32>
      %282 = vector.shape_cast %281 : vector<1x1x26x64xf32> to vector<26x64xf32>
      %283 = vector.broadcast %123 : vector<1x64xf32> to vector<26x64xf32>
      %284 = arith.mulf %280, %283 : vector<26x64xf32>
      %285 = vector.broadcast %126 : vector<1x64xf32> to vector<26x64xf32>
      %286 = arith.addf %284, %285 : vector<26x64xf32>
      %cst_183 = arith.constant 0.000000e+00 : f32
      %287 = vector.broadcast %cst_183 : f32 to vector<26x64xf32>
      %288 = arith.maximumf %286, %287 : vector<26x64xf32>
      %289 = vector.broadcast %123 : vector<1x64xf32> to vector<26x64xf32>
      %290 = arith.mulf %282, %289 : vector<26x64xf32>
      %291 = vector.broadcast %126 : vector<1x64xf32> to vector<26x64xf32>
      %292 = arith.addf %290, %291 : vector<26x64xf32>
      %cst_184 = arith.constant 0.000000e+00 : f32
      %293 = vector.broadcast %cst_184 : f32 to vector<26x64xf32>
      %294 = arith.maximumf %292, %293 : vector<26x64xf32>
      %295 = arith.maximumf %288, %294 : vector<26x64xf32>
      %cst_185 = arith.constant dense<0.000000e+00> : vector<13x64xf32>
      %296 = tpu.matmul %133, %295, %cst_185 {dimension_numbers = #tpu.dot_dimension_numbers<[1], [0], [0], [1], [0, 0, 1, 1], [], []>} : vector<13x26xf32>, vector<26x64xf32>, vector<13x64xf32> -> vector<13x64xf32>
      %cst_186 = arith.constant dense<0.000000e+00> : vector<13x64xf32>
      %297 = tpu.matmul %140, %295, %cst_186 {dimension_numbers = #tpu.dot_dimension_numbers<[1], [0], [0], [1], [0, 0, 1, 1], [], []>} : vector<13x26xf32>, vector<26x64xf32>, vector<13x64xf32> -> vector<13x64xf32>
      %298 = arith.maximumf %296, %297 : vector<13x64xf32>
      %c0_187 = arith.constant 0 : index
      %c6_188 = arith.constant 6 : index
      %c0_189 = arith.constant 0 : index
      %c0_190 = arith.constant 0 : index
      %299 = vector.load %arg7[%c0_187, %c6_188, %c0_189, %c0_190] : memref<2x13x13x64xf32, #tpu.memory_space<vmem>>, vector<1x1x13x64xf32>
      %300 = vector.shape_cast %299 : vector<1x1x13x64xf32> to vector<13x64xf32>
      %301 = vector.shape_cast %298 : vector<13x64xf32> to vector<1x1x13x64xf32>
      tpu.vector_store %arg7[%c0_187, %c6_188, %c0_189, %c0_190], %301 {strides = array<i32>} : memref<2x13x13x64xf32, #tpu.memory_space<vmem>>, vector<1x1x13x64xf32>,
      %c0_191 = arith.constant 0 : index
      %c14 = arith.constant 14 : index
      %c0_192 = arith.constant 0 : index
      %c0_193 = arith.constant 0 : index
      %302 = vector.load %arg8[%c0_191, %c14, %c0_192, %c0_193] : memref<2x26x26x64xf32, #tpu.memory_space<vmem>>, vector<1x1x26x64xf32>
      %303 = vector.shape_cast %302 : vector<1x1x26x64xf32> to vector<26x64xf32>
      %c0_194 = arith.constant 0 : index
      %c15 = arith.constant 15 : index
      %c0_195 = arith.constant 0 : index
      %c0_196 = arith.constant 0 : index
      %304 = vector.load %arg8[%c0_194, %c15, %c0_195, %c0_196] : memref<2x26x26x64xf32, #tpu.memory_space<vmem>>, vector<1x1x26x64xf32>
      %305 = vector.shape_cast %304 : vector<1x1x26x64xf32> to vector<26x64xf32>
      %306 = vector.broadcast %123 : vector<1x64xf32> to vector<26x64xf32>
      %307 = arith.mulf %303, %306 : vector<26x64xf32>
      %308 = vector.broadcast %126 : vector<1x64xf32> to vector<26x64xf32>
      %309 = arith.addf %307, %308 : vector<26x64xf32>
      %cst_197 = arith.constant 0.000000e+00 : f32
      %310 = vector.broadcast %cst_197 : f32 to vector<26x64xf32>
      %311 = arith.maximumf %309, %310 : vector<26x64xf32>
      %312 = vector.broadcast %123 : vector<1x64xf32> to vector<26x64xf32>
      %313 = arith.mulf %305, %312 : vector<26x64xf32>
      %314 = vector.broadcast %126 : vector<1x64xf32> to vector<26x64xf32>
      %315 = arith.addf %313, %314 : vector<26x64xf32>
      %cst_198 = arith.constant 0.000000e+00 : f32
      %316 = vector.broadcast %cst_198 : f32 to vector<26x64xf32>
      %317 = arith.maximumf %315, %316 : vector<26x64xf32>
      %318 = arith.maximumf %311, %317 : vector<26x64xf32>
      %cst_199 = arith.constant dense<0.000000e+00> : vector<13x64xf32>
      %319 = tpu.matmul %133, %318, %cst_199 {dimension_numbers = #tpu.dot_dimension_numbers<[1], [0], [0], [1], [0, 0, 1, 1], [], []>} : vector<13x26xf32>, vector<26x64xf32>, vector<13x64xf32> -> vector<13x64xf32>
      %cst_200 = arith.constant dense<0.000000e+00> : vector<13x64xf32>
      %320 = tpu.matmul %140, %318, %cst_200 {dimension_numbers = #tpu.dot_dimension_numbers<[1], [0], [0], [1], [0, 0, 1, 1], [], []>} : vector<13x26xf32>, vector<26x64xf32>, vector<13x64xf32> -> vector<13x64xf32>
      %321 = arith.maximumf %319, %320 : vector<13x64xf32>
      %c0_201 = arith.constant 0 : index
      %c7_202 = arith.constant 7 : index
      %c0_203 = arith.constant 0 : index
      %c0_204 = arith.constant 0 : index
      %322 = vector.load %arg7[%c0_201, %c7_202, %c0_203, %c0_204] : memref<2x13x13x64xf32, #tpu.memory_space<vmem>>, vector<1x1x13x64xf32>
      %323 = vector.shape_cast %322 : vector<1x1x13x64xf32> to vector<13x64xf32>
      %324 = vector.shape_cast %321 : vector<13x64xf32> to vector<1x1x13x64xf32>
      tpu.vector_store %arg7[%c0_201, %c7_202, %c0_203, %c0_204], %324 {strides = array<i32>} : memref<2x13x13x64xf32, #tpu.memory_space<vmem>>, vector<1x1x13x64xf32>,
      %c0_205 = arith.constant 0 : index
      %c16 = arith.constant 16 : index
      %c0_206 = arith.constant 0 : index
      %c0_207 = arith.constant 0 : index
      %325 = vector.load %arg8[%c0_205, %c16, %c0_206, %c0_207] : memref<2x26x26x64xf32, #tpu.memory_space<vmem>>, vector<1x1x26x64xf32>
      %326 = vector.shape_cast %325 : vector<1x1x26x64xf32> to vector<26x64xf32>
      %c0_208 = arith.constant 0 : index
      %c17 = arith.constant 17 : index
      %c0_209 = arith.constant 0 : index
      %c0_210 = arith.constant 0 : index
      %327 = vector.load %arg8[%c0_208, %c17, %c0_209, %c0_210] : memref<2x26x26x64xf32, #tpu.memory_space<vmem>>, vector<1x1x26x64xf32>
      %328 = vector.shape_cast %327 : vector<1x1x26x64xf32> to vector<26x64xf32>
      %329 = vector.broadcast %123 : vector<1x64xf32> to vector<26x64xf32>
      %330 = arith.mulf %326, %329 : vector<26x64xf32>
      %331 = vector.broadcast %126 : vector<1x64xf32> to vector<26x64xf32>
      %332 = arith.addf %330, %331 : vector<26x64xf32>
      %cst_211 = arith.constant 0.000000e+00 : f32
      %333 = vector.broadcast %cst_211 : f32 to vector<26x64xf32>
      %334 = arith.maximumf %332, %333 : vector<26x64xf32>
      %335 = vector.broadcast %123 : vector<1x64xf32> to vector<26x64xf32>
      %336 = arith.mulf %328, %335 : vector<26x64xf32>
      %337 = vector.broadcast %126 : vector<1x64xf32> to vector<26x64xf32>
      %338 = arith.addf %336, %337 : vector<26x64xf32>
      %cst_212 = arith.constant 0.000000e+00 : f32
      %339 = vector.broadcast %cst_212 : f32 to vector<26x64xf32>
      %340 = arith.maximumf %338, %339 : vector<26x64xf32>
      %341 = arith.maximumf %334, %340 : vector<26x64xf32>
      %cst_213 = arith.constant dense<0.000000e+00> : vector<13x64xf32>
      %342 = tpu.matmul %133, %341, %cst_213 {dimension_numbers = #tpu.dot_dimension_numbers<[1], [0], [0], [1], [0, 0, 1, 1], [], []>} : vector<13x26xf32>, vector<26x64xf32>, vector<13x64xf32> -> vector<13x64xf32>
      %cst_214 = arith.constant dense<0.000000e+00> : vector<13x64xf32>
      %343 = tpu.matmul %140, %341, %cst_214 {dimension_numbers = #tpu.dot_dimension_numbers<[1], [0], [0], [1], [0, 0, 1, 1], [], []>} : vector<13x26xf32>, vector<26x64xf32>, vector<13x64xf32> -> vector<13x64xf32>
      %344 = arith.maximumf %342, %343 : vector<13x64xf32>
      %c0_215 = arith.constant 0 : index
      %c8_216 = arith.constant 8 : index
      %c0_217 = arith.constant 0 : index
      %c0_218 = arith.constant 0 : index
      %345 = vector.load %arg7[%c0_215, %c8_216, %c0_217, %c0_218] : memref<2x13x13x64xf32, #tpu.memory_space<vmem>>, vector<1x1x13x64xf32>
      %346 = vector.shape_cast %345 : vector<1x1x13x64xf32> to vector<13x64xf32>
      %347 = vector.shape_cast %344 : vector<13x64xf32> to vector<1x1x13x64xf32>
      tpu.vector_store %arg7[%c0_215, %c8_216, %c0_217, %c0_218], %347 {strides = array<i32>} : memref<2x13x13x64xf32, #tpu.memory_space<vmem>>, vector<1x1x13x64xf32>,
      %c0_219 = arith.constant 0 : index
      %c18 = arith.constant 18 : index
      %c0_220 = arith.constant 0 : index
      %c0_221 = arith.constant 0 : index
      %348 = vector.load %arg8[%c0_219, %c18, %c0_220, %c0_221] : memref<2x26x26x64xf32, #tpu.memory_space<vmem>>, vector<1x1x26x64xf32>
      %349 = vector.shape_cast %348 : vector<1x1x26x64xf32> to vector<26x64xf32>
      %c0_222 = arith.constant 0 : index
      %c19 = arith.constant 19 : index
      %c0_223 = arith.constant 0 : index
      %c0_224 = arith.constant 0 : index
      %350 = vector.load %arg8[%c0_222, %c19, %c0_223, %c0_224] : memref<2x26x26x64xf32, #tpu.memory_space<vmem>>, vector<1x1x26x64xf32>
      %351 = vector.shape_cast %350 : vector<1x1x26x64xf32> to vector<26x64xf32>
      %352 = vector.broadcast %123 : vector<1x64xf32> to vector<26x64xf32>
      %353 = arith.mulf %349, %352 : vector<26x64xf32>
      %354 = vector.broadcast %126 : vector<1x64xf32> to vector<26x64xf32>
      %355 = arith.addf %353, %354 : vector<26x64xf32>
      %cst_225 = arith.constant 0.000000e+00 : f32
      %356 = vector.broadcast %cst_225 : f32 to vector<26x64xf32>
      %357 = arith.maximumf %355, %356 : vector<26x64xf32>
      %358 = vector.broadcast %123 : vector<1x64xf32> to vector<26x64xf32>
      %359 = arith.mulf %351, %358 : vector<26x64xf32>
      %360 = vector.broadcast %126 : vector<1x64xf32> to vector<26x64xf32>
      %361 = arith.addf %359, %360 : vector<26x64xf32>
      %cst_226 = arith.constant 0.000000e+00 : f32
      %362 = vector.broadcast %cst_226 : f32 to vector<26x64xf32>
      %363 = arith.maximumf %361, %362 : vector<26x64xf32>
      %364 = arith.maximumf %357, %363 : vector<26x64xf32>
      %cst_227 = arith.constant dense<0.000000e+00> : vector<13x64xf32>
      %365 = tpu.matmul %133, %364, %cst_227 {dimension_numbers = #tpu.dot_dimension_numbers<[1], [0], [0], [1], [0, 0, 1, 1], [], []>} : vector<13x26xf32>, vector<26x64xf32>, vector<13x64xf32> -> vector<13x64xf32>
      %cst_228 = arith.constant dense<0.000000e+00> : vector<13x64xf32>
      %366 = tpu.matmul %140, %364, %cst_228 {dimension_numbers = #tpu.dot_dimension_numbers<[1], [0], [0], [1], [0, 0, 1, 1], [], []>} : vector<13x26xf32>, vector<26x64xf32>, vector<13x64xf32> -> vector<13x64xf32>
      %367 = arith.maximumf %365, %366 : vector<13x64xf32>
      %c0_229 = arith.constant 0 : index
      %c9_230 = arith.constant 9 : index
      %c0_231 = arith.constant 0 : index
      %c0_232 = arith.constant 0 : index
      %368 = vector.load %arg7[%c0_229, %c9_230, %c0_231, %c0_232] : memref<2x13x13x64xf32, #tpu.memory_space<vmem>>, vector<1x1x13x64xf32>
      %369 = vector.shape_cast %368 : vector<1x1x13x64xf32> to vector<13x64xf32>
      %370 = vector.shape_cast %367 : vector<13x64xf32> to vector<1x1x13x64xf32>
      tpu.vector_store %arg7[%c0_229, %c9_230, %c0_231, %c0_232], %370 {strides = array<i32>} : memref<2x13x13x64xf32, #tpu.memory_space<vmem>>, vector<1x1x13x64xf32>,
      %c0_233 = arith.constant 0 : index
      %c20 = arith.constant 20 : index
      %c0_234 = arith.constant 0 : index
      %c0_235 = arith.constant 0 : index
      %371 = vector.load %arg8[%c0_233, %c20, %c0_234, %c0_235] : memref<2x26x26x64xf32, #tpu.memory_space<vmem>>, vector<1x1x26x64xf32>
      %372 = vector.shape_cast %371 : vector<1x1x26x64xf32> to vector<26x64xf32>
      %c0_236 = arith.constant 0 : index
      %c21 = arith.constant 21 : index
      %c0_237 = arith.constant 0 : index
      %c0_238 = arith.constant 0 : index
      %373 = vector.load %arg8[%c0_236, %c21, %c0_237, %c0_238] : memref<2x26x26x64xf32, #tpu.memory_space<vmem>>, vector<1x1x26x64xf32>
      %374 = vector.shape_cast %373 : vector<1x1x26x64xf32> to vector<26x64xf32>
      %375 = vector.broadcast %123 : vector<1x64xf32> to vector<26x64xf32>
      %376 = arith.mulf %372, %375 : vector<26x64xf32>
      %377 = vector.broadcast %126 : vector<1x64xf32> to vector<26x64xf32>
      %378 = arith.addf %376, %377 : vector<26x64xf32>
      %cst_239 = arith.constant 0.000000e+00 : f32
      %379 = vector.broadcast %cst_239 : f32 to vector<26x64xf32>
      %380 = arith.maximumf %378, %379 : vector<26x64xf32>
      %381 = vector.broadcast %123 : vector<1x64xf32> to vector<26x64xf32>
      %382 = arith.mulf %374, %381 : vector<26x64xf32>
      %383 = vector.broadcast %126 : vector<1x64xf32> to vector<26x64xf32>
      %384 = arith.addf %382, %383 : vector<26x64xf32>
      %cst_240 = arith.constant 0.000000e+00 : f32
      %385 = vector.broadcast %cst_240 : f32 to vector<26x64xf32>
      %386 = arith.maximumf %384, %385 : vector<26x64xf32>
      %387 = arith.maximumf %380, %386 : vector<26x64xf32>
      %cst_241 = arith.constant dense<0.000000e+00> : vector<13x64xf32>
      %388 = tpu.matmul %133, %387, %cst_241 {dimension_numbers = #tpu.dot_dimension_numbers<[1], [0], [0], [1], [0, 0, 1, 1], [], []>} : vector<13x26xf32>, vector<26x64xf32>, vector<13x64xf32> -> vector<13x64xf32>
      %cst_242 = arith.constant dense<0.000000e+00> : vector<13x64xf32>
      %389 = tpu.matmul %140, %387, %cst_242 {dimension_numbers = #tpu.dot_dimension_numbers<[1], [0], [0], [1], [0, 0, 1, 1], [], []>} : vector<13x26xf32>, vector<26x64xf32>, vector<13x64xf32> -> vector<13x64xf32>
      %390 = arith.maximumf %388, %389 : vector<13x64xf32>
      %c0_243 = arith.constant 0 : index
      %c10_244 = arith.constant 10 : index
      %c0_245 = arith.constant 0 : index
      %c0_246 = arith.constant 0 : index
      %391 = vector.load %arg7[%c0_243, %c10_244, %c0_245, %c0_246] : memref<2x13x13x64xf32, #tpu.memory_space<vmem>>, vector<1x1x13x64xf32>
      %392 = vector.shape_cast %391 : vector<1x1x13x64xf32> to vector<13x64xf32>
      %393 = vector.shape_cast %390 : vector<13x64xf32> to vector<1x1x13x64xf32>
      tpu.vector_store %arg7[%c0_243, %c10_244, %c0_245, %c0_246], %393 {strides = array<i32>} : memref<2x13x13x64xf32, #tpu.memory_space<vmem>>, vector<1x1x13x64xf32>,
      %c0_247 = arith.constant 0 : index
      %c22 = arith.constant 22 : index
      %c0_248 = arith.constant 0 : index
      %c0_249 = arith.constant 0 : index
      %394 = vector.load %arg8[%c0_247, %c22, %c0_248, %c0_249] : memref<2x26x26x64xf32, #tpu.memory_space<vmem>>, vector<1x1x26x64xf32>
      %395 = vector.shape_cast %394 : vector<1x1x26x64xf32> to vector<26x64xf32>
      %c0_250 = arith.constant 0 : index
      %c23 = arith.constant 23 : index
      %c0_251 = arith.constant 0 : index
      %c0_252 = arith.constant 0 : index
      %396 = vector.load %arg8[%c0_250, %c23, %c0_251, %c0_252] : memref<2x26x26x64xf32, #tpu.memory_space<vmem>>, vector<1x1x26x64xf32>
      %397 = vector.shape_cast %396 : vector<1x1x26x64xf32> to vector<26x64xf32>
      %398 = vector.broadcast %123 : vector<1x64xf32> to vector<26x64xf32>
      %399 = arith.mulf %395, %398 : vector<26x64xf32>
      %400 = vector.broadcast %126 : vector<1x64xf32> to vector<26x64xf32>
      %401 = arith.addf %399, %400 : vector<26x64xf32>
      %cst_253 = arith.constant 0.000000e+00 : f32
      %402 = vector.broadcast %cst_253 : f32 to vector<26x64xf32>
      %403 = arith.maximumf %401, %402 : vector<26x64xf32>
      %404 = vector.broadcast %123 : vector<1x64xf32> to vector<26x64xf32>
      %405 = arith.mulf %397, %404 : vector<26x64xf32>
      %406 = vector.broadcast %126 : vector<1x64xf32> to vector<26x64xf32>
      %407 = arith.addf %405, %406 : vector<26x64xf32>
      %cst_254 = arith.constant 0.000000e+00 : f32
      %408 = vector.broadcast %cst_254 : f32 to vector<26x64xf32>
      %409 = arith.maximumf %407, %408 : vector<26x64xf32>
      %410 = arith.maximumf %403, %409 : vector<26x64xf32>
      %cst_255 = arith.constant dense<0.000000e+00> : vector<13x64xf32>
      %411 = tpu.matmul %133, %410, %cst_255 {dimension_numbers = #tpu.dot_dimension_numbers<[1], [0], [0], [1], [0, 0, 1, 1], [], []>} : vector<13x26xf32>, vector<26x64xf32>, vector<13x64xf32> -> vector<13x64xf32>
      %cst_256 = arith.constant dense<0.000000e+00> : vector<13x64xf32>
      %412 = tpu.matmul %140, %410, %cst_256 {dimension_numbers = #tpu.dot_dimension_numbers<[1], [0], [0], [1], [0, 0, 1, 1], [], []>} : vector<13x26xf32>, vector<26x64xf32>, vector<13x64xf32> -> vector<13x64xf32>
      %413 = arith.maximumf %411, %412 : vector<13x64xf32>
      %c0_257 = arith.constant 0 : index
      %c11_258 = arith.constant 11 : index
      %c0_259 = arith.constant 0 : index
      %c0_260 = arith.constant 0 : index
      %414 = vector.load %arg7[%c0_257, %c11_258, %c0_259, %c0_260] : memref<2x13x13x64xf32, #tpu.memory_space<vmem>>, vector<1x1x13x64xf32>
      %415 = vector.shape_cast %414 : vector<1x1x13x64xf32> to vector<13x64xf32>
      %416 = vector.shape_cast %413 : vector<13x64xf32> to vector<1x1x13x64xf32>
      tpu.vector_store %arg7[%c0_257, %c11_258, %c0_259, %c0_260], %416 {strides = array<i32>} : memref<2x13x13x64xf32, #tpu.memory_space<vmem>>, vector<1x1x13x64xf32>,
      %c0_261 = arith.constant 0 : index
      %c24 = arith.constant 24 : index
      %c0_262 = arith.constant 0 : index
      %c0_263 = arith.constant 0 : index
      %417 = vector.load %arg8[%c0_261, %c24, %c0_262, %c0_263] : memref<2x26x26x64xf32, #tpu.memory_space<vmem>>, vector<1x1x26x64xf32>
      %418 = vector.shape_cast %417 : vector<1x1x26x64xf32> to vector<26x64xf32>
      %c0_264 = arith.constant 0 : index
      %c25 = arith.constant 25 : index
      %c0_265 = arith.constant 0 : index
      %c0_266 = arith.constant 0 : index
      %419 = vector.load %arg8[%c0_264, %c25, %c0_265, %c0_266] : memref<2x26x26x64xf32, #tpu.memory_space<vmem>>, vector<1x1x26x64xf32>
      %420 = vector.shape_cast %419 : vector<1x1x26x64xf32> to vector<26x64xf32>
      %421 = vector.broadcast %123 : vector<1x64xf32> to vector<26x64xf32>
      %422 = arith.mulf %418, %421 : vector<26x64xf32>
      %423 = vector.broadcast %126 : vector<1x64xf32> to vector<26x64xf32>
      %424 = arith.addf %422, %423 : vector<26x64xf32>
      %cst_267 = arith.constant 0.000000e+00 : f32
      %425 = vector.broadcast %cst_267 : f32 to vector<26x64xf32>
      %426 = arith.maximumf %424, %425 : vector<26x64xf32>
      %427 = vector.broadcast %123 : vector<1x64xf32> to vector<26x64xf32>
      %428 = arith.mulf %420, %427 : vector<26x64xf32>
      %429 = vector.broadcast %126 : vector<1x64xf32> to vector<26x64xf32>
      %430 = arith.addf %428, %429 : vector<26x64xf32>
      %cst_268 = arith.constant 0.000000e+00 : f32
      %431 = vector.broadcast %cst_268 : f32 to vector<26x64xf32>
      %432 = arith.maximumf %430, %431 : vector<26x64xf32>
      %433 = arith.maximumf %426, %432 : vector<26x64xf32>
      %cst_269 = arith.constant dense<0.000000e+00> : vector<13x64xf32>
      %434 = tpu.matmul %133, %433, %cst_269 {dimension_numbers = #tpu.dot_dimension_numbers<[1], [0], [0], [1], [0, 0, 1, 1], [], []>} : vector<13x26xf32>, vector<26x64xf32>, vector<13x64xf32> -> vector<13x64xf32>
      %cst_270 = arith.constant dense<0.000000e+00> : vector<13x64xf32>
      %435 = tpu.matmul %140, %433, %cst_270 {dimension_numbers = #tpu.dot_dimension_numbers<[1], [0], [0], [1], [0, 0, 1, 1], [], []>} : vector<13x26xf32>, vector<26x64xf32>, vector<13x64xf32> -> vector<13x64xf32>
      %436 = arith.maximumf %434, %435 : vector<13x64xf32>
      %c0_271 = arith.constant 0 : index
      %c12_272 = arith.constant 12 : index
      %c0_273 = arith.constant 0 : index
      %c0_274 = arith.constant 0 : index
      %437 = vector.load %arg7[%c0_271, %c12_272, %c0_273, %c0_274] : memref<2x13x13x64xf32, #tpu.memory_space<vmem>>, vector<1x1x13x64xf32>
      %438 = vector.shape_cast %437 : vector<1x1x13x64xf32> to vector<13x64xf32>
      %439 = vector.shape_cast %436 : vector<13x64xf32> to vector<1x1x13x64xf32>
      tpu.vector_store %arg7[%c0_271, %c12_272, %c0_273, %c0_274], %439 {strides = array<i32>} : memref<2x13x13x64xf32, #tpu.memory_space<vmem>>, vector<1x1x13x64xf32>,
      %c1_275 = arith.constant 1 : index
      %c0_276 = arith.constant 0 : index
      %c0_277 = arith.constant 0 : index
      %c0_278 = arith.constant 0 : index
      %440 = vector.load %arg8[%c1_275, %c0_276, %c0_277, %c0_278] : memref<2x26x26x64xf32, #tpu.memory_space<vmem>>, vector<1x1x26x64xf32>
      %441 = vector.shape_cast %440 : vector<1x1x26x64xf32> to vector<26x64xf32>
      %c1_279 = arith.constant 1 : index
      %c1_280 = arith.constant 1 : index
      %c0_281 = arith.constant 0 : index
      %c0_282 = arith.constant 0 : index
      %442 = vector.load %arg8[%c1_279, %c1_280, %c0_281, %c0_282] : memref<2x26x26x64xf32, #tpu.memory_space<vmem>>, vector<1x1x26x64xf32>
      %443 = vector.shape_cast %442 : vector<1x1x26x64xf32> to vector<26x64xf32>
      %444 = vector.broadcast %123 : vector<1x64xf32> to vector<26x64xf32>
      %445 = arith.mulf %441, %444 : vector<26x64xf32>
      %446 = vector.broadcast %126 : vector<1x64xf32> to vector<26x64xf32>
      %447 = arith.addf %445, %446 : vector<26x64xf32>
      %cst_283 = arith.constant 0.000000e+00 : f32
      %448 = vector.broadcast %cst_283 : f32 to vector<26x64xf32>
      %449 = arith.maximumf %447, %448 : vector<26x64xf32>
      %450 = vector.broadcast %123 : vector<1x64xf32> to vector<26x64xf32>
      %451 = arith.mulf %443, %450 : vector<26x64xf32>
      %452 = vector.broadcast %126 : vector<1x64xf32> to vector<26x64xf32>
      %453 = arith.addf %451, %452 : vector<26x64xf32>
      %cst_284 = arith.constant 0.000000e+00 : f32
      %454 = vector.broadcast %cst_284 : f32 to vector<26x64xf32>
      %455 = arith.maximumf %453, %454 : vector<26x64xf32>
      %456 = arith.maximumf %449, %455 : vector<26x64xf32>
      %cst_285 = arith.constant dense<0.000000e+00> : vector<13x64xf32>
      %457 = tpu.matmul %133, %456, %cst_285 {dimension_numbers = #tpu.dot_dimension_numbers<[1], [0], [0], [1], [0, 0, 1, 1], [], []>} : vector<13x26xf32>, vector<26x64xf32>, vector<13x64xf32> -> vector<13x64xf32>
      %cst_286 = arith.constant dense<0.000000e+00> : vector<13x64xf32>
      %458 = tpu.matmul %140, %456, %cst_286 {dimension_numbers = #tpu.dot_dimension_numbers<[1], [0], [0], [1], [0, 0, 1, 1], [], []>} : vector<13x26xf32>, vector<26x64xf32>, vector<13x64xf32> -> vector<13x64xf32>
      %459 = arith.maximumf %457, %458 : vector<13x64xf32>
      %c1_287 = arith.constant 1 : index
      %c0_288 = arith.constant 0 : index
      %c0_289 = arith.constant 0 : index
      %c0_290 = arith.constant 0 : index
      %460 = vector.load %arg7[%c1_287, %c0_288, %c0_289, %c0_290] : memref<2x13x13x64xf32, #tpu.memory_space<vmem>>, vector<1x1x13x64xf32>
      %461 = vector.shape_cast %460 : vector<1x1x13x64xf32> to vector<13x64xf32>
      %462 = vector.shape_cast %459 : vector<13x64xf32> to vector<1x1x13x64xf32>
      tpu.vector_store %arg7[%c1_287, %c0_288, %c0_289, %c0_290], %462 {strides = array<i32>} : memref<2x13x13x64xf32, #tpu.memory_space<vmem>>, vector<1x1x13x64xf32>,
      %c1_291 = arith.constant 1 : index
      %c2_292 = arith.constant 2 : index
      %c0_293 = arith.constant 0 : index
      %c0_294 = arith.constant 0 : index
      %463 = vector.load %arg8[%c1_291, %c2_292, %c0_293, %c0_294] : memref<2x26x26x64xf32, #tpu.memory_space<vmem>>, vector<1x1x26x64xf32>
      %464 = vector.shape_cast %463 : vector<1x1x26x64xf32> to vector<26x64xf32>
      %c1_295 = arith.constant 1 : index
      %c3_296 = arith.constant 3 : index
      %c0_297 = arith.constant 0 : index
      %c0_298 = arith.constant 0 : index
      %465 = vector.load %arg8[%c1_295, %c3_296, %c0_297, %c0_298] : memref<2x26x26x64xf32, #tpu.memory_space<vmem>>, vector<1x1x26x64xf32>
      %466 = vector.shape_cast %465 : vector<1x1x26x64xf32> to vector<26x64xf32>
      %467 = vector.broadcast %123 : vector<1x64xf32> to vector<26x64xf32>
      %468 = arith.mulf %464, %467 : vector<26x64xf32>
      %469 = vector.broadcast %126 : vector<1x64xf32> to vector<26x64xf32>
      %470 = arith.addf %468, %469 : vector<26x64xf32>
      %cst_299 = arith.constant 0.000000e+00 : f32
      %471 = vector.broadcast %cst_299 : f32 to vector<26x64xf32>
      %472 = arith.maximumf %470, %471 : vector<26x64xf32>
      %473 = vector.broadcast %123 : vector<1x64xf32> to vector<26x64xf32>
      %474 = arith.mulf %466, %473 : vector<26x64xf32>
      %475 = vector.broadcast %126 : vector<1x64xf32> to vector<26x64xf32>
      %476 = arith.addf %474, %475 : vector<26x64xf32>
      %cst_300 = arith.constant 0.000000e+00 : f32
      %477 = vector.broadcast %cst_300 : f32 to vector<26x64xf32>
      %478 = arith.maximumf %476, %477 : vector<26x64xf32>
      %479 = arith.maximumf %472, %478 : vector<26x64xf32>
      %cst_301 = arith.constant dense<0.000000e+00> : vector<13x64xf32>
      %480 = tpu.matmul %133, %479, %cst_301 {dimension_numbers = #tpu.dot_dimension_numbers<[1], [0], [0], [1], [0, 0, 1, 1], [], []>} : vector<13x26xf32>, vector<26x64xf32>, vector<13x64xf32> -> vector<13x64xf32>
      %cst_302 = arith.constant dense<0.000000e+00> : vector<13x64xf32>
      %481 = tpu.matmul %140, %479, %cst_302 {dimension_numbers = #tpu.dot_dimension_numbers<[1], [0], [0], [1], [0, 0, 1, 1], [], []>} : vector<13x26xf32>, vector<26x64xf32>, vector<13x64xf32> -> vector<13x64xf32>
      %482 = arith.maximumf %480, %481 : vector<13x64xf32>
      %c1_303 = arith.constant 1 : index
      %c1_304 = arith.constant 1 : index
      %c0_305 = arith.constant 0 : index
      %c0_306 = arith.constant 0 : index
      %483 = vector.load %arg7[%c1_303, %c1_304, %c0_305, %c0_306] : memref<2x13x13x64xf32, #tpu.memory_space<vmem>>, vector<1x1x13x64xf32>
      %484 = vector.shape_cast %483 : vector<1x1x13x64xf32> to vector<13x64xf32>
      %485 = vector.shape_cast %482 : vector<13x64xf32> to vector<1x1x13x64xf32>
      tpu.vector_store %arg7[%c1_303, %c1_304, %c0_305, %c0_306], %485 {strides = array<i32>} : memref<2x13x13x64xf32, #tpu.memory_space<vmem>>, vector<1x1x13x64xf32>,
      %c1_307 = arith.constant 1 : index
      %c4_308 = arith.constant 4 : index
      %c0_309 = arith.constant 0 : index
      %c0_310 = arith.constant 0 : index
      %486 = vector.load %arg8[%c1_307, %c4_308, %c0_309, %c0_310] : memref<2x26x26x64xf32, #tpu.memory_space<vmem>>, vector<1x1x26x64xf32>
      %487 = vector.shape_cast %486 : vector<1x1x26x64xf32> to vector<26x64xf32>
      %c1_311 = arith.constant 1 : index
      %c5_312 = arith.constant 5 : index
      %c0_313 = arith.constant 0 : index
      %c0_314 = arith.constant 0 : index
      %488 = vector.load %arg8[%c1_311, %c5_312, %c0_313, %c0_314] : memref<2x26x26x64xf32, #tpu.memory_space<vmem>>, vector<1x1x26x64xf32>
      %489 = vector.shape_cast %488 : vector<1x1x26x64xf32> to vector<26x64xf32>
      %490 = vector.broadcast %123 : vector<1x64xf32> to vector<26x64xf32>
      %491 = arith.mulf %487, %490 : vector<26x64xf32>
      %492 = vector.broadcast %126 : vector<1x64xf32> to vector<26x64xf32>
      %493 = arith.addf %491, %492 : vector<26x64xf32>
      %cst_315 = arith.constant 0.000000e+00 : f32
      %494 = vector.broadcast %cst_315 : f32 to vector<26x64xf32>
      %495 = arith.maximumf %493, %494 : vector<26x64xf32>
      %496 = vector.broadcast %123 : vector<1x64xf32> to vector<26x64xf32>
      %497 = arith.mulf %489, %496 : vector<26x64xf32>
      %498 = vector.broadcast %126 : vector<1x64xf32> to vector<26x64xf32>
      %499 = arith.addf %497, %498 : vector<26x64xf32>
      %cst_316 = arith.constant 0.000000e+00 : f32
      %500 = vector.broadcast %cst_316 : f32 to vector<26x64xf32>
      %501 = arith.maximumf %499, %500 : vector<26x64xf32>
      %502 = arith.maximumf %495, %501 : vector<26x64xf32>
      %cst_317 = arith.constant dense<0.000000e+00> : vector<13x64xf32>
      %503 = tpu.matmul %133, %502, %cst_317 {dimension_numbers = #tpu.dot_dimension_numbers<[1], [0], [0], [1], [0, 0, 1, 1], [], []>} : vector<13x26xf32>, vector<26x64xf32>, vector<13x64xf32> -> vector<13x64xf32>
      %cst_318 = arith.constant dense<0.000000e+00> : vector<13x64xf32>
      %504 = tpu.matmul %140, %502, %cst_318 {dimension_numbers = #tpu.dot_dimension_numbers<[1], [0], [0], [1], [0, 0, 1, 1], [], []>} : vector<13x26xf32>, vector<26x64xf32>, vector<13x64xf32> -> vector<13x64xf32>
      %505 = arith.maximumf %503, %504 : vector<13x64xf32>
      %c1_319 = arith.constant 1 : index
      %c2_320 = arith.constant 2 : index
      %c0_321 = arith.constant 0 : index
      %c0_322 = arith.constant 0 : index
      %506 = vector.load %arg7[%c1_319, %c2_320, %c0_321, %c0_322] : memref<2x13x13x64xf32, #tpu.memory_space<vmem>>, vector<1x1x13x64xf32>
      %507 = vector.shape_cast %506 : vector<1x1x13x64xf32> to vector<13x64xf32>
      %508 = vector.shape_cast %505 : vector<13x64xf32> to vector<1x1x13x64xf32>
      tpu.vector_store %arg7[%c1_319, %c2_320, %c0_321, %c0_322], %508 {strides = array<i32>} : memref<2x13x13x64xf32, #tpu.memory_space<vmem>>, vector<1x1x13x64xf32>,
      %c1_323 = arith.constant 1 : index
      %c6_324 = arith.constant 6 : index
      %c0_325 = arith.constant 0 : index
      %c0_326 = arith.constant 0 : index
      %509 = vector.load %arg8[%c1_323, %c6_324, %c0_325, %c0_326] : memref<2x26x26x64xf32, #tpu.memory_space<vmem>>, vector<1x1x26x64xf32>
      %510 = vector.shape_cast %509 : vector<1x1x26x64xf32> to vector<26x64xf32>
      %c1_327 = arith.constant 1 : index
      %c7_328 = arith.constant 7 : index
      %c0_329 = arith.constant 0 : index
      %c0_330 = arith.constant 0 : index
      %511 = vector.load %arg8[%c1_327, %c7_328, %c0_329, %c0_330] : memref<2x26x26x64xf32, #tpu.memory_space<vmem>>, vector<1x1x26x64xf32>
      %512 = vector.shape_cast %511 : vector<1x1x26x64xf32> to vector<26x64xf32>
      %513 = vector.broadcast %123 : vector<1x64xf32> to vector<26x64xf32>
      %514 = arith.mulf %510, %513 : vector<26x64xf32>
      %515 = vector.broadcast %126 : vector<1x64xf32> to vector<26x64xf32>
      %516 = arith.addf %514, %515 : vector<26x64xf32>
      %cst_331 = arith.constant 0.000000e+00 : f32
      %517 = vector.broadcast %cst_331 : f32 to vector<26x64xf32>
      %518 = arith.maximumf %516, %517 : vector<26x64xf32>
      %519 = vector.broadcast %123 : vector<1x64xf32> to vector<26x64xf32>
      %520 = arith.mulf %512, %519 : vector<26x64xf32>
      %521 = vector.broadcast %126 : vector<1x64xf32> to vector<26x64xf32>
      %522 = arith.addf %520, %521 : vector<26x64xf32>
      %cst_332 = arith.constant 0.000000e+00 : f32
      %523 = vector.broadcast %cst_332 : f32 to vector<26x64xf32>
      %524 = arith.maximumf %522, %523 : vector<26x64xf32>
      %525 = arith.maximumf %518, %524 : vector<26x64xf32>
      %cst_333 = arith.constant dense<0.000000e+00> : vector<13x64xf32>
      %526 = tpu.matmul %133, %525, %cst_333 {dimension_numbers = #tpu.dot_dimension_numbers<[1], [0], [0], [1], [0, 0, 1, 1], [], []>} : vector<13x26xf32>, vector<26x64xf32>, vector<13x64xf32> -> vector<13x64xf32>
      %cst_334 = arith.constant dense<0.000000e+00> : vector<13x64xf32>
      %527 = tpu.matmul %140, %525, %cst_334 {dimension_numbers = #tpu.dot_dimension_numbers<[1], [0], [0], [1], [0, 0, 1, 1], [], []>} : vector<13x26xf32>, vector<26x64xf32>, vector<13x64xf32> -> vector<13x64xf32>
      %528 = arith.maximumf %526, %527 : vector<13x64xf32>
      %c1_335 = arith.constant 1 : index
      %c3_336 = arith.constant 3 : index
      %c0_337 = arith.constant 0 : index
      %c0_338 = arith.constant 0 : index
      %529 = vector.load %arg7[%c1_335, %c3_336, %c0_337, %c0_338] : memref<2x13x13x64xf32, #tpu.memory_space<vmem>>, vector<1x1x13x64xf32>
      %530 = vector.shape_cast %529 : vector<1x1x13x64xf32> to vector<13x64xf32>
      %531 = vector.shape_cast %528 : vector<13x64xf32> to vector<1x1x13x64xf32>
      tpu.vector_store %arg7[%c1_335, %c3_336, %c0_337, %c0_338], %531 {strides = array<i32>} : memref<2x13x13x64xf32, #tpu.memory_space<vmem>>, vector<1x1x13x64xf32>,
      %c1_339 = arith.constant 1 : index
      %c8_340 = arith.constant 8 : index
      %c0_341 = arith.constant 0 : index
      %c0_342 = arith.constant 0 : index
      %532 = vector.load %arg8[%c1_339, %c8_340, %c0_341, %c0_342] : memref<2x26x26x64xf32, #tpu.memory_space<vmem>>, vector<1x1x26x64xf32>
      %533 = vector.shape_cast %532 : vector<1x1x26x64xf32> to vector<26x64xf32>
      %c1_343 = arith.constant 1 : index
      %c9_344 = arith.constant 9 : index
      %c0_345 = arith.constant 0 : index
      %c0_346 = arith.constant 0 : index
      %534 = vector.load %arg8[%c1_343, %c9_344, %c0_345, %c0_346] : memref<2x26x26x64xf32, #tpu.memory_space<vmem>>, vector<1x1x26x64xf32>
      %535 = vector.shape_cast %534 : vector<1x1x26x64xf32> to vector<26x64xf32>
      %536 = vector.broadcast %123 : vector<1x64xf32> to vector<26x64xf32>
      %537 = arith.mulf %533, %536 : vector<26x64xf32>
      %538 = vector.broadcast %126 : vector<1x64xf32> to vector<26x64xf32>
      %539 = arith.addf %537, %538 : vector<26x64xf32>
      %cst_347 = arith.constant 0.000000e+00 : f32
      %540 = vector.broadcast %cst_347 : f32 to vector<26x64xf32>
      %541 = arith.maximumf %539, %540 : vector<26x64xf32>
      %542 = vector.broadcast %123 : vector<1x64xf32> to vector<26x64xf32>
      %543 = arith.mulf %535, %542 : vector<26x64xf32>
      %544 = vector.broadcast %126 : vector<1x64xf32> to vector<26x64xf32>
      %545 = arith.addf %543, %544 : vector<26x64xf32>
      %cst_348 = arith.constant 0.000000e+00 : f32
      %546 = vector.broadcast %cst_348 : f32 to vector<26x64xf32>
      %547 = arith.maximumf %545, %546 : vector<26x64xf32>
      %548 = arith.maximumf %541, %547 : vector<26x64xf32>
      %cst_349 = arith.constant dense<0.000000e+00> : vector<13x64xf32>
      %549 = tpu.matmul %133, %548, %cst_349 {dimension_numbers = #tpu.dot_dimension_numbers<[1], [0], [0], [1], [0, 0, 1, 1], [], []>} : vector<13x26xf32>, vector<26x64xf32>, vector<13x64xf32> -> vector<13x64xf32>
      %cst_350 = arith.constant dense<0.000000e+00> : vector<13x64xf32>
      %550 = tpu.matmul %140, %548, %cst_350 {dimension_numbers = #tpu.dot_dimension_numbers<[1], [0], [0], [1], [0, 0, 1, 1], [], []>} : vector<13x26xf32>, vector<26x64xf32>, vector<13x64xf32> -> vector<13x64xf32>
      %551 = arith.maximumf %549, %550 : vector<13x64xf32>
      %c1_351 = arith.constant 1 : index
      %c4_352 = arith.constant 4 : index
      %c0_353 = arith.constant 0 : index
      %c0_354 = arith.constant 0 : index
      %552 = vector.load %arg7[%c1_351, %c4_352, %c0_353, %c0_354] : memref<2x13x13x64xf32, #tpu.memory_space<vmem>>, vector<1x1x13x64xf32>
      %553 = vector.shape_cast %552 : vector<1x1x13x64xf32> to vector<13x64xf32>
      %554 = vector.shape_cast %551 : vector<13x64xf32> to vector<1x1x13x64xf32>
      tpu.vector_store %arg7[%c1_351, %c4_352, %c0_353, %c0_354], %554 {strides = array<i32>} : memref<2x13x13x64xf32, #tpu.memory_space<vmem>>, vector<1x1x13x64xf32>,
      %c1_355 = arith.constant 1 : index
      %c10_356 = arith.constant 10 : index
      %c0_357 = arith.constant 0 : index
      %c0_358 = arith.constant 0 : index
      %555 = vector.load %arg8[%c1_355, %c10_356, %c0_357, %c0_358] : memref<2x26x26x64xf32, #tpu.memory_space<vmem>>, vector<1x1x26x64xf32>
      %556 = vector.shape_cast %555 : vector<1x1x26x64xf32> to vector<26x64xf32>
      %c1_359 = arith.constant 1 : index
      %c11_360 = arith.constant 11 : index
      %c0_361 = arith.constant 0 : index
      %c0_362 = arith.constant 0 : index
      %557 = vector.load %arg8[%c1_359, %c11_360, %c0_361, %c0_362] : memref<2x26x26x64xf32, #tpu.memory_space<vmem>>, vector<1x1x26x64xf32>
      %558 = vector.shape_cast %557 : vector<1x1x26x64xf32> to vector<26x64xf32>
      %559 = vector.broadcast %123 : vector<1x64xf32> to vector<26x64xf32>
      %560 = arith.mulf %556, %559 : vector<26x64xf32>
      %561 = vector.broadcast %126 : vector<1x64xf32> to vector<26x64xf32>
      %562 = arith.addf %560, %561 : vector<26x64xf32>
      %cst_363 = arith.constant 0.000000e+00 : f32
      %563 = vector.broadcast %cst_363 : f32 to vector<26x64xf32>
      %564 = arith.maximumf %562, %563 : vector<26x64xf32>
      %565 = vector.broadcast %123 : vector<1x64xf32> to vector<26x64xf32>
      %566 = arith.mulf %558, %565 : vector<26x64xf32>
      %567 = vector.broadcast %126 : vector<1x64xf32> to vector<26x64xf32>
      %568 = arith.addf %566, %567 : vector<26x64xf32>
      %cst_364 = arith.constant 0.000000e+00 : f32
      %569 = vector.broadcast %cst_364 : f32 to vector<26x64xf32>
      %570 = arith.maximumf %568, %569 : vector<26x64xf32>
      %571 = arith.maximumf %564, %570 : vector<26x64xf32>
      %cst_365 = arith.constant dense<0.000000e+00> : vector<13x64xf32>
      %572 = tpu.matmul %133, %571, %cst_365 {dimension_numbers = #tpu.dot_dimension_numbers<[1], [0], [0], [1], [0, 0, 1, 1], [], []>} : vector<13x26xf32>, vector<26x64xf32>, vector<13x64xf32> -> vector<13x64xf32>
      %cst_366 = arith.constant dense<0.000000e+00> : vector<13x64xf32>
      %573 = tpu.matmul %140, %571, %cst_366 {dimension_numbers = #tpu.dot_dimension_numbers<[1], [0], [0], [1], [0, 0, 1, 1], [], []>} : vector<13x26xf32>, vector<26x64xf32>, vector<13x64xf32> -> vector<13x64xf32>
      %574 = arith.maximumf %572, %573 : vector<13x64xf32>
      %c1_367 = arith.constant 1 : index
      %c5_368 = arith.constant 5 : index
      %c0_369 = arith.constant 0 : index
      %c0_370 = arith.constant 0 : index
      %575 = vector.load %arg7[%c1_367, %c5_368, %c0_369, %c0_370] : memref<2x13x13x64xf32, #tpu.memory_space<vmem>>, vector<1x1x13x64xf32>
      %576 = vector.shape_cast %575 : vector<1x1x13x64xf32> to vector<13x64xf32>
      %577 = vector.shape_cast %574 : vector<13x64xf32> to vector<1x1x13x64xf32>
      tpu.vector_store %arg7[%c1_367, %c5_368, %c0_369, %c0_370], %577 {strides = array<i32>} : memref<2x13x13x64xf32, #tpu.memory_space<vmem>>, vector<1x1x13x64xf32>,
      %c1_371 = arith.constant 1 : index
      %c12_372 = arith.constant 12 : index
      %c0_373 = arith.constant 0 : index
      %c0_374 = arith.constant 0 : index
      %578 = vector.load %arg8[%c1_371, %c12_372, %c0_373, %c0_374] : memref<2x26x26x64xf32, #tpu.memory_space<vmem>>, vector<1x1x26x64xf32>
      %579 = vector.shape_cast %578 : vector<1x1x26x64xf32> to vector<26x64xf32>
      %c1_375 = arith.constant 1 : index
      %c13_376 = arith.constant 13 : index
      %c0_377 = arith.constant 0 : index
      %c0_378 = arith.constant 0 : index
      %580 = vector.load %arg8[%c1_375, %c13_376, %c0_377, %c0_378] : memref<2x26x26x64xf32, #tpu.memory_space<vmem>>, vector<1x1x26x64xf32>
      %581 = vector.shape_cast %580 : vector<1x1x26x64xf32> to vector<26x64xf32>
      %582 = vector.broadcast %123 : vector<1x64xf32> to vector<26x64xf32>
      %583 = arith.mulf %579, %582 : vector<26x64xf32>
      %584 = vector.broadcast %126 : vector<1x64xf32> to vector<26x64xf32>
      %585 = arith.addf %583, %584 : vector<26x64xf32>
      %cst_379 = arith.constant 0.000000e+00 : f32
      %586 = vector.broadcast %cst_379 : f32 to vector<26x64xf32>
      %587 = arith.maximumf %585, %586 : vector<26x64xf32>
      %588 = vector.broadcast %123 : vector<1x64xf32> to vector<26x64xf32>
      %589 = arith.mulf %581, %588 : vector<26x64xf32>
      %590 = vector.broadcast %126 : vector<1x64xf32> to vector<26x64xf32>
      %591 = arith.addf %589, %590 : vector<26x64xf32>
      %cst_380 = arith.constant 0.000000e+00 : f32
      %592 = vector.broadcast %cst_380 : f32 to vector<26x64xf32>
      %593 = arith.maximumf %591, %592 : vector<26x64xf32>
      %594 = arith.maximumf %587, %593 : vector<26x64xf32>
      %cst_381 = arith.constant dense<0.000000e+00> : vector<13x64xf32>
      %595 = tpu.matmul %133, %594, %cst_381 {dimension_numbers = #tpu.dot_dimension_numbers<[1], [0], [0], [1], [0, 0, 1, 1], [], []>} : vector<13x26xf32>, vector<26x64xf32>, vector<13x64xf32> -> vector<13x64xf32>
      %cst_382 = arith.constant dense<0.000000e+00> : vector<13x64xf32>
      %596 = tpu.matmul %140, %594, %cst_382 {dimension_numbers = #tpu.dot_dimension_numbers<[1], [0], [0], [1], [0, 0, 1, 1], [], []>} : vector<13x26xf32>, vector<26x64xf32>, vector<13x64xf32> -> vector<13x64xf32>
      %597 = arith.maximumf %595, %596 : vector<13x64xf32>
      %c1_383 = arith.constant 1 : index
      %c6_384 = arith.constant 6 : index
      %c0_385 = arith.constant 0 : index
      %c0_386 = arith.constant 0 : index
      %598 = vector.load %arg7[%c1_383, %c6_384, %c0_385, %c0_386] : memref<2x13x13x64xf32, #tpu.memory_space<vmem>>, vector<1x1x13x64xf32>
      %599 = vector.shape_cast %598 : vector<1x1x13x64xf32> to vector<13x64xf32>
      %600 = vector.shape_cast %597 : vector<13x64xf32> to vector<1x1x13x64xf32>
      tpu.vector_store %arg7[%c1_383, %c6_384, %c0_385, %c0_386], %600 {strides = array<i32>} : memref<2x13x13x64xf32, #tpu.memory_space<vmem>>, vector<1x1x13x64xf32>,
      %c1_387 = arith.constant 1 : index
      %c14_388 = arith.constant 14 : index
      %c0_389 = arith.constant 0 : index
      %c0_390 = arith.constant 0 : index
      %601 = vector.load %arg8[%c1_387, %c14_388, %c0_389, %c0_390] : memref<2x26x26x64xf32, #tpu.memory_space<vmem>>, vector<1x1x26x64xf32>
      %602 = vector.shape_cast %601 : vector<1x1x26x64xf32> to vector<26x64xf32>
      %c1_391 = arith.constant 1 : index
      %c15_392 = arith.constant 15 : index
      %c0_393 = arith.constant 0 : index
      %c0_394 = arith.constant 0 : index
      %603 = vector.load %arg8[%c1_391, %c15_392, %c0_393, %c0_394] : memref<2x26x26x64xf32, #tpu.memory_space<vmem>>, vector<1x1x26x64xf32>
      %604 = vector.shape_cast %603 : vector<1x1x26x64xf32> to vector<26x64xf32>
      %605 = vector.broadcast %123 : vector<1x64xf32> to vector<26x64xf32>
      %606 = arith.mulf %602, %605 : vector<26x64xf32>
      %607 = vector.broadcast %126 : vector<1x64xf32> to vector<26x64xf32>
      %608 = arith.addf %606, %607 : vector<26x64xf32>
      %cst_395 = arith.constant 0.000000e+00 : f32
      %609 = vector.broadcast %cst_395 : f32 to vector<26x64xf32>
      %610 = arith.maximumf %608, %609 : vector<26x64xf32>
      %611 = vector.broadcast %123 : vector<1x64xf32> to vector<26x64xf32>
      %612 = arith.mulf %604, %611 : vector<26x64xf32>
      %613 = vector.broadcast %126 : vector<1x64xf32> to vector<26x64xf32>
      %614 = arith.addf %612, %613 : vector<26x64xf32>
      %cst_396 = arith.constant 0.000000e+00 : f32
      %615 = vector.broadcast %cst_396 : f32 to vector<26x64xf32>
      %616 = arith.maximumf %614, %615 : vector<26x64xf32>
      %617 = arith.maximumf %610, %616 : vector<26x64xf32>
      %cst_397 = arith.constant dense<0.000000e+00> : vector<13x64xf32>
      %618 = tpu.matmul %133, %617, %cst_397 {dimension_numbers = #tpu.dot_dimension_numbers<[1], [0], [0], [1], [0, 0, 1, 1], [], []>} : vector<13x26xf32>, vector<26x64xf32>, vector<13x64xf32> -> vector<13x64xf32>
      %cst_398 = arith.constant dense<0.000000e+00> : vector<13x64xf32>
      %619 = tpu.matmul %140, %617, %cst_398 {dimension_numbers = #tpu.dot_dimension_numbers<[1], [0], [0], [1], [0, 0, 1, 1], [], []>} : vector<13x26xf32>, vector<26x64xf32>, vector<13x64xf32> -> vector<13x64xf32>
      %620 = arith.maximumf %618, %619 : vector<13x64xf32>
      %c1_399 = arith.constant 1 : index
      %c7_400 = arith.constant 7 : index
      %c0_401 = arith.constant 0 : index
      %c0_402 = arith.constant 0 : index
      %621 = vector.load %arg7[%c1_399, %c7_400, %c0_401, %c0_402] : memref<2x13x13x64xf32, #tpu.memory_space<vmem>>, vector<1x1x13x64xf32>
      %622 = vector.shape_cast %621 : vector<1x1x13x64xf32> to vector<13x64xf32>
      %623 = vector.shape_cast %620 : vector<13x64xf32> to vector<1x1x13x64xf32>
      tpu.vector_store %arg7[%c1_399, %c7_400, %c0_401, %c0_402], %623 {strides = array<i32>} : memref<2x13x13x64xf32, #tpu.memory_space<vmem>>, vector<1x1x13x64xf32>,
      %c1_403 = arith.constant 1 : index
      %c16_404 = arith.constant 16 : index
      %c0_405 = arith.constant 0 : index
      %c0_406 = arith.constant 0 : index
      %624 = vector.load %arg8[%c1_403, %c16_404, %c0_405, %c0_406] : memref<2x26x26x64xf32, #tpu.memory_space<vmem>>, vector<1x1x26x64xf32>
      %625 = vector.shape_cast %624 : vector<1x1x26x64xf32> to vector<26x64xf32>
      %c1_407 = arith.constant 1 : index
      %c17_408 = arith.constant 17 : index
      %c0_409 = arith.constant 0 : index
      %c0_410 = arith.constant 0 : index
      %626 = vector.load %arg8[%c1_407, %c17_408, %c0_409, %c0_410] : memref<2x26x26x64xf32, #tpu.memory_space<vmem>>, vector<1x1x26x64xf32>
      %627 = vector.shape_cast %626 : vector<1x1x26x64xf32> to vector<26x64xf32>
      %628 = vector.broadcast %123 : vector<1x64xf32> to vector<26x64xf32>
      %629 = arith.mulf %625, %628 : vector<26x64xf32>
      %630 = vector.broadcast %126 : vector<1x64xf32> to vector<26x64xf32>
      %631 = arith.addf %629, %630 : vector<26x64xf32>
      %cst_411 = arith.constant 0.000000e+00 : f32
      %632 = vector.broadcast %cst_411 : f32 to vector<26x64xf32>
      %633 = arith.maximumf %631, %632 : vector<26x64xf32>
      %634 = vector.broadcast %123 : vector<1x64xf32> to vector<26x64xf32>
      %635 = arith.mulf %627, %634 : vector<26x64xf32>
      %636 = vector.broadcast %126 : vector<1x64xf32> to vector<26x64xf32>
      %637 = arith.addf %635, %636 : vector<26x64xf32>
      %cst_412 = arith.constant 0.000000e+00 : f32
      %638 = vector.broadcast %cst_412 : f32 to vector<26x64xf32>
      %639 = arith.maximumf %637, %638 : vector<26x64xf32>
      %640 = arith.maximumf %633, %639 : vector<26x64xf32>
      %cst_413 = arith.constant dense<0.000000e+00> : vector<13x64xf32>
      %641 = tpu.matmul %133, %640, %cst_413 {dimension_numbers = #tpu.dot_dimension_numbers<[1], [0], [0], [1], [0, 0, 1, 1], [], []>} : vector<13x26xf32>, vector<26x64xf32>, vector<13x64xf32> -> vector<13x64xf32>
      %cst_414 = arith.constant dense<0.000000e+00> : vector<13x64xf32>
      %642 = tpu.matmul %140, %640, %cst_414 {dimension_numbers = #tpu.dot_dimension_numbers<[1], [0], [0], [1], [0, 0, 1, 1], [], []>} : vector<13x26xf32>, vector<26x64xf32>, vector<13x64xf32> -> vector<13x64xf32>
      %643 = arith.maximumf %641, %642 : vector<13x64xf32>
      %c1_415 = arith.constant 1 : index
      %c8_416 = arith.constant 8 : index
      %c0_417 = arith.constant 0 : index
      %c0_418 = arith.constant 0 : index
      %644 = vector.load %arg7[%c1_415, %c8_416, %c0_417, %c0_418] : memref<2x13x13x64xf32, #tpu.memory_space<vmem>>, vector<1x1x13x64xf32>
      %645 = vector.shape_cast %644 : vector<1x1x13x64xf32> to vector<13x64xf32>
      %646 = vector.shape_cast %643 : vector<13x64xf32> to vector<1x1x13x64xf32>
      tpu.vector_store %arg7[%c1_415, %c8_416, %c0_417, %c0_418], %646 {strides = array<i32>} : memref<2x13x13x64xf32, #tpu.memory_space<vmem>>, vector<1x1x13x64xf32>,
      %c1_419 = arith.constant 1 : index
      %c18_420 = arith.constant 18 : index
      %c0_421 = arith.constant 0 : index
      %c0_422 = arith.constant 0 : index
      %647 = vector.load %arg8[%c1_419, %c18_420, %c0_421, %c0_422] : memref<2x26x26x64xf32, #tpu.memory_space<vmem>>, vector<1x1x26x64xf32>
      %648 = vector.shape_cast %647 : vector<1x1x26x64xf32> to vector<26x64xf32>
      %c1_423 = arith.constant 1 : index
      %c19_424 = arith.constant 19 : index
      %c0_425 = arith.constant 0 : index
      %c0_426 = arith.constant 0 : index
      %649 = vector.load %arg8[%c1_423, %c19_424, %c0_425, %c0_426] : memref<2x26x26x64xf32, #tpu.memory_space<vmem>>, vector<1x1x26x64xf32>
      %650 = vector.shape_cast %649 : vector<1x1x26x64xf32> to vector<26x64xf32>
      %651 = vector.broadcast %123 : vector<1x64xf32> to vector<26x64xf32>
      %652 = arith.mulf %648, %651 : vector<26x64xf32>
      %653 = vector.broadcast %126 : vector<1x64xf32> to vector<26x64xf32>
      %654 = arith.addf %652, %653 : vector<26x64xf32>
      %cst_427 = arith.constant 0.000000e+00 : f32
      %655 = vector.broadcast %cst_427 : f32 to vector<26x64xf32>
      %656 = arith.maximumf %654, %655 : vector<26x64xf32>
      %657 = vector.broadcast %123 : vector<1x64xf32> to vector<26x64xf32>
      %658 = arith.mulf %650, %657 : vector<26x64xf32>
      %659 = vector.broadcast %126 : vector<1x64xf32> to vector<26x64xf32>
      %660 = arith.addf %658, %659 : vector<26x64xf32>
      %cst_428 = arith.constant 0.000000e+00 : f32
      %661 = vector.broadcast %cst_428 : f32 to vector<26x64xf32>
      %662 = arith.maximumf %660, %661 : vector<26x64xf32>
      %663 = arith.maximumf %656, %662 : vector<26x64xf32>
      %cst_429 = arith.constant dense<0.000000e+00> : vector<13x64xf32>
      %664 = tpu.matmul %133, %663, %cst_429 {dimension_numbers = #tpu.dot_dimension_numbers<[1], [0], [0], [1], [0, 0, 1, 1], [], []>} : vector<13x26xf32>, vector<26x64xf32>, vector<13x64xf32> -> vector<13x64xf32>
      %cst_430 = arith.constant dense<0.000000e+00> : vector<13x64xf32>
      %665 = tpu.matmul %140, %663, %cst_430 {dimension_numbers = #tpu.dot_dimension_numbers<[1], [0], [0], [1], [0, 0, 1, 1], [], []>} : vector<13x26xf32>, vector<26x64xf32>, vector<13x64xf32> -> vector<13x64xf32>
      %666 = arith.maximumf %664, %665 : vector<13x64xf32>
      %c1_431 = arith.constant 1 : index
      %c9_432 = arith.constant 9 : index
      %c0_433 = arith.constant 0 : index
      %c0_434 = arith.constant 0 : index
      %667 = vector.load %arg7[%c1_431, %c9_432, %c0_433, %c0_434] : memref<2x13x13x64xf32, #tpu.memory_space<vmem>>, vector<1x1x13x64xf32>
      %668 = vector.shape_cast %667 : vector<1x1x13x64xf32> to vector<13x64xf32>
      %669 = vector.shape_cast %666 : vector<13x64xf32> to vector<1x1x13x64xf32>
      tpu.vector_store %arg7[%c1_431, %c9_432, %c0_433, %c0_434], %669 {strides = array<i32>} : memref<2x13x13x64xf32, #tpu.memory_space<vmem>>, vector<1x1x13x64xf32>,
      %c1_435 = arith.constant 1 : index
      %c20_436 = arith.constant 20 : index
      %c0_437 = arith.constant 0 : index
      %c0_438 = arith.constant 0 : index
      %670 = vector.load %arg8[%c1_435, %c20_436, %c0_437, %c0_438] : memref<2x26x26x64xf32, #tpu.memory_space<vmem>>, vector<1x1x26x64xf32>
      %671 = vector.shape_cast %670 : vector<1x1x26x64xf32> to vector<26x64xf32>
      %c1_439 = arith.constant 1 : index
      %c21_440 = arith.constant 21 : index
      %c0_441 = arith.constant 0 : index
      %c0_442 = arith.constant 0 : index
      %672 = vector.load %arg8[%c1_439, %c21_440, %c0_441, %c0_442] : memref<2x26x26x64xf32, #tpu.memory_space<vmem>>, vector<1x1x26x64xf32>
      %673 = vector.shape_cast %672 : vector<1x1x26x64xf32> to vector<26x64xf32>
      %674 = vector.broadcast %123 : vector<1x64xf32> to vector<26x64xf32>
      %675 = arith.mulf %671, %674 : vector<26x64xf32>
      %676 = vector.broadcast %126 : vector<1x64xf32> to vector<26x64xf32>
      %677 = arith.addf %675, %676 : vector<26x64xf32>
      %cst_443 = arith.constant 0.000000e+00 : f32
      %678 = vector.broadcast %cst_443 : f32 to vector<26x64xf32>
      %679 = arith.maximumf %677, %678 : vector<26x64xf32>
      %680 = vector.broadcast %123 : vector<1x64xf32> to vector<26x64xf32>
      %681 = arith.mulf %673, %680 : vector<26x64xf32>
      %682 = vector.broadcast %126 : vector<1x64xf32> to vector<26x64xf32>
      %683 = arith.addf %681, %682 : vector<26x64xf32>
      %cst_444 = arith.constant 0.000000e+00 : f32
      %684 = vector.broadcast %cst_444 : f32 to vector<26x64xf32>
      %685 = arith.maximumf %683, %684 : vector<26x64xf32>
      %686 = arith.maximumf %679, %685 : vector<26x64xf32>
      %cst_445 = arith.constant dense<0.000000e+00> : vector<13x64xf32>
      %687 = tpu.matmul %133, %686, %cst_445 {dimension_numbers = #tpu.dot_dimension_numbers<[1], [0], [0], [1], [0, 0, 1, 1], [], []>} : vector<13x26xf32>, vector<26x64xf32>, vector<13x64xf32> -> vector<13x64xf32>
      %cst_446 = arith.constant dense<0.000000e+00> : vector<13x64xf32>
      %688 = tpu.matmul %140, %686, %cst_446 {dimension_numbers = #tpu.dot_dimension_numbers<[1], [0], [0], [1], [0, 0, 1, 1], [], []>} : vector<13x26xf32>, vector<26x64xf32>, vector<13x64xf32> -> vector<13x64xf32>
      %689 = arith.maximumf %687, %688 : vector<13x64xf32>
      %c1_447 = arith.constant 1 : index
      %c10_448 = arith.constant 10 : index
      %c0_449 = arith.constant 0 : index
      %c0_450 = arith.constant 0 : index
      %690 = vector.load %arg7[%c1_447, %c10_448, %c0_449, %c0_450] : memref<2x13x13x64xf32, #tpu.memory_space<vmem>>, vector<1x1x13x64xf32>
      %691 = vector.shape_cast %690 : vector<1x1x13x64xf32> to vector<13x64xf32>
      %692 = vector.shape_cast %689 : vector<13x64xf32> to vector<1x1x13x64xf32>
      tpu.vector_store %arg7[%c1_447, %c10_448, %c0_449, %c0_450], %692 {strides = array<i32>} : memref<2x13x13x64xf32, #tpu.memory_space<vmem>>, vector<1x1x13x64xf32>,
      %c1_451 = arith.constant 1 : index
      %c22_452 = arith.constant 22 : index
      %c0_453 = arith.constant 0 : index
      %c0_454 = arith.constant 0 : index
      %693 = vector.load %arg8[%c1_451, %c22_452, %c0_453, %c0_454] : memref<2x26x26x64xf32, #tpu.memory_space<vmem>>, vector<1x1x26x64xf32>
      %694 = vector.shape_cast %693 : vector<1x1x26x64xf32> to vector<26x64xf32>
      %c1_455 = arith.constant 1 : index
      %c23_456 = arith.constant 23 : index
      %c0_457 = arith.constant 0 : index
      %c0_458 = arith.constant 0 : index
      %695 = vector.load %arg8[%c1_455, %c23_456, %c0_457, %c0_458] : memref<2x26x26x64xf32, #tpu.memory_space<vmem>>, vector<1x1x26x64xf32>
      %696 = vector.shape_cast %695 : vector<1x1x26x64xf32> to vector<26x64xf32>
      %697 = vector.broadcast %123 : vector<1x64xf32> to vector<26x64xf32>
      %698 = arith.mulf %694, %697 : vector<26x64xf32>
      %699 = vector.broadcast %126 : vector<1x64xf32> to vector<26x64xf32>
      %700 = arith.addf %698, %699 : vector<26x64xf32>
      %cst_459 = arith.constant 0.000000e+00 : f32
      %701 = vector.broadcast %cst_459 : f32 to vector<26x64xf32>
      %702 = arith.maximumf %700, %701 : vector<26x64xf32>
      %703 = vector.broadcast %123 : vector<1x64xf32> to vector<26x64xf32>
      %704 = arith.mulf %696, %703 : vector<26x64xf32>
      %705 = vector.broadcast %126 : vector<1x64xf32> to vector<26x64xf32>
      %706 = arith.addf %704, %705 : vector<26x64xf32>
      %cst_460 = arith.constant 0.000000e+00 : f32
      %707 = vector.broadcast %cst_460 : f32 to vector<26x64xf32>
      %708 = arith.maximumf %706, %707 : vector<26x64xf32>
      %709 = arith.maximumf %702, %708 : vector<26x64xf32>
      %cst_461 = arith.constant dense<0.000000e+00> : vector<13x64xf32>
      %710 = tpu.matmul %133, %709, %cst_461 {dimension_numbers = #tpu.dot_dimension_numbers<[1], [0], [0], [1], [0, 0, 1, 1], [], []>} : vector<13x26xf32>, vector<26x64xf32>, vector<13x64xf32> -> vector<13x64xf32>
      %cst_462 = arith.constant dense<0.000000e+00> : vector<13x64xf32>
      %711 = tpu.matmul %140, %709, %cst_462 {dimension_numbers = #tpu.dot_dimension_numbers<[1], [0], [0], [1], [0, 0, 1, 1], [], []>} : vector<13x26xf32>, vector<26x64xf32>, vector<13x64xf32> -> vector<13x64xf32>
      %712 = arith.maximumf %710, %711 : vector<13x64xf32>
      %c1_463 = arith.constant 1 : index
      %c11_464 = arith.constant 11 : index
      %c0_465 = arith.constant 0 : index
      %c0_466 = arith.constant 0 : index
      %713 = vector.load %arg7[%c1_463, %c11_464, %c0_465, %c0_466] : memref<2x13x13x64xf32, #tpu.memory_space<vmem>>, vector<1x1x13x64xf32>
      %714 = vector.shape_cast %713 : vector<1x1x13x64xf32> to vector<13x64xf32>
      %715 = vector.shape_cast %712 : vector<13x64xf32> to vector<1x1x13x64xf32>
      tpu.vector_store %arg7[%c1_463, %c11_464, %c0_465, %c0_466], %715 {strides = array<i32>} : memref<2x13x13x64xf32, #tpu.memory_space<vmem>>, vector<1x1x13x64xf32>,
      %c1_467 = arith.constant 1 : index
      %c24_468 = arith.constant 24 : index
      %c0_469 = arith.constant 0 : index
      %c0_470 = arith.constant 0 : index
      %716 = vector.load %arg8[%c1_467, %c24_468, %c0_469, %c0_470] : memref<2x26x26x64xf32, #tpu.memory_space<vmem>>, vector<1x1x26x64xf32>
      %717 = vector.shape_cast %716 : vector<1x1x26x64xf32> to vector<26x64xf32>
      %c1_471 = arith.constant 1 : index
      %c25_472 = arith.constant 25 : index
      %c0_473 = arith.constant 0 : index
      %c0_474 = arith.constant 0 : index
      %718 = vector.load %arg8[%c1_471, %c25_472, %c0_473, %c0_474] : memref<2x26x26x64xf32, #tpu.memory_space<vmem>>, vector<1x1x26x64xf32>
      %719 = vector.shape_cast %718 : vector<1x1x26x64xf32> to vector<26x64xf32>
      %720 = vector.broadcast %123 : vector<1x64xf32> to vector<26x64xf32>
      %721 = arith.mulf %717, %720 : vector<26x64xf32>
      %722 = vector.broadcast %126 : vector<1x64xf32> to vector<26x64xf32>
      %723 = arith.addf %721, %722 : vector<26x64xf32>
      %cst_475 = arith.constant 0.000000e+00 : f32
      %724 = vector.broadcast %cst_475 : f32 to vector<26x64xf32>
      %725 = arith.maximumf %723, %724 : vector<26x64xf32>
      %726 = vector.broadcast %123 : vector<1x64xf32> to vector<26x64xf32>
      %727 = arith.mulf %719, %726 : vector<26x64xf32>
      %728 = vector.broadcast %126 : vector<1x64xf32> to vector<26x64xf32>
      %729 = arith.addf %727, %728 : vector<26x64xf32>
      %cst_476 = arith.constant 0.000000e+00 : f32
      %730 = vector.broadcast %cst_476 : f32 to vector<26x64xf32>
      %731 = arith.maximumf %729, %730 : vector<26x64xf32>
      %732 = arith.maximumf %725, %731 : vector<26x64xf32>
      %cst_477 = arith.constant dense<0.000000e+00> : vector<13x64xf32>
      %733 = tpu.matmul %133, %732, %cst_477 {dimension_numbers = #tpu.dot_dimension_numbers<[1], [0], [0], [1], [0, 0, 1, 1], [], []>} : vector<13x26xf32>, vector<26x64xf32>, vector<13x64xf32> -> vector<13x64xf32>
      %cst_478 = arith.constant dense<0.000000e+00> : vector<13x64xf32>
      %734 = tpu.matmul %140, %732, %cst_478 {dimension_numbers = #tpu.dot_dimension_numbers<[1], [0], [0], [1], [0, 0, 1, 1], [], []>} : vector<13x26xf32>, vector<26x64xf32>, vector<13x64xf32> -> vector<13x64xf32>
      %735 = arith.maximumf %733, %734 : vector<13x64xf32>
      %c1_479 = arith.constant 1 : index
      %c12_480 = arith.constant 12 : index
      %c0_481 = arith.constant 0 : index
      %c0_482 = arith.constant 0 : index
      %736 = vector.load %arg7[%c1_479, %c12_480, %c0_481, %c0_482] : memref<2x13x13x64xf32, #tpu.memory_space<vmem>>, vector<1x1x13x64xf32>
      %737 = vector.shape_cast %736 : vector<1x1x13x64xf32> to vector<13x64xf32>
      %738 = vector.shape_cast %735 : vector<13x64xf32> to vector<1x1x13x64xf32>
      tpu.vector_store %arg7[%c1_479, %c12_480, %c0_481, %c0_482], %738 {strides = array<i32>} : memref<2x13x13x64xf32, #tpu.memory_space<vmem>>, vector<1x1x13x64xf32>,
    } else {
    }
    return
  }
  func.func @transform_0(%arg0: i32, %arg1: i32) -> (i32, i32, i32, i32) {
    %c0_i32 = arith.constant 0 : i32
    %c0_i32_0 = arith.constant 0 : i32
    %c0_i32_1 = arith.constant 0 : i32
    %c0_i32_2 = arith.constant 0 : i32
    %c0_i32_3 = arith.constant 0 : i32
    return %c0_i32, %c0_i32_0, %c0_i32_1, %c0_i32_2 : i32, i32, i32, i32
  }
  func.func @transform_1(%arg0: i32, %arg1: i32) -> (i32, i32, i32) {
    %c0_i32 = arith.constant 0 : i32
    %c0_i32_0 = arith.constant 0 : i32
    %c0_i32_1 = arith.constant 0 : i32
    %c0_i32_2 = arith.constant 0 : i32
    return %c0_i32, %c0_i32_0, %c0_i32_1 : i32, i32, i32
  }
  func.func @transform_2(%arg0: i32, %arg1: i32) -> (i32, i32) {
    %c0_i32 = arith.constant 0 : i32
    %c0_i32_0 = arith.constant 0 : i32
    %c0_i32_1 = arith.constant 0 : i32
    return %c0_i32, %c0_i32_0 : i32, i32
  }
  func.func @transform_3(%arg0: i32, %arg1: i32) -> (i32, i32) {
    %c0_i32 = arith.constant 0 : i32
    %c0_i32_0 = arith.constant 0 : i32
    %c0_i32_1 = arith.constant 0 : i32
    return %c0_i32, %c0_i32_0 : i32, i32
  }
  func.func @transform_4(%arg0: i32, %arg1: i32) -> (i32, i32) {
    %c0_i32 = arith.constant 0 : i32
    %c0_i32_0 = arith.constant 0 : i32
    %c0_i32_1 = arith.constant 0 : i32
    return %c0_i32, %c0_i32_0 : i32, i32
  }
  func.func @transform_5(%arg0: i32, %arg1: i32) -> (i32, i32, i32, i32) {
    %c0_i32 = arith.constant 0 : i32
    %c0_i32_0 = arith.constant 0 : i32
    %c0_i32_1 = arith.constant 0 : i32
    %c0_i32_2 = arith.constant 0 : i32
    %c0_i32_3 = arith.constant 0 : i32
    return %c0_i32, %c0_i32_0, %c0_i32_1, %c0_i32_2 : i32, i32, i32, i32
  }
}

</mosaic_0001>

<llo_original>
// kernel: tpu_custom_call.1
$region0: #{tpu_custom_call.1}
  #allocation0 [shape = 'u32[]', space=smem, size = 0x4, offset = 0x4, fixed_abs, tag = 'smem constant byte address 0x4 - core index']
  #allocation1 [shape = 'u32[144,128]{1,0:T(1,128)}', space=vmem, size = 0x12000, scoped, tag = 'internal scratch']
  #allocation2 [shape = 'f32[2,26,26,64]{3,2,1,0:T(8,128)}', space=vmem, size = 0xd0000, scoped, tag = 'scratch operand']
  #allocation3 [shape = 'f32[1,64]{1,0:T(1,128)}', space=vmem, size = 0x200, scoped, tag = 'scratch operand']
  #allocation4 [shape = 'f32[1,64]{1,0:T(1,128)}', space=vmem, size = 0x200, scoped, tag = 'scratch operand']
  %s0 = inlined_call_operand.vmem [shape: f32[2,28,28,3], index: 0, kind: input, shape index: {}]
  %s1 = inlined_call_operand.vmem [shape: f32[9,3,64], index: 1, kind: input, shape index: {}]
  %s2 = inlined_call_operand.vmem [shape: f32[1,64], index: 2, kind: input, shape index: {}]
  %s3 = inlined_call_operand.vmem [shape: f32[1,64], index: 3, kind: input, shape index: {}]
  %s4 = inlined_call_operand.vmem [shape: f32[1,64], index: 4, kind: input, shape index: {}]
  %s5 = inlined_call_operand.vmem [shape: f32[2,13,13,64], index: 5, kind: output, shape index: {}]
  %s6 = sld [smem:[#allocation0]]
  $region61: #{tpu_custom_call.1} parent=0
    _
  %s8 = ssub.s32 1, %s6
  %s9 = scalar_select 0, %s8, %s6
  loop: start=0, step=1, limit=54
  $region2: #{tpu_custom_call.1} parent=0 // loop_pre_header
    _
  $region3: #{tpu_custom_call.1} parent=0 // loop_header
    %s11 = sphi 0, %s15
    %p12 = scmp.ge.s32.totalorder %s11, 54
    %s18 = sphi 0, %s30
    %s19 = sphi 0, %s26
    %s20 = sphi 0, %s18
    %s21 = sphi 0, %s19
    %s22 = sphi 0, %s20
    %s23 = sphi 0, %s21
    %s31 = sphi 0, %s31
    %s33 = sphi 0, %s31
    %s34 = sphi 0, %s33
    %s48 = sphi 0, %s34
    %s52 = sphi 0, %s52
    %s54 = sphi 0, %s52
    %s55 = sphi 0, %s54
    %s69 = sphi 0, %s55
    %s73 = sphi 0, %s73
    %s75 = sphi 0, %s73
    %s76 = sphi 0, %s75
    %s90 = sphi 0, %s76
    %s94 = sphi 0, %s94
    %s96 = sphi 0, %s94
    %s97 = sphi 0, %s96
    %s111 = sphi 0, %s97
    %s115 = sphi 0, %s115
    %s117 = sphi 0, %s115
    %s118 = sphi 0, %s117
    %s132 = sphi 0, %s118
    %s136 = sphi 0, %s136
    %s138 = sphi 0, %s136
    %s139 = sphi 0, %s138
    %s153 = sphi 0, %s139
  $region4: #{tpu_custom_call.1} parent=0 // loop_header_branch
    %14 = sbr.rel (%p12) target = $region8
  $region5: #{tpu_custom_call.1} parent=0 // loop_body
    %s16 = ssub.s32 %s11, 1
    %s17 = ssub.s32 %s11, 2
    %s24 = sadd.s32 1, %s19
    %p25 = scmp.ge.s32.totalorder %s24, 26
    %s26 = scalar_select %p25, 0, %s24
    %s27 = sadd.s32 1, %s18
    %s28 = scalar_select %p25, %s27, %s18
    %p29 = scmp.ge.s32.totalorder %s28, 2
    %s30 = scalar_select %p29, 0, %s28
    %s32 = sadd.s32 %s31, 1
    %p35 = scmp.eq.s32.totalorder %s11, 51
    %p36 = scmp.ne.s32.totalorder %s31, %s33
    %p37 = scmp.eq.s32.totalorder %s11, 0
    %p38 = por %p36, %p37
    %p39 = scmp.ne.s32.totalorder %s31, %s33
    %p40 = scmp.eq.s32.totalorder %s16, 51
    %p41 = por %p39, %p40
    %p42 = scmp.ne.s32.totalorder %s33, %s34
    %p43 = scmp.eq.s32.totalorder %s16, 0
    %p44 = por %p42, %p43
    %p45 = scmp.ne.s32.totalorder %s33, %s34
    %p46 = scmp.eq.s32.totalorder %s17, 51
    %p47 = por %p45, %p46
    %p49 = scmp.ne.s32.totalorder %s34, %s48
    %p50 = scmp.eq.s32.totalorder %s17, 0
    %p51 = por %p49, %p50
    %s53 = sadd.s32 %s52, 1
    %p56 = scmp.eq.s32.totalorder %s11, 51
    %p57 = scmp.ne.s32.totalorder %s52, %s54
    %p58 = scmp.eq.s32.totalorder %s11, 0
    %p59 = por %p57, %p58
    %p60 = scmp.ne.s32.totalorder %s52, %s54
    %p61 = scmp.eq.s32.totalorder %s16, 51
    %p62 = por %p60, %p61
    %p63 = scmp.ne.s32.totalorder %s54, %s55
    %p64 = scmp.eq.s32.totalorder %s16, 0
    %p65 = por %p63, %p64
    %p66 = scmp.ne.s32.totalorder %s54, %s55
    %p67 = scmp.eq.s32.totalorder %s17, 51
    %p68 = por %p66, %p67
    %p70 = scmp.ne.s32.totalorder %s55, %s69
    %p71 = scmp.eq.s32.totalorder %s17, 0
    %p72 = por %p70, %p71
    %s74 = sadd.s32 %s73, 1
    %p77 = scmp.eq.s32.totalorder %s11, 51
    %p78 = scmp.ne.s32.totalorder %s73, %s75
    %p79 = scmp.eq.s32.totalorder %s11, 0
    %p80 = por %p78, %p79
    %p81 = scmp.ne.s32.totalorder %s73, %s75
    %p82 = scmp.eq.s32.totalorder %s16, 51
    %p83 = por %p81, %p82
    %p84 = scmp.ne.s32.totalorder %s75, %s76
    %p85 = scmp.eq.s32.totalorder %s16, 0
    %p86 = por %p84, %p85
    %p87 = scmp.ne.s32.totalorder %s75, %s76
    %p88 = scmp.eq.s32.totalorder %s17, 51
    %p89 = por %p87, %p88
    %p91 = scmp.ne.s32.totalorder %s76, %s90
    %p92 = scmp.eq.s32.totalorder %s17, 0
    %p93 = por %p91, %p92
    %s95 = sadd.s32 %s94, 1
    %p98 = scmp.eq.s32.totalorder %s11, 51
    %p99 = scmp.ne.s32.totalorder %s94, %s96
    %p100 = scmp.eq.s32.totalorder %s11, 0
    %p101 = por %p99, %p100
    %p102 = scmp.ne.s32.totalorder %s94, %s96
    %p103 = scmp.eq.s32.totalorder %s16, 51
    %p104 = por %p102, %p103
    %p105 = scmp.ne.s32.totalorder %s96, %s97
    %p106 = scmp.eq.s32.totalorder %s16, 0
    %p107 = por %p105, %p106
    %p108 = scmp.ne.s32.totalorder %s96, %s97
    %p109 = scmp.eq.s32.totalorder %s17, 51
    %p110 = por %p108, %p109
    %p112 = scmp.ne.s32.totalorder %s97, %s111
    %p113 = scmp.eq.s32.totalorder %s17, 0
    %p114 = por %p112, %p113
    %s116 = sadd.s32 %s115, 1
    %p119 = scmp.eq.s32.totalorder %s11, 51
    %p120 = scmp.ne.s32.totalorder %s115, %s117
    %p121 = scmp.eq.s32.totalorder %s11, 0
    %p122 = por %p120, %p121
    %p123 = scmp.ne.s32.totalorder %s115, %s117
    %p124 = scmp.eq.s32.totalorder %s16, 51
    %p125 = por %p123, %p124
    %p126 = scmp.ne.s32.totalorder %s117, %s118
    %p127 = scmp.eq.s32.totalorder %s16, 0
    %p128 = por %p126, %p127
    %p129 = scmp.ne.s32.totalorder %s117, %s118
    %p130 = scmp.eq.s32.totalorder %s17, 51
    %p131 = por %p129, %p130
    %p133 = scmp.ne.s32.totalorder %s118, %s132
    %p134 = scmp.eq.s32.totalorder %s17, 0
    %p135 = por %p133, %p134
    %s137 = sadd.s32 %s136, 1
    %p140 = scmp.eq.s32.totalorder %s11, 51
    %p141 = scmp.ne.s32.totalorder %s136, %s138
    %p142 = scmp.eq.s32.totalorder %s11, 0
    %p143 = por %p141, %p142
    %p144 = scmp.ne.s32.totalorder %s136, %s138
    %p145 = scmp.eq.s32.totalorder %s16, 51
    %p146 = por %p144, %p145
    %p147 = scmp.ne.s32.totalorder %s138, %s139
    %p148 = scmp.eq.s32.totalorder %s16, 0
    %p149 = por %p147, %p148
    %p150 = scmp.ne.s32.totalorder %s138, %s139
    %p151 = scmp.eq.s32.totalorder %s17, 51
    %p152 = por %p150, %p151
    %p154 = scmp.ne.s32.totalorder %s139, %s153
    %p155 = scmp.eq.s32.totalorder %s17, 0
    %p156 = por %p154, %p155
    %p157 = scmp.le.s32.totalorder 1, %s11
    %p158 = scmp.lt.s32.totalorder %s11, 53
    %p159 = pnand %p157, %p158
    %p160 = pneg %p159
    // Predicated region
    $region9: #{tpu_custom_call.1} parent=5 // pred_check
      _
    $region10: #{tpu_custom_call.1} parent=5 // pred_check_branch
      %162 = sbr.rel (%p159) target = $region12
    $region11: #{tpu_custom_call.1} parent=5 // pred_region
      %s163 = ssub.s32 %s11, 1
      // Predicated region
      $region13: #{tpu_custom_call.1} parent=11 // pred_check
        %p164 = pneg %p44
      $region14: #{tpu_custom_call.1} parent=11 // pred_check_branch
        %166 = sbr.rel (%p164) target = $region16
      $region15: #{tpu_custom_call.1} parent=11 // pred_region
        _
      $region16: #{tpu_custom_call.1} parent=11 // pred_fallthru
        _
      // Predicated region
      $region17: #{tpu_custom_call.1} parent=11 // pred_check
        %p167 = pneg %p65
      $region18: #{tpu_custom_call.1} parent=11 // pred_check_branch
        %169 = sbr.rel (%p167) target = $region20
      $region19: #{tpu_custom_call.1} parent=11 // pred_region
        _
      $region20: #{tpu_custom_call.1} parent=11 // pred_fallthru
        _
      // Predicated region
      $region21: #{tpu_custom_call.1} parent=11 // pred_check
        %p170 = pneg %p86
      $region22: #{tpu_custom_call.1} parent=11 // pred_check_branch
        %172 = sbr.rel (%p170) target = $region24
      $region23: #{tpu_custom_call.1} parent=11 // pred_region
        _
      $region24: #{tpu_custom_call.1} parent=11 // pred_fallthru
        _
      // Predicated region
      $region25: #{tpu_custom_call.1} parent=11 // pred_check
        %p173 = pneg %p107
      $region26: #{tpu_custom_call.1} parent=11 // pred_check_branch
        %175 = sbr.rel (%p173) target = $region28
      $region27: #{tpu_custom_call.1} parent=11 // pred_region
        _
      $region28: #{tpu_custom_call.1} parent=11 // pred_fallthru
        _
      // Predicated region
      $region29: #{tpu_custom_call.1} parent=11 // pred_check
        %p176 = pneg %p128
      $region30: #{tpu_custom_call.1} parent=11 // pred_check_branch
        %178 = sbr.rel (%p176) target = $region32
      $region31: #{tpu_custom_call.1} parent=11 // pred_region
        _
      $region32: #{tpu_custom_call.1} parent=11 // pred_fallthru
        _
    $region12: #{tpu_custom_call.1} parent=5 // pred_fallthru
      _
    %p179 = scmp.lt.s32.totalorder %s11, 52
    // Predicated region
    $region33: #{tpu_custom_call.1} parent=5 // pred_check
      %p180 = pneg %p179
    $region34: #{tpu_custom_call.1} parent=5 // pred_check_branch
      %182 = sbr.rel (%p180) target = $region36
    $region35: #{tpu_custom_call.1} parent=5 // pred_region
      _
    $region36: #{tpu_custom_call.1} parent=5 // pred_fallthru
      _
    %p183 = scmp.le.s32.totalorder 1, %s11
    %p184 = scmp.lt.s32.totalorder %s11, 53
    %p185 = pnand %p183, %p184
    %p186 = pneg %p185
    // Predicated region
    $region37: #{tpu_custom_call.1} parent=5 // pred_check
      _
    $region38: #{tpu_custom_call.1} parent=5 // pred_check_branch
      %188 = sbr.rel (%p185) target = $region40
    $region39: #{tpu_custom_call.1} parent=5 // pred_region
      %s189 = ssub.s32 %s11, 1
      %p190 = pneg %p44
      %p191 = pneg %p41
      %p192 = pneg %p65
      %p193 = pneg %p62
      %p194 = pneg %p86
      %p195 = pneg %p83
      %p196 = pneg %p107
      %p197 = pneg %p104
      %p198 = pneg %p128
      %p199 = pneg %p125
      %p200 = pneg %p149
      %p201 = pneg %p146
      %p202 = scmp.eq.s32.totalorder %s20, 0
      %p203 = scmp.eq.s32.totalorder %s21, 0
      %p204 = pnand %p202, %p203
      %p205 = pneg %p204
      // Predicated region
      $region41: #{tpu_custom_call.1} parent=39 // pred_check
        _
      $region42: #{tpu_custom_call.1} parent=39 // pred_check_branch
        %207 = sbr.rel (%p204) target = $region44
      $region43: #{tpu_custom_call.1} parent=39 // pred_region
        %vm208 = vcmask 516096
        %209 = vst.msk [vmem:[#allocation3] sm:$0x1] %vm208, 0.0
        %210 = vst.msk [vmem:[#allocation4] sm:$0x1] %vm208, 0.0
      $region44: #{tpu_custom_call.1} parent=39 // pred_fallthru
        _
      %s211 = smul.u32 %s21, 32
      %s212 = smul.u32 %s20, 896
      %s213 = sadd.s32 %s211, %s212
      %s214 = scalar_lea.vmem %s0, %s213
      %v215 = vld [vmem:[%s214] sm:$0xff]
      %v216 = vld [vmem:[%s214 + $0x8] sm:$0xff]
      %v217 = vld [vmem:[%s214 + $0x10] sm:$0xff]
      %v218 = vld [vmem:[%s214 + $0x18] sm:$0x3]
      %v219 = vld [vmem:[%s1] sm:$0x7]
      %v220 = vld [vmem:[%s214 + $0x1] sm:$0xff]
      %v221 = vld [vmem:[%s214 + $0x9] sm:$0xff]
      %v222 = vld [vmem:[%s214 + $0x11] sm:$0xff]
      %v223 = vld [vmem:[%s214 + $0x19] sm:$0x3]
      %s224 = scalar_lea.vmem %s1, 4
      %v225 = vld [vmem:[%s224] sm:$0x7]
      %vm226 = vcmask 23552
      %v228 = vsel %vm226, %v220, 0
      %v231 = vsel %vm226, %v221, 0
      %v234 = vsel %vm226, %v222, 0
      %v237 = vsel %vm226, %v223, 0
      %vm239 = vcmask 1042432
      %v241 = vsel %vm239, %v225, 0
      %243 = vmatprep.subr.mxu0 0.0
      %244 = vmatpush1.msra.mxu0 0.0
      %245 = vmatprep.subr.mxu0 0.0
      %246 = vmatpush1.msra.mxu0 0.0
      %247 = vmatprep.subr.mxu0 0.0
      %248 = vmatpush1.msra.mxu0 0.0
      %249 = vmatprep.subr.mxu0 0.0
      %250 = vmatpush1.msra.mxu0 0.0
      %251 = vmatprep.subr.mxu0 0.0
      %252 = vmatpush1.msra.mxu0 0.0
      %253 = vmatprep.subr.mxu0 0.0
      %254 = vmatpush1.msra.mxu0 0.0
      %255 = vmatprep.subr.mxu0 0.0
      %256 = vmatpush1.msra.mxu0 0.0
      %257 = vmatprep.subr.mxu0 0.0
      %258 = vmatpush1.msra.mxu0 0.0
      %259 = vmatprep.subr.mxu0 0.0
      %260 = vmatpush1.msra.mxu0 0.0
      %261 = vmatprep.subr.mxu0 0.0
      %262 = vmatpush1.msra.mxu0 0.0
      %263 = vmatprep.subr.mxu0 0.0
      %264 = vmatpush1.msra.mxu0 0.0
      %265 = vmatprep.subr.mxu0 0.0
      %266 = vmatpush1.msra.mxu0 0.0
      %267 = vmatprep.subr.mxu0 0.0
      %268 = vmatpush1.msra.mxu0 0.0
      %269 = vmatprep.subr.mxu0 0.0
      %270 = vmatpush1.msra.mxu0 0.0
      %271 = vmatprep.subr.mxu0 0.0
      %272 = vmatpush1.msra.mxu0 0.0
      %273 = vmatprep.subr.mxu0 0.0
      %274 = vmatpush1.msra.mxu0 %v241
      %275 = vmatprep.subr.mxu0 0.0
      %276 = vmatpush2.msra.mxu0 0.0
      %277 = vmatprep.subr.mxu0 0.0
      %278 = vmatpush2.msra.mxu0 0.0
      %279 = vmatprep.subr.mxu0 0.0
      %280 = vmatpush2.msra.mxu0 0.0
      %281 = vmatprep.subr.mxu0 0.0
      %282 = vmatpush2.msra.mxu0 0.0
      %283 = vmatprep.subr.mxu0 0.0
      %284 = vmatpush2.msra.mxu0 0.0
      %285 = vmatprep.subr.mxu0 0.0
      %286 = vmatpush2.msra.mxu0 0.0
      %287 = vmatprep.subr.mxu0 0.0
      %288 = vmatpush2.msra.mxu0 0.0
      %289 = vmatprep.subr.mxu0 0.0
      %290 = vmatpush2.msra.mxu0 0.0
      %291 = vmatprep.subr.mxu0 0.0
      %292 = vmatpush2.msra.mxu0 0.0
      %293 = vmatprep.subr.mxu0 0.0
      %294 = vmatpush2.msra.mxu0 0.0
      %295 = vmatprep.subr.mxu0 0.0
      %296 = vmatpush2.msra.mxu0 0.0
      %297 = vmatprep.subr.mxu0 0.0
      %298 = vmatpush2.msra.mxu0 0.0
      %299 = vmatprep.subr.mxu0 0.0
      %300 = vmatpush2.msra.mxu0 0.0
      %301 = vmatprep.subr.mxu0 0.0
      %302 = vmatpush2.msra.mxu0 0.0
      %303 = vmatprep.subr.mxu0 0.0
      %304 = vmatpush2.msra.mxu0 0.0
      %305 = vmatprep.subr.mxu0 0.0
      %306 = vmatpush2.msra.mxu0 0.0
      %307 = vmatprep.mubr.f32.mxu0 0.0
      %308 = vmatmul.mubr.f32.gmra.mxu0 %v228
      %v309 = vpop.f32.mrf.mxu0
      %v310 = vadd.f32 0.0, %v309
      %v311 = vpop.f32.mrf.mxu0
      %312 = vmatprep.mubr.f32.mxu0 0.0
      %313 = vmatmul.mubr.f32.gmra.mxu0 %v231
      %v314 = vpop.f32.mrf.mxu0
      %v315 = vadd.f32 0.0, %v314
      %v316 = vpop.f32.mrf.mxu0
      %317 = vmatprep.mubr.f32.mxu0 0.0
      %318 = vmatmul.mubr.f32.gmra.mxu0 %v234
      %v319 = vpop.f32.mrf.mxu0
      %v320 = vadd.f32 0.0, %v319
      %v321 = vpop.f32.mrf.mxu0
      %322 = vmatprep.mubr.f32.mxu0 0.0
      %323 = vmatmul.mubr.f32.gmra.mxu0 %v237
      %v324 = vpop.f32.mrf.mxu0
      %v325 = vadd.f32 0.0, %v324
      %v326 = vpop.f32.mrf.mxu0
      %327 = vdwg.mxu0
      %v329 = vsel %vm226, %v215, 0
      %v332 = vsel %vm226, %v216, 0
      %v335 = vsel %vm226, %v217, 0
      %v338 = vsel %vm226, %v218, 0
      %v341 = vsel %vm239, %v219, 0
      %343 = vmatprep.subr.mxu0 0.0
      %344 = vmatpush1.msra.mxu0 0.0
      %345 = vmatprep.subr.mxu0 0.0
      %346 = vmatpush1.msra.mxu0 0.0
      %347 = vmatprep.subr.mxu0 0.0
      %348 = vmatpush1.msra.mxu0 0.0
      %349 = vmatprep.subr.mxu0 0.0
      %350 = vmatpush1.msra.mxu0 0.0
      %351 = vmatprep.subr.mxu0 0.0
      %352 = vmatpush1.msra.mxu0 0.0
      %353 = vmatprep.subr.mxu0 0.0
      %354 = vmatpush1.msra.mxu0 0.0
      %355 = vmatprep.subr.mxu0 0.0
      %356 = vmatpush1.msra.mxu0 0.0
      %357 = vmatprep.subr.mxu0 0.0
      %358 = vmatpush1.msra.mxu0 0.0
      %359 = vmatprep.subr.mxu0 0.0
      %360 = vmatpush1.msra.mxu0 0.0
      %361 = vmatprep.subr.mxu0 0.0
      %362 = vmatpush1.msra.mxu0 0.0
      %363 = vmatprep.subr.mxu0 0.0
      %364 = vmatpush1.msra.mxu0 0.0
      %365 = vmatprep.subr.mxu0 0.0
      %366 = vmatpush1.msra.mxu0 0.0
      %367 = vmatprep.subr.mxu0 0.0
      %368 = vmatpush1.msra.mxu0 0.0
      %369 = vmatprep.subr.mxu0 0.0
      %370 = vmatpush1.msra.mxu0 0.0
      %371 = vmatprep.subr.mxu0 0.0
      %372 = vmatpush1.msra.mxu0 0.0
      %373 = vmatprep.subr.mxu0 0.0
      %374 = vmatpush1.msra.mxu0 %v341
      %375 = vmatprep.subr.mxu0 0.0
      %376 = vmatpush2.msra.mxu0 0.0
      %377 = vmatprep.subr.mxu0 0.0
      %378 = vmatpush2.msra.mxu0 0.0
      %379 = vmatprep.subr.mxu0 0.0
      %380 = vmatpush2.msra.mxu0 0.0
      %381 = vmatprep.subr.mxu0 0.0
      %382 = vmatpush2.msra.mxu0 0.0
      %383 = vmatprep.subr.mxu0 0.0
      %384 = vmatpush2.msra.mxu0 0.0
      %385 = vmatprep.subr.mxu0 0.0
      %386 = vmatpush2.msra.mxu0 0.0
      %387 = vmatprep.subr.mxu0 0.0
      %388 = vmatpush2.msra.mxu0 0.0
      %389 = vmatprep.subr.mxu0 0.0
      %390 = vmatpush2.msra.mxu0 0.0
      %391 = vmatprep.subr.mxu0 0.0
      %392 = vmatpush2.msra.mxu0 0.0
      %393 = vmatprep.subr.mxu0 0.0
      %394 = vmatpush2.msra.mxu0 0.0
      %395 = vmatprep.subr.mxu0 0.0
      %396 = vmatpush2.msra.mxu0 0.0
      %397 = vmatprep.subr.mxu0 0.0
      %398 = vmatpush2.msra.mxu0 0.0
      %399 = vmatprep.subr.mxu0 0.0
      %400 = vmatpush2.msra.mxu0 0.0
      %401 = vmatprep.subr.mxu0 0.0
      %402 = vmatpush2.msra.mxu0 0.0
      %403 = vmatprep.subr.mxu0 0.0
      %404 = vmatpush2.msra.mxu0 0.0
      %405 = vmatprep.subr.mxu0 0.0
      %406 = vmatpush2.msra.mxu0 0.0
      %407 = vmatprep.mubr.f32.mxu0 0.0
      %408 = vmatmul.mubr.f32.gmra.mxu0 %v329
      %v409 = vpop.f32.mrf.mxu0
      %v410 = vadd.f32 %v310, %v409
      %v411 = vpop.f32.mrf.mxu0
      %412 = vmatprep.mubr.f32.mxu0 0.0
      %413 = vmatmul.mubr.f32.gmra.mxu0 %v332
      %v414 = vpop.f32.mrf.mxu0
      %v415 = vadd.f32 %v315, %v414
      %v416 = vpop.f32.mrf.mxu0
      %417 = vmatprep.mubr.f32.mxu0 0.0
      %418 = vmatmul.mubr.f32.gmra.mxu0 %v335
      %v419 = vpop.f32.mrf.mxu0
      %v420 = vadd.f32 %v320, %v419
      %v421 = vpop.f32.mrf.mxu0
      %422 = vmatprep.mubr.f32.mxu0 0.0
      %423 = vmatmul.mubr.f32.gmra.mxu0 %v338
      %v424 = vpop.f32.mrf.mxu0
      %v425 = vadd.f32 %v325, %v424
      %v426 = vpop.f32.mrf.mxu0
      %427 = vdwg.mxu0
      %v428 = vld [vmem:[%s214 + $0x2] sm:$0xff]
      %v429 = vld [vmem:[%s214 + $0xa] sm:$0xff]
      %v430 = vld [vmem:[%s214 + $0x12] sm:$0xff]
      %v431 = vld [vmem:[%s214 + $0x1a] sm:$0x3]
      %s432 = scalar_lea.vmem %s1, 8
      %v433 = vld [vmem:[%s432] sm:$0x7]
      %v435 = vsel %vm226, %v428, 0
      %v438 = vsel %vm226, %v429, 0
      %v441 = vsel %vm226, %v430, 0
      %v444 = vsel %vm226, %v431, 0
      %v447 = vsel %vm239, %v433, 0
      %449 = vmatprep.subr.mxu0 0.0
      %450 = vmatpush1.msra.mxu0 0.0
      %451 = vmatprep.subr.mxu0 0.0
      %452 = vmatpush1.msra.mxu0 0.0
      %453 = vmatprep.subr.mxu0 0.0
      %454 = vmatpush1.msra.mxu0 0.0
      %455 = vmatprep.subr.mxu0 0.0
      %456 = vmatpush1.msra.mxu0 0.0
      %457 = vmatprep.subr.mxu0 0.0
      %458 = vmatpush1.msra.mxu0 0.0
      %459 = vmatprep.subr.mxu0 0.0
      %460 = vmatpush1.msra.mxu0 0.0
      %461 = vmatprep.subr.mxu0 0.0
      %462 = vmatpush1.msra.mxu0 0.0
      %463 = vmatprep.subr.mxu0 0.0
      %464 = vmatpush1.msra.mxu0 0.0
      %465 = vmatprep.subr.mxu0 0.0
      %466 = vmatpush1.msra.mxu0 0.0
      %467 = vmatprep.subr.mxu0 0.0
      %468 = vmatpush1.msra.mxu0 0.0
      %469 = vmatprep.subr.mxu0 0.0
      %470 = vmatpush1.msra.mxu0 0.0
      %471 = vmatprep.subr.mxu0 0.0
      %472 = vmatpush1.msra.mxu0 0.0
      %473 = vmatprep.subr.mxu0 0.0
      %474 = vmatpush1.msra.mxu0 0.0
      %475 = vmatprep.subr.mxu0 0.0
      %476 = vmatpush1.msra.mxu0 0.0
      %477 = vmatprep.subr.mxu0 0.0
      %478 = vmatpush1.msra.mxu0 0.0
      %479 = vmatprep.subr.mxu0 0.0
      %480 = vmatpush1.msra.mxu0 %v447
      %481 = vmatprep.subr.mxu0 0.0
      %482 = vmatpush2.msra.mxu0 0.0
      %483 = vmatprep.subr.mxu0 0.0
      %484 = vmatpush2.msra.mxu0 0.0
      %485 = vmatprep.subr.mxu0 0.0
      %486 = vmatpush2.msra.mxu0 0.0
      %487 = vmatprep.subr.mxu0 0.0
      %488 = vmatpush2.msra.mxu0 0.0
      %489 = vmatprep.subr.mxu0 0.0
      %490 = vmatpush2.msra.mxu0 0.0
      %491 = vmatprep.subr.mxu0 0.0
      %492 = vmatpush2.msra.mxu0 0.0
      %493 = vmatprep.subr.mxu0 0.0
      %494 = vmatpush2.msra.mxu0 0.0
      %495 = vmatprep.subr.mxu0 0.0
      %496 = vmatpush2.msra.mxu0 0.0
      %497 = vmatprep.subr.mxu0 0.0
      %498 = vmatpush2.msra.mxu0 0.0
      %499 = vmatprep.subr.mxu0 0.0
      %500 = vmatpush2.msra.mxu0 0.0
      %501 = vmatprep.subr.mxu0 0.0
      %502 = vmatpush2.msra.mxu0 0.0
      %503 = vmatprep.subr.mxu0 0.0
      %504 = vmatpush2.msra.mxu0 0.0
      %505 = vmatprep.subr.mxu0 0.0
      %506 = vmatpush2.msra.mxu0 0.0
      %507 = vmatprep.subr.mxu0 0.0
      %508 = vmatpush2.msra.mxu0 0.0
      %509 = vmatprep.subr.mxu0 0.0
      %510 = vmatpush2.msra.mxu0 0.0
      %511 = vmatprep.subr.mxu0 0.0
      %512 = vmatpush2.msra.mxu0 0.0
      %513 = vmatprep.mubr.f32.mxu0 0.0
      %514 = vmatmul.mubr.f32.gmra.mxu0 %v435
      %v515 = vpop.f32.mrf.mxu0
      %v516 = vadd.f32 0.0, %v515
      %v517 = vpop.f32.mrf.mxu0
      %518 = vmatprep.mubr.f32.mxu0 0.0
      %519 = vmatmul.mubr.f32.gmra.mxu0 %v438
      %v520 = vpop.f32.mrf.mxu0
      %v521 = vadd.f32 0.0, %v520
      %v522 = vpop.f32.mrf.mxu0
      %523 = vmatprep.mubr.f32.mxu0 0.0
      %524 = vmatmul.mubr.f32.gmra.mxu0 %v441
      %v525 = vpop.f32.mrf.mxu0
      %v526 = vadd.f32 0.0, %v525
      %v527 = vpop.f32.mrf.mxu0
      %528 = vmatprep.mubr.f32.mxu0 0.0
      %529 = vmatmul.mubr.f32.gmra.mxu0 %v444
      %v530 = vpop.f32.mrf.mxu0
      %v531 = vadd.f32 0.0, %v530
      %v532 = vpop.f32.mrf.mxu0
      %533 = vdwg.mxu0
      %v534 = vadd.f32 %v410, %v516
      %v535 = vadd.f32 %v415, %v521
      %v536 = vadd.f32 %v420, %v526
      %v537 = vadd.f32 %v425, %v531
      %s538 = sadd.s32 %s21, 1
      %s539 = smul.u32 %s538, 32
      %s540 = sadd.s32 %s539, %s212
      %s541 = scalar_lea.vmem %s0, %s540
      %v542 = vld [vmem:[%s541] sm:$0xff]
      %v543 = vld [vmem:[%s541 + $0x8] sm:$0xff]
      %v544 = vld [vmem:[%s541 + $0x10] sm:$0xff]
      %v545 = vld [vmem:[%s541 + $0x18] sm:$0x3]
      %s546 = scalar_lea.vmem %s1, 12
      %v547 = vld [vmem:[%s546] sm:$0x7]
      %v549 = vsel %vm226, %v542, 0
      %v552 = vsel %vm226, %v543, 0
      %v555 = vsel %vm226, %v544, 0
      %v558 = vsel %vm226, %v545, 0
      %v561 = vsel %vm239, %v547, 0
      %563 = vmatprep.subr.mxu0 0.0
      %564 = vmatpush1.msra.mxu0 0.0
      %565 = vmatprep.subr.mxu0 0.0
      %566 = vmatpush1.msra.mxu0 0.0
      %567 = vmatprep.subr.mxu0 0.0
      %568 = vmatpush1.msra.mxu0 0.0
      %569 = vmatprep.subr.mxu0 0.0
      %570 = vmatpush1.msra.mxu0 0.0
      %571 = vmatprep.subr.mxu0 0.0
      %572 = vmatpush1.msra.mxu0 0.0
      %573 = vmatprep.subr.mxu0 0.0
      %574 = vmatpush1.msra.mxu0 0.0
      %575 = vmatprep.subr.mxu0 0.0
      %576 = vmatpush1.msra.mxu0 0.0
      %577 = vmatprep.subr.mxu0 0.0
      %578 = vmatpush1.msra.mxu0 0.0
      %579 = vmatprep.subr.mxu0 0.0
      %580 = vmatpush1.msra.mxu0 0.0
      %581 = vmatprep.subr.mxu0 0.0
      %582 = vmatpush1.msra.mxu0 0.0
      %583 = vmatprep.subr.mxu0 0.0
      %584 = vmatpush1.msra.mxu0 0.0
      %585 = vmatprep.subr.mxu0 0.0
      %586 = vmatpush1.msra.mxu0 0.0
      %587 = vmatprep.subr.mxu0 0.0
      %588 = vmatpush1.msra.mxu0 0.0
      %589 = vmatprep.subr.mxu0 0.0
      %590 = vmatpush1.msra.mxu0 0.0
      %591 = vmatprep.subr.mxu0 0.0
      %592 = vmatpush1.msra.mxu0 0.0
      %593 = vmatprep.subr.mxu0 0.0
      %594 = vmatpush1.msra.mxu0 %v561
      %595 = vmatprep.subr.mxu0 0.0
      %596 = vmatpush2.msra.mxu0 0.0
      %597 = vmatprep.subr.mxu0 0.0
      %598 = vmatpush2.msra.mxu0 0.0
      %599 = vmatprep.subr.mxu0 0.0
      %600 = vmatpush2.msra.mxu0 0.0
      %601 = vmatprep.subr.mxu0 0.0
      %602 = vmatpush2.msra.mxu0 0.0
      %603 = vmatprep.subr.mxu0 0.0
      %604 = vmatpush2.msra.mxu0 0.0
      %605 = vmatprep.subr.mxu0 0.0
      %606 = vmatpush2.msra.mxu0 0.0
      %607 = vmatprep.subr.mxu0 0.0
      %608 = vmatpush2.msra.mxu0 0.0
      %609 = vmatprep.subr.mxu0 0.0
      %610 = vmatpush2.msra.mxu0 0.0
      %611 = vmatprep.subr.mxu0 0.0
      %612 = vmatpush2.msra.mxu0 0.0
      %613 = vmatprep.subr.mxu0 0.0
      %614 = vmatpush2.msra.mxu0 0.0
      %615 = vmatprep.subr.mxu0 0.0
      %616 = vmatpush2.msra.mxu0 0.0
      %617 = vmatprep.subr.mxu0 0.0
      %618 = vmatpush2.msra.mxu0 0.0
      %619 = vmatprep.subr.mxu0 0.0
      %620 = vmatpush2.msra.mxu0 0.0
      %621 = vmatprep.subr.mxu0 0.0
      %622 = vmatpush2.msra.mxu0 0.0
      %623 = vmatprep.subr.mxu0 0.0
      %624 = vmatpush2.msra.mxu0 0.0
      %625 = vmatprep.subr.mxu0 0.0
      %626 = vmatpush2.msra.mxu0 0.0
      %627 = vmatprep.mubr.f32.mxu0 0.0
      %628 = vmatmul.mubr.f32.gmra.mxu0 %v549
      %v629 = vpop.f32.mrf.mxu0
      %v630 = vadd.f32 0.0, %v629
      %v631 = vpop.f32.mrf.mxu0
      %632 = vmatprep.mubr.f32.mxu0 0.0
      %633 = vmatmul.mubr.f32.gmra.mxu0 %v552
      %v634 = vpop.f32.mrf.mxu0
      %v635 = vadd.f32 0.0, %v634
      %v636 = vpop.f32.mrf.mxu0
      %637 = vmatprep.mubr.f32.mxu0 0.0
      %638 = vmatmul.mubr.f32.gmra.mxu0 %v555
      %v639 = vpop.f32.mrf.mxu0
      %v640 = vadd.f32 0.0, %v639
      %v641 = vpop.f32.mrf.mxu0
      %642 = vmatprep.mubr.f32.mxu0 0.0
      %643 = vmatmul.mubr.f32.gmra.mxu0 %v558
      %v644 = vpop.f32.mrf.mxu0
      %v645 = vadd.f32 0.0, %v644
      %v646 = vpop.f32.mrf.mxu0
      %647 = vdwg.mxu0
      %v648 = vadd.f32 %v534, %v630
      %v649 = vadd.f32 %v535, %v635
      %v650 = vadd.f32 %v536, %v640
      %v651 = vadd.f32 %v537, %v645
      %v652 = vld [vmem:[%s541 + $0x1] sm:$0xff]
      %v653 = vld [vmem:[%s541 + $0x9] sm:$0xff]
      %v654 = vld [vmem:[%s541 + $0x11] sm:$0xff]
      %v655 = vld [vmem:[%s541 + $0x19] sm:$0x3]
      %s656 = scalar_lea.vmem %s1, 16
      %v657 = vld [vmem:[%s656] sm:$0x7]
      %v659 = vsel %vm226, %v652, 0
      %v662 = vsel %vm226, %v653, 0
      %v665 = vsel %vm226, %v654, 0
      %v668 = vsel %vm226, %v655, 0
      %v671 = vsel %vm239, %v657, 0
      %673 = vmatprep.subr.mxu0 0.0
      %674 = vmatpush1.msra.mxu0 0.0
      %675 = vmatprep.subr.mxu0 0.0
      %676 = vmatpush1.msra.mxu0 0.0
      %677 = vmatprep.subr.mxu0 0.0
      %678 = vmatpush1.msra.mxu0 0.0
      %679 = vmatprep.subr.mxu0 0.0
      %680 = vmatpush1.msra.mxu0 0.0
      %681 = vmatprep.subr.mxu0 0.0
      %682 = vmatpush1.msra.mxu0 0.0
      %683 = vmatprep.subr.mxu0 0.0
      %684 = vmatpush1.msra.mxu0 0.0
      %685 = vmatprep.subr.mxu0 0.0
      %686 = vmatpush1.msra.mxu0 0.0
      %687 = vmatprep.subr.mxu0 0.0
      %688 = vmatpush1.msra.mxu0 0.0
      %689 = vmatprep.subr.mxu0 0.0
      %690 = vmatpush1.msra.mxu0 0.0
      %691 = vmatprep.subr.mxu0 0.0
      %692 = vmatpush1.msra.mxu0 0.0
      %693 = vmatprep.subr.mxu0 0.0
      %694 = vmatpush1.msra.mxu0 0.0
      %695 = vmatprep.subr.mxu0 0.0
      %696 = vmatpush1.msra.mxu0 0.0
      %697 = vmatprep.subr.mxu0 0.0
      %698 = vmatpush1.msra.mxu0 0.0
      %699 = vmatprep.subr.mxu0 0.0
      %700 = vmatpush1.msra.mxu0 0.0
      %701 = vmatprep.subr.mxu0 0.0
      %702 = vmatpush1.msra.mxu0 0.0
      %703 = vmatprep.subr.mxu0 0.0
      %704 = vmatpush1.msra.mxu0 %v671
      %705 = vmatprep.subr.mxu0 0.0
      %706 = vmatpush2.msra.mxu0 0.0
      %707 = vmatprep.subr.mxu0 0.0
      %708 = vmatpush2.msra.mxu0 0.0
      %709 = vmatprep.subr.mxu0 0.0
      %710 = vmatpush2.msra.mxu0 0.0
      %711 = vmatprep.subr.mxu0 0.0
      %712 = vmatpush2.msra.mxu0 0.0
      %713 = vmatprep.subr.mxu0 0.0
      %714 = vmatpush2.msra.mxu0 0.0
      %715 = vmatprep.subr.mxu0 0.0
      %716 = vmatpush2.msra.mxu0 0.0
      %717 = vmatprep.subr.mxu0 0.0
      %718 = vmatpush2.msra.mxu0 0.0
      %719 = vmatprep.subr.mxu0 0.0
      %720 = vmatpush2.msra.mxu0 0.0
      %721 = vmatprep.subr.mxu0 0.0
      %722 = vmatpush2.msra.mxu0 0.0
      %723 = vmatprep.subr.mxu0 0.0
      %724 = vmatpush2.msra.mxu0 0.0
      %725 = vmatprep.subr.mxu0 0.0
      %726 = vmatpush2.msra.mxu0 0.0
      %727 = vmatprep.subr.mxu0 0.0
      %728 = vmatpush2.msra.mxu0 0.0
      %729 = vmatprep.subr.mxu0 0.0
      %730 = vmatpush2.msra.mxu0 0.0
      %731 = vmatprep.subr.mxu0 0.0
      %732 = vmatpush2.msra.mxu0 0.0
      %733 = vmatprep.subr.mxu0 0.0
      %734 = vmatpush2.msra.mxu0 0.0
      %735 = vmatprep.subr.mxu0 0.0
      %736 = vmatpush2.msra.mxu0 0.0
      %737 = vmatprep.mubr.f32.mxu0 0.0
      %738 = vmatmul.mubr.f32.gmra.mxu0 %v659
      %v739 = vpop.f32.mrf.mxu0
      %v740 = vadd.f32 0.0, %v739
      %v741 = vpop.f32.mrf.mxu0
      %742 = vmatprep.mubr.f32.mxu0 0.0
      %743 = vmatmul.mubr.f32.gmra.mxu0 %v662
      %v744 = vpop.f32.mrf.mxu0
      %v745 = vadd.f32 0.0, %v744
      %v746 = vpop.f32.mrf.mxu0
      %747 = vmatprep.mubr.f32.mxu0 0.0
      %748 = vmatmul.mubr.f32.gmra.mxu0 %v665
      %v749 = vpop.f32.mrf.mxu0
      %v750 = vadd.f32 0.0, %v749
      %v751 = vpop.f32.mrf.mxu0
      %752 = vmatprep.mubr.f32.mxu0 0.0
      %753 = vmatmul.mubr.f32.gmra.mxu0 %v668
      %v754 = vpop.f32.mrf.mxu0
      %v755 = vadd.f32 0.0, %v754
      %v756 = vpop.f32.mrf.mxu0
      %757 = vdwg.mxu0
      %v758 = vadd.f32 %v648, %v740
      %v759 = vadd.f32 %v649, %v745
      %v760 = vadd.f32 %v650, %v750
      %v761 = vadd.f32 %v651, %v755
      %v762 = vld [vmem:[%s541 + $0x2] sm:$0xff]
      %v763 = vld [vmem:[%s541 + $0xa] sm:$0xff]
      %v764 = vld [vmem:[%s541 + $0x12] sm:$0xff]
      %v765 = vld [vmem:[%s541 + $0x1a] sm:$0x3]
      %s766 = scalar_lea.vmem %s1, 20
      %v767 = vld [vmem:[%s766] sm:$0x7]
      %v769 = vsel %vm226, %v762, 0
      %v772 = vsel %vm226, %v763, 0
      %v775 = vsel %vm226, %v764, 0
      %v778 = vsel %vm226, %v765, 0
      %v781 = vsel %vm239, %v767, 0
      %783 = vmatprep.subr.mxu0 0.0
      %784 = vmatpush1.msra.mxu0 0.0
      %785 = vmatprep.subr.mxu0 0.0
      %786 = vmatpush1.msra.mxu0 0.0
      %787 = vmatprep.subr.mxu0 0.0
      %788 = vmatpush1.msra.mxu0 0.0
      %789 = vmatprep.subr.mxu0 0.0
      %790 = vmatpush1.msra.mxu0 0.0
      %791 = vmatprep.subr.mxu0 0.0
      %792 = vmatpush1.msra.mxu0 0.0
      %793 = vmatprep.subr.mxu0 0.0
      %794 = vmatpush1.msra.mxu0 0.0
      %795 = vmatprep.subr.mxu0 0.0
      %796 = vmatpush1.msra.mxu0 0.0
      %797 = vmatprep.subr.mxu0 0.0
      %798 = vmatpush1.msra.mxu0 0.0
      %799 = vmatprep.subr.mxu0 0.0
      %800 = vmatpush1.msra.mxu0 0.0
      %801 = vmatprep.subr.mxu0 0.0
      %802 = vmatpush1.msra.mxu0 0.0
      %803 = vmatprep.subr.mxu0 0.0
      %804 = vmatpush1.msra.mxu0 0.0
      %805 = vmatprep.subr.mxu0 0.0
      %806 = vmatpush1.msra.mxu0 0.0
      %807 = vmatprep.subr.mxu0 0.0
      %808 = vmatpush1.msra.mxu0 0.0
      %809 = vmatprep.subr.mxu0 0.0
      %810 = vmatpush1.msra.mxu0 0.0
      %811 = vmatprep.subr.mxu0 0.0
      %812 = vmatpush1.msra.mxu0 0.0
      %813 = vmatprep.subr.mxu0 0.0
      %814 = vmatpush1.msra.mxu0 %v781
      %815 = vmatprep.subr.mxu0 0.0
      %816 = vmatpush2.msra.mxu0 0.0
      %817 = vmatprep.subr.mxu0 0.0
      %818 = vmatpush2.msra.mxu0 0.0
      %819 = vmatprep.subr.mxu0 0.0
      %820 = vmatpush2.msra.mxu0 0.0
      %821 = vmatprep.subr.mxu0 0.0
      %822 = vmatpush2.msra.mxu0 0.0
      %823 = vmatprep.subr.mxu0 0.0
      %824 = vmatpush2.msra.mxu0 0.0
      %825 = vmatprep.subr.mxu0 0.0
      %826 = vmatpush2.msra.mxu0 0.0
      %827 = vmatprep.subr.mxu0 0.0
      %828 = vmatpush2.msra.mxu0 0.0
      %829 = vmatprep.subr.mxu0 0.0
      %830 = vmatpush2.msra.mxu0 0.0
      %831 = vmatprep.subr.mxu0 0.0
      %832 = vmatpush2.msra.mxu0 0.0
      %833 = vmatprep.subr.mxu0 0.0
      %834 = vmatpush2.msra.mxu0 0.0
      %835 = vmatprep.subr.mxu0 0.0
      %836 = vmatpush2.msra.mxu0 0.0
      %837 = vmatprep.subr.mxu0 0.0
      %838 = vmatpush2.msra.mxu0 0.0
      %839 = vmatprep.subr.mxu0 0.0
      %840 = vmatpush2.msra.mxu0 0.0
      %841 = vmatprep.subr.mxu0 0.0
      %842 = vmatpush2.msra.mxu0 0.0
      %843 = vmatprep.subr.mxu0 0.0
      %844 = vmatpush2.msra.mxu0 0.0
      %845 = vmatprep.subr.mxu0 0.0
      %846 = vmatpush2.msra.mxu0 0.0
      %847 = vmatprep.mubr.f32.mxu0 0.0
      %848 = vmatmul.mubr.f32.gmra.mxu0 %v769
      %v849 = vpop.f32.mrf.mxu0
      %v850 = vadd.f32 0.0, %v849
      %v851 = vpop.f32.mrf.mxu0
      %852 = vmatprep.mubr.f32.mxu0 0.0
      %853 = vmatmul.mubr.f32.gmra.mxu0 %v772
      %v854 = vpop.f32.mrf.mxu0
      %v855 = vadd.f32 0.0, %v854
      %v856 = vpop.f32.mrf.mxu0
      %857 = vmatprep.mubr.f32.mxu0 0.0
      %858 = vmatmul.mubr.f32.gmra.mxu0 %v775
      %v859 = vpop.f32.mrf.mxu0
      %v860 = vadd.f32 0.0, %v859
      %v861 = vpop.f32.mrf.mxu0
      %862 = vmatprep.mubr.f32.mxu0 0.0
      %863 = vmatmul.mubr.f32.gmra.mxu0 %v778
      %v864 = vpop.f32.mrf.mxu0
      %v865 = vadd.f32 0.0, %v864
      %v866 = vpop.f32.mrf.mxu0
      %867 = vdwg.mxu0
      %v868 = vadd.f32 %v758, %v850
      %v869 = vadd.f32 %v759, %v855
      %v870 = vadd.f32 %v760, %v860
      %v871 = vadd.f32 %v761, %v865
      %s872 = sadd.s32 %s21, 2
      %s873 = smul.u32 %s872, 32
      %s874 = sadd.s32 %s873, %s212
      %s875 = scalar_lea.vmem %s0, %s874
      %v876 = vld [vmem:[%s875] sm:$0xff]
      %v877 = vld [vmem:[%s875 + $0x8] sm:$0xff]
      %v878 = vld [vmem:[%s875 + $0x10] sm:$0xff]
      %v879 = vld [vmem:[%s875 + $0x18] sm:$0x3]
      %s880 = scalar_lea.vmem %s1, 24
      %v881 = vld [vmem:[%s880] sm:$0x7]
      %v883 = vsel %vm226, %v876, 0
      %v886 = vsel %vm226, %v877, 0
      %v889 = vsel %vm226, %v878, 0
      %v892 = vsel %vm226, %v879, 0
      %v895 = vsel %vm239, %v881, 0
      %897 = vmatprep.subr.mxu0 0.0
      %898 = vmatpush1.msra.mxu0 0.0
      %899 = vmatprep.subr.mxu0 0.0
      %900 = vmatpush1.msra.mxu0 0.0
      %901 = vmatprep.subr.mxu0 0.0
      %902 = vmatpush1.msra.mxu0 0.0
      %903 = vmatprep.subr.mxu0 0.0
      %904 = vmatpush1.msra.mxu0 0.0
      %905 = vmatprep.subr.mxu0 0.0
      %906 = vmatpush1.msra.mxu0 0.0
      %907 = vmatprep.subr.mxu0 0.0
      %908 = vmatpush1.msra.mxu0 0.0
      %909 = vmatprep.subr.mxu0 0.0
      %910 = vmatpush1.msra.mxu0 0.0
      %911 = vmatprep.subr.mxu0 0.0
      %912 = vmatpush1.msra.mxu0 0.0
      %913 = vmatprep.subr.mxu0 0.0
      %914 = vmatpush1.msra.mxu0 0.0
      %915 = vmatprep.subr.mxu0 0.0
      %916 = vmatpush1.msra.mxu0 0.0
      %917 = vmatprep.subr.mxu0 0.0
      %918 = vmatpush1.msra.mxu0 0.0
      %919 = vmatprep.subr.mxu0 0.0
      %920 = vmatpush1.msra.mxu0 0.0
      %921 = vmatprep.subr.mxu0 0.0
      %922 = vmatpush1.msra.mxu0 0.0
      %923 = vmatprep.subr.mxu0 0.0
      %924 = vmatpush1.msra.mxu0 0.0
      %925 = vmatprep.subr.mxu0 0.0
      %926 = vmatpush1.msra.mxu0 0.0
      %927 = vmatprep.subr.mxu0 0.0
      %928 = vmatpush1.msra.mxu0 %v895
      %929 = vmatprep.subr.mxu0 0.0
      %930 = vmatpush2.msra.mxu0 0.0
      %931 = vmatprep.subr.mxu0 0.0
      %932 = vmatpush2.msra.mxu0 0.0
      %933 = vmatprep.subr.mxu0 0.0
      %934 = vmatpush2.msra.mxu0 0.0
      %935 = vmatprep.subr.mxu0 0.0
      %936 = vmatpush2.msra.mxu0 0.0
      %937 = vmatprep.subr.mxu0 0.0
      %938 = vmatpush2.msra.mxu0 0.0
      %939 = vmatprep.subr.mxu0 0.0
      %940 = vmatpush2.msra.mxu0 0.0
      %941 = vmatprep.subr.mxu0 0.0
      %942 = vmatpush2.msra.mxu0 0.0
      %943 = vmatprep.subr.mxu0 0.0
      %944 = vmatpush2.msra.mxu0 0.0
      %945 = vmatprep.subr.mxu0 0.0
      %946 = vmatpush2.msra.mxu0 0.0
      %947 = vmatprep.subr.mxu0 0.0
      %948 = vmatpush2.msra.mxu0 0.0
      %949 = vmatprep.subr.mxu0 0.0
      %950 = vmatpush2.msra.mxu0 0.0
      %951 = vmatprep.subr.mxu0 0.0
      %952 = vmatpush2.msra.mxu0 0.0
      %953 = vmatprep.subr.mxu0 0.0
      %954 = vmatpush2.msra.mxu0 0.0
      %955 = vmatprep.subr.mxu0 0.0
      %956 = vmatpush2.msra.mxu0 0.0
      %957 = vmatprep.subr.mxu0 0.0
      %958 = vmatpush2.msra.mxu0 0.0
      %959 = vmatprep.subr.mxu0 0.0
      %960 = vmatpush2.msra.mxu0 0.0
      %961 = vmatprep.mubr.f32.mxu0 0.0
      %962 = vmatmul.mubr.f32.gmra.mxu0 %v883
      %v963 = vpop.f32.mrf.mxu0
      %v964 = vadd.f32 0.0, %v963
      %v965 = vpop.f32.mrf.mxu0
      %966 = vmatprep.mubr.f32.mxu0 0.0
      %967 = vmatmul.mubr.f32.gmra.mxu0 %v886
      %v968 = vpop.f32.mrf.mxu0
      %v969 = vadd.f32 0.0, %v968
      %v970 = vpop.f32.mrf.mxu0
      %971 = vmatprep.mubr.f32.mxu0 0.0
      %972 = vmatmul.mubr.f32.gmra.mxu0 %v889
      %v973 = vpop.f32.mrf.mxu0
      %v974 = vadd.f32 0.0, %v973
      %v975 = vpop.f32.mrf.mxu0
      %976 = vmatprep.mubr.f32.mxu0 0.0
      %977 = vmatmul.mubr.f32.gmra.mxu0 %v892
      %v978 = vpop.f32.mrf.mxu0
      %v979 = vadd.f32 0.0, %v978
      %v980 = vpop.f32.mrf.mxu0
      %981 = vdwg.mxu0
      %v982 = vadd.f32 %v868, %v964
      %v983 = vadd.f32 %v869, %v969
      %v984 = vadd.f32 %v870, %v974
      %v985 = vadd.f32 %v871, %v979
      %v986 = vld [vmem:[%s875 + $0x1] sm:$0xff]
      %v987 = vld [vmem:[%s875 + $0x9] sm:$0xff]
      %v988 = vld [vmem:[%s875 + $0x11] sm:$0xff]
      %v989 = vld [vmem:[%s875 + $0x19] sm:$0x3]
      %s990 = scalar_lea.vmem %s1, 28
      %v991 = vld [vmem:[%s990] sm:$0x7]
      %v993 = vsel %vm226, %v986, 0
      %v996 = vsel %vm226, %v987, 0
      %v999 = vsel %vm226, %v988, 0
      %v1002 = vsel %vm226, %v989, 0
      %v1005 = vsel %vm239, %v991, 0
      %1007 = vmatprep.subr.mxu0 0.0
      %1008 = vmatpush1.msra.mxu0 0.0
      %1009 = vmatprep.subr.mxu0 0.0
      %1010 = vmatpush1.msra.mxu0 0.0
      %1011 = vmatprep.subr.mxu0 0.0
      %1012 = vmatpush1.msra.mxu0 0.0
      %1013 = vmatprep.subr.mxu0 0.0
      %1014 = vmatpush1.msra.mxu0 0.0
      %1015 = vmatprep.subr.mxu0 0.0
      %1016 = vmatpush1.msra.mxu0 0.0
      %1017 = vmatprep.subr.mxu0 0.0
      %1018 = vmatpush1.msra.mxu0 0.0
      %1019 = vmatprep.subr.mxu0 0.0
      %1020 = vmatpush1.msra.mxu0 0.0
      %1021 = vmatprep.subr.mxu0 0.0
      %1022 = vmatpush1.msra.mxu0 0.0
      %1023 = vmatprep.subr.mxu0 0.0
      %1024 = vmatpush1.msra.mxu0 0.0
      %1025 = vmatprep.subr.mxu0 0.0
      %1026 = vmatpush1.msra.mxu0 0.0
      %1027 = vmatprep.subr.mxu0 0.0
      %1028 = vmatpush1.msra.mxu0 0.0
      %1029 = vmatprep.subr.mxu0 0.0
      %1030 = vmatpush1.msra.mxu0 0.0
      %1031 = vmatprep.subr.mxu0 0.0
      %1032 = vmatpush1.msra.mxu0 0.0
      %1033 = vmatprep.subr.mxu0 0.0
      %1034 = vmatpush1.msra.mxu0 0.0
      %1035 = vmatprep.subr.mxu0 0.0
      %1036 = vmatpush1.msra.mxu0 0.0
      %1037 = vmatprep.subr.mxu0 0.0
      %1038 = vmatpush1.msra.mxu0 %v1005
      %1039 = vmatprep.subr.mxu0 0.0
      %1040 = vmatpush2.msra.mxu0 0.0
      %1041 = vmatprep.subr.mxu0 0.0
      %1042 = vmatpush2.msra.mxu0 0.0
      %1043 = vmatprep.subr.mxu0 0.0
      %1044 = vmatpush2.msra.mxu0 0.0
      %1045 = vmatprep.subr.mxu0 0.0
      %1046 = vmatpush2.msra.mxu0 0.0
      %1047 = vmatprep.subr.mxu0 0.0
      %1048 = vmatpush2.msra.mxu0 0.0
      %1049 = vmatprep.subr.mxu0 0.0
      %1050 = vmatpush2.msra.mxu0 0.0
      %1051 = vmatprep.subr.mxu0 0.0
      %1052 = vmatpush2.msra.mxu0 0.0
      %1053 = vmatprep.subr.mxu0 0.0
      %1054 = vmatpush2.msra.mxu0 0.0
      %1055 = vmatprep.subr.mxu0 0.0
      %1056 = vmatpush2.msra.mxu0 0.0
      %1057 = vmatprep.subr.mxu0 0.0
      %1058 = vmatpush2.msra.mxu0 0.0
      %1059 = vmatprep.subr.mxu0 0.0
      %1060 = vmatpush2.msra.mxu0 0.0
      %1061 = vmatprep.subr.mxu0 0.0
      %1062 = vmatpush2.msra.mxu0 0.0
      %1063 = vmatprep.subr.mxu0 0.0
      %1064 = vmatpush2.msra.mxu0 0.0
      %1065 = vmatprep.subr.mxu0 0.0
      %1066 = vmatpush2.msra.mxu0 0.0
      %1067 = vmatprep.subr.mxu0 0.0
      %1068 = vmatpush2.msra.mxu0 0.0
      %1069 = vmatprep.subr.mxu0 0.0
      %1070 = vmatpush2.msra.mxu0 0.0
      %1071 = vmatprep.mubr.f32.mxu0 0.0
      %1072 = vmatmul.mubr.f32.gmra.mxu0 %v993
      %v1073 = vpop.f32.mrf.mxu0
      %v1074 = vadd.f32 0.0, %v1073
      %v1075 = vpop.f32.mrf.mxu0
      %1076 = vmatprep.mubr.f32.mxu0 0.0
      %1077 = vmatmul.mubr.f32.gmra.mxu0 %v996
      %v1078 = vpop.f32.mrf.mxu0
      %v1079 = vadd.f32 0.0, %v1078
      %v1080 = vpop.f32.mrf.mxu0
      %1081 = vmatprep.mubr.f32.mxu0 0.0
      %1082 = vmatmul.mubr.f32.gmra.mxu0 %v999
      %v1083 = vpop.f32.mrf.mxu0
      %v1084 = vadd.f32 0.0, %v1083
      %v1085 = vpop.f32.mrf.mxu0
      %1086 = vmatprep.mubr.f32.mxu0 0.0
      %1087 = vmatmul.mubr.f32.gmra.mxu0 %v1002
      %v1088 = vpop.f32.mrf.mxu0
      %v1089 = vadd.f32 0.0, %v1088
      %v1090 = vpop.f32.mrf.mxu0
      %1091 = vdwg.mxu0
      %v1092 = vadd.f32 %v982, %v1074
      %v1093 = vadd.f32 %v983, %v1079
      %v1094 = vadd.f32 %v984, %v1084
      %v1095 = vadd.f32 %v985, %v1089
      %v1096 = vld [vmem:[%s875 + $0x2] sm:$0xff]
      %v1097 = vld [vmem:[%s875 + $0xa] sm:$0xff]
      %v1098 = vld [vmem:[%s875 + $0x12] sm:$0xff]
      %v1099 = vld [vmem:[%s875 + $0x1a] sm:$0x3]
      %s1100 = scalar_lea.vmem %s1, 32
      %v1101 = vld [vmem:[%s1100] sm:$0x7]
      %v1103 = vsel %vm226, %v1096, 0
      %v1106 = vsel %vm226, %v1097, 0
      %v1109 = vsel %vm226, %v1098, 0
      %v1112 = vsel %vm226, %v1099, 0
      %v1115 = vsel %vm239, %v1101, 0
      %1117 = vmatprep.subr.mxu0 0.0
      %1118 = vmatpush1.msra.mxu0 0.0
      %1119 = vmatprep.subr.mxu0 0.0
      %1120 = vmatpush1.msra.mxu0 0.0
      %1121 = vmatprep.subr.mxu0 0.0
      %1122 = vmatpush1.msra.mxu0 0.0
      %1123 = vmatprep.subr.mxu0 0.0
      %1124 = vmatpush1.msra.mxu0 0.0
      %1125 = vmatprep.subr.mxu0 0.0
      %1126 = vmatpush1.msra.mxu0 0.0
      %1127 = vmatprep.subr.mxu0 0.0
      %1128 = vmatpush1.msra.mxu0 0.0
      %1129 = vmatprep.subr.mxu0 0.0
      %1130 = vmatpush1.msra.mxu0 0.0
      %1131 = vmatprep.subr.mxu0 0.0
      %1132 = vmatpush1.msra.mxu0 0.0
      %1133 = vmatprep.subr.mxu0 0.0
      %1134 = vmatpush1.msra.mxu0 0.0
      %1135 = vmatprep.subr.mxu0 0.0
      %1136 = vmatpush1.msra.mxu0 0.0
      %1137 = vmatprep.subr.mxu0 0.0
      %1138 = vmatpush1.msra.mxu0 0.0
      %1139 = vmatprep.subr.mxu0 0.0
      %1140 = vmatpush1.msra.mxu0 0.0
      %1141 = vmatprep.subr.mxu0 0.0
      %1142 = vmatpush1.msra.mxu0 0.0
      %1143 = vmatprep.subr.mxu0 0.0
      %1144 = vmatpush1.msra.mxu0 0.0
      %1145 = vmatprep.subr.mxu0 0.0
      %1146 = vmatpush1.msra.mxu0 0.0
      %1147 = vmatprep.subr.mxu0 0.0
      %1148 = vmatpush1.msra.mxu0 %v1115
      %1149 = vmatprep.subr.mxu0 0.0
      %1150 = vmatpush2.msra.mxu0 0.0
      %1151 = vmatprep.subr.mxu0 0.0
      %1152 = vmatpush2.msra.mxu0 0.0
      %1153 = vmatprep.subr.mxu0 0.0
      %1154 = vmatpush2.msra.mxu0 0.0
      %1155 = vmatprep.subr.mxu0 0.0
      %1156 = vmatpush2.msra.mxu0 0.0
      %1157 = vmatprep.subr.mxu0 0.0
      %1158 = vmatpush2.msra.mxu0 0.0
      %1159 = vmatprep.subr.mxu0 0.0
      %1160 = vmatpush2.msra.mxu0 0.0
      %1161 = vmatprep.subr.mxu0 0.0
      %1162 = vmatpush2.msra.mxu0 0.0
      %1163 = vmatprep.subr.mxu0 0.0
      %1164 = vmatpush2.msra.mxu0 0.0
      %1165 = vmatprep.subr.mxu0 0.0
      %1166 = vmatpush2.msra.mxu0 0.0
      %1167 = vmatprep.subr.mxu0 0.0
      %1168 = vmatpush2.msra.mxu0 0.0
      %1169 = vmatprep.subr.mxu0 0.0
      %1170 = vmatpush2.msra.mxu0 0.0
      %1171 = vmatprep.subr.mxu0 0.0
      %1172 = vmatpush2.msra.mxu0 0.0
      %1173 = vmatprep.subr.mxu0 0.0
      %1174 = vmatpush2.msra.mxu0 0.0
      %1175 = vmatprep.subr.mxu0 0.0
      %1176 = vmatpush2.msra.mxu0 0.0
      %1177 = vmatprep.subr.mxu0 0.0
      %1178 = vmatpush2.msra.mxu0 0.0
      %1179 = vmatprep.subr.mxu0 0.0
      %1180 = vmatpush2.msra.mxu0 0.0
      %1181 = vmatprep.mubr.f32.mxu0 0.0
      %1182 = vmatmul.mubr.f32.gmra.mxu0 %v1103
      %v1183 = vpop.f32.mrf.mxu0
      %v1184 = vadd.f32 0.0, %v1183
      %v1185 = vpop.f32.mrf.mxu0
      %1186 = vmatprep.mubr.f32.mxu0 0.0
      %1187 = vmatmul.mubr.f32.gmra.mxu0 %v1106
      %v1188 = vpop.f32.mrf.mxu0
      %v1189 = vadd.f32 0.0, %v1188
      %v1190 = vpop.f32.mrf.mxu0
      %1191 = vmatprep.mubr.f32.mxu0 0.0
      %1192 = vmatmul.mubr.f32.gmra.mxu0 %v1109
      %v1193 = vpop.f32.mrf.mxu0
      %v1194 = vadd.f32 0.0, %v1193
      %v1195 = vpop.f32.mrf.mxu0
      %1196 = vmatprep.mubr.f32.mxu0 0.0
      %1197 = vmatmul.mubr.f32.gmra.mxu0 %v1112
      %v1198 = vpop.f32.mrf.mxu0
      %v1199 = vadd.f32 0.0, %v1198
      %v1200 = vpop.f32.mrf.mxu0
      %1201 = vdwg.mxu0
      %v1202 = vadd.f32 %v1092, %v1184
      %v1203 = vadd.f32 %v1093, %v1189
      %v1204 = vadd.f32 %v1094, %v1194
      %v1205 = vadd.f32 %v1095, %v1199
      %v1206 = vld [vmem:[%s2] sm:$0x1]
      %v1208 = vlaneseq
      %v1209 = vshrl.u32 %v1208, 7
      %v1210 = vsub.s32 0, %v1209
      %v1211 = vrot.slane %v1206, %v1210
      %v1213 = vadd.f32 %v1202, %v1211
      %v1214 = vadd.f32 %v1203, %v1211
      %v1215 = vadd.f32 %v1204, %v1211
      %v1216 = vadd.f32 %v1205, %v1211
      %s1217 = smul.u32 %s20, 832
      %s1218 = sadd.s32 %s211, %s1217
      %s1219 = scalar_lea.vmem [#allocation2], %s1218
      %vm1220 = vcmask 523264
      %1221 = vst.msk [vmem:[%s1219] sm:$0xff] %vm1220, %v1213
      %1222 = vst.msk [vmem:[%s1219 + $0x8] sm:$0xff] %vm1220, %v1214
      %1223 = vst.msk [vmem:[%s1219 + $0x10] sm:$0xff] %vm1220, %v1215
      %vm1224 = vcmask 517120
      %1225 = vst.msk [vmem:[%s1219 + $0x18] sm:$0x3] %vm1224, %v1216
      %v1226 = vld [vmem:[#allocation3] sm:$0x1]
      %v1227 = vsel %vm1220, %v1213, 0.0
      %v1228 = vsel %vm1220, %v1214, 0.0
      %v1229 = vadd.f32 %v1227, %v1228
      %v1230 = vsel %vm1220, %v1215, 0.0
      %v1231 = vadd.f32 %v1229, %v1230
      %v1232 = vsel %vm1224, %v1216, 0.0
      %v1233 = vadd.f32 %v1231, %v1232
      %v1234 = vrot.slane %v1233, 4
      %v1235 = vadd.f32 %v1233, %v1234
      %v1236 = vrot.slane %v1235, 2
      %v1237 = vadd.f32 %v1235, %v1236
      %v1238 = vrot.slane %v1237, 1
      %v1239 = vadd.f32 %v1237, %v1238
      %v1240 = vadd.f32 %v1226, %v1239
      %vm1241 = vcmask 516096
      %1242 = vst.msk [vmem:[#allocation3] sm:$0x1] %vm1241, %v1240
      %v1243 = vld [vmem:[#allocation4] sm:$0x1]
      %v1244 = vmul.f32 %v1213, %v1213
      %v1245 = vmul.f32 %v1214, %v1214
      %v1246 = vmul.f32 %v1215, %v1215
      %v1247 = vmul.f32 %v1216, %v1216
      %v1248 = vsel %vm1220, %v1244, 0.0
      %v1249 = vsel %vm1220, %v1245, 0.0
      %v1250 = vadd.f32 %v1248, %v1249
      %v1251 = vsel %vm1220, %v1246, 0.0
      %v1252 = vadd.f32 %v1250, %v1251
      %v1253 = vsel %vm1224, %v1247, 0.0
      %v1254 = vadd.f32 %v1252, %v1253
      %v1255 = vrot.slane %v1254, 4
      %v1256 = vadd.f32 %v1254, %v1255
      %v1257 = vrot.slane %v1256, 2
      %v1258 = vadd.f32 %v1256, %v1257
      %v1259 = vrot.slane %v1258, 1
      %v1260 = vadd.f32 %v1258, %v1259
      %v1261 = vadd.f32 %v1243, %v1260
      %1262 = vst.msk [vmem:[#allocation4] sm:$0x1] %vm1241, %v1261
      %p1263 = scmp.eq.s32.totalorder %s20, 1
      %p1264 = scmp.eq.s32.totalorder %s21, 25
      %p1265 = pnand %p1263, %p1264
      %p1266 = pneg %p1265
      // Predicated region
      $region45: #{tpu_custom_call.1} parent=39 // pred_check
        _
      $region46: #{tpu_custom_call.1} parent=39 // pred_check_branch
        %1268 = sbr.rel (%p1265) target = $region48
      $region47: #{tpu_custom_call.1} parent=39 // pred_region
        %v1269 = vld [vmem:[#allocation3] sm:$0x1]
        %v1270 = vrcp.pop 1352.0
        %v1271 = vmul.f32 %v1269, %v1270
        %v1272 = vld [vmem:[#allocation4] sm:$0x1]
        %v1273 = vmul.f32 %v1272, %v1270
        %v1274 = vmul.f32 %v1271, %v1271
        %v1275 = vsub.f32 %v1273, %v1274
        %v1276 = vld [vmem:[%s3] sm:$0x1]
        %v1277 = vadd.f32 %v1275, 1e-05
        %v1278 = vrsqrt.pop %v1277
        %v1279 = vmul.f32 %v1276, %v1278
        %v1280 = vld [vmem:[%s4] sm:$0x1]
        %v1281 = vmul.f32 %v1271, %v1279
        %v1282 = vsub.f32 %v1280, %v1281
        %v1283 = vlaneseq
        %v1284 = vshrl.u32 %v1283, 7
        %v1285 = vadd.s32 %v1284, 8
        %v1286 = vlaneseq
        %v1287 = vand.u32 %v1286, 127
        %v1288 = vmul.u32 %v1284, 2
        %v1289 = vmul.u32 %v1285, 2
        %vm1290 = vcmp.eq.s32.totalorder %v1287, %v1288
        %vm1291 = vcmp.eq.s32.totalorder %v1287, %v1289
        %v1292 = vsel %vm1290, 1, 0
        %v1293 = vsel %vm1291, 1, 0
        %v1294 = vcvt.s32.f32 %v1292
        %v1295 = vcvt.s32.f32 %v1293
        %v1296 = vadd.s32 %v1288, 1
        %v1297 = vadd.s32 %v1289, 1
        %vm1298 = vcmp.eq.s32.totalorder %v1287, %v1296
        %vm1299 = vcmp.eq.s32.totalorder %v1287, %v1297
        %v1300 = vsel %vm1298, 1, 0
        %v1301 = vsel %vm1299, 1, 0
        %v1302 = vcvt.s32.f32 %v1300
        %v1303 = vcvt.s32.f32 %v1301
        %v1304 = vld [vmem:[#allocation2] sm:$0xff]
        %v1305 = vld [vmem:[#allocation2 + $0x8] sm:$0xff]
        %v1306 = vld [vmem:[#allocation2 + $0x10] sm:$0xff]
        %v1307 = vld [vmem:[#allocation2 + $0x18] sm:$0x3]
        %s1308 = scalar_lea.vmem [#allocation2], 32
        %v1309 = vld [vmem:[%s1308] sm:$0xff]
        %v1310 = vld [vmem:[%s1308 + $0x8] sm:$0xff]
        %v1311 = vld [vmem:[%s1308 + $0x10] sm:$0xff]
        %v1312 = vld [vmem:[%s1308 + $0x18] sm:$0x3]
        %v1314 = vlaneseq
        %v1315 = vshrl.u32 %v1314, 7
        %v1316 = vsub.s32 0, %v1315
        %v1317 = vrot.slane %v1279, %v1316
        %v1319 = vmul.f32 %v1304, %v1317
        %v1320 = vmul.f32 %v1305, %v1317
        %v1321 = vmul.f32 %v1306, %v1317
        %v1322 = vmul.f32 %v1307, %v1317
        %v1324 = vlaneseq
        %v1325 = vshrl.u32 %v1324, 7
        %v1326 = vsub.s32 0, %v1325
        %v1327 = vrot.slane %v1282, %v1326
        %v1329 = vadd.f32 %v1319, %v1327
        %v1330 = vadd.f32 %v1320, %v1327
        %v1331 = vadd.f32 %v1321, %v1327
        %v1332 = vadd.f32 %v1322, %v1327
        %v1333 = vmax.f32 %v1329, 0.0
        %v1334 = vmax.f32 %v1330, 0.0
        %v1335 = vmax.f32 %v1331, 0.0
        %v1336 = vmax.f32 %v1332, 0.0
        %v1337 = vmul.f32 %v1309, %v1317
        %v1338 = vmul.f32 %v1310, %v1317
        %v1339 = vmul.f32 %v1311, %v1317
        %v1340 = vmul.f32 %v1312, %v1317
        %v1341 = vadd.f32 %v1337, %v1327
        %v1342 = vadd.f32 %v1338, %v1327
        %v1343 = vadd.f32 %v1339, %v1327
        %v1344 = vadd.f32 %v1340, %v1327
        %v1345 = vmax.f32 %v1341, 0.0
        %v1346 = vmax.f32 %v1342, 0.0
        %v1347 = vmax.f32 %v1343, 0.0
        %v1348 = vmax.f32 %v1344, 0.0
        %v1349 = vmax.f32 %v1333, %v1345
        %v1350 = vmax.f32 %v1334, %v1346
        %v1351 = vmax.f32 %v1335, %v1347
        %v1352 = vmax.f32 %v1336, %v1348
        %vm1353 = vcmask 211968
        %v1355 = vsel %vm1353, %v1294, 0
        %v1358 = vsel %vm1353, %v1295, 0
        %vm1360 = vcmask 1041408
        %v1362 = vsel %vm1360, %v1352, 0
        %1364 = vmatprep.subr.mxu0 0.0
        %1365 = vmatpush1.msra.mxu0 0.0
        %1366 = vmatprep.subr.mxu0 0.0
        %1367 = vmatpush1.msra.mxu0 0.0
        %1368 = vmatprep.subr.mxu0 0.0
        %1369 = vmatpush1.msra.mxu0 0.0
        %1370 = vmatprep.subr.mxu0 0.0
        %1371 = vmatpush1.msra.mxu0 0.0
        %1372 = vmatprep.subr.mxu0 0.0
        %1373 = vmatpush1.msra.mxu0 0.0
        %1374 = vmatprep.subr.mxu0 0.0
        %1375 = vmatpush1.msra.mxu0 0.0
        %1376 = vmatprep.subr.mxu0 0.0
        %1377 = vmatpush1.msra.mxu0 0.0
        %1378 = vmatprep.subr.mxu0 0.0
        %1379 = vmatpush1.msra.mxu0 0.0
        %1380 = vmatprep.subr.mxu0 0.0
        %1381 = vmatpush1.msra.mxu0 0.0
        %1382 = vmatprep.subr.mxu0 0.0
        %1383 = vmatpush1.msra.mxu0 0.0
        %1384 = vmatprep.subr.mxu0 0.0
        %1385 = vmatpush1.msra.mxu0 0.0
        %1386 = vmatprep.subr.mxu0 0.0
        %1387 = vmatpush1.msra.mxu0 0.0
        %1388 = vmatprep.subr.mxu0 0.0
        %1389 = vmatpush1.msra.mxu0 %v1362
        %1390 = vmatprep.subr.mxu0 0.0
        %1391 = vmatpush1.msra.mxu0 %v1351
        %1392 = vmatprep.subr.mxu0 0.0
        %1393 = vmatpush1.msra.mxu0 %v1350
        %1394 = vmatprep.subr.mxu0 0.0
        %1395 = vmatpush1.msra.mxu0 %v1349
        %1396 = vmatprep.subr.mxu0 0.0
        %1397 = vmatpush2.msra.mxu0 0.0
        %1398 = vmatprep.subr.mxu0 0.0
        %1399 = vmatpush2.msra.mxu0 0.0
        %1400 = vmatprep.subr.mxu0 0.0
        %1401 = vmatpush2.msra.mxu0 0.0
        %1402 = vmatprep.subr.mxu0 0.0
        %1403 = vmatpush2.msra.mxu0 0.0
        %1404 = vmatprep.subr.mxu0 0.0
        %1405 = vmatpush2.msra.mxu0 0.0
        %1406 = vmatprep.subr.mxu0 0.0
        %1407 = vmatpush2.msra.mxu0 0.0
        %1408 = vmatprep.subr.mxu0 0.0
        %1409 = vmatpush2.msra.mxu0 0.0
        %1410 = vmatprep.subr.mxu0 0.0
        %1411 = vmatpush2.msra.mxu0 0.0
        %1412 = vmatprep.subr.mxu0 0.0
        %1413 = vmatpush2.msra.mxu0 0.0
        %1414 = vmatprep.subr.mxu0 0.0
        %1415 = vmatpush2.msra.mxu0 0.0
        %1416 = vmatprep.subr.mxu0 0.0
        %1417 = vmatpush2.msra.mxu0 0.0
        %1418 = vmatprep.subr.mxu0 0.0
        %1419 = vmatpush2.msra.mxu0 0.0
        %1420 = vmatprep.subr.mxu0 0.0
        %1421 = vmatpush2.msra.mxu0 0.0
        %1422 = vmatprep.subr.mxu0 0.0
        %1423 = vmatpush2.msra.mxu0 0.0
        %1424 = vmatprep.subr.mxu0 0.0
        %1425 = vmatpush2.msra.mxu0 0.0
        %1426 = vmatprep.subr.mxu0 0.0
        %1427 = vmatpush2.msra.mxu0 0.0
        %1428 = vmatprep.mubr.f32.mxu0 0.0
        %1429 = vmatmul.mubr.f32.gmra.mxu0 %v1355
        %v1430 = vpop.f32.mrf.mxu0
        %v1431 = vadd.f32 0.0, %v1430
        %v1432 = vpop.f32.mrf.mxu0
        %1433 = vmatprep.mubr.f32.mxu0 0.0
        %1434 = vmatmul.mubr.f32.gmra.mxu0 %v1358
        %v1435 = vpop.f32.mrf.mxu0
        %v1436 = vadd.f32 0.0, %v1435
        %v1437 = vpop.f32.mrf.mxu0
        %1438 = vdwg.mxu0
        %v1440 = vsel %vm1353, %v1302, 0
        %v1443 = vsel %vm1353, %v1303, 0
        %1445 = vmatprep.subr.mxu0 0.0
        %1446 = vmatpush1.msra.mxu0 0.0
        %1447 = vmatprep.subr.mxu0 0.0
        %1448 = vmatpush1.msra.mxu0 0.0
        %1449 = vmatprep.subr.mxu0 0.0
        %1450 = vmatpush1.msra.mxu0 0.0
        %1451 = vmatprep.subr.mxu0 0.0
        %1452 = vmatpush1.msra.mxu0 0.0
        %1453 = vmatprep.subr.mxu0 0.0
        %1454 = vmatpush1.msra.mxu0 0.0
        %1455 = vmatprep.subr.mxu0 0.0
        %1456 = vmatpush1.msra.mxu0 0.0
        %1457 = vmatprep.subr.mxu0 0.0
        %1458 = vmatpush1.msra.mxu0 0.0
        %1459 = vmatprep.subr.mxu0 0.0
        %1460 = vmatpush1.msra.mxu0 0.0
        %1461 = vmatprep.subr.mxu0 0.0
        %1462 = vmatpush1.msra.mxu0 0.0
        %1463 = vmatprep.subr.mxu0 0.0
        %1464 = vmatpush1.msra.mxu0 0.0
        %1465 = vmatprep.subr.mxu0 0.0
        %1466 = vmatpush1.msra.mxu0 0.0
        %1467 = vmatprep.subr.mxu0 0.0
        %1468 = vmatpush1.msra.mxu0 0.0
        %1469 = vmatprep.subr.mxu0 0.0
        %1470 = vmatpush1.msra.mxu0 %v1362
        %1471 = vmatprep.subr.mxu0 0.0
        %1472 = vmatpush1.msra.mxu0 %v1351
        %1473 = vmatprep.subr.mxu0 0.0
        %1474 = vmatpush1.msra.mxu0 %v1350
        %1475 = vmatprep.subr.mxu0 0.0
        %1476 = vmatpush1.msra.mxu0 %v1349
        %1477 = vmatprep.subr.mxu0 0.0
        %1478 = vmatpush2.msra.mxu0 0.0
        %1479 = vmatprep.subr.mxu0 0.0
        %1480 = vmatpush2.msra.mxu0 0.0
        %1481 = vmatprep.subr.mxu0 0.0
        %1482 = vmatpush2.msra.mxu0 0.0
        %1483 = vmatprep.subr.mxu0 0.0
        %1484 = vmatpush2.msra.mxu0 0.0
        %1485 = vmatprep.subr.mxu0 0.0
        %1486 = vmatpush2.msra.mxu0 0.0
        %1487 = vmatprep.subr.mxu0 0.0
        %1488 = vmatpush2.msra.mxu0 0.0
        %1489 = vmatprep.subr.mxu0 0.0
        %1490 = vmatpush2.msra.mxu0 0.0
        %1491 = vmatprep.subr.mxu0 0.0
        %1492 = vmatpush2.msra.mxu0 0.0
        %1493 = vmatprep.subr.mxu0 0.0
        %1494 = vmatpush2.msra.mxu0 0.0
        %1495 = vmatprep.subr.mxu0 0.0
        %1496 = vmatpush2.msra.mxu0 0.0
        %1497 = vmatprep.subr.mxu0 0.0
        %1498 = vmatpush2.msra.mxu0 0.0
        %1499 = vmatprep.subr.mxu0 0.0
        %1500 = vmatpush2.msra.mxu0 0.0
        %1501 = vmatprep.subr.mxu0 0.0
        %1502 = vmatpush2.msra.mxu0 0.0
        %1503 = vmatprep.subr.mxu0 0.0
        %1504 = vmatpush2.msra.mxu0 0.0
        %1505 = vmatprep.subr.mxu0 0.0
        %1506 = vmatpush2.msra.mxu0 0.0
        %1507 = vmatprep.subr.mxu0 0.0
        %1508 = vmatpush2.msra.mxu0 0.0
        %1509 = vmatprep.mubr.f32.mxu0 0.0
        %1510 = vmatmul.mubr.f32.gmra.mxu0 %v1440
        %v1511 = vpop.f32.mrf.mxu0
        %v1512 = vadd.f32 0.0, %v1511
        %v1513 = vpop.f32.mrf.mxu0
        %1514 = vmatprep.mubr.f32.mxu0 0.0
        %1515 = vmatmul.mubr.f32.gmra.mxu0 %v1443
        %v1516 = vpop.f32.mrf.mxu0
        %v1517 = vadd.f32 0.0, %v1516
        %v1518 = vpop.f32.mrf.mxu0
        %1519 = vdwg.mxu0
        %v1520 = vmax.f32 %v1431, %v1512
        %v1521 = vmax.f32 %v1436, %v1517
        %1522 = vst.msk [vmem:[%s5] sm:$0xff] %vm1220, %v1520
        %vm1523 = vcmask 520192
        %1524 = vst.msk [vmem:[%s5 + $0x8] sm:$0x1f] %vm1523, %v1521
        %s1525 = scalar_lea.vmem [#allocation2], 64
        %v1526 = vld [vmem:[%s1525] sm:$0xff]
        %v1527 = vld [vmem:[%s1525 + $0x8] sm:$0xff]
        %v1528 = vld [vmem:[%s1525 + $0x10] sm:$0xff]
        %v1529 = vld [vmem:[%s1525 + $0x18] sm:$0x3]
        %s1530 = scalar_lea.vmem [#allocation2], 96
        %v1531 = vld [vmem:[%s1530] sm:$0xff]
        %v1532 = vld [vmem:[%s1530 + $0x8] sm:$0xff]
        %v1533 = vld [vmem:[%s1530 + $0x10] sm:$0xff]
        %v1534 = vld [vmem:[%s1530 + $0x18] sm:$0x3]
        %v1535 = vmul.f32 %v1526, %v1317
        %v1536 = vmul.f32 %v1527, %v1317
        %v1537 = vmul.f32 %v1528, %v1317
        %v1538 = vmul.f32 %v1529, %v1317
        %v1539 = vadd.f32 %v1535, %v1327
        %v1540 = vadd.f32 %v1536, %v1327
        %v1541 = vadd.f32 %v1537, %v1327
        %v1542 = vadd.f32 %v1538, %v1327
        %v1543 = vmax.f32 %v1539, 0.0
        %v1544 = vmax.f32 %v1540, 0.0
        %v1545 = vmax.f32 %v1541, 0.0
        %v1546 = vmax.f32 %v1542, 0.0
        %v1547 = vmul.f32 %v1531, %v1317
        %v1548 = vmul.f32 %v1532, %v1317
        %v1549 = vmul.f32 %v1533, %v1317
        %v1550 = vmul.f32 %v1534, %v1317
        %v1551 = vadd.f32 %v1547, %v1327
        %v1552 = vadd.f32 %v1548, %v1327
        %v1553 = vadd.f32 %v1549, %v1327
        %v1554 = vadd.f32 %v1550, %v1327
        %v1555 = vmax.f32 %v1551, 0.0
        %v1556 = vmax.f32 %v1552, 0.0
        %v1557 = vmax.f32 %v1553, 0.0
        %v1558 = vmax.f32 %v1554, 0.0
        %v1559 = vmax.f32 %v1543, %v1555
        %v1560 = vmax.f32 %v1544, %v1556
        %v1561 = vmax.f32 %v1545, %v1557
        %v1562 = vmax.f32 %v1546, %v1558
        %v1564 = vsel %vm1360, %v1562, 0
        %1566 = vmatprep.subr.mxu0 0.0
        %1567 = vmatpush1.msra.mxu0 0.0
        %1568 = vmatprep.subr.mxu0 0.0
        %1569 = vmatpush1.msra.mxu0 0.0
        %1570 = vmatprep.subr.mxu0 0.0
        %1571 = vmatpush1.msra.mxu0 0.0
        %1572 = vmatprep.subr.mxu0 0.0
        %1573 = vmatpush1.msra.mxu0 0.0
        %1574 = vmatprep.subr.mxu0 0.0
        %1575 = vmatpush1.msra.mxu0 0.0
        %1576 = vmatprep.subr.mxu0 0.0
        %1577 = vmatpush1.msra.mxu0 0.0
        %1578 = vmatprep.subr.mxu0 0.0
        %1579 = vmatpush1.msra.mxu0 0.0
        %1580 = vmatprep.subr.mxu0 0.0
        %1581 = vmatpush1.msra.mxu0 0.0
        %1582 = vmatprep.subr.mxu0 0.0
        %1583 = vmatpush1.msra.mxu0 0.0
        %1584 = vmatprep.subr.mxu0 0.0
        %1585 = vmatpush1.msra.mxu0 0.0
        %1586 = vmatprep.subr.mxu0 0.0
        %1587 = vmatpush1.msra.mxu0 0.0
        %1588 = vmatprep.subr.mxu0 0.0
        %1589 = vmatpush1.msra.mxu0 0.0
        %1590 = vmatprep.subr.mxu0 0.0
        %1591 = vmatpush1.msra.mxu0 %v1564
        %1592 = vmatprep.subr.mxu0 0.0
        %1593 = vmatpush1.msra.mxu0 %v1561
        %1594 = vmatprep.subr.mxu0 0.0
        %1595 = vmatpush1.msra.mxu0 %v1560
        %1596 = vmatprep.subr.mxu0 0.0
        %1597 = vmatpush1.msra.mxu0 %v1559
        %1598 = vmatprep.subr.mxu0 0.0
        %1599 = vmatpush2.msra.mxu0 0.0
        %1600 = vmatprep.subr.mxu0 0.0
        %1601 = vmatpush2.msra.mxu0 0.0
        %1602 = vmatprep.subr.mxu0 0.0
        %1603 = vmatpush2.msra.mxu0 0.0
        %1604 = vmatprep.subr.mxu0 0.0
        %1605 = vmatpush2.msra.mxu0 0.0
        %1606 = vmatprep.subr.mxu0 0.0
        %1607 = vmatpush2.msra.mxu0 0.0
        %1608 = vmatprep.subr.mxu0 0.0
        %1609 = vmatpush2.msra.mxu0 0.0
        %1610 = vmatprep.subr.mxu0 0.0
        %1611 = vmatpush2.msra.mxu0 0.0
        %1612 = vmatprep.subr.mxu0 0.0
        %1613 = vmatpush2.msra.mxu0 0.0
        %1614 = vmatprep.subr.mxu0 0.0
        %1615 = vmatpush2.msra.mxu0 0.0
        %1616 = vmatprep.subr.mxu0 0.0
        %1617 = vmatpush2.msra.mxu0 0.0
        %1618 = vmatprep.subr.mxu0 0.0
        %1619 = vmatpush2.msra.mxu0 0.0
        %1620 = vmatprep.subr.mxu0 0.0
        %1621 = vmatpush2.msra.mxu0 0.0
        %1622 = vmatprep.subr.mxu0 0.0
        %1623 = vmatpush2.msra.mxu0 0.0
        %1624 = vmatprep.subr.mxu0 0.0
        %1625 = vmatpush2.msra.mxu0 0.0
        %1626 = vmatprep.subr.mxu0 0.0
        %1627 = vmatpush2.msra.mxu0 0.0
        %1628 = vmatprep.subr.mxu0 0.0
        %1629 = vmatpush2.msra.mxu0 0.0
        %1630 = vmatprep.mubr.f32.mxu0 0.0
        %1631 = vmatmul.mubr.f32.gmra.mxu0 %v1355
        %v1632 = vpop.f32.mrf.mxu0
        %v1633 = vadd.f32 0.0, %v1632
        %v1634 = vpop.f32.mrf.mxu0
        %1635 = vmatprep.mubr.f32.mxu0 0.0
        %1636 = vmatmul.mubr.f32.gmra.mxu0 %v1358
        %v1637 = vpop.f32.mrf.mxu0
        %v1638 = vadd.f32 0.0, %v1637
        %v1639 = vpop.f32.mrf.mxu0
        %1640 = vdwg.mxu0
        %1641 = vmatprep.subr.mxu0 0.0
        %1642 = vmatpush1.msra.mxu0 0.0
        %1643 = vmatprep.subr.mxu0 0.0
        %1644 = vmatpush1.msra.mxu0 0.0
        %1645 = vmatprep.subr.mxu0 0.0
        %1646 = vmatpush1.msra.mxu0 0.0
        %1647 = vmatprep.subr.mxu0 0.0
        %1648 = vmatpush1.msra.mxu0 0.0
        %1649 = vmatprep.subr.mxu0 0.0
        %1650 = vmatpush1.msra.mxu0 0.0
        %1651 = vmatprep.subr.mxu0 0.0
        %1652 = vmatpush1.msra.mxu0 0.0
        %1653 = vmatprep.subr.mxu0 0.0
        %1654 = vmatpush1.msra.mxu0 0.0
        %1655 = vmatprep.subr.mxu0 0.0
        %1656 = vmatpush1.msra.mxu0 0.0
        %1657 = vmatprep.subr.mxu0 0.0
        %1658 = vmatpush1.msra.mxu0 0.0
        %1659 = vmatprep.subr.mxu0 0.0
        %1660 = vmatpush1.msra.mxu0 0.0
        %1661 = vmatprep.subr.mxu0 0.0
        %1662 = vmatpush1.msra.mxu0 0.0
        %1663 = vmatprep.subr.mxu0 0.0
        %1664 = vmatpush1.msra.mxu0 0.0
        %1665 = vmatprep.subr.mxu0 0.0
        %1666 = vmatpush1.msra.mxu0 %v1564
        %1667 = vmatprep.subr.mxu0 0.0
        %1668 = vmatpush1.msra.mxu0 %v1561
        %1669 = vmatprep.subr.mxu0 0.0
        %1670 = vmatpush1.msra.mxu0 %v1560
        %1671 = vmatprep.subr.mxu0 0.0
        %1672 = vmatpush1.msra.mxu0 %v1559
        %1673 = vmatprep.subr.mxu0 0.0
        %1674 = vmatpush2.msra.mxu0 0.0
        %1675 = vmatprep.subr.mxu0 0.0
        %1676 = vmatpush2.msra.mxu0 0.0
        %1677 = vmatprep.subr.mxu0 0.0
        %1678 = vmatpush2.msra.mxu0 0.0
        %1679 = vmatprep.subr.mxu0 0.0
        %1680 = vmatpush2.msra.mxu0 0.0
        %1681 = vmatprep.subr.mxu0 0.0
        %1682 = vmatpush2.msra.mxu0 0.0
        %1683 = vmatprep.subr.mxu0 0.0
        %1684 = vmatpush2.msra.mxu0 0.0
        %1685 = vmatprep.subr.mxu0 0.0
        %1686 = vmatpush2.msra.mxu0 0.0
        %1687 = vmatprep.subr.mxu0 0.0
        %1688 = vmatpush2.msra.mxu0 0.0
        %1689 = vmatprep.subr.mxu0 0.0
        %1690 = vmatpush2.msra.mxu0 0.0
        %1691 = vmatprep.subr.mxu0 0.0
        %1692 = vmatpush2.msra.mxu0 0.0
        %1693 = vmatprep.subr.mxu0 0.0
        %1694 = vmatpush2.msra.mxu0 0.0
        %1695 = vmatprep.subr.mxu0 0.0
        %1696 = vmatpush2.msra.mxu0 0.0
        %1697 = vmatprep.subr.mxu0 0.0
        %1698 = vmatpush2.msra.mxu0 0.0
        %1699 = vmatprep.subr.mxu0 0.0
        %1700 = vmatpush2.msra.mxu0 0.0
        %1701 = vmatprep.subr.mxu0 0.0
        %1702 = vmatpush2.msra.mxu0 0.0
        %1703 = vmatprep.subr.mxu0 0.0
        %1704 = vmatpush2.msra.mxu0 0.0
        %1705 = vmatprep.mubr.f32.mxu0 0.0
        %1706 = vmatmul.mubr.f32.gmra.mxu0 %v1440
        %v1707 = vpop.f32.mrf.mxu0
        %v1708 = vadd.f32 0.0, %v1707
        %v1709 = vpop.f32.mrf.mxu0
        %1710 = vmatprep.mubr.f32.mxu0 0.0
        %1711 = vmatmul.mubr.f32.gmra.mxu0 %v1443
        %v1712 = vpop.f32.mrf.mxu0
        %v1713 = vadd.f32 0.0, %v1712
        %v1714 = vpop.f32.mrf.mxu0
        %1715 = vdwg.mxu0
        %v1716 = vmax.f32 %v1633, %v1708
        %v1717 = vmax.f32 %v1638, %v1713
        %s1718 = scalar_lea.vmem %s5, 16
        %1719 = vst.msk [vmem:[%s1718] sm:$0xff] %vm1220, %v1716
        %1720 = vst.msk [vmem:[%s1718 + $0x8] sm:$0x1f] %vm1523, %v1717
        %s1721 = scalar_lea.vmem [#allocation2], 128
        %v1722 = vld [vmem:[%s1721] sm:$0xff]
        %v1723 = vld [vmem:[%s1721 + $0x8] sm:$0xff]
        %v1724 = vld [vmem:[%s1721 + $0x10] sm:$0xff]
        %v1725 = vld [vmem:[%s1721 + $0x18] sm:$0x3]
        %s1726 = scalar_lea.vmem [#allocation2], 160
        %v1727 = vld [vmem:[%s1726] sm:$0xff]
        %v1728 = vld [vmem:[%s1726 + $0x8] sm:$0xff]
        %v1729 = vld [vmem:[%s1726 + $0x10] sm:$0xff]
        %v1730 = vld [vmem:[%s1726 + $0x18] sm:$0x3]
        %v1731 = vmul.f32 %v1722, %v1317
        %v1732 = vmul.f32 %v1723, %v1317
        %v1733 = vmul.f32 %v1724, %v1317
        %v1734 = vmul.f32 %v1725, %v1317
        %v1735 = vadd.f32 %v1731, %v1327
        %v1736 = vadd.f32 %v1732, %v1327
        %v1737 = vadd.f32 %v1733, %v1327
        %v1738 = vadd.f32 %v1734, %v1327
        %v1739 = vmax.f32 %v1735, 0.0
        %v1740 = vmax.f32 %v1736, 0.0
        %v1741 = vmax.f32 %v1737, 0.0
        %v1742 = vmax.f32 %v1738, 0.0
        %v1743 = vmul.f32 %v1727, %v1317
        %v1744 = vmul.f32 %v1728, %v1317
        %v1745 = vmul.f32 %v1729, %v1317
        %v1746 = vmul.f32 %v1730, %v1317
        %v1747 = vadd.f32 %v1743, %v1327
        %v1748 = vadd.f32 %v1744, %v1327
        %v1749 = vadd.f32 %v1745, %v1327
        %v1750 = vadd.f32 %v1746, %v1327
        %v1751 = vmax.f32 %v1747, 0.0
        %v1752 = vmax.f32 %v1748, 0.0
        %v1753 = vmax.f32 %v1749, 0.0
        %v1754 = vmax.f32 %v1750, 0.0
        %v1755 = vmax.f32 %v1739, %v1751
        %v1756 = vmax.f32 %v1740, %v1752
        %v1757 = vmax.f32 %v1741, %v1753
        %v1758 = vmax.f32 %v1742, %v1754
        %v1760 = vsel %vm1360, %v1758, 0
        %1762 = vmatprep.subr.mxu0 0.0
        %1763 = vmatpush1.msra.mxu0 0.0
        %1764 = vmatprep.subr.mxu0 0.0
        %1765 = vmatpush1.msra.mxu0 0.0
        %1766 = vmatprep.subr.mxu0 0.0
        %1767 = vmatpush1.msra.mxu0 0.0
        %1768 = vmatprep.subr.mxu0 0.0
        %1769 = vmatpush1.msra.mxu0 0.0
        %1770 = vmatprep.subr.mxu0 0.0
        %1771 = vmatpush1.msra.mxu0 0.0
        %1772 = vmatprep.subr.mxu0 0.0
        %1773 = vmatpush1.msra.mxu0 0.0
        %1774 = vmatprep.subr.mxu0 0.0
        %1775 = vmatpush1.msra.mxu0 0.0
        %1776 = vmatprep.subr.mxu0 0.0
        %1777 = vmatpush1.msra.mxu0 0.0
        %1778 = vmatprep.subr.mxu0 0.0
        %1779 = vmatpush1.msra.mxu0 0.0
        %1780 = vmatprep.subr.mxu0 0.0
        %1781 = vmatpush1.msra.mxu0 0.0
        %1782 = vmatprep.subr.mxu0 0.0
        %1783 = vmatpush1.msra.mxu0 0.0
        %1784 = vmatprep.subr.mxu0 0.0
        %1785 = vmatpush1.msra.mxu0 0.0
        %1786 = vmatprep.subr.mxu0 0.0
        %1787 = vmatpush1.msra.mxu0 %v1760
        %1788 = vmatprep.subr.mxu0 0.0
        %1789 = vmatpush1.msra.mxu0 %v1757
        %1790 = vmatprep.subr.mxu0 0.0
        %1791 = vmatpush1.msra.mxu0 %v1756
        %1792 = vmatprep.subr.mxu0 0.0
        %1793 = vmatpush1.msra.mxu0 %v1755
        %1794 = vmatprep.subr.mxu0 0.0
        %1795 = vmatpush2.msra.mxu0 0.0
        %1796 = vmatprep.subr.mxu0 0.0
        %1797 = vmatpush2.msra.mxu0 0.0
        %1798 = vmatprep.subr.mxu0 0.0
        %1799 = vmatpush2.msra.mxu0 0.0
        %1800 = vmatprep.subr.mxu0 0.0
        %1801 = vmatpush2.msra.mxu0 0.0
        %1802 = vmatprep.subr.mxu0 0.0
        %1803 = vmatpush2.msra.mxu0 0.0
        %1804 = vmatprep.subr.mxu0 0.0
        %1805 = vmatpush2.msra.mxu0 0.0
        %1806 = vmatprep.subr.mxu0 0.0
        %1807 = vmatpush2.msra.mxu0 0.0
        %1808 = vmatprep.subr.mxu0 0.0
        %1809 = vmatpush2.msra.mxu0 0.0
        %1810 = vmatprep.subr.mxu0 0.0
        %1811 = vmatpush2.msra.mxu0 0.0
        %1812 = vmatprep.subr.mxu0 0.0
        %1813 = vmatpush2.msra.mxu0 0.0
        %1814 = vmatprep.subr.mxu0 0.0
        %1815 = vmatpush2.msra.mxu0 0.0
        %1816 = vmatprep.subr.mxu0 0.0
        %1817 = vmatpush2.msra.mxu0 0.0
        %1818 = vmatprep.subr.mxu0 0.0
        %1819 = vmatpush2.msra.mxu0 0.0
        %1820 = vmatprep.subr.mxu0 0.0
        %1821 = vmatpush2.msra.mxu0 0.0
        %1822 = vmatprep.subr.mxu0 0.0
        %1823 = vmatpush2.msra.mxu0 0.0
        %1824 = vmatprep.subr.mxu0 0.0
        %1825 = vmatpush2.msra.mxu0 0.0
        %1826 = vmatprep.mubr.f32.mxu0 0.0
        %1827 = vmatmul.mubr.f32.gmra.mxu0 %v1355
        %v1828 = vpop.f32.mrf.mxu0
        %v1829 = vadd.f32 0.0, %v1828
        %v1830 = vpop.f32.mrf.mxu0
        %1831 = vmatprep.mubr.f32.mxu0 0.0
        %1832 = vmatmul.mubr.f32.gmra.mxu0 %v1358
        %v1833 = vpop.f32.mrf.mxu0
        %v1834 = vadd.f32 0.0, %v1833
        %v1835 = vpop.f32.mrf.mxu0
        %1836 = vdwg.mxu0
        %1837 = vmatprep.subr.mxu0 0.0
        %1838 = vmatpush1.msra.mxu0 0.0
        %1839 = vmatprep.subr.mxu0 0.0
        %1840 = vmatpush1.msra.mxu0 0.0
        %1841 = vmatprep.subr.mxu0 0.0
        %1842 = vmatpush1.msra.mxu0 0.0
        %1843 = vmatprep.subr.mxu0 0.0
        %1844 = vmatpush1.msra.mxu0 0.0
        %1845 = vmatprep.subr.mxu0 0.0
        %1846 = vmatpush1.msra.mxu0 0.0
        %1847 = vmatprep.subr.mxu0 0.0
        %1848 = vmatpush1.msra.mxu0 0.0
        %1849 = vmatprep.subr.mxu0 0.0
        %1850 = vmatpush1.msra.mxu0 0.0
        %1851 = vmatprep.subr.mxu0 0.0
        %1852 = vmatpush1.msra.mxu0 0.0
        %1853 = vmatprep.subr.mxu0 0.0
        %1854 = vmatpush1.msra.mxu0 0.0
        %1855 = vmatprep.subr.mxu0 0.0
        %1856 = vmatpush1.msra.mxu0 0.0
        %1857 = vmatprep.subr.mxu0 0.0
        %1858 = vmatpush1.msra.mxu0 0.0
        %1859 = vmatprep.subr.mxu0 0.0
        %1860 = vmatpush1.msra.mxu0 0.0
        %1861 = vmatprep.subr.mxu0 0.0
        %1862 = vmatpush1.msra.mxu0 %v1760
        %1863 = vmatprep.subr.mxu0 0.0
        %1864 = vmatpush1.msra.mxu0 %v1757
        %1865 = vmatprep.subr.mxu0 0.0
        %1866 = vmatpush1.msra.mxu0 %v1756
        %1867 = vmatprep.subr.mxu0 0.0
        %1868 = vmatpush1.msra.mxu0 %v1755
        %1869 = vmatprep.subr.mxu0 0.0
        %1870 = vmatpush2.msra.mxu0 0.0
        %1871 = vmatprep.subr.mxu0 0.0
        %1872 = vmatpush2.msra.mxu0 0.0
        %1873 = vmatprep.subr.mxu0 0.0
        %1874 = vmatpush2.msra.mxu0 0.0
        %1875 = vmatprep.subr.mxu0 0.0
        %1876 = vmatpush2.msra.mxu0 0.0
        %1877 = vmatprep.subr.mxu0 0.0
        %1878 = vmatpush2.msra.mxu0 0.0
        %1879 = vmatprep.subr.mxu0 0.0
        %1880 = vmatpush2.msra.mxu0 0.0
        %1881 = vmatprep.subr.mxu0 0.0
        %1882 = vmatpush2.msra.mxu0 0.0
        %1883 = vmatprep.subr.mxu0 0.0
        %1884 = vmatpush2.msra.mxu0 0.0
        %1885 = vmatprep.subr.mxu0 0.0
        %1886 = vmatpush2.msra.mxu0 0.0
        %1887 = vmatprep.subr.mxu0 0.0
        %1888 = vmatpush2.msra.mxu0 0.0
        %1889 = vmatprep.subr.mxu0 0.0
        %1890 = vmatpush2.msra.mxu0 0.0
        %1891 = vmatprep.subr.mxu0 0.0
        %1892 = vmatpush2.msra.mxu0 0.0
        %1893 = vmatprep.subr.mxu0 0.0
        %1894 = vmatpush2.msra.mxu0 0.0
        %1895 = vmatprep.subr.mxu0 0.0
        %1896 = vmatpush2.msra.mxu0 0.0
        %1897 = vmatprep.subr.mxu0 0.0
        %1898 = vmatpush2.msra.mxu0 0.0
        %1899 = vmatprep.subr.mxu0 0.0
        %1900 = vmatpush2.msra.mxu0 0.0
        %1901 = vmatprep.mubr.f32.mxu0 0.0
        %1902 = vmatmul.mubr.f32.gmra.mxu0 %v1440
        %v1903 = vpop.f32.mrf.mxu0
        %v1904 = vadd.f32 0.0, %v1903
        %v1905 = vpop.f32.mrf.mxu0
        %1906 = vmatprep.mubr.f32.mxu0 0.0
        %1907 = vmatmul.mubr.f32.gmra.mxu0 %v1443
        %v1908 = vpop.f32.mrf.mxu0
        %v1909 = vadd.f32 0.0, %v1908
        %v1910 = vpop.f32.mrf.mxu0
        %1911 = vdwg.mxu0
        %v1912 = vmax.f32 %v1829, %v1904
        %v1913 = vmax.f32 %v1834, %v1909
        %s1914 = scalar_lea.vmem %s5, 32
        %1915 = vst.msk [vmem:[%s1914] sm:$0xff] %vm1220, %v1912
        %1916 = vst.msk [vmem:[%s1914 + $0x8] sm:$0x1f] %vm1523, %v1913
        %s1917 = scalar_lea.vmem [#allocation2], 192
        %v1918 = vld [vmem:[%s1917] sm:$0xff]
        %v1919 = vld [vmem:[%s1917 + $0x8] sm:$0xff]
        %v1920 = vld [vmem:[%s1917 + $0x10] sm:$0xff]
        %v1921 = vld [vmem:[%s1917 + $0x18] sm:$0x3]
        %s1922 = scalar_lea.vmem [#allocation2], 224
        %v1923 = vld [vmem:[%s1922] sm:$0xff]
        %v1924 = vld [vmem:[%s1922 + $0x8] sm:$0xff]
        %v1925 = vld [vmem:[%s1922 + $0x10] sm:$0xff]
        %v1926 = vld [vmem:[%s1922 + $0x18] sm:$0x3]
        %v1927 = vmul.f32 %v1918, %v1317
        %v1928 = vmul.f32 %v1919, %v1317
        %v1929 = vmul.f32 %v1920, %v1317
        %v1930 = vmul.f32 %v1921, %v1317
        %v1931 = vadd.f32 %v1927, %v1327
        %v1932 = vadd.f32 %v1928, %v1327
        %v1933 = vadd.f32 %v1929, %v1327
        %v1934 = vadd.f32 %v1930, %v1327
        %v1935 = vmax.f32 %v1931, 0.0
        %v1936 = vmax.f32 %v1932, 0.0
        %v1937 = vmax.f32 %v1933, 0.0
        %v1938 = vmax.f32 %v1934, 0.0
        %v1939 = vmul.f32 %v1923, %v1317
        %v1940 = vmul.f32 %v1924, %v1317
        %v1941 = vmul.f32 %v1925, %v1317
        %v1942 = vmul.f32 %v1926, %v1317
        %v1943 = vadd.f32 %v1939, %v1327
        %v1944 = vadd.f32 %v1940, %v1327
        %v1945 = vadd.f32 %v1941, %v1327
        %v1946 = vadd.f32 %v1942, %v1327
        %v1947 = vmax.f32 %v1943, 0.0
        %v1948 = vmax.f32 %v1944, 0.0
        %v1949 = vmax.f32 %v1945, 0.0
        %v1950 = vmax.f32 %v1946, 0.0
        %v1951 = vmax.f32 %v1935, %v1947
        %v1952 = vmax.f32 %v1936, %v1948
        %v1953 = vmax.f32 %v1937, %v1949
        %v1954 = vmax.f32 %v1938, %v1950
        %v1956 = vsel %vm1360, %v1954, 0
        %1958 = vmatprep.subr.mxu0 0.0
        %1959 = vmatpush1.msra.mxu0 0.0
        %1960 = vmatprep.subr.mxu0 0.0
        %1961 = vmatpush1.msra.mxu0 0.0
        %1962 = vmatprep.subr.mxu0 0.0
        %1963 = vmatpush1.msra.mxu0 0.0
        %1964 = vmatprep.subr.mxu0 0.0
        %1965 = vmatpush1.msra.mxu0 0.0
        %1966 = vmatprep.subr.mxu0 0.0
        %1967 = vmatpush1.msra.mxu0 0.0
        %1968 = vmatprep.subr.mxu0 0.0
        %1969 = vmatpush1.msra.mxu0 0.0
        %1970 = vmatprep.subr.mxu0 0.0
        %1971 = vmatpush1.msra.mxu0 0.0
        %1972 = vmatprep.subr.mxu0 0.0
        %1973 = vmatpush1.msra.mxu0 0.0
        %1974 = vmatprep.subr.mxu0 0.0
        %1975 = vmatpush1.msra.mxu0 0.0
        %1976 = vmatprep.subr.mxu0 0.0
        %1977 = vmatpush1.msra.mxu0 0.0
        %1978 = vmatprep.subr.mxu0 0.0
        %1979 = vmatpush1.msra.mxu0 0.0
        %1980 = vmatprep.subr.mxu0 0.0
        %1981 = vmatpush1.msra.mxu0 0.0
        %1982 = vmatprep.subr.mxu0 0.0
        %1983 = vmatpush1.msra.mxu0 %v1956
        %1984 = vmatprep.subr.mxu0 0.0
        %1985 = vmatpush1.msra.mxu0 %v1953
        %1986 = vmatprep.subr.mxu0 0.0
        %1987 = vmatpush1.msra.mxu0 %v1952
        %1988 = vmatprep.subr.mxu0 0.0
        %1989 = vmatpush1.msra.mxu0 %v1951
        %1990 = vmatprep.subr.mxu0 0.0
        %1991 = vmatpush2.msra.mxu0 0.0
        %1992 = vmatprep.subr.mxu0 0.0
        %1993 = vmatpush2.msra.mxu0 0.0
        %1994 = vmatprep.subr.mxu0 0.0
        %1995 = vmatpush2.msra.mxu0 0.0
        %1996 = vmatprep.subr.mxu0 0.0
        %1997 = vmatpush2.msra.mxu0 0.0
        %1998 = vmatprep.subr.mxu0 0.0
        %1999 = vmatpush2.msra.mxu0 0.0
        %2000 = vmatprep.subr.mxu0 0.0
        %2001 = vmatpush2.msra.mxu0 0.0
        %2002 = vmatprep.subr.mxu0 0.0
        %2003 = vmatpush2.msra.mxu0 0.0
        %2004 = vmatprep.subr.mxu0 0.0
        %2005 = vmatpush2.msra.mxu0 0.0
        %2006 = vmatprep.subr.mxu0 0.0
        %2007 = vmatpush2.msra.mxu0 0.0
        %2008 = vmatprep.subr.mxu0 0.0
        %2009 = vmatpush2.msra.mxu0 0.0
        %2010 = vmatprep.subr.mxu0 0.0
        %2011 = vmatpush2.msra.mxu0 0.0
        %2012 = vmatprep.subr.mxu0 0.0
        %2013 = vmatpush2.msra.mxu0 0.0
        %2014 = vmatprep.subr.mxu0 0.0
        %2015 = vmatpush2.msra.mxu0 0.0
        %2016 = vmatprep.subr.mxu0 0.0
        %2017 = vmatpush2.msra.mxu0 0.0
        %2018 = vmatprep.subr.mxu0 0.0
        %2019 = vmatpush2.msra.mxu0 0.0
        %2020 = vmatprep.subr.mxu0 0.0
        %2021 = vmatpush2.msra.mxu0 0.0
        %2022 = vmatprep.mubr.f32.mxu0 0.0
        %2023 = vmatmul.mubr.f32.gmra.mxu0 %v1355
        %v2024 = vpop.f32.mrf.mxu0
        %v2025 = vadd.f32 0.0, %v2024
        %v2026 = vpop.f32.mrf.mxu0
        %2027 = vmatprep.mubr.f32.mxu0 0.0
        %2028 = vmatmul.mubr.f32.gmra.mxu0 %v1358
        %v2029 = vpop.f32.mrf.mxu0
        %v2030 = vadd.f32 0.0, %v2029
        %v2031 = vpop.f32.mrf.mxu0
        %2032 = vdwg.mxu0
        %2033 = vmatprep.subr.mxu0 0.0
        %2034 = vmatpush1.msra.mxu0 0.0
        %2035 = vmatprep.subr.mxu0 0.0
        %2036 = vmatpush1.msra.mxu0 0.0
        %2037 = vmatprep.subr.mxu0 0.0
        %2038 = vmatpush1.msra.mxu0 0.0
        %2039 = vmatprep.subr.mxu0 0.0
        %2040 = vmatpush1.msra.mxu0 0.0
        %2041 = vmatprep.subr.mxu0 0.0
        %2042 = vmatpush1.msra.mxu0 0.0
        %2043 = vmatprep.subr.mxu0 0.0
        %2044 = vmatpush1.msra.mxu0 0.0
        %2045 = vmatprep.subr.mxu0 0.0
        %2046 = vmatpush1.msra.mxu0 0.0
        %2047 = vmatprep.subr.mxu0 0.0
        %2048 = vmatpush1.msra.mxu0 0.0
        %2049 = vmatprep.subr.mxu0 0.0
        %2050 = vmatpush1.msra.mxu0 0.0
        %2051 = vmatprep.subr.mxu0 0.0
        %2052 = vmatpush1.msra.mxu0 0.0
        %2053 = vmatprep.subr.mxu0 0.0
        %2054 = vmatpush1.msra.mxu0 0.0
        %2055 = vmatprep.subr.mxu0 0.0
        %2056 = vmatpush1.msra.mxu0 0.0
        %2057 = vmatprep.subr.mxu0 0.0
        %2058 = vmatpush1.msra.mxu0 %v1956
        %2059 = vmatprep.subr.mxu0 0.0
        %2060 = vmatpush1.msra.mxu0 %v1953
        %2061 = vmatprep.subr.mxu0 0.0
        %2062 = vmatpush1.msra.mxu0 %v1952
        %2063 = vmatprep.subr.mxu0 0.0
        %2064 = vmatpush1.msra.mxu0 %v1951
        %2065 = vmatprep.subr.mxu0 0.0
        %2066 = vmatpush2.msra.mxu0 0.0
        %2067 = vmatprep.subr.mxu0 0.0
        %2068 = vmatpush2.msra.mxu0 0.0
        %2069 = vmatprep.subr.mxu0 0.0
        %2070 = vmatpush2.msra.mxu0 0.0
        %2071 = vmatprep.subr.mxu0 0.0
        %2072 = vmatpush2.msra.mxu0 0.0
        %2073 = vmatprep.subr.mxu0 0.0
        %2074 = vmatpush2.msra.mxu0 0.0
        %2075 = vmatprep.subr.mxu0 0.0
        %2076 = vmatpush2.msra.mxu0 0.0
        %2077 = vmatprep.subr.mxu0 0.0
        %2078 = vmatpush2.msra.mxu0 0.0
        %2079 = vmatprep.subr.mxu0 0.0
        %2080 = vmatpush2.msra.mxu0 0.0
        %2081 = vmatprep.subr.mxu0 0.0
        %2082 = vmatpush2.msra.mxu0 0.0
        %2083 = vmatprep.subr.mxu0 0.0
        %2084 = vmatpush2.msra.mxu0 0.0
        %2085 = vmatprep.subr.mxu0 0.0
        %2086 = vmatpush2.msra.mxu0 0.0
        %2087 = vmatprep.subr.mxu0 0.0
        %2088 = vmatpush2.msra.mxu0 0.0
        %2089 = vmatprep.subr.mxu0 0.0
        %2090 = vmatpush2.msra.mxu0 0.0
        %2091 = vmatprep.subr.mxu0 0.0
        %2092 = vmatpush2.msra.mxu0 0.0
        %2093 = vmatprep.subr.mxu0 0.0
        %2094 = vmatpush2.msra.mxu0 0.0
        %2095 = vmatprep.subr.mxu0 0.0
        %2096 = vmatpush2.msra.mxu0 0.0
        %2097 = vmatprep.mubr.f32.mxu0 0.0
        %2098 = vmatmul.mubr.f32.gmra.mxu0 %v1440
        %v2099 = vpop.f32.mrf.mxu0
        %v2100 = vadd.f32 0.0, %v2099
        %v2101 = vpop.f32.mrf.mxu0
        %2102 = vmatprep.mubr.f32.mxu0 0.0
        %2103 = vmatmul.mubr.f32.gmra.mxu0 %v1443
        %v2104 = vpop.f32.mrf.mxu0
        %v2105 = vadd.f32 0.0, %v2104
        %v2106 = vpop.f32.mrf.mxu0
        %2107 = vdwg.mxu0
        %v2108 = vmax.f32 %v2025, %v2100
        %v2109 = vmax.f32 %v2030, %v2105
        %s2110 = scalar_lea.vmem %s5, 48
        %2111 = vst.msk [vmem:[%s2110] sm:$0xff] %vm1220, %v2108
        %2112 = vst.msk [vmem:[%s2110 + $0x8] sm:$0x1f] %vm1523, %v2109
        %s2113 = scalar_lea.vmem [#allocation2], 256
        %v2114 = vld [vmem:[%s2113] sm:$0xff]
        %v2115 = vld [vmem:[%s2113 + $0x8] sm:$0xff]
        %v2116 = vld [vmem:[%s2113 + $0x10] sm:$0xff]
        %v2117 = vld [vmem:[%s2113 + $0x18] sm:$0x3]
        %s2118 = scalar_lea.vmem [#allocation2], 288
        %v2119 = vld [vmem:[%s2118] sm:$0xff]
        %v2120 = vld [vmem:[%s2118 + $0x8] sm:$0xff]
        %v2121 = vld [vmem:[%s2118 + $0x10] sm:$0xff]
        %v2122 = vld [vmem:[%s2118 + $0x18] sm:$0x3]
        %v2123 = vmul.f32 %v2114, %v1317
        %v2124 = vmul.f32 %v2115, %v1317
        %v2125 = vmul.f32 %v2116, %v1317
        %v2126 = vmul.f32 %v2117, %v1317
        %v2127 = vadd.f32 %v2123, %v1327
        %v2128 = vadd.f32 %v2124, %v1327
        %v2129 = vadd.f32 %v2125, %v1327
        %v2130 = vadd.f32 %v2126, %v1327
        %v2131 = vmax.f32 %v2127, 0.0
        %v2132 = vmax.f32 %v2128, 0.0
        %v2133 = vmax.f32 %v2129, 0.0
        %v2134 = vmax.f32 %v2130, 0.0
        %v2135 = vmul.f32 %v2119, %v1317
        %v2136 = vmul.f32 %v2120, %v1317
        %v2137 = vmul.f32 %v2121, %v1317
        %v2138 = vmul.f32 %v2122, %v1317
        %v2139 = vadd.f32 %v2135, %v1327
        %v2140 = vadd.f32 %v2136, %v1327
        %v2141 = vadd.f32 %v2137, %v1327
        %v2142 = vadd.f32 %v2138, %v1327
        %v2143 = vmax.f32 %v2139, 0.0
        %v2144 = vmax.f32 %v2140, 0.0
        %v2145 = vmax.f32 %v2141, 0.0
        %v2146 = vmax.f32 %v2142, 0.0
        %v2147 = vmax.f32 %v2131, %v2143
        %v2148 = vmax.f32 %v2132, %v2144
        %v2149 = vmax.f32 %v2133, %v2145
        %v2150 = vmax.f32 %v2134, %v2146
        %v2152 = vsel %vm1360, %v2150, 0
        %2154 = vmatprep.subr.mxu0 0.0
        %2155 = vmatpush1.msra.mxu0 0.0
        %2156 = vmatprep.subr.mxu0 0.0
        %2157 = vmatpush1.msra.mxu0 0.0
        %2158 = vmatprep.subr.mxu0 0.0
        %2159 = vmatpush1.msra.mxu0 0.0
        %2160 = vmatprep.subr.mxu0 0.0
        %2161 = vmatpush1.msra.mxu0 0.0
        %2162 = vmatprep.subr.mxu0 0.0
        %2163 = vmatpush1.msra.mxu0 0.0
        %2164 = vmatprep.subr.mxu0 0.0
        %2165 = vmatpush1.msra.mxu0 0.0
        %2166 = vmatprep.subr.mxu0 0.0
        %2167 = vmatpush1.msra.mxu0 0.0
        %2168 = vmatprep.subr.mxu0 0.0
        %2169 = vmatpush1.msra.mxu0 0.0
        %2170 = vmatprep.subr.mxu0 0.0
        %2171 = vmatpush1.msra.mxu0 0.0
        %2172 = vmatprep.subr.mxu0 0.0
        %2173 = vmatpush1.msra.mxu0 0.0
        %2174 = vmatprep.subr.mxu0 0.0
        %2175 = vmatpush1.msra.mxu0 0.0
        %2176 = vmatprep.subr.mxu0 0.0
        %2177 = vmatpush1.msra.mxu0 0.0
        %2178 = vmatprep.subr.mxu0 0.0
        %2179 = vmatpush1.msra.mxu0 %v2152
        %2180 = vmatprep.subr.mxu0 0.0
        %2181 = vmatpush1.msra.mxu0 %v2149
        %2182 = vmatprep.subr.mxu0 0.0
        %2183 = vmatpush1.msra.mxu0 %v2148
        %2184 = vmatprep.subr.mxu0 0.0
        %2185 = vmatpush1.msra.mxu0 %v2147
        %2186 = vmatprep.subr.mxu0 0.0
        %2187 = vmatpush2.msra.mxu0 0.0
        %2188 = vmatprep.subr.mxu0 0.0
        %2189 = vmatpush2.msra.mxu0 0.0
        %2190 = vmatprep.subr.mxu0 0.0
        %2191 = vmatpush2.msra.mxu0 0.0
        %2192 = vmatprep.subr.mxu0 0.0
        %2193 = vmatpush2.msra.mxu0 0.0
        %2194 = vmatprep.subr.mxu0 0.0
        %2195 = vmatpush2.msra.mxu0 0.0
        %2196 = vmatprep.subr.mxu0 0.0
        %2197 = vmatpush2.msra.mxu0 0.0
        %2198 = vmatprep.subr.mxu0 0.0
        %2199 = vmatpush2.msra.mxu0 0.0
        %2200 = vmatprep.subr.mxu0 0.0
        %2201 = vmatpush2.msra.mxu0 0.0
        %2202 = vmatprep.subr.mxu0 0.0
        %2203 = vmatpush2.msra.mxu0 0.0
        %2204 = vmatprep.subr.mxu0 0.0
        %2205 = vmatpush2.msra.mxu0 0.0
        %2206 = vmatprep.subr.mxu0 0.0
        %2207 = vmatpush2.msra.mxu0 0.0
        %2208 = vmatprep.subr.mxu0 0.0
        %2209 = vmatpush2.msra.mxu0 0.0
        %2210 = vmatprep.subr.mxu0 0.0
        %2211 = vmatpush2.msra.mxu0 0.0
        %2212 = vmatprep.subr.mxu0 0.0
        %2213 = vmatpush2.msra.mxu0 0.0
        %2214 = vmatprep.subr.mxu0 0.0
        %2215 = vmatpush2.msra.mxu0 0.0
        %2216 = vmatprep.subr.mxu0 0.0
        %2217 = vmatpush2.msra.mxu0 0.0
        %2218 = vmatprep.mubr.f32.mxu0 0.0
        %2219 = vmatmul.mubr.f32.gmra.mxu0 %v1355
        %v2220 = vpop.f32.mrf.mxu0
        %v2221 = vadd.f32 0.0, %v2220
        %v2222 = vpop.f32.mrf.mxu0
        %2223 = vmatprep.mubr.f32.mxu0 0.0
        %2224 = vmatmul.mubr.f32.gmra.mxu0 %v1358
        %v2225 = vpop.f32.mrf.mxu0
        %v2226 = vadd.f32 0.0, %v2225
        %v2227 = vpop.f32.mrf.mxu0
        %2228 = vdwg.mxu0
        %2229 = vmatprep.subr.mxu0 0.0
        %2230 = vmatpush1.msra.mxu0 0.0
        %2231 = vmatprep.subr.mxu0 0.0
        %2232 = vmatpush1.msra.mxu0 0.0
        %2233 = vmatprep.subr.mxu0 0.0
        %2234 = vmatpush1.msra.mxu0 0.0
        %2235 = vmatprep.subr.mxu0 0.0
        %2236 = vmatpush1.msra.mxu0 0.0
        %2237 = vmatprep.subr.mxu0 0.0
        %2238 = vmatpush1.msra.mxu0 0.0
        %2239 = vmatprep.subr.mxu0 0.0
        %2240 = vmatpush1.msra.mxu0 0.0
        %2241 = vmatprep.subr.mxu0 0.0
        %2242 = vmatpush1.msra.mxu0 0.0
        %2243 = vmatprep.subr.mxu0 0.0
        %2244 = vmatpush1.msra.mxu0 0.0
        %2245 = vmatprep.subr.mxu0 0.0
        %2246 = vmatpush1.msra.mxu0 0.0
        %2247 = vmatprep.subr.mxu0 0.0
        %2248 = vmatpush1.msra.mxu0 0.0
        %2249 = vmatprep.subr.mxu0 0.0
        %2250 = vmatpush1.msra.mxu0 0.0
        %2251 = vmatprep.subr.mxu0 0.0
        %2252 = vmatpush1.msra.mxu0 0.0
        %2253 = vmatprep.subr.mxu0 0.0
        %2254 = vmatpush1.msra.mxu0 %v2152
        %2255 = vmatprep.subr.mxu0 0.0
        %2256 = vmatpush1.msra.mxu0 %v2149
        %2257 = vmatprep.subr.mxu0 0.0
        %2258 = vmatpush1.msra.mxu0 %v2148
        %2259 = vmatprep.subr.mxu0 0.0
        %2260 = vmatpush1.msra.mxu0 %v2147
        %2261 = vmatprep.subr.mxu0 0.0
        %2262 = vmatpush2.msra.mxu0 0.0
        %2263 = vmatprep.subr.mxu0 0.0
        %2264 = vmatpush2.msra.mxu0 0.0
        %2265 = vmatprep.subr.mxu0 0.0
        %2266 = vmatpush2.msra.mxu0 0.0
        %2267 = vmatprep.subr.mxu0 0.0
        %2268 = vmatpush2.msra.mxu0 0.0
        %2269 = vmatprep.subr.mxu0 0.0
        %2270 = vmatpush2.msra.mxu0 0.0
        %2271 = vmatprep.subr.mxu0 0.0
        %2272 = vmatpush2.msra.mxu0 0.0
        %2273 = vmatprep.subr.mxu0 0.0
        %2274 = vmatpush2.msra.mxu0 0.0
        %2275 = vmatprep.subr.mxu0 0.0
        %2276 = vmatpush2.msra.mxu0 0.0
        %2277 = vmatprep.subr.mxu0 0.0
        %2278 = vmatpush2.msra.mxu0 0.0
        %2279 = vmatprep.subr.mxu0 0.0
        %2280 = vmatpush2.msra.mxu0 0.0
        %2281 = vmatprep.subr.mxu0 0.0
        %2282 = vmatpush2.msra.mxu0 0.0
        %2283 = vmatprep.subr.mxu0 0.0
        %2284 = vmatpush2.msra.mxu0 0.0
        %2285 = vmatprep.subr.mxu0 0.0
        %2286 = vmatpush2.msra.mxu0 0.0
        %2287 = vmatprep.subr.mxu0 0.0
        %2288 = vmatpush2.msra.mxu0 0.0
        %2289 = vmatprep.subr.mxu0 0.0
        %2290 = vmatpush2.msra.mxu0 0.0
        %2291 = vmatprep.subr.mxu0 0.0
        %2292 = vmatpush2.msra.mxu0 0.0
        %2293 = vmatprep.mubr.f32.mxu0 0.0
        %2294 = vmatmul.mubr.f32.gmra.mxu0 %v1440
        %v2295 = vpop.f32.mrf.mxu0
        %v2296 = vadd.f32 0.0, %v2295
        %v2297 = vpop.f32.mrf.mxu0
        %2298 = vmatprep.mubr.f32.mxu0 0.0
        %2299 = vmatmul.mubr.f32.gmra.mxu0 %v1443
        %v2300 = vpop.f32.mrf.mxu0
        %v2301 = vadd.f32 0.0, %v2300
        %v2302 = vpop.f32.mrf.mxu0
        %2303 = vdwg.mxu0
        %v2304 = vmax.f32 %v2221, %v2296
        %v2305 = vmax.f32 %v2226, %v2301
        %s2306 = scalar_lea.vmem %s5, 64
        %2307 = vst.msk [vmem:[%s2306] sm:$0xff] %vm1220, %v2304
        %2308 = vst.msk [vmem:[%s2306 + $0x8] sm:$0x1f] %vm1523, %v2305
        %s2309 = scalar_lea.vmem [#allocation2], 320
        %v2310 = vld [vmem:[%s2309] sm:$0xff]
        %v2311 = vld [vmem:[%s2309 + $0x8] sm:$0xff]
        %v2312 = vld [vmem:[%s2309 + $0x10] sm:$0xff]
        %v2313 = vld [vmem:[%s2309 + $0x18] sm:$0x3]
        %s2314 = scalar_lea.vmem [#allocation2], 352
        %v2315 = vld [vmem:[%s2314] sm:$0xff]
        %v2316 = vld [vmem:[%s2314 + $0x8] sm:$0xff]
        %v2317 = vld [vmem:[%s2314 + $0x10] sm:$0xff]
        %v2318 = vld [vmem:[%s2314 + $0x18] sm:$0x3]
        %v2319 = vmul.f32 %v2310, %v1317
        %v2320 = vmul.f32 %v2311, %v1317
        %v2321 = vmul.f32 %v2312, %v1317
        %v2322 = vmul.f32 %v2313, %v1317
        %v2323 = vadd.f32 %v2319, %v1327
        %v2324 = vadd.f32 %v2320, %v1327
        %v2325 = vadd.f32 %v2321, %v1327
        %v2326 = vadd.f32 %v2322, %v1327
        %v2327 = vmax.f32 %v2323, 0.0
        %v2328 = vmax.f32 %v2324, 0.0
        %v2329 = vmax.f32 %v2325, 0.0
        %v2330 = vmax.f32 %v2326, 0.0
        %v2331 = vmul.f32 %v2315, %v1317
        %v2332 = vmul.f32 %v2316, %v1317
        %v2333 = vmul.f32 %v2317, %v1317
        %v2334 = vmul.f32 %v2318, %v1317
        %v2335 = vadd.f32 %v2331, %v1327
        %v2336 = vadd.f32 %v2332, %v1327
        %v2337 = vadd.f32 %v2333, %v1327
        %v2338 = vadd.f32 %v2334, %v1327
        %v2339 = vmax.f32 %v2335, 0.0
        %v2340 = vmax.f32 %v2336, 0.0
        %v2341 = vmax.f32 %v2337, 0.0
        %v2342 = vmax.f32 %v2338, 0.0
        %v2343 = vmax.f32 %v2327, %v2339
        %v2344 = vmax.f32 %v2328, %v2340
        %v2345 = vmax.f32 %v2329, %v2341
        %v2346 = vmax.f32 %v2330, %v2342
        %v2348 = vsel %vm1360, %v2346, 0
        %2350 = vmatprep.subr.mxu0 0.0
        %2351 = vmatpush1.msra.mxu0 0.0
        %2352 = vmatprep.subr.mxu0 0.0
        %2353 = vmatpush1.msra.mxu0 0.0
        %2354 = vmatprep.subr.mxu0 0.0
        %2355 = vmatpush1.msra.mxu0 0.0
        %2356 = vmatprep.subr.mxu0 0.0
        %2357 = vmatpush1.msra.mxu0 0.0
        %2358 = vmatprep.subr.mxu0 0.0
        %2359 = vmatpush1.msra.mxu0 0.0
        %2360 = vmatprep.subr.mxu0 0.0
        %2361 = vmatpush1.msra.mxu0 0.0
        %2362 = vmatprep.subr.mxu0 0.0
        %2363 = vmatpush1.msra.mxu0 0.0
        %2364 = vmatprep.subr.mxu0 0.0
        %2365 = vmatpush1.msra.mxu0 0.0
        %2366 = vmatprep.subr.mxu0 0.0
        %2367 = vmatpush1.msra.mxu0 0.0
        %2368 = vmatprep.subr.mxu0 0.0
        %2369 = vmatpush1.msra.mxu0 0.0
        %2370 = vmatprep.subr.mxu0 0.0
        %2371 = vmatpush1.msra.mxu0 0.0
        %2372 = vmatprep.subr.mxu0 0.0
        %2373 = vmatpush1.msra.mxu0 0.0
        %2374 = vmatprep.subr.mxu0 0.0
        %2375 = vmatpush1.msra.mxu0 %v2348
        %2376 = vmatprep.subr.mxu0 0.0
        %2377 = vmatpush1.msra.mxu0 %v2345
        %2378 = vmatprep.subr.mxu0 0.0
        %2379 = vmatpush1.msra.mxu0 %v2344
        %2380 = vmatprep.subr.mxu0 0.0
        %2381 = vmatpush1.msra.mxu0 %v2343
        %2382 = vmatprep.subr.mxu0 0.0
        %2383 = vmatpush2.msra.mxu0 0.0
        %2384 = vmatprep.subr.mxu0 0.0
        %2385 = vmatpush2.msra.mxu0 0.0
        %2386 = vmatprep.subr.mxu0 0.0
        %2387 = vmatpush2.msra.mxu0 0.0
        %2388 = vmatprep.subr.mxu0 0.0
        %2389 = vmatpush2.msra.mxu0 0.0
        %2390 = vmatprep.subr.mxu0 0.0
        %2391 = vmatpush2.msra.mxu0 0.0
        %2392 = vmatprep.subr.mxu0 0.0
        %2393 = vmatpush2.msra.mxu0 0.0
        %2394 = vmatprep.subr.mxu0 0.0
        %2395 = vmatpush2.msra.mxu0 0.0
        %2396 = vmatprep.subr.mxu0 0.0
        %2397 = vmatpush2.msra.mxu0 0.0
        %2398 = vmatprep.subr.mxu0 0.0
        %2399 = vmatpush2.msra.mxu0 0.0
        %2400 = vmatprep.subr.mxu0 0.0
        %2401 = vmatpush2.msra.mxu0 0.0
        %2402 = vmatprep.subr.mxu0 0.0
        %2403 = vmatpush2.msra.mxu0 0.0
        %2404 = vmatprep.subr.mxu0 0.0
        %2405 = vmatpush2.msra.mxu0 0.0
        %2406 = vmatprep.subr.mxu0 0.0
        %2407 = vmatpush2.msra.mxu0 0.0
        %2408 = vmatprep.subr.mxu0 0.0
        %2409 = vmatpush2.msra.mxu0 0.0
        %2410 = vmatprep.subr.mxu0 0.0
        %2411 = vmatpush2.msra.mxu0 0.0
        %2412 = vmatprep.subr.mxu0 0.0
        %2413 = vmatpush2.msra.mxu0 0.0
        %2414 = vmatprep.mubr.f32.mxu0 0.0
        %2415 = vmatmul.mubr.f32.gmra.mxu0 %v1355
        %v2416 = vpop.f32.mrf.mxu0
        %v2417 = vadd.f32 0.0, %v2416
        %v2418 = vpop.f32.mrf.mxu0
        %2419 = vmatprep.mubr.f32.mxu0 0.0
        %2420 = vmatmul.mubr.f32.gmra.mxu0 %v1358
        %v2421 = vpop.f32.mrf.mxu0
        %v2422 = vadd.f32 0.0, %v2421
        %v2423 = vpop.f32.mrf.mxu0
        %2424 = vdwg.mxu0
        %2425 = vmatprep.subr.mxu0 0.0
        %2426 = vmatpush1.msra.mxu0 0.0
        %2427 = vmatprep.subr.mxu0 0.0
        %2428 = vmatpush1.msra.mxu0 0.0
        %2429 = vmatprep.subr.mxu0 0.0
        %2430 = vmatpush1.msra.mxu0 0.0
        %2431 = vmatprep.subr.mxu0 0.0
        %2432 = vmatpush1.msra.mxu0 0.0
        %2433 = vmatprep.subr.mxu0 0.0
        %2434 = vmatpush1.msra.mxu0 0.0
        %2435 = vmatprep.subr.mxu0 0.0
        %2436 = vmatpush1.msra.mxu0 0.0
        %2437 = vmatprep.subr.mxu0 0.0
        %2438 = vmatpush1.msra.mxu0 0.0
        %2439 = vmatprep.subr.mxu0 0.0
        %2440 = vmatpush1.msra.mxu0 0.0
        %2441 = vmatprep.subr.mxu0 0.0
        %2442 = vmatpush1.msra.mxu0 0.0
        %2443 = vmatprep.subr.mxu0 0.0
        %2444 = vmatpush1.msra.mxu0 0.0
        %2445 = vmatprep.subr.mxu0 0.0
        %2446 = vmatpush1.msra.mxu0 0.0
        %2447 = vmatprep.subr.mxu0 0.0
        %2448 = vmatpush1.msra.mxu0 0.0
        %2449 = vmatprep.subr.mxu0 0.0
        %2450 = vmatpush1.msra.mxu0 %v2348
        %2451 = vmatprep.subr.mxu0 0.0
        %2452 = vmatpush1.msra.mxu0 %v2345
        %2453 = vmatprep.subr.mxu0 0.0
        %2454 = vmatpush1.msra.mxu0 %v2344
        %2455 = vmatprep.subr.mxu0 0.0
        %2456 = vmatpush1.msra.mxu0 %v2343
        %2457 = vmatprep.subr.mxu0 0.0
        %2458 = vmatpush2.msra.mxu0 0.0
        %2459 = vmatprep.subr.mxu0 0.0
        %2460 = vmatpush2.msra.mxu0 0.0
        %2461 = vmatprep.subr.mxu0 0.0
        %2462 = vmatpush2.msra.mxu0 0.0
        %2463 = vmatprep.subr.mxu0 0.0
        %2464 = vmatpush2.msra.mxu0 0.0
        %2465 = vmatprep.subr.mxu0 0.0
        %2466 = vmatpush2.msra.mxu0 0.0
        %2467 = vmatprep.subr.mxu0 0.0
        %2468 = vmatpush2.msra.mxu0 0.0
        %2469 = vmatprep.subr.mxu0 0.0
        %2470 = vmatpush2.msra.mxu0 0.0
        %2471 = vmatprep.subr.mxu0 0.0
        %2472 = vmatpush2.msra.mxu0 0.0
        %2473 = vmatprep.subr.mxu0 0.0
        %2474 = vmatpush2.msra.mxu0 0.0
        %2475 = vmatprep.subr.mxu0 0.0
        %2476 = vmatpush2.msra.mxu0 0.0
        %2477 = vmatprep.subr.mxu0 0.0
        %2478 = vmatpush2.msra.mxu0 0.0
        %2479 = vmatprep.subr.mxu0 0.0
        %2480 = vmatpush2.msra.mxu0 0.0
        %2481 = vmatprep.subr.mxu0 0.0
        %2482 = vmatpush2.msra.mxu0 0.0
        %2483 = vmatprep.subr.mxu0 0.0
        %2484 = vmatpush2.msra.mxu0 0.0
        %2485 = vmatprep.subr.mxu0 0.0
        %2486 = vmatpush2.msra.mxu0 0.0
        %2487 = vmatprep.subr.mxu0 0.0
        %2488 = vmatpush2.msra.mxu0 0.0
        %2489 = vmatprep.mubr.f32.mxu0 0.0
        %2490 = vmatmul.mubr.f32.gmra.mxu0 %v1440
        %v2491 = vpop.f32.mrf.mxu0
        %v2492 = vadd.f32 0.0, %v2491
        %v2493 = vpop.f32.mrf.mxu0
        %2494 = vmatprep.mubr.f32.mxu0 0.0
        %2495 = vmatmul.mubr.f32.gmra.mxu0 %v1443
        %v2496 = vpop.f32.mrf.mxu0
        %v2497 = vadd.f32 0.0, %v2496
        %v2498 = vpop.f32.mrf.mxu0
        %2499 = vdwg.mxu0
        %v2500 = vmax.f32 %v2417, %v2492
        %v2501 = vmax.f32 %v2422, %v2497
        %s2502 = scalar_lea.vmem %s5, 80
        %2503 = vst.msk [vmem:[%s2502] sm:$0xff] %vm1220, %v2500
        %2504 = vst.msk [vmem:[%s2502 + $0x8] sm:$0x1f] %vm1523, %v2501
        %s2505 = scalar_lea.vmem [#allocation2], 384
        %v2506 = vld [vmem:[%s2505] sm:$0xff]
        %v2507 = vld [vmem:[%s2505 + $0x8] sm:$0xff]
        %v2508 = vld [vmem:[%s2505 + $0x10] sm:$0xff]
        %v2509 = vld [vmem:[%s2505 + $0x18] sm:$0x3]
        %s2510 = scalar_lea.vmem [#allocation2], 416
        %v2511 = vld [vmem:[%s2510] sm:$0xff]
        %v2512 = vld [vmem:[%s2510 + $0x8] sm:$0xff]
        %v2513 = vld [vmem:[%s2510 + $0x10] sm:$0xff]
        %v2514 = vld [vmem:[%s2510 + $0x18] sm:$0x3]
        %v2515 = vmul.f32 %v2506, %v1317
        %v2516 = vmul.f32 %v2507, %v1317
        %v2517 = vmul.f32 %v2508, %v1317
        %v2518 = vmul.f32 %v2509, %v1317
        %v2519 = vadd.f32 %v2515, %v1327
        %v2520 = vadd.f32 %v2516, %v1327
        %v2521 = vadd.f32 %v2517, %v1327
        %v2522 = vadd.f32 %v2518, %v1327
        %v2523 = vmax.f32 %v2519, 0.0
        %v2524 = vmax.f32 %v2520, 0.0
        %v2525 = vmax.f32 %v2521, 0.0
        %v2526 = vmax.f32 %v2522, 0.0
        %v2527 = vmul.f32 %v2511, %v1317
        %v2528 = vmul.f32 %v2512, %v1317
        %v2529 = vmul.f32 %v2513, %v1317
        %v2530 = vmul.f32 %v2514, %v1317
        %v2531 = vadd.f32 %v2527, %v1327
        %v2532 = vadd.f32 %v2528, %v1327
        %v2533 = vadd.f32 %v2529, %v1327
        %v2534 = vadd.f32 %v2530, %v1327
        %v2535 = vmax.f32 %v2531, 0.0
        %v2536 = vmax.f32 %v2532, 0.0
        %v2537 = vmax.f32 %v2533, 0.0
        %v2538 = vmax.f32 %v2534, 0.0
        %v2539 = vmax.f32 %v2523, %v2535
        %v2540 = vmax.f32 %v2524, %v2536
        %v2541 = vmax.f32 %v2525, %v2537
        %v2542 = vmax.f32 %v2526, %v2538
        %v2544 = vsel %vm1360, %v2542, 0
        %2546 = vmatprep.subr.mxu0 0.0
        %2547 = vmatpush1.msra.mxu0 0.0
        %2548 = vmatprep.subr.mxu0 0.0
        %2549 = vmatpush1.msra.mxu0 0.0
        %2550 = vmatprep.subr.mxu0 0.0
        %2551 = vmatpush1.msra.mxu0 0.0
        %2552 = vmatprep.subr.mxu0 0.0
        %2553 = vmatpush1.msra.mxu0 0.0
        %2554 = vmatprep.subr.mxu0 0.0
        %2555 = vmatpush1.msra.mxu0 0.0
        %2556 = vmatprep.subr.mxu0 0.0
        %2557 = vmatpush1.msra.mxu0 0.0
        %2558 = vmatprep.subr.mxu0 0.0
        %2559 = vmatpush1.msra.mxu0 0.0
        %2560 = vmatprep.subr.mxu0 0.0
        %2561 = vmatpush1.msra.mxu0 0.0
        %2562 = vmatprep.subr.mxu0 0.0
        %2563 = vmatpush1.msra.mxu0 0.0
        %2564 = vmatprep.subr.mxu0 0.0
        %2565 = vmatpush1.msra.mxu0 0.0
        %2566 = vmatprep.subr.mxu0 0.0
        %2567 = vmatpush1.msra.mxu0 0.0
        %2568 = vmatprep.subr.mxu0 0.0
        %2569 = vmatpush1.msra.mxu0 0.0
        %2570 = vmatprep.subr.mxu0 0.0
        %2571 = vmatpush1.msra.mxu0 %v2544
        %2572 = vmatprep.subr.mxu0 0.0
        %2573 = vmatpush1.msra.mxu0 %v2541
        %2574 = vmatprep.subr.mxu0 0.0
        %2575 = vmatpush1.msra.mxu0 %v2540
        %2576 = vmatprep.subr.mxu0 0.0
        %2577 = vmatpush1.msra.mxu0 %v2539
        %2578 = vmatprep.subr.mxu0 0.0
        %2579 = vmatpush2.msra.mxu0 0.0
        %2580 = vmatprep.subr.mxu0 0.0
        %2581 = vmatpush2.msra.mxu0 0.0
        %2582 = vmatprep.subr.mxu0 0.0
        %2583 = vmatpush2.msra.mxu0 0.0
        %2584 = vmatprep.subr.mxu0 0.0
        %2585 = vmatpush2.msra.mxu0 0.0
        %2586 = vmatprep.subr.mxu0 0.0
        %2587 = vmatpush2.msra.mxu0 0.0
        %2588 = vmatprep.subr.mxu0 0.0
        %2589 = vmatpush2.msra.mxu0 0.0
        %2590 = vmatprep.subr.mxu0 0.0
        %2591 = vmatpush2.msra.mxu0 0.0
        %2592 = vmatprep.subr.mxu0 0.0
        %2593 = vmatpush2.msra.mxu0 0.0
        %2594 = vmatprep.subr.mxu0 0.0
        %2595 = vmatpush2.msra.mxu0 0.0
        %2596 = vmatprep.subr.mxu0 0.0
        %2597 = vmatpush2.msra.mxu0 0.0
        %2598 = vmatprep.subr.mxu0 0.0
        %2599 = vmatpush2.msra.mxu0 0.0
        %2600 = vmatprep.subr.mxu0 0.0
        %2601 = vmatpush2.msra.mxu0 0.0
        %2602 = vmatprep.subr.mxu0 0.0
        %2603 = vmatpush2.msra.mxu0 0.0
        %2604 = vmatprep.subr.mxu0 0.0
        %2605 = vmatpush2.msra.mxu0 0.0
        %2606 = vmatprep.subr.mxu0 0.0
        %2607 = vmatpush2.msra.mxu0 0.0
        %2608 = vmatprep.subr.mxu0 0.0
        %2609 = vmatpush2.msra.mxu0 0.0
        %2610 = vmatprep.mubr.f32.mxu0 0.0
        %2611 = vmatmul.mubr.f32.gmra.mxu0 %v1355
        %v2612 = vpop.f32.mrf.mxu0
        %v2613 = vadd.f32 0.0, %v2612
        %v2614 = vpop.f32.mrf.mxu0
        %2615 = vmatprep.mubr.f32.mxu0 0.0
        %2616 = vmatmul.mubr.f32.gmra.mxu0 %v1358
        %v2617 = vpop.f32.mrf.mxu0
        %v2618 = vadd.f32 0.0, %v2617
        %v2619 = vpop.f32.mrf.mxu0
        %2620 = vdwg.mxu0
        %2621 = vmatprep.subr.mxu0 0.0
        %2622 = vmatpush1.msra.mxu0 0.0
        %2623 = vmatprep.subr.mxu0 0.0
        %2624 = vmatpush1.msra.mxu0 0.0
        %2625 = vmatprep.subr.mxu0 0.0
        %2626 = vmatpush1.msra.mxu0 0.0
        %2627 = vmatprep.subr.mxu0 0.0
        %2628 = vmatpush1.msra.mxu0 0.0
        %2629 = vmatprep.subr.mxu0 0.0
        %2630 = vmatpush1.msra.mxu0 0.0
        %2631 = vmatprep.subr.mxu0 0.0
        %2632 = vmatpush1.msra.mxu0 0.0
        %2633 = vmatprep.subr.mxu0 0.0
        %2634 = vmatpush1.msra.mxu0 0.0
        %2635 = vmatprep.subr.mxu0 0.0
        %2636 = vmatpush1.msra.mxu0 0.0
        %2637 = vmatprep.subr.mxu0 0.0
        %2638 = vmatpush1.msra.mxu0 0.0
        %2639 = vmatprep.subr.mxu0 0.0
        %2640 = vmatpush1.msra.mxu0 0.0
        %2641 = vmatprep.subr.mxu0 0.0
        %2642 = vmatpush1.msra.mxu0 0.0
        %2643 = vmatprep.subr.mxu0 0.0
        %2644 = vmatpush1.msra.mxu0 0.0
        %2645 = vmatprep.subr.mxu0 0.0
        %2646 = vmatpush1.msra.mxu0 %v2544
        %2647 = vmatprep.subr.mxu0 0.0
        %2648 = vmatpush1.msra.mxu0 %v2541
        %2649 = vmatprep.subr.mxu0 0.0
        %2650 = vmatpush1.msra.mxu0 %v2540
        %2651 = vmatprep.subr.mxu0 0.0
        %2652 = vmatpush1.msra.mxu0 %v2539
        %2653 = vmatprep.subr.mxu0 0.0
        %2654 = vmatpush2.msra.mxu0 0.0
        %2655 = vmatprep.subr.mxu0 0.0
        %2656 = vmatpush2.msra.mxu0 0.0
        %2657 = vmatprep.subr.mxu0 0.0
        %2658 = vmatpush2.msra.mxu0 0.0
        %2659 = vmatprep.subr.mxu0 0.0
        %2660 = vmatpush2.msra.mxu0 0.0
        %2661 = vmatprep.subr.mxu0 0.0
        %2662 = vmatpush2.msra.mxu0 0.0
        %2663 = vmatprep.subr.mxu0 0.0
        %2664 = vmatpush2.msra.mxu0 0.0
        %2665 = vmatprep.subr.mxu0 0.0
        %2666 = vmatpush2.msra.mxu0 0.0
        %2667 = vmatprep.subr.mxu0 0.0
        %2668 = vmatpush2.msra.mxu0 0.0
        %2669 = vmatprep.subr.mxu0 0.0
        %2670 = vmatpush2.msra.mxu0 0.0
        %2671 = vmatprep.subr.mxu0 0.0
        %2672 = vmatpush2.msra.mxu0 0.0
        %2673 = vmatprep.subr.mxu0 0.0
        %2674 = vmatpush2.msra.mxu0 0.0
        %2675 = vmatprep.subr.mxu0 0.0
        %2676 = vmatpush2.msra.mxu0 0.0
        %2677 = vmatprep.subr.mxu0 0.0
        %2678 = vmatpush2.msra.mxu0 0.0
        %2679 = vmatprep.subr.mxu0 0.0
        %2680 = vmatpush2.msra.mxu0 0.0
        %2681 = vmatprep.subr.mxu0 0.0
        %2682 = vmatpush2.msra.mxu0 0.0
        %2683 = vmatprep.subr.mxu0 0.0
        %2684 = vmatpush2.msra.mxu0 0.0
        %2685 = vmatprep.mubr.f32.mxu0 0.0
        %2686 = vmatmul.mubr.f32.gmra.mxu0 %v1440
        %v2687 = vpop.f32.mrf.mxu0
        %v2688 = vadd.f32 0.0, %v2687
        %v2689 = vpop.f32.mrf.mxu0
        %2690 = vmatprep.mubr.f32.mxu0 0.0
        %2691 = vmatmul.mubr.f32.gmra.mxu0 %v1443
        %v2692 = vpop.f32.mrf.mxu0
        %v2693 = vadd.f32 0.0, %v2692
        %v2694 = vpop.f32.mrf.mxu0
        %2695 = vdwg.mxu0
        %v2696 = vmax.f32 %v2613, %v2688
        %v2697 = vmax.f32 %v2618, %v2693
        %s2698 = scalar_lea.vmem %s5, 96
        %2699 = vst.msk [vmem:[%s2698] sm:$0xff] %vm1220, %v2696
        %2700 = vst.msk [vmem:[%s2698 + $0x8] sm:$0x1f] %vm1523, %v2697
        %s2701 = scalar_lea.vmem [#allocation2], 448
        %v2702 = vld [vmem:[%s2701] sm:$0xff]
        %v2703 = vld [vmem:[%s2701 + $0x8] sm:$0xff]
        %v2704 = vld [vmem:[%s2701 + $0x10] sm:$0xff]
        %v2705 = vld [vmem:[%s2701 + $0x18] sm:$0x3]
        %s2706 = scalar_lea.vmem [#allocation2], 480
        %v2707 = vld [vmem:[%s2706] sm:$0xff]
        %v2708 = vld [vmem:[%s2706 + $0x8] sm:$0xff]
        %v2709 = vld [vmem:[%s2706 + $0x10] sm:$0xff]
        %v2710 = vld [vmem:[%s2706 + $0x18] sm:$0x3]
        %v2711 = vmul.f32 %v2702, %v1317
        %v2712 = vmul.f32 %v2703, %v1317
        %v2713 = vmul.f32 %v2704, %v1317
        %v2714 = vmul.f32 %v2705, %v1317
        %v2715 = vadd.f32 %v2711, %v1327
        %v2716 = vadd.f32 %v2712, %v1327
        %v2717 = vadd.f32 %v2713, %v1327
        %v2718 = vadd.f32 %v2714, %v1327
        %v2719 = vmax.f32 %v2715, 0.0
        %v2720 = vmax.f32 %v2716, 0.0
        %v2721 = vmax.f32 %v2717, 0.0
        %v2722 = vmax.f32 %v2718, 0.0
        %v2723 = vmul.f32 %v2707, %v1317
        %v2724 = vmul.f32 %v2708, %v1317
        %v2725 = vmul.f32 %v2709, %v1317
        %v2726 = vmul.f32 %v2710, %v1317
        %v2727 = vadd.f32 %v2723, %v1327
        %v2728 = vadd.f32 %v2724, %v1327
        %v2729 = vadd.f32 %v2725, %v1327
        %v2730 = vadd.f32 %v2726, %v1327
        %v2731 = vmax.f32 %v2727, 0.0
        %v2732 = vmax.f32 %v2728, 0.0
        %v2733 = vmax.f32 %v2729, 0.0
        %v2734 = vmax.f32 %v2730, 0.0
        %v2735 = vmax.f32 %v2719, %v2731
        %v2736 = vmax.f32 %v2720, %v2732
        %v2737 = vmax.f32 %v2721, %v2733
        %v2738 = vmax.f32 %v2722, %v2734
        %v2740 = vsel %vm1360, %v2738, 0
        %2742 = vmatprep.subr.mxu0 0.0
        %2743 = vmatpush1.msra.mxu0 0.0
        %2744 = vmatprep.subr.mxu0 0.0
        %2745 = vmatpush1.msra.mxu0 0.0
        %2746 = vmatprep.subr.mxu0 0.0
        %2747 = vmatpush1.msra.mxu0 0.0
        %2748 = vmatprep.subr.mxu0 0.0
        %2749 = vmatpush1.msra.mxu0 0.0
        %2750 = vmatprep.subr.mxu0 0.0
        %2751 = vmatpush1.msra.mxu0 0.0
        %2752 = vmatprep.subr.mxu0 0.0
        %2753 = vmatpush1.msra.mxu0 0.0
        %2754 = vmatprep.subr.mxu0 0.0
        %2755 = vmatpush1.msra.mxu0 0.0
        %2756 = vmatprep.subr.mxu0 0.0
        %2757 = vmatpush1.msra.mxu0 0.0
        %2758 = vmatprep.subr.mxu0 0.0
        %2759 = vmatpush1.msra.mxu0 0.0
        %2760 = vmatprep.subr.mxu0 0.0
        %2761 = vmatpush1.msra.mxu0 0.0
        %2762 = vmatprep.subr.mxu0 0.0
        %2763 = vmatpush1.msra.mxu0 0.0
        %2764 = vmatprep.subr.mxu0 0.0
        %2765 = vmatpush1.msra.mxu0 0.0
        %2766 = vmatprep.subr.mxu0 0.0
        %2767 = vmatpush1.msra.mxu0 %v2740
        %2768 = vmatprep.subr.mxu0 0.0
        %2769 = vmatpush1.msra.mxu0 %v2737
        %2770 = vmatprep.subr.mxu0 0.0
        %2771 = vmatpush1.msra.mxu0 %v2736
        %2772 = vmatprep.subr.mxu0 0.0
        %2773 = vmatpush1.msra.mxu0 %v2735
        %2774 = vmatprep.subr.mxu0 0.0
        %2775 = vmatpush2.msra.mxu0 0.0
        %2776 = vmatprep.subr.mxu0 0.0
        %2777 = vmatpush2.msra.mxu0 0.0
        %2778 = vmatprep.subr.mxu0 0.0
        %2779 = vmatpush2.msra.mxu0 0.0
        %2780 = vmatprep.subr.mxu0 0.0
        %2781 = vmatpush2.msra.mxu0 0.0
        %2782 = vmatprep.subr.mxu0 0.0
        %2783 = vmatpush2.msra.mxu0 0.0
        %2784 = vmatprep.subr.mxu0 0.0
        %2785 = vmatpush2.msra.mxu0 0.0
        %2786 = vmatprep.subr.mxu0 0.0
        %2787 = vmatpush2.msra.mxu0 0.0
        %2788 = vmatprep.subr.mxu0 0.0
        %2789 = vmatpush2.msra.mxu0 0.0
        %2790 = vmatprep.subr.mxu0 0.0
        %2791 = vmatpush2.msra.mxu0 0.0
        %2792 = vmatprep.subr.mxu0 0.0
        %2793 = vmatpush2.msra.mxu0 0.0
        %2794 = vmatprep.subr.mxu0 0.0
        %2795 = vmatpush2.msra.mxu0 0.0
        %2796 = vmatprep.subr.mxu0 0.0
        %2797 = vmatpush2.msra.mxu0 0.0
        %2798 = vmatprep.subr.mxu0 0.0
        %2799 = vmatpush2.msra.mxu0 0.0
        %2800 = vmatprep.subr.mxu0 0.0
        %2801 = vmatpush2.msra.mxu0 0.0
        %2802 = vmatprep.subr.mxu0 0.0
        %2803 = vmatpush2.msra.mxu0 0.0
        %2804 = vmatprep.subr.mxu0 0.0
        %2805 = vmatpush2.msra.mxu0 0.0
        %2806 = vmatprep.mubr.f32.mxu0 0.0
        %2807 = vmatmul.mubr.f32.gmra.mxu0 %v1355
        %v2808 = vpop.f32.mrf.mxu0
        %v2809 = vadd.f32 0.0, %v2808
        %v2810 = vpop.f32.mrf.mxu0
        %2811 = vmatprep.mubr.f32.mxu0 0.0
        %2812 = vmatmul.mubr.f32.gmra.mxu0 %v1358
        %v2813 = vpop.f32.mrf.mxu0
        %v2814 = vadd.f32 0.0, %v2813
        %v2815 = vpop.f32.mrf.mxu0
        %2816 = vdwg.mxu0
        %2817 = vmatprep.subr.mxu0 0.0
        %2818 = vmatpush1.msra.mxu0 0.0
        %2819 = vmatprep.subr.mxu0 0.0
        %2820 = vmatpush1.msra.mxu0 0.0
        %2821 = vmatprep.subr.mxu0 0.0
        %2822 = vmatpush1.msra.mxu0 0.0
        %2823 = vmatprep.subr.mxu0 0.0
        %2824 = vmatpush1.msra.mxu0 0.0
        %2825 = vmatprep.subr.mxu0 0.0
        %2826 = vmatpush1.msra.mxu0 0.0
        %2827 = vmatprep.subr.mxu0 0.0
        %2828 = vmatpush1.msra.mxu0 0.0
        %2829 = vmatprep.subr.mxu0 0.0
        %2830 = vmatpush1.msra.mxu0 0.0
        %2831 = vmatprep.subr.mxu0 0.0
        %2832 = vmatpush1.msra.mxu0 0.0
        %2833 = vmatprep.subr.mxu0 0.0
        %2834 = vmatpush1.msra.mxu0 0.0
        %2835 = vmatprep.subr.mxu0 0.0
        %2836 = vmatpush1.msra.mxu0 0.0
        %2837 = vmatprep.subr.mxu0 0.0
        %2838 = vmatpush1.msra.mxu0 0.0
        %2839 = vmatprep.subr.mxu0 0.0
        %2840 = vmatpush1.msra.mxu0 0.0
        %2841 = vmatprep.subr.mxu0 0.0
        %2842 = vmatpush1.msra.mxu0 %v2740
        %2843 = vmatprep.subr.mxu0 0.0
        %2844 = vmatpush1.msra.mxu0 %v2737
        %2845 = vmatprep.subr.mxu0 0.0
        %2846 = vmatpush1.msra.mxu0 %v2736
        %2847 = vmatprep.subr.mxu0 0.0
        %2848 = vmatpush1.msra.mxu0 %v2735
        %2849 = vmatprep.subr.mxu0 0.0
        %2850 = vmatpush2.msra.mxu0 0.0
        %2851 = vmatprep.subr.mxu0 0.0
        %2852 = vmatpush2.msra.mxu0 0.0
        %2853 = vmatprep.subr.mxu0 0.0
        %2854 = vmatpush2.msra.mxu0 0.0
        %2855 = vmatprep.subr.mxu0 0.0
        %2856 = vmatpush2.msra.mxu0 0.0
        %2857 = vmatprep.subr.mxu0 0.0
        %2858 = vmatpush2.msra.mxu0 0.0
        %2859 = vmatprep.subr.mxu0 0.0
        %2860 = vmatpush2.msra.mxu0 0.0
        %2861 = vmatprep.subr.mxu0 0.0
        %2862 = vmatpush2.msra.mxu0 0.0
        %2863 = vmatprep.subr.mxu0 0.0
        %2864 = vmatpush2.msra.mxu0 0.0
        %2865 = vmatprep.subr.mxu0 0.0
        %2866 = vmatpush2.msra.mxu0 0.0
        %2867 = vmatprep.subr.mxu0 0.0
        %2868 = vmatpush2.msra.mxu0 0.0
        %2869 = vmatprep.subr.mxu0 0.0
        %2870 = vmatpush2.msra.mxu0 0.0
        %2871 = vmatprep.subr.mxu0 0.0
        %2872 = vmatpush2.msra.mxu0 0.0
        %2873 = vmatprep.subr.mxu0 0.0
        %2874 = vmatpush2.msra.mxu0 0.0
        %2875 = vmatprep.subr.mxu0 0.0
        %2876 = vmatpush2.msra.mxu0 0.0
        %2877 = vmatprep.subr.mxu0 0.0
        %2878 = vmatpush2.msra.mxu0 0.0
        %2879 = vmatprep.subr.mxu0 0.0
        %2880 = vmatpush2.msra.mxu0 0.0
        %2881 = vmatprep.mubr.f32.mxu0 0.0
        %2882 = vmatmul.mubr.f32.gmra.mxu0 %v1440
        %v2883 = vpop.f32.mrf.mxu0
        %v2884 = vadd.f32 0.0, %v2883
        %v2885 = vpop.f32.mrf.mxu0
        %2886 = vmatprep.mubr.f32.mxu0 0.0
        %2887 = vmatmul.mubr.f32.gmra.mxu0 %v1443
        %v2888 = vpop.f32.mrf.mxu0
        %v2889 = vadd.f32 0.0, %v2888
        %v2890 = vpop.f32.mrf.mxu0
        %2891 = vdwg.mxu0
        %v2892 = vmax.f32 %v2809, %v2884
        %v2893 = vmax.f32 %v2814, %v2889
        %s2894 = scalar_lea.vmem %s5, 112
        %2895 = vst.msk [vmem:[%s2894] sm:$0xff] %vm1220, %v2892
        %2896 = vst.msk [vmem:[%s2894 + $0x8] sm:$0x1f] %vm1523, %v2893
        %s2897 = scalar_lea.vmem [#allocation2], 512
        %v2898 = vld [vmem:[%s2897] sm:$0xff]
        %v2899 = vld [vmem:[%s2897 + $0x8] sm:$0xff]
        %v2900 = vld [vmem:[%s2897 + $0x10] sm:$0xff]
        %v2901 = vld [vmem:[%s2897 + $0x18] sm:$0x3]
        %s2902 = scalar_lea.vmem [#allocation2], 544
        %v2903 = vld [vmem:[%s2902] sm:$0xff]
        %v2904 = vld [vmem:[%s2902 + $0x8] sm:$0xff]
        %v2905 = vld [vmem:[%s2902 + $0x10] sm:$0xff]
        %v2906 = vld [vmem:[%s2902 + $0x18] sm:$0x3]
        %v2907 = vmul.f32 %v2898, %v1317
        %v2908 = vmul.f32 %v2899, %v1317
        %v2909 = vmul.f32 %v2900, %v1317
        %v2910 = vmul.f32 %v2901, %v1317
        %v2911 = vadd.f32 %v2907, %v1327
        %v2912 = vadd.f32 %v2908, %v1327
        %v2913 = vadd.f32 %v2909, %v1327
        %v2914 = vadd.f32 %v2910, %v1327
        %v2915 = vmax.f32 %v2911, 0.0
        %v2916 = vmax.f32 %v2912, 0.0
        %v2917 = vmax.f32 %v2913, 0.0
        %v2918 = vmax.f32 %v2914, 0.0
        %v2919 = vmul.f32 %v2903, %v1317
        %v2920 = vmul.f32 %v2904, %v1317
        %v2921 = vmul.f32 %v2905, %v1317
        %v2922 = vmul.f32 %v2906, %v1317
        %v2923 = vadd.f32 %v2919, %v1327
        %v2924 = vadd.f32 %v2920, %v1327
        %v2925 = vadd.f32 %v2921, %v1327
        %v2926 = vadd.f32 %v2922, %v1327
        %v2927 = vmax.f32 %v2923, 0.0
        %v2928 = vmax.f32 %v2924, 0.0
        %v2929 = vmax.f32 %v2925, 0.0
        %v2930 = vmax.f32 %v2926, 0.0
        %v2931 = vmax.f32 %v2915, %v2927
        %v2932 = vmax.f32 %v2916, %v2928
        %v2933 = vmax.f32 %v2917, %v2929
        %v2934 = vmax.f32 %v2918, %v2930
        %v2936 = vsel %vm1360, %v2934, 0
        %2938 = vmatprep.subr.mxu0 0.0
        %2939 = vmatpush1.msra.mxu0 0.0
        %2940 = vmatprep.subr.mxu0 0.0
        %2941 = vmatpush1.msra.mxu0 0.0
        %2942 = vmatprep.subr.mxu0 0.0
        %2943 = vmatpush1.msra.mxu0 0.0
        %2944 = vmatprep.subr.mxu0 0.0
        %2945 = vmatpush1.msra.mxu0 0.0
        %2946 = vmatprep.subr.mxu0 0.0
        %2947 = vmatpush1.msra.mxu0 0.0
        %2948 = vmatprep.subr.mxu0 0.0
        %2949 = vmatpush1.msra.mxu0 0.0
        %2950 = vmatprep.subr.mxu0 0.0
        %2951 = vmatpush1.msra.mxu0 0.0
        %2952 = vmatprep.subr.mxu0 0.0
        %2953 = vmatpush1.msra.mxu0 0.0
        %2954 = vmatprep.subr.mxu0 0.0
        %2955 = vmatpush1.msra.mxu0 0.0
        %2956 = vmatprep.subr.mxu0 0.0
        %2957 = vmatpush1.msra.mxu0 0.0
        %2958 = vmatprep.subr.mxu0 0.0
        %2959 = vmatpush1.msra.mxu0 0.0
        %2960 = vmatprep.subr.mxu0 0.0
        %2961 = vmatpush1.msra.mxu0 0.0
        %2962 = vmatprep.subr.mxu0 0.0
        %2963 = vmatpush1.msra.mxu0 %v2936
        %2964 = vmatprep.subr.mxu0 0.0
        %2965 = vmatpush1.msra.mxu0 %v2933
        %2966 = vmatprep.subr.mxu0 0.0
        %2967 = vmatpush1.msra.mxu0 %v2932
        %2968 = vmatprep.subr.mxu0 0.0
        %2969 = vmatpush1.msra.mxu0 %v2931
        %2970 = vmatprep.subr.mxu0 0.0
        %2971 = vmatpush2.msra.mxu0 0.0
        %2972 = vmatprep.subr.mxu0 0.0
        %2973 = vmatpush2.msra.mxu0 0.0
        %2974 = vmatprep.subr.mxu0 0.0
        %2975 = vmatpush2.msra.mxu0 0.0
        %2976 = vmatprep.subr.mxu0 0.0
        %2977 = vmatpush2.msra.mxu0 0.0
        %2978 = vmatprep.subr.mxu0 0.0
        %2979 = vmatpush2.msra.mxu0 0.0
        %2980 = vmatprep.subr.mxu0 0.0
        %2981 = vmatpush2.msra.mxu0 0.0
        %2982 = vmatprep.subr.mxu0 0.0
        %2983 = vmatpush2.msra.mxu0 0.0
        %2984 = vmatprep.subr.mxu0 0.0
        %2985 = vmatpush2.msra.mxu0 0.0
        %2986 = vmatprep.subr.mxu0 0.0
        %2987 = vmatpush2.msra.mxu0 0.0
        %2988 = vmatprep.subr.mxu0 0.0
        %2989 = vmatpush2.msra.mxu0 0.0
        %2990 = vmatprep.subr.mxu0 0.0
        %2991 = vmatpush2.msra.mxu0 0.0
        %2992 = vmatprep.subr.mxu0 0.0
        %2993 = vmatpush2.msra.mxu0 0.0
        %2994 = vmatprep.subr.mxu0 0.0
        %2995 = vmatpush2.msra.mxu0 0.0
        %2996 = vmatprep.subr.mxu0 0.0
        %2997 = vmatpush2.msra.mxu0 0.0
        %2998 = vmatprep.subr.mxu0 0.0
        %2999 = vmatpush2.msra.mxu0 0.0
        %3000 = vmatprep.subr.mxu0 0.0
        %3001 = vmatpush2.msra.mxu0 0.0
        %3002 = vmatprep.mubr.f32.mxu0 0.0
        %3003 = vmatmul.mubr.f32.gmra.mxu0 %v1355
        %v3004 = vpop.f32.mrf.mxu0
        %v3005 = vadd.f32 0.0, %v3004
        %v3006 = vpop.f32.mrf.mxu0
        %3007 = vmatprep.mubr.f32.mxu0 0.0
        %3008 = vmatmul.mubr.f32.gmra.mxu0 %v1358
        %v3009 = vpop.f32.mrf.mxu0
        %v3010 = vadd.f32 0.0, %v3009
        %v3011 = vpop.f32.mrf.mxu0
        %3012 = vdwg.mxu0
        %3013 = vmatprep.subr.mxu0 0.0
        %3014 = vmatpush1.msra.mxu0 0.0
        %3015 = vmatprep.subr.mxu0 0.0
        %3016 = vmatpush1.msra.mxu0 0.0
        %3017 = vmatprep.subr.mxu0 0.0
        %3018 = vmatpush1.msra.mxu0 0.0
        %3019 = vmatprep.subr.mxu0 0.0
        %3020 = vmatpush1.msra.mxu0 0.0
        %3021 = vmatprep.subr.mxu0 0.0
        %3022 = vmatpush1.msra.mxu0 0.0
        %3023 = vmatprep.subr.mxu0 0.0
        %3024 = vmatpush1.msra.mxu0 0.0
        %3025 = vmatprep.subr.mxu0 0.0
        %3026 = vmatpush1.msra.mxu0 0.0
        %3027 = vmatprep.subr.mxu0 0.0
        %3028 = vmatpush1.msra.mxu0 0.0
        %3029 = vmatprep.subr.mxu0 0.0
        %3030 = vmatpush1.msra.mxu0 0.0
        %3031 = vmatprep.subr.mxu0 0.0
        %3032 = vmatpush1.msra.mxu0 0.0
        %3033 = vmatprep.subr.mxu0 0.0
        %3034 = vmatpush1.msra.mxu0 0.0
        %3035 = vmatprep.subr.mxu0 0.0
        %3036 = vmatpush1.msra.mxu0 0.0
        %3037 = vmatprep.subr.mxu0 0.0
        %3038 = vmatpush1.msra.mxu0 %v2936
        %3039 = vmatprep.subr.mxu0 0.0
        %3040 = vmatpush1.msra.mxu0 %v2933
        %3041 = vmatprep.subr.mxu0 0.0
        %3042 = vmatpush1.msra.mxu0 %v2932
        %3043 = vmatprep.subr.mxu0 0.0
        %3044 = vmatpush1.msra.mxu0 %v2931
        %3045 = vmatprep.subr.mxu0 0.0
        %3046 = vmatpush2.msra.mxu0 0.0
        %3047 = vmatprep.subr.mxu0 0.0
        %3048 = vmatpush2.msra.mxu0 0.0
        %3049 = vmatprep.subr.mxu0 0.0
        %3050 = vmatpush2.msra.mxu0 0.0
        %3051 = vmatprep.subr.mxu0 0.0
        %3052 = vmatpush2.msra.mxu0 0.0
        %3053 = vmatprep.subr.mxu0 0.0
        %3054 = vmatpush2.msra.mxu0 0.0
        %3055 = vmatprep.subr.mxu0 0.0
        %3056 = vmatpush2.msra.mxu0 0.0
        %3057 = vmatprep.subr.mxu0 0.0
        %3058 = vmatpush2.msra.mxu0 0.0
        %3059 = vmatprep.subr.mxu0 0.0
        %3060 = vmatpush2.msra.mxu0 0.0
        %3061 = vmatprep.subr.mxu0 0.0
        %3062 = vmatpush2.msra.mxu0 0.0
        %3063 = vmatprep.subr.mxu0 0.0
        %3064 = vmatpush2.msra.mxu0 0.0
        %3065 = vmatprep.subr.mxu0 0.0
        %3066 = vmatpush2.msra.mxu0 0.0
        %3067 = vmatprep.subr.mxu0 0.0
        %3068 = vmatpush2.msra.mxu0 0.0
        %3069 = vmatprep.subr.mxu0 0.0
        %3070 = vmatpush2.msra.mxu0 0.0
        %3071 = vmatprep.subr.mxu0 0.0
        %3072 = vmatpush2.msra.mxu0 0.0
        %3073 = vmatprep.subr.mxu0 0.0
        %3074 = vmatpush2.msra.mxu0 0.0
        %3075 = vmatprep.subr.mxu0 0.0
        %3076 = vmatpush2.msra.mxu0 0.0
        %3077 = vmatprep.mubr.f32.mxu0 0.0
        %3078 = vmatmul.mubr.f32.gmra.mxu0 %v1440
        %v3079 = vpop.f32.mrf.mxu0
        %v3080 = vadd.f32 0.0, %v3079
        %v3081 = vpop.f32.mrf.mxu0
        %3082 = vmatprep.mubr.f32.mxu0 0.0
        %3083 = vmatmul.mubr.f32.gmra.mxu0 %v1443
        %v3084 = vpop.f32.mrf.mxu0
        %v3085 = vadd.f32 0.0, %v3084
        %v3086 = vpop.f32.mrf.mxu0
        %3087 = vdwg.mxu0
        %v3088 = vmax.f32 %v3005, %v3080
        %v3089 = vmax.f32 %v3010, %v3085
        %s3090 = scalar_lea.vmem %s5, 128
        %3091 = vst.msk [vmem:[%s3090] sm:$0xff] %vm1220, %v3088
        %3092 = vst.msk [vmem:[%s3090 + $0x8] sm:$0x1f] %vm1523, %v3089
        %s3093 = scalar_lea.vmem [#allocation2], 576
        %v3094 = vld [vmem:[%s3093] sm:$0xff]
        %v3095 = vld [vmem:[%s3093 + $0x8] sm:$0xff]
        %v3096 = vld [vmem:[%s3093 + $0x10] sm:$0xff]
        %v3097 = vld [vmem:[%s3093 + $0x18] sm:$0x3]
        %s3098 = scalar_lea.vmem [#allocation2], 608
        %v3099 = vld [vmem:[%s3098] sm:$0xff]
        %v3100 = vld [vmem:[%s3098 + $0x8] sm:$0xff]
        %v3101 = vld [vmem:[%s3098 + $0x10] sm:$0xff]
        %v3102 = vld [vmem:[%s3098 + $0x18] sm:$0x3]
        %v3103 = vmul.f32 %v3094, %v1317
        %v3104 = vmul.f32 %v3095, %v1317
        %v3105 = vmul.f32 %v3096, %v1317
        %v3106 = vmul.f32 %v3097, %v1317
        %v3107 = vadd.f32 %v3103, %v1327
        %v3108 = vadd.f32 %v3104, %v1327
        %v3109 = vadd.f32 %v3105, %v1327
        %v3110 = vadd.f32 %v3106, %v1327
        %v3111 = vmax.f32 %v3107, 0.0
        %v3112 = vmax.f32 %v3108, 0.0
        %v3113 = vmax.f32 %v3109, 0.0
        %v3114 = vmax.f32 %v3110, 0.0
        %v3115 = vmul.f32 %v3099, %v1317
        %v3116 = vmul.f32 %v3100, %v1317
        %v3117 = vmul.f32 %v3101, %v1317
        %v3118 = vmul.f32 %v3102, %v1317
        %v3119 = vadd.f32 %v3115, %v1327
        %v3120 = vadd.f32 %v3116, %v1327
        %v3121 = vadd.f32 %v3117, %v1327
        %v3122 = vadd.f32 %v3118, %v1327
        %v3123 = vmax.f32 %v3119, 0.0
        %v3124 = vmax.f32 %v3120, 0.0
        %v3125 = vmax.f32 %v3121, 0.0
        %v3126 = vmax.f32 %v3122, 0.0
        %v3127 = vmax.f32 %v3111, %v3123
        %v3128 = vmax.f32 %v3112, %v3124
        %v3129 = vmax.f32 %v3113, %v3125
        %v3130 = vmax.f32 %v3114, %v3126
        %v3132 = vsel %vm1360, %v3130, 0
        %3134 = vmatprep.subr.mxu0 0.0
        %3135 = vmatpush1.msra.mxu0 0.0
        %3136 = vmatprep.subr.mxu0 0.0
        %3137 = vmatpush1.msra.mxu0 0.0
        %3138 = vmatprep.subr.mxu0 0.0
        %3139 = vmatpush1.msra.mxu0 0.0
        %3140 = vmatprep.subr.mxu0 0.0
        %3141 = vmatpush1.msra.mxu0 0.0
        %3142 = vmatprep.subr.mxu0 0.0
        %3143 = vmatpush1.msra.mxu0 0.0
        %3144 = vmatprep.subr.mxu0 0.0
        %3145 = vmatpush1.msra.mxu0 0.0
        %3146 = vmatprep.subr.mxu0 0.0
        %3147 = vmatpush1.msra.mxu0 0.0
        %3148 = vmatprep.subr.mxu0 0.0
        %3149 = vmatpush1.msra.mxu0 0.0
        %3150 = vmatprep.subr.mxu0 0.0
        %3151 = vmatpush1.msra.mxu0 0.0
        %3152 = vmatprep.subr.mxu0 0.0
        %3153 = vmatpush1.msra.mxu0 0.0
        %3154 = vmatprep.subr.mxu0 0.0
        %3155 = vmatpush1.msra.mxu0 0.0
        %3156 = vmatprep.subr.mxu0 0.0
        %3157 = vmatpush1.msra.mxu0 0.0
        %3158 = vmatprep.subr.mxu0 0.0
        %3159 = vmatpush1.msra.mxu0 %v3132
        %3160 = vmatprep.subr.mxu0 0.0
        %3161 = vmatpush1.msra.mxu0 %v3129
        %3162 = vmatprep.subr.mxu0 0.0
        %3163 = vmatpush1.msra.mxu0 %v3128
        %3164 = vmatprep.subr.mxu0 0.0
        %3165 = vmatpush1.msra.mxu0 %v3127
        %3166 = vmatprep.subr.mxu0 0.0
        %3167 = vmatpush2.msra.mxu0 0.0
        %3168 = vmatprep.subr.mxu0 0.0
        %3169 = vmatpush2.msra.mxu0 0.0
        %3170 = vmatprep.subr.mxu0 0.0
        %3171 = vmatpush2.msra.mxu0 0.0
        %3172 = vmatprep.subr.mxu0 0.0
        %3173 = vmatpush2.msra.mxu0 0.0
        %3174 = vmatprep.subr.mxu0 0.0
        %3175 = vmatpush2.msra.mxu0 0.0
        %3176 = vmatprep.subr.mxu0 0.0
        %3177 = vmatpush2.msra.mxu0 0.0
        %3178 = vmatprep.subr.mxu0 0.0
        %3179 = vmatpush2.msra.mxu0 0.0
        %3180 = vmatprep.subr.mxu0 0.0
        %3181 = vmatpush2.msra.mxu0 0.0
        %3182 = vmatprep.subr.mxu0 0.0
        %3183 = vmatpush2.msra.mxu0 0.0
        %3184 = vmatprep.subr.mxu0 0.0
        %3185 = vmatpush2.msra.mxu0 0.0
        %3186 = vmatprep.subr.mxu0 0.0
        %3187 = vmatpush2.msra.mxu0 0.0
        %3188 = vmatprep.subr.mxu0 0.0
        %3189 = vmatpush2.msra.mxu0 0.0
        %3190 = vmatprep.subr.mxu0 0.0
        %3191 = vmatpush2.msra.mxu0 0.0
        %3192 = vmatprep.subr.mxu0 0.0
        %3193 = vmatpush2.msra.mxu0 0.0
        %3194 = vmatprep.subr.mxu0 0.0
        %3195 = vmatpush2.msra.mxu0 0.0
        %3196 = vmatprep.subr.mxu0 0.0
        %3197 = vmatpush2.msra.mxu0 0.0
        %3198 = vmatprep.mubr.f32.mxu0 0.0
        %3199 = vmatmul.mubr.f32.gmra.mxu0 %v1355
        %v3200 = vpop.f32.mrf.mxu0
        %v3201 = vadd.f32 0.0, %v3200
        %v3202 = vpop.f32.mrf.mxu0
        %3203 = vmatprep.mubr.f32.mxu0 0.0
        %3204 = vmatmul.mubr.f32.gmra.mxu0 %v1358
        %v3205 = vpop.f32.mrf.mxu0
        %v3206 = vadd.f32 0.0, %v3205
        %v3207 = vpop.f32.mrf.mxu0
        %3208 = vdwg.mxu0
        %3209 = vmatprep.subr.mxu0 0.0
        %3210 = vmatpush1.msra.mxu0 0.0
        %3211 = vmatprep.subr.mxu0 0.0
        %3212 = vmatpush1.msra.mxu0 0.0
        %3213 = vmatprep.subr.mxu0 0.0
        %3214 = vmatpush1.msra.mxu0 0.0
        %3215 = vmatprep.subr.mxu0 0.0
        %3216 = vmatpush1.msra.mxu0 0.0
        %3217 = vmatprep.subr.mxu0 0.0
        %3218 = vmatpush1.msra.mxu0 0.0
        %3219 = vmatprep.subr.mxu0 0.0
        %3220 = vmatpush1.msra.mxu0 0.0
        %3221 = vmatprep.subr.mxu0 0.0
        %3222 = vmatpush1.msra.mxu0 0.0
        %3223 = vmatprep.subr.mxu0 0.0
        %3224 = vmatpush1.msra.mxu0 0.0
        %3225 = vmatprep.subr.mxu0 0.0
        %3226 = vmatpush1.msra.mxu0 0.0
        %3227 = vmatprep.subr.mxu0 0.0
        %3228 = vmatpush1.msra.mxu0 0.0
        %3229 = vmatprep.subr.mxu0 0.0
        %3230 = vmatpush1.msra.mxu0 0.0
        %3231 = vmatprep.subr.mxu0 0.0
        %3232 = vmatpush1.msra.mxu0 0.0
        %3233 = vmatprep.subr.mxu0 0.0
        %3234 = vmatpush1.msra.mxu0 %v3132
        %3235 = vmatprep.subr.mxu0 0.0
        %3236 = vmatpush1.msra.mxu0 %v3129
        %3237 = vmatprep.subr.mxu0 0.0
        %3238 = vmatpush1.msra.mxu0 %v3128
        %3239 = vmatprep.subr.mxu0 0.0
        %3240 = vmatpush1.msra.mxu0 %v3127
        %3241 = vmatprep.subr.mxu0 0.0
        %3242 = vmatpush2.msra.mxu0 0.0
        %3243 = vmatprep.subr.mxu0 0.0
        %3244 = vmatpush2.msra.mxu0 0.0
        %3245 = vmatprep.subr.mxu0 0.0
        %3246 = vmatpush2.msra.mxu0 0.0
        %3247 = vmatprep.subr.mxu0 0.0
        %3248 = vmatpush2.msra.mxu0 0.0
        %3249 = vmatprep.subr.mxu0 0.0
        %3250 = vmatpush2.msra.mxu0 0.0
        %3251 = vmatprep.subr.mxu0 0.0
        %3252 = vmatpush2.msra.mxu0 0.0
        %3253 = vmatprep.subr.mxu0 0.0
        %3254 = vmatpush2.msra.mxu0 0.0
        %3255 = vmatprep.subr.mxu0 0.0
        %3256 = vmatpush2.msra.mxu0 0.0
        %3257 = vmatprep.subr.mxu0 0.0
        %3258 = vmatpush2.msra.mxu0 0.0
        %3259 = vmatprep.subr.mxu0 0.0
        %3260 = vmatpush2.msra.mxu0 0.0
        %3261 = vmatprep.subr.mxu0 0.0
        %3262 = vmatpush2.msra.mxu0 0.0
        %3263 = vmatprep.subr.mxu0 0.0
        %3264 = vmatpush2.msra.mxu0 0.0
        %3265 = vmatprep.subr.mxu0 0.0
        %3266 = vmatpush2.msra.mxu0 0.0
        %3267 = vmatprep.subr.mxu0 0.0
        %3268 = vmatpush2.msra.mxu0 0.0
        %3269 = vmatprep.subr.mxu0 0.0
        %3270 = vmatpush2.msra.mxu0 0.0
        %3271 = vmatprep.subr.mxu0 0.0
        %3272 = vmatpush2.msra.mxu0 0.0
        %3273 = vmatprep.mubr.f32.mxu0 0.0
        %3274 = vmatmul.mubr.f32.gmra.mxu0 %v1440
        %v3275 = vpop.f32.mrf.mxu0
        %v3276 = vadd.f32 0.0, %v3275
        %v3277 = vpop.f32.mrf.mxu0
        %3278 = vmatprep.mubr.f32.mxu0 0.0
        %3279 = vmatmul.mubr.f32.gmra.mxu0 %v1443
        %v3280 = vpop.f32.mrf.mxu0
        %v3281 = vadd.f32 0.0, %v3280
        %v3282 = vpop.f32.mrf.mxu0
        %3283 = vdwg.mxu0
        %v3284 = vmax.f32 %v3201, %v3276
        %v3285 = vmax.f32 %v3206, %v3281
        %s3286 = scalar_lea.vmem %s5, 144
        %3287 = vst.msk [vmem:[%s3286] sm:$0xff] %vm1220, %v3284
        %3288 = vst.msk [vmem:[%s3286 + $0x8] sm:$0x1f] %vm1523, %v3285
        %s3289 = scalar_lea.vmem [#allocation2], 640
        %v3290 = vld [vmem:[%s3289] sm:$0xff]
        %v3291 = vld [vmem:[%s3289 + $0x8] sm:$0xff]
        %v3292 = vld [vmem:[%s3289 + $0x10] sm:$0xff]
        %v3293 = vld [vmem:[%s3289 + $0x18] sm:$0x3]
        %s3294 = scalar_lea.vmem [#allocation2], 672
        %v3295 = vld [vmem:[%s3294] sm:$0xff]
        %v3296 = vld [vmem:[%s3294 + $0x8] sm:$0xff]
        %v3297 = vld [vmem:[%s3294 + $0x10] sm:$0xff]
        %v3298 = vld [vmem:[%s3294 + $0x18] sm:$0x3]
        %v3299 = vmul.f32 %v3290, %v1317
        %v3300 = vmul.f32 %v3291, %v1317
        %v3301 = vmul.f32 %v3292, %v1317
        %v3302 = vmul.f32 %v3293, %v1317
        %v3303 = vadd.f32 %v3299, %v1327
        %v3304 = vadd.f32 %v3300, %v1327
        %v3305 = vadd.f32 %v3301, %v1327
        %v3306 = vadd.f32 %v3302, %v1327
        %v3307 = vmax.f32 %v3303, 0.0
        %v3308 = vmax.f32 %v3304, 0.0
        %v3309 = vmax.f32 %v3305, 0.0
        %v3310 = vmax.f32 %v3306, 0.0
        %v3311 = vmul.f32 %v3295, %v1317
        %v3312 = vmul.f32 %v3296, %v1317
        %v3313 = vmul.f32 %v3297, %v1317
        %v3314 = vmul.f32 %v3298, %v1317
        %v3315 = vadd.f32 %v3311, %v1327
        %v3316 = vadd.f32 %v3312, %v1327
        %v3317 = vadd.f32 %v3313, %v1327
        %v3318 = vadd.f32 %v3314, %v1327
        %v3319 = vmax.f32 %v3315, 0.0
        %v3320 = vmax.f32 %v3316, 0.0
        %v3321 = vmax.f32 %v3317, 0.0
        %v3322 = vmax.f32 %v3318, 0.0
        %v3323 = vmax.f32 %v3307, %v3319
        %v3324 = vmax.f32 %v3308, %v3320
        %v3325 = vmax.f32 %v3309, %v3321
        %v3326 = vmax.f32 %v3310, %v3322
        %v3328 = vsel %vm1360, %v3326, 0
        %3330 = vmatprep.subr.mxu0 0.0
        %3331 = vmatpush1.msra.mxu0 0.0
        %3332 = vmatprep.subr.mxu0 0.0
        %3333 = vmatpush1.msra.mxu0 0.0
        %3334 = vmatprep.subr.mxu0 0.0
        %3335 = vmatpush1.msra.mxu0 0.0
        %3336 = vmatprep.subr.mxu0 0.0
        %3337 = vmatpush1.msra.mxu0 0.0
        %3338 = vmatprep.subr.mxu0 0.0
        %3339 = vmatpush1.msra.mxu0 0.0
        %3340 = vmatprep.subr.mxu0 0.0
        %3341 = vmatpush1.msra.mxu0 0.0
        %3342 = vmatprep.subr.mxu0 0.0
        %3343 = vmatpush1.msra.mxu0 0.0
        %3344 = vmatprep.subr.mxu0 0.0
        %3345 = vmatpush1.msra.mxu0 0.0
        %3346 = vmatprep.subr.mxu0 0.0
        %3347 = vmatpush1.msra.mxu0 0.0
        %3348 = vmatprep.subr.mxu0 0.0
        %3349 = vmatpush1.msra.mxu0 0.0
        %3350 = vmatprep.subr.mxu0 0.0
        %3351 = vmatpush1.msra.mxu0 0.0
        %3352 = vmatprep.subr.mxu0 0.0
        %3353 = vmatpush1.msra.mxu0 0.0
        %3354 = vmatprep.subr.mxu0 0.0
        %3355 = vmatpush1.msra.mxu0 %v3328
        %3356 = vmatprep.subr.mxu0 0.0
        %3357 = vmatpush1.msra.mxu0 %v3325
        %3358 = vmatprep.subr.mxu0 0.0
        %3359 = vmatpush1.msra.mxu0 %v3324
        %3360 = vmatprep.subr.mxu0 0.0
        %3361 = vmatpush1.msra.mxu0 %v3323
        %3362 = vmatprep.subr.mxu0 0.0
        %3363 = vmatpush2.msra.mxu0 0.0
        %3364 = vmatprep.subr.mxu0 0.0
        %3365 = vmatpush2.msra.mxu0 0.0
        %3366 = vmatprep.subr.mxu0 0.0
        %3367 = vmatpush2.msra.mxu0 0.0
        %3368 = vmatprep.subr.mxu0 0.0
        %3369 = vmatpush2.msra.mxu0 0.0
        %3370 = vmatprep.subr.mxu0 0.0
        %3371 = vmatpush2.msra.mxu0 0.0
        %3372 = vmatprep.subr.mxu0 0.0
        %3373 = vmatpush2.msra.mxu0 0.0
        %3374 = vmatprep.subr.mxu0 0.0
        %3375 = vmatpush2.msra.mxu0 0.0
        %3376 = vmatprep.subr.mxu0 0.0
        %3377 = vmatpush2.msra.mxu0 0.0
        %3378 = vmatprep.subr.mxu0 0.0
        %3379 = vmatpush2.msra.mxu0 0.0
        %3380 = vmatprep.subr.mxu0 0.0
        %3381 = vmatpush2.msra.mxu0 0.0
        %3382 = vmatprep.subr.mxu0 0.0
        %3383 = vmatpush2.msra.mxu0 0.0
        %3384 = vmatprep.subr.mxu0 0.0
        %3385 = vmatpush2.msra.mxu0 0.0
        %3386 = vmatprep.subr.mxu0 0.0
        %3387 = vmatpush2.msra.mxu0 0.0
        %3388 = vmatprep.subr.mxu0 0.0
        %3389 = vmatpush2.msra.mxu0 0.0
        %3390 = vmatprep.subr.mxu0 0.0
        %3391 = vmatpush2.msra.mxu0 0.0
        %3392 = vmatprep.subr.mxu0 0.0
        %3393 = vmatpush2.msra.mxu0 0.0
        %3394 = vmatprep.mubr.f32.mxu0 0.0
        %3395 = vmatmul.mubr.f32.gmra.mxu0 %v1355
        %v3396 = vpop.f32.mrf.mxu0
        %v3397 = vadd.f32 0.0, %v3396
        %v3398 = vpop.f32.mrf.mxu0
        %3399 = vmatprep.mubr.f32.mxu0 0.0
        %3400 = vmatmul.mubr.f32.gmra.mxu0 %v1358
        %v3401 = vpop.f32.mrf.mxu0
        %v3402 = vadd.f32 0.0, %v3401
        %v3403 = vpop.f32.mrf.mxu0
        %3404 = vdwg.mxu0
        %3405 = vmatprep.subr.mxu0 0.0
        %3406 = vmatpush1.msra.mxu0 0.0
        %3407 = vmatprep.subr.mxu0 0.0
        %3408 = vmatpush1.msra.mxu0 0.0
        %3409 = vmatprep.subr.mxu0 0.0
        %3410 = vmatpush1.msra.mxu0 0.0
        %3411 = vmatprep.subr.mxu0 0.0
        %3412 = vmatpush1.msra.mxu0 0.0
        %3413 = vmatprep.subr.mxu0 0.0
        %3414 = vmatpush1.msra.mxu0 0.0
        %3415 = vmatprep.subr.mxu0 0.0
        %3416 = vmatpush1.msra.mxu0 0.0
        %3417 = vmatprep.subr.mxu0 0.0
        %3418 = vmatpush1.msra.mxu0 0.0
        %3419 = vmatprep.subr.mxu0 0.0
        %3420 = vmatpush1.msra.mxu0 0.0
        %3421 = vmatprep.subr.mxu0 0.0
        %3422 = vmatpush1.msra.mxu0 0.0
        %3423 = vmatprep.subr.mxu0 0.0
        %3424 = vmatpush1.msra.mxu0 0.0
        %3425 = vmatprep.subr.mxu0 0.0
        %3426 = vmatpush1.msra.mxu0 0.0
        %3427 = vmatprep.subr.mxu0 0.0
        %3428 = vmatpush1.msra.mxu0 0.0
        %3429 = vmatprep.subr.mxu0 0.0
        %3430 = vmatpush1.msra.mxu0 %v3328
        %3431 = vmatprep.subr.mxu0 0.0
        %3432 = vmatpush1.msra.mxu0 %v3325
        %3433 = vmatprep.subr.mxu0 0.0
        %3434 = vmatpush1.msra.mxu0 %v3324
        %3435 = vmatprep.subr.mxu0 0.0
        %3436 = vmatpush1.msra.mxu0 %v3323
        %3437 = vmatprep.subr.mxu0 0.0
        %3438 = vmatpush2.msra.mxu0 0.0
        %3439 = vmatprep.subr.mxu0 0.0
        %3440 = vmatpush2.msra.mxu0 0.0
        %3441 = vmatprep.subr.mxu0 0.0
        %3442 = vmatpush2.msra.mxu0 0.0
        %3443 = vmatprep.subr.mxu0 0.0
        %3444 = vmatpush2.msra.mxu0 0.0
        %3445 = vmatprep.subr.mxu0 0.0
        %3446 = vmatpush2.msra.mxu0 0.0
        %3447 = vmatprep.subr.mxu0 0.0
        %3448 = vmatpush2.msra.mxu0 0.0
        %3449 = vmatprep.subr.mxu0 0.0
        %3450 = vmatpush2.msra.mxu0 0.0
        %3451 = vmatprep.subr.mxu0 0.0
        %3452 = vmatpush2.msra.mxu0 0.0
        %3453 = vmatprep.subr.mxu0 0.0
        %3454 = vmatpush2.msra.mxu0 0.0
        %3455 = vmatprep.subr.mxu0 0.0
        %3456 = vmatpush2.msra.mxu0 0.0
        %3457 = vmatprep.subr.mxu0 0.0
        %3458 = vmatpush2.msra.mxu0 0.0
        %3459 = vmatprep.subr.mxu0 0.0
        %3460 = vmatpush2.msra.mxu0 0.0
        %3461 = vmatprep.subr.mxu0 0.0
        %3462 = vmatpush2.msra.mxu0 0.0
        %3463 = vmatprep.subr.mxu0 0.0
        %3464 = vmatpush2.msra.mxu0 0.0
        %3465 = vmatprep.subr.mxu0 0.0
        %3466 = vmatpush2.msra.mxu0 0.0
        %3467 = vmatprep.subr.mxu0 0.0
        %3468 = vmatpush2.msra.mxu0 0.0
        %3469 = vmatprep.mubr.f32.mxu0 0.0
        %3470 = vmatmul.mubr.f32.gmra.mxu0 %v1440
        %v3471 = vpop.f32.mrf.mxu0
        %v3472 = vadd.f32 0.0, %v3471
        %v3473 = vpop.f32.mrf.mxu0
        %3474 = vmatprep.mubr.f32.mxu0 0.0
        %3475 = vmatmul.mubr.f32.gmra.mxu0 %v1443
        %v3476 = vpop.f32.mrf.mxu0
        %v3477 = vadd.f32 0.0, %v3476
        %v3478 = vpop.f32.mrf.mxu0
        %3479 = vdwg.mxu0
        %v3480 = vmax.f32 %v3397, %v3472
        %v3481 = vmax.f32 %v3402, %v3477
        %s3482 = scalar_lea.vmem %s5, 160
        %3483 = vst.msk [vmem:[%s3482] sm:$0xff] %vm1220, %v3480
        %3484 = vst.msk [vmem:[%s3482 + $0x8] sm:$0x1f] %vm1523, %v3481
        %s3485 = scalar_lea.vmem [#allocation2], 704
        %v3486 = vld [vmem:[%s3485] sm:$0xff]
        %v3487 = vld [vmem:[%s3485 + $0x8] sm:$0xff]
        %v3488 = vld [vmem:[%s3485 + $0x10] sm:$0xff]
        %v3489 = vld [vmem:[%s3485 + $0x18] sm:$0x3]
        %s3490 = scalar_lea.vmem [#allocation2], 736
        %v3491 = vld [vmem:[%s3490] sm:$0xff]
        %v3492 = vld [vmem:[%s3490 + $0x8] sm:$0xff]
        %v3493 = vld [vmem:[%s3490 + $0x10] sm:$0xff]
        %v3494 = vld [vmem:[%s3490 + $0x18] sm:$0x3]
        %v3495 = vmul.f32 %v3486, %v1317
        %v3496 = vmul.f32 %v3487, %v1317
        %v3497 = vmul.f32 %v3488, %v1317
        %v3498 = vmul.f32 %v3489, %v1317
        %v3499 = vadd.f32 %v3495, %v1327
        %v3500 = vadd.f32 %v3496, %v1327
        %v3501 = vadd.f32 %v3497, %v1327
        %v3502 = vadd.f32 %v3498, %v1327
        %v3503 = vmax.f32 %v3499, 0.0
        %v3504 = vmax.f32 %v3500, 0.0
        %v3505 = vmax.f32 %v3501, 0.0
        %v3506 = vmax.f32 %v3502, 0.0
        %v3507 = vmul.f32 %v3491, %v1317
        %v3508 = vmul.f32 %v3492, %v1317
        %v3509 = vmul.f32 %v3493, %v1317
        %v3510 = vmul.f32 %v3494, %v1317
        %v3511 = vadd.f32 %v3507, %v1327
        %v3512 = vadd.f32 %v3508, %v1327
        %v3513 = vadd.f32 %v3509, %v1327
        %v3514 = vadd.f32 %v3510, %v1327
        %v3515 = vmax.f32 %v3511, 0.0
        %v3516 = vmax.f32 %v3512, 0.0
        %v3517 = vmax.f32 %v3513, 0.0
        %v3518 = vmax.f32 %v3514, 0.0
        %v3519 = vmax.f32 %v3503, %v3515
        %v3520 = vmax.f32 %v3504, %v3516
        %v3521 = vmax.f32 %v3505, %v3517
        %v3522 = vmax.f32 %v3506, %v3518
        %v3524 = vsel %vm1360, %v3522, 0
        %3526 = vmatprep.subr.mxu0 0.0
        %3527 = vmatpush1.msra.mxu0 0.0
        %3528 = vmatprep.subr.mxu0 0.0
        %3529 = vmatpush1.msra.mxu0 0.0
        %3530 = vmatprep.subr.mxu0 0.0
        %3531 = vmatpush1.msra.mxu0 0.0
        %3532 = vmatprep.subr.mxu0 0.0
        %3533 = vmatpush1.msra.mxu0 0.0
        %3534 = vmatprep.subr.mxu0 0.0
        %3535 = vmatpush1.msra.mxu0 0.0
        %3536 = vmatprep.subr.mxu0 0.0
        %3537 = vmatpush1.msra.mxu0 0.0
        %3538 = vmatprep.subr.mxu0 0.0
        %3539 = vmatpush1.msra.mxu0 0.0
        %3540 = vmatprep.subr.mxu0 0.0
        %3541 = vmatpush1.msra.mxu0 0.0
        %3542 = vmatprep.subr.mxu0 0.0
        %3543 = vmatpush1.msra.mxu0 0.0
        %3544 = vmatprep.subr.mxu0 0.0
        %3545 = vmatpush1.msra.mxu0 0.0
        %3546 = vmatprep.subr.mxu0 0.0
        %3547 = vmatpush1.msra.mxu0 0.0
        %3548 = vmatprep.subr.mxu0 0.0
        %3549 = vmatpush1.msra.mxu0 0.0
        %3550 = vmatprep.subr.mxu0 0.0
        %3551 = vmatpush1.msra.mxu0 %v3524
        %3552 = vmatprep.subr.mxu0 0.0
        %3553 = vmatpush1.msra.mxu0 %v3521
        %3554 = vmatprep.subr.mxu0 0.0
        %3555 = vmatpush1.msra.mxu0 %v3520
        %3556 = vmatprep.subr.mxu0 0.0
        %3557 = vmatpush1.msra.mxu0 %v3519
        %3558 = vmatprep.subr.mxu0 0.0
        %3559 = vmatpush2.msra.mxu0 0.0
        %3560 = vmatprep.subr.mxu0 0.0
        %3561 = vmatpush2.msra.mxu0 0.0
        %3562 = vmatprep.subr.mxu0 0.0
        %3563 = vmatpush2.msra.mxu0 0.0
        %3564 = vmatprep.subr.mxu0 0.0
        %3565 = vmatpush2.msra.mxu0 0.0
        %3566 = vmatprep.subr.mxu0 0.0
        %3567 = vmatpush2.msra.mxu0 0.0
        %3568 = vmatprep.subr.mxu0 0.0
        %3569 = vmatpush2.msra.mxu0 0.0
        %3570 = vmatprep.subr.mxu0 0.0
        %3571 = vmatpush2.msra.mxu0 0.0
        %3572 = vmatprep.subr.mxu0 0.0
        %3573 = vmatpush2.msra.mxu0 0.0
        %3574 = vmatprep.subr.mxu0 0.0
        %3575 = vmatpush2.msra.mxu0 0.0
        %3576 = vmatprep.subr.mxu0 0.0
        %3577 = vmatpush2.msra.mxu0 0.0
        %3578 = vmatprep.subr.mxu0 0.0
        %3579 = vmatpush2.msra.mxu0 0.0
        %3580 = vmatprep.subr.mxu0 0.0
        %3581 = vmatpush2.msra.mxu0 0.0
        %3582 = vmatprep.subr.mxu0 0.0
        %3583 = vmatpush2.msra.mxu0 0.0
        %3584 = vmatprep.subr.mxu0 0.0
        %3585 = vmatpush2.msra.mxu0 0.0
        %3586 = vmatprep.subr.mxu0 0.0
        %3587 = vmatpush2.msra.mxu0 0.0
        %3588 = vmatprep.subr.mxu0 0.0
        %3589 = vmatpush2.msra.mxu0 0.0
        %3590 = vmatprep.mubr.f32.mxu0 0.0
        %3591 = vmatmul.mubr.f32.gmra.mxu0 %v1355
        %v3592 = vpop.f32.mrf.mxu0
        %v3593 = vadd.f32 0.0, %v3592
        %v3594 = vpop.f32.mrf.mxu0
        %3595 = vmatprep.mubr.f32.mxu0 0.0
        %3596 = vmatmul.mubr.f32.gmra.mxu0 %v1358
        %v3597 = vpop.f32.mrf.mxu0
        %v3598 = vadd.f32 0.0, %v3597
        %v3599 = vpop.f32.mrf.mxu0
        %3600 = vdwg.mxu0
        %3601 = vmatprep.subr.mxu0 0.0
        %3602 = vmatpush1.msra.mxu0 0.0
        %3603 = vmatprep.subr.mxu0 0.0
        %3604 = vmatpush1.msra.mxu0 0.0
        %3605 = vmatprep.subr.mxu0 0.0
        %3606 = vmatpush1.msra.mxu0 0.0
        %3607 = vmatprep.subr.mxu0 0.0
        %3608 = vmatpush1.msra.mxu0 0.0
        %3609 = vmatprep.subr.mxu0 0.0
        %3610 = vmatpush1.msra.mxu0 0.0
        %3611 = vmatprep.subr.mxu0 0.0
        %3612 = vmatpush1.msra.mxu0 0.0
        %3613 = vmatprep.subr.mxu0 0.0
        %3614 = vmatpush1.msra.mxu0 0.0
        %3615 = vmatprep.subr.mxu0 0.0
        %3616 = vmatpush1.msra.mxu0 0.0
        %3617 = vmatprep.subr.mxu0 0.0
        %3618 = vmatpush1.msra.mxu0 0.0
        %3619 = vmatprep.subr.mxu0 0.0
        %3620 = vmatpush1.msra.mxu0 0.0
        %3621 = vmatprep.subr.mxu0 0.0
        %3622 = vmatpush1.msra.mxu0 0.0
        %3623 = vmatprep.subr.mxu0 0.0
        %3624 = vmatpush1.msra.mxu0 0.0
        %3625 = vmatprep.subr.mxu0 0.0
        %3626 = vmatpush1.msra.mxu0 %v3524
        %3627 = vmatprep.subr.mxu0 0.0
        %3628 = vmatpush1.msra.mxu0 %v3521
        %3629 = vmatprep.subr.mxu0 0.0
        %3630 = vmatpush1.msra.mxu0 %v3520
        %3631 = vmatprep.subr.mxu0 0.0
        %3632 = vmatpush1.msra.mxu0 %v3519
        %3633 = vmatprep.subr.mxu0 0.0
        %3634 = vmatpush2.msra.mxu0 0.0
        %3635 = vmatprep.subr.mxu0 0.0
        %3636 = vmatpush2.msra.mxu0 0.0
        %3637 = vmatprep.subr.mxu0 0.0
        %3638 = vmatpush2.msra.mxu0 0.0
        %3639 = vmatprep.subr.mxu0 0.0
        %3640 = vmatpush2.msra.mxu0 0.0
        %3641 = vmatprep.subr.mxu0 0.0
        %3642 = vmatpush2.msra.mxu0 0.0
        %3643 = vmatprep.subr.mxu0 0.0
        %3644 = vmatpush2.msra.mxu0 0.0
        %3645 = vmatprep.subr.mxu0 0.0
        %3646 = vmatpush2.msra.mxu0 0.0
        %3647 = vmatprep.subr.mxu0 0.0
        %3648 = vmatpush2.msra.mxu0 0.0
        %3649 = vmatprep.subr.mxu0 0.0
        %3650 = vmatpush2.msra.mxu0 0.0
        %3651 = vmatprep.subr.mxu0 0.0
        %3652 = vmatpush2.msra.mxu0 0.0
        %3653 = vmatprep.subr.mxu0 0.0
        %3654 = vmatpush2.msra.mxu0 0.0
        %3655 = vmatprep.subr.mxu0 0.0
        %3656 = vmatpush2.msra.mxu0 0.0
        %3657 = vmatprep.subr.mxu0 0.0
        %3658 = vmatpush2.msra.mxu0 0.0
        %3659 = vmatprep.subr.mxu0 0.0
        %3660 = vmatpush2.msra.mxu0 0.0
        %3661 = vmatprep.subr.mxu0 0.0
        %3662 = vmatpush2.msra.mxu0 0.0
        %3663 = vmatprep.subr.mxu0 0.0
        %3664 = vmatpush2.msra.mxu0 0.0
        %3665 = vmatprep.mubr.f32.mxu0 0.0
        %3666 = vmatmul.mubr.f32.gmra.mxu0 %v1440
        %v3667 = vpop.f32.mrf.mxu0
        %v3668 = vadd.f32 0.0, %v3667
        %v3669 = vpop.f32.mrf.mxu0
        %3670 = vmatprep.mubr.f32.mxu0 0.0
        %3671 = vmatmul.mubr.f32.gmra.mxu0 %v1443
        %v3672 = vpop.f32.mrf.mxu0
        %v3673 = vadd.f32 0.0, %v3672
        %v3674 = vpop.f32.mrf.mxu0
        %3675 = vdwg.mxu0
        %v3676 = vmax.f32 %v3593, %v3668
        %v3677 = vmax.f32 %v3598, %v3673
        %s3678 = scalar_lea.vmem %s5, 176
        %3679 = vst.msk [vmem:[%s3678] sm:$0xff] %vm1220, %v3676
        %3680 = vst.msk [vmem:[%s3678 + $0x8] sm:$0x1f] %vm1523, %v3677
        %s3681 = scalar_lea.vmem [#allocation2], 768
        %v3682 = vld [vmem:[%s3681] sm:$0xff]
        %v3683 = vld [vmem:[%s3681 + $0x8] sm:$0xff]
        %v3684 = vld [vmem:[%s3681 + $0x10] sm:$0xff]
        %v3685 = vld [vmem:[%s3681 + $0x18] sm:$0x3]
        %s3686 = scalar_lea.vmem [#allocation2], 800
        %v3687 = vld [vmem:[%s3686] sm:$0xff]
        %v3688 = vld [vmem:[%s3686 + $0x8] sm:$0xff]
        %v3689 = vld [vmem:[%s3686 + $0x10] sm:$0xff]
        %v3690 = vld [vmem:[%s3686 + $0x18] sm:$0x3]
        %v3691 = vmul.f32 %v3682, %v1317
        %v3692 = vmul.f32 %v3683, %v1317
        %v3693 = vmul.f32 %v3684, %v1317
        %v3694 = vmul.f32 %v3685, %v1317
        %v3695 = vadd.f32 %v3691, %v1327
        %v3696 = vadd.f32 %v3692, %v1327
        %v3697 = vadd.f32 %v3693, %v1327
        %v3698 = vadd.f32 %v3694, %v1327
        %v3699 = vmax.f32 %v3695, 0.0
        %v3700 = vmax.f32 %v3696, 0.0
        %v3701 = vmax.f32 %v3697, 0.0
        %v3702 = vmax.f32 %v3698, 0.0
        %v3703 = vmul.f32 %v3687, %v1317
        %v3704 = vmul.f32 %v3688, %v1317
        %v3705 = vmul.f32 %v3689, %v1317
        %v3706 = vmul.f32 %v3690, %v1317
        %v3707 = vadd.f32 %v3703, %v1327
        %v3708 = vadd.f32 %v3704, %v1327
        %v3709 = vadd.f32 %v3705, %v1327
        %v3710 = vadd.f32 %v3706, %v1327
        %v3711 = vmax.f32 %v3707, 0.0
        %v3712 = vmax.f32 %v3708, 0.0
        %v3713 = vmax.f32 %v3709, 0.0
        %v3714 = vmax.f32 %v3710, 0.0
        %v3715 = vmax.f32 %v3699, %v3711
        %v3716 = vmax.f32 %v3700, %v3712
        %v3717 = vmax.f32 %v3701, %v3713
        %v3718 = vmax.f32 %v3702, %v3714
        %v3720 = vsel %vm1360, %v3718, 0
        %3722 = vmatprep.subr.mxu0 0.0
        %3723 = vmatpush1.msra.mxu0 0.0
        %3724 = vmatprep.subr.mxu0 0.0
        %3725 = vmatpush1.msra.mxu0 0.0
        %3726 = vmatprep.subr.mxu0 0.0
        %3727 = vmatpush1.msra.mxu0 0.0
        %3728 = vmatprep.subr.mxu0 0.0
        %3729 = vmatpush1.msra.mxu0 0.0
        %3730 = vmatprep.subr.mxu0 0.0
        %3731 = vmatpush1.msra.mxu0 0.0
        %3732 = vmatprep.subr.mxu0 0.0
        %3733 = vmatpush1.msra.mxu0 0.0
        %3734 = vmatprep.subr.mxu0 0.0
        %3735 = vmatpush1.msra.mxu0 0.0
        %3736 = vmatprep.subr.mxu0 0.0
        %3737 = vmatpush1.msra.mxu0 0.0
        %3738 = vmatprep.subr.mxu0 0.0
        %3739 = vmatpush1.msra.mxu0 0.0
        %3740 = vmatprep.subr.mxu0 0.0
        %3741 = vmatpush1.msra.mxu0 0.0
        %3742 = vmatprep.subr.mxu0 0.0
        %3743 = vmatpush1.msra.mxu0 0.0
        %3744 = vmatprep.subr.mxu0 0.0
        %3745 = vmatpush1.msra.mxu0 0.0
        %3746 = vmatprep.subr.mxu0 0.0
        %3747 = vmatpush1.msra.mxu0 %v3720
        %3748 = vmatprep.subr.mxu0 0.0
        %3749 = vmatpush1.msra.mxu0 %v3717
        %3750 = vmatprep.subr.mxu0 0.0
        %3751 = vmatpush1.msra.mxu0 %v3716
        %3752 = vmatprep.subr.mxu0 0.0
        %3753 = vmatpush1.msra.mxu0 %v3715
        %3754 = vmatprep.subr.mxu0 0.0
        %3755 = vmatpush2.msra.mxu0 0.0
        %3756 = vmatprep.subr.mxu0 0.0
        %3757 = vmatpush2.msra.mxu0 0.0
        %3758 = vmatprep.subr.mxu0 0.0
        %3759 = vmatpush2.msra.mxu0 0.0
        %3760 = vmatprep.subr.mxu0 0.0
        %3761 = vmatpush2.msra.mxu0 0.0
        %3762 = vmatprep.subr.mxu0 0.0
        %3763 = vmatpush2.msra.mxu0 0.0
        %3764 = vmatprep.subr.mxu0 0.0
        %3765 = vmatpush2.msra.mxu0 0.0
        %3766 = vmatprep.subr.mxu0 0.0
        %3767 = vmatpush2.msra.mxu0 0.0
        %3768 = vmatprep.subr.mxu0 0.0
        %3769 = vmatpush2.msra.mxu0 0.0
        %3770 = vmatprep.subr.mxu0 0.0
        %3771 = vmatpush2.msra.mxu0 0.0
        %3772 = vmatprep.subr.mxu0 0.0
        %3773 = vmatpush2.msra.mxu0 0.0
        %3774 = vmatprep.subr.mxu0 0.0
        %3775 = vmatpush2.msra.mxu0 0.0
        %3776 = vmatprep.subr.mxu0 0.0
        %3777 = vmatpush2.msra.mxu0 0.0
        %3778 = vmatprep.subr.mxu0 0.0
        %3779 = vmatpush2.msra.mxu0 0.0
        %3780 = vmatprep.subr.mxu0 0.0
        %3781 = vmatpush2.msra.mxu0 0.0
        %3782 = vmatprep.subr.mxu0 0.0
        %3783 = vmatpush2.msra.mxu0 0.0
        %3784 = vmatprep.subr.mxu0 0.0
        %3785 = vmatpush2.msra.mxu0 0.0
        %3786 = vmatprep.mubr.f32.mxu0 0.0
        %3787 = vmatmul.mubr.f32.gmra.mxu0 %v1355
        %v3788 = vpop.f32.mrf.mxu0
        %v3789 = vadd.f32 0.0, %v3788
        %v3790 = vpop.f32.mrf.mxu0
        %3791 = vmatprep.mubr.f32.mxu0 0.0
        %3792 = vmatmul.mubr.f32.gmra.mxu0 %v1358
        %v3793 = vpop.f32.mrf.mxu0
        %v3794 = vadd.f32 0.0, %v3793
        %v3795 = vpop.f32.mrf.mxu0
        %3796 = vdwg.mxu0
        %3797 = vmatprep.subr.mxu0 0.0
        %3798 = vmatpush1.msra.mxu0 0.0
        %3799 = vmatprep.subr.mxu0 0.0
        %3800 = vmatpush1.msra.mxu0 0.0
        %3801 = vmatprep.subr.mxu0 0.0
        %3802 = vmatpush1.msra.mxu0 0.0
        %3803 = vmatprep.subr.mxu0 0.0
        %3804 = vmatpush1.msra.mxu0 0.0
        %3805 = vmatprep.subr.mxu0 0.0
        %3806 = vmatpush1.msra.mxu0 0.0
        %3807 = vmatprep.subr.mxu0 0.0
        %3808 = vmatpush1.msra.mxu0 0.0
        %3809 = vmatprep.subr.mxu0 0.0
        %3810 = vmatpush1.msra.mxu0 0.0
        %3811 = vmatprep.subr.mxu0 0.0
        %3812 = vmatpush1.msra.mxu0 0.0
        %3813 = vmatprep.subr.mxu0 0.0
        %3814 = vmatpush1.msra.mxu0 0.0
        %3815 = vmatprep.subr.mxu0 0.0
        %3816 = vmatpush1.msra.mxu0 0.0
        %3817 = vmatprep.subr.mxu0 0.0
        %3818 = vmatpush1.msra.mxu0 0.0
        %3819 = vmatprep.subr.mxu0 0.0
        %3820 = vmatpush1.msra.mxu0 0.0
        %3821 = vmatprep.subr.mxu0 0.0
        %3822 = vmatpush1.msra.mxu0 %v3720
        %3823 = vmatprep.subr.mxu0 0.0
        %3824 = vmatpush1.msra.mxu0 %v3717
        %3825 = vmatprep.subr.mxu0 0.0
        %3826 = vmatpush1.msra.mxu0 %v3716
        %3827 = vmatprep.subr.mxu0 0.0
        %3828 = vmatpush1.msra.mxu0 %v3715
        %3829 = vmatprep.subr.mxu0 0.0
        %3830 = vmatpush2.msra.mxu0 0.0
        %3831 = vmatprep.subr.mxu0 0.0
        %3832 = vmatpush2.msra.mxu0 0.0
        %3833 = vmatprep.subr.mxu0 0.0
        %3834 = vmatpush2.msra.mxu0 0.0
        %3835 = vmatprep.subr.mxu0 0.0
        %3836 = vmatpush2.msra.mxu0 0.0
        %3837 = vmatprep.subr.mxu0 0.0
        %3838 = vmatpush2.msra.mxu0 0.0
        %3839 = vmatprep.subr.mxu0 0.0
        %3840 = vmatpush2.msra.mxu0 0.0
        %3841 = vmatprep.subr.mxu0 0.0
        %3842 = vmatpush2.msra.mxu0 0.0
        %3843 = vmatprep.subr.mxu0 0.0
        %3844 = vmatpush2.msra.mxu0 0.0
        %3845 = vmatprep.subr.mxu0 0.0
        %3846 = vmatpush2.msra.mxu0 0.0
        %3847 = vmatprep.subr.mxu0 0.0
        %3848 = vmatpush2.msra.mxu0 0.0
        %3849 = vmatprep.subr.mxu0 0.0
        %3850 = vmatpush2.msra.mxu0 0.0
        %3851 = vmatprep.subr.mxu0 0.0
        %3852 = vmatpush2.msra.mxu0 0.0
        %3853 = vmatprep.subr.mxu0 0.0
        %3854 = vmatpush2.msra.mxu0 0.0
        %3855 = vmatprep.subr.mxu0 0.0
        %3856 = vmatpush2.msra.mxu0 0.0
        %3857 = vmatprep.subr.mxu0 0.0
        %3858 = vmatpush2.msra.mxu0 0.0
        %3859 = vmatprep.subr.mxu0 0.0
        %3860 = vmatpush2.msra.mxu0 0.0
        %3861 = vmatprep.mubr.f32.mxu0 0.0
        %3862 = vmatmul.mubr.f32.gmra.mxu0 %v1440
        %v3863 = vpop.f32.mrf.mxu0
        %v3864 = vadd.f32 0.0, %v3863
        %v3865 = vpop.f32.mrf.mxu0
        %3866 = vmatprep.mubr.f32.mxu0 0.0
        %3867 = vmatmul.mubr.f32.gmra.mxu0 %v1443
        %v3868 = vpop.f32.mrf.mxu0
        %v3869 = vadd.f32 0.0, %v3868
        %v3870 = vpop.f32.mrf.mxu0
        %3871 = vdwg.mxu0
        %v3872 = vmax.f32 %v3789, %v3864
        %v3873 = vmax.f32 %v3794, %v3869
        %s3874 = scalar_lea.vmem %s5, 192
        %3875 = vst.msk [vmem:[%s3874] sm:$0xff] %vm1220, %v3872
        %3876 = vst.msk [vmem:[%s3874 + $0x8] sm:$0x1f] %vm1523, %v3873
        %s3877 = scalar_lea.vmem [#allocation2], 832
        %v3878 = vld [vmem:[%s3877] sm:$0xff]
        %v3879 = vld [vmem:[%s3877 + $0x8] sm:$0xff]
        %v3880 = vld [vmem:[%s3877 + $0x10] sm:$0xff]
        %v3881 = vld [vmem:[%s3877 + $0x18] sm:$0x3]
        %s3882 = scalar_lea.vmem [#allocation2], 864
        %v3883 = vld [vmem:[%s3882] sm:$0xff]
        %v3884 = vld [vmem:[%s3882 + $0x8] sm:$0xff]
        %v3885 = vld [vmem:[%s3882 + $0x10] sm:$0xff]
        %v3886 = vld [vmem:[%s3882 + $0x18] sm:$0x3]
        %v3887 = vmul.f32 %v3878, %v1317
        %v3888 = vmul.f32 %v3879, %v1317
        %v3889 = vmul.f32 %v3880, %v1317
        %v3890 = vmul.f32 %v3881, %v1317
        %v3891 = vadd.f32 %v3887, %v1327
        %v3892 = vadd.f32 %v3888, %v1327
        %v3893 = vadd.f32 %v3889, %v1327
        %v3894 = vadd.f32 %v3890, %v1327
        %v3895 = vmax.f32 %v3891, 0.0
        %v3896 = vmax.f32 %v3892, 0.0
        %v3897 = vmax.f32 %v3893, 0.0
        %v3898 = vmax.f32 %v3894, 0.0
        %v3899 = vmul.f32 %v3883, %v1317
        %v3900 = vmul.f32 %v3884, %v1317
        %v3901 = vmul.f32 %v3885, %v1317
        %v3902 = vmul.f32 %v3886, %v1317
        %v3903 = vadd.f32 %v3899, %v1327
        %v3904 = vadd.f32 %v3900, %v1327
        %v3905 = vadd.f32 %v3901, %v1327
        %v3906 = vadd.f32 %v3902, %v1327
        %v3907 = vmax.f32 %v3903, 0.0
        %v3908 = vmax.f32 %v3904, 0.0
        %v3909 = vmax.f32 %v3905, 0.0
        %v3910 = vmax.f32 %v3906, 0.0
        %v3911 = vmax.f32 %v3895, %v3907
        %v3912 = vmax.f32 %v3896, %v3908
        %v3913 = vmax.f32 %v3897, %v3909
        %v3914 = vmax.f32 %v3898, %v3910
        %v3916 = vsel %vm1360, %v3914, 0
        %3918 = vmatprep.subr.mxu0 0.0
        %3919 = vmatpush1.msra.mxu0 0.0
        %3920 = vmatprep.subr.mxu0 0.0
        %3921 = vmatpush1.msra.mxu0 0.0
        %3922 = vmatprep.subr.mxu0 0.0
        %3923 = vmatpush1.msra.mxu0 0.0
        %3924 = vmatprep.subr.mxu0 0.0
        %3925 = vmatpush1.msra.mxu0 0.0
        %3926 = vmatprep.subr.mxu0 0.0
        %3927 = vmatpush1.msra.mxu0 0.0
        %3928 = vmatprep.subr.mxu0 0.0
        %3929 = vmatpush1.msra.mxu0 0.0
        %3930 = vmatprep.subr.mxu0 0.0
        %3931 = vmatpush1.msra.mxu0 0.0
        %3932 = vmatprep.subr.mxu0 0.0
        %3933 = vmatpush1.msra.mxu0 0.0
        %3934 = vmatprep.subr.mxu0 0.0
        %3935 = vmatpush1.msra.mxu0 0.0
        %3936 = vmatprep.subr.mxu0 0.0
        %3937 = vmatpush1.msra.mxu0 0.0
        %3938 = vmatprep.subr.mxu0 0.0
        %3939 = vmatpush1.msra.mxu0 0.0
        %3940 = vmatprep.subr.mxu0 0.0
        %3941 = vmatpush1.msra.mxu0 0.0
        %3942 = vmatprep.subr.mxu0 0.0
        %3943 = vmatpush1.msra.mxu0 %v3916
        %3944 = vmatprep.subr.mxu0 0.0
        %3945 = vmatpush1.msra.mxu0 %v3913
        %3946 = vmatprep.subr.mxu0 0.0
        %3947 = vmatpush1.msra.mxu0 %v3912
        %3948 = vmatprep.subr.mxu0 0.0
        %3949 = vmatpush1.msra.mxu0 %v3911
        %3950 = vmatprep.subr.mxu0 0.0
        %3951 = vmatpush2.msra.mxu0 0.0
        %3952 = vmatprep.subr.mxu0 0.0
        %3953 = vmatpush2.msra.mxu0 0.0
        %3954 = vmatprep.subr.mxu0 0.0
        %3955 = vmatpush2.msra.mxu0 0.0
        %3956 = vmatprep.subr.mxu0 0.0
        %3957 = vmatpush2.msra.mxu0 0.0
        %3958 = vmatprep.subr.mxu0 0.0
        %3959 = vmatpush2.msra.mxu0 0.0
        %3960 = vmatprep.subr.mxu0 0.0
        %3961 = vmatpush2.msra.mxu0 0.0
        %3962 = vmatprep.subr.mxu0 0.0
        %3963 = vmatpush2.msra.mxu0 0.0
        %3964 = vmatprep.subr.mxu0 0.0
        %3965 = vmatpush2.msra.mxu0 0.0
        %3966 = vmatprep.subr.mxu0 0.0
        %3967 = vmatpush2.msra.mxu0 0.0
        %3968 = vmatprep.subr.mxu0 0.0
        %3969 = vmatpush2.msra.mxu0 0.0
        %3970 = vmatprep.subr.mxu0 0.0
        %3971 = vmatpush2.msra.mxu0 0.0
        %3972 = vmatprep.subr.mxu0 0.0
        %3973 = vmatpush2.msra.mxu0 0.0
        %3974 = vmatprep.subr.mxu0 0.0
        %3975 = vmatpush2.msra.mxu0 0.0
        %3976 = vmatprep.subr.mxu0 0.0
        %3977 = vmatpush2.msra.mxu0 0.0
        %3978 = vmatprep.subr.mxu0 0.0
        %3979 = vmatpush2.msra.mxu0 0.0
        %3980 = vmatprep.subr.mxu0 0.0
        %3981 = vmatpush2.msra.mxu0 0.0
        %3982 = vmatprep.mubr.f32.mxu0 0.0
        %3983 = vmatmul.mubr.f32.gmra.mxu0 %v1355
        %v3984 = vpop.f32.mrf.mxu0
        %v3985 = vadd.f32 0.0, %v3984
        %v3986 = vpop.f32.mrf.mxu0
        %3987 = vmatprep.mubr.f32.mxu0 0.0
        %3988 = vmatmul.mubr.f32.gmra.mxu0 %v1358
        %v3989 = vpop.f32.mrf.mxu0
        %v3990 = vadd.f32 0.0, %v3989
        %v3991 = vpop.f32.mrf.mxu0
        %3992 = vdwg.mxu0
        %3993 = vmatprep.subr.mxu0 0.0
        %3994 = vmatpush1.msra.mxu0 0.0
        %3995 = vmatprep.subr.mxu0 0.0
        %3996 = vmatpush1.msra.mxu0 0.0
        %3997 = vmatprep.subr.mxu0 0.0
        %3998 = vmatpush1.msra.mxu0 0.0
        %3999 = vmatprep.subr.mxu0 0.0
        %4000 = vmatpush1.msra.mxu0 0.0
        %4001 = vmatprep.subr.mxu0 0.0
        %4002 = vmatpush1.msra.mxu0 0.0
        %4003 = vmatprep.subr.mxu0 0.0
        %4004 = vmatpush1.msra.mxu0 0.0
        %4005 = vmatprep.subr.mxu0 0.0
        %4006 = vmatpush1.msra.mxu0 0.0
        %4007 = vmatprep.subr.mxu0 0.0
        %4008 = vmatpush1.msra.mxu0 0.0
        %4009 = vmatprep.subr.mxu0 0.0
        %4010 = vmatpush1.msra.mxu0 0.0
        %4011 = vmatprep.subr.mxu0 0.0
        %4012 = vmatpush1.msra.mxu0 0.0
        %4013 = vmatprep.subr.mxu0 0.0
        %4014 = vmatpush1.msra.mxu0 0.0
        %4015 = vmatprep.subr.mxu0 0.0
        %4016 = vmatpush1.msra.mxu0 0.0
        %4017 = vmatprep.subr.mxu0 0.0
        %4018 = vmatpush1.msra.mxu0 %v3916
        %4019 = vmatprep.subr.mxu0 0.0
        %4020 = vmatpush1.msra.mxu0 %v3913
        %4021 = vmatprep.subr.mxu0 0.0
        %4022 = vmatpush1.msra.mxu0 %v3912
        %4023 = vmatprep.subr.mxu0 0.0
        %4024 = vmatpush1.msra.mxu0 %v3911
        %4025 = vmatprep.subr.mxu0 0.0
        %4026 = vmatpush2.msra.mxu0 0.0
        %4027 = vmatprep.subr.mxu0 0.0
        %4028 = vmatpush2.msra.mxu0 0.0
        %4029 = vmatprep.subr.mxu0 0.0
        %4030 = vmatpush2.msra.mxu0 0.0
        %4031 = vmatprep.subr.mxu0 0.0
        %4032 = vmatpush2.msra.mxu0 0.0
        %4033 = vmatprep.subr.mxu0 0.0
        %4034 = vmatpush2.msra.mxu0 0.0
        %4035 = vmatprep.subr.mxu0 0.0
        %4036 = vmatpush2.msra.mxu0 0.0
        %4037 = vmatprep.subr.mxu0 0.0
        %4038 = vmatpush2.msra.mxu0 0.0
        %4039 = vmatprep.subr.mxu0 0.0
        %4040 = vmatpush2.msra.mxu0 0.0
        %4041 = vmatprep.subr.mxu0 0.0
        %4042 = vmatpush2.msra.mxu0 0.0
        %4043 = vmatprep.subr.mxu0 0.0
        %4044 = vmatpush2.msra.mxu0 0.0
        %4045 = vmatprep.subr.mxu0 0.0
        %4046 = vmatpush2.msra.mxu0 0.0
        %4047 = vmatprep.subr.mxu0 0.0
        %4048 = vmatpush2.msra.mxu0 0.0
        %4049 = vmatprep.subr.mxu0 0.0
        %4050 = vmatpush2.msra.mxu0 0.0
        %4051 = vmatprep.subr.mxu0 0.0
        %4052 = vmatpush2.msra.mxu0 0.0
        %4053 = vmatprep.subr.mxu0 0.0
        %4054 = vmatpush2.msra.mxu0 0.0
        %4055 = vmatprep.subr.mxu0 0.0
        %4056 = vmatpush2.msra.mxu0 0.0
        %4057 = vmatprep.mubr.f32.mxu0 0.0
        %4058 = vmatmul.mubr.f32.gmra.mxu0 %v1440
        %v4059 = vpop.f32.mrf.mxu0
        %v4060 = vadd.f32 0.0, %v4059
        %v4061 = vpop.f32.mrf.mxu0
        %4062 = vmatprep.mubr.f32.mxu0 0.0
        %4063 = vmatmul.mubr.f32.gmra.mxu0 %v1443
        %v4064 = vpop.f32.mrf.mxu0
        %v4065 = vadd.f32 0.0, %v4064
        %v4066 = vpop.f32.mrf.mxu0
        %4067 = vdwg.mxu0
        %v4068 = vmax.f32 %v3985, %v4060
        %v4069 = vmax.f32 %v3990, %v4065
        %s4070 = scalar_lea.vmem %s5, 208
        %4071 = vst.msk [vmem:[%s4070] sm:$0xff] %vm1220, %v4068
        %4072 = vst.msk [vmem:[%s4070 + $0x8] sm:$0x1f] %vm1523, %v4069
        %s4073 = scalar_lea.vmem [#allocation2], 896
        %v4074 = vld [vmem:[%s4073] sm:$0xff]
        %v4075 = vld [vmem:[%s4073 + $0x8] sm:$0xff]
        %v4076 = vld [vmem:[%s4073 + $0x10] sm:$0xff]
        %v4077 = vld [vmem:[%s4073 + $0x18] sm:$0x3]
        %s4078 = scalar_lea.vmem [#allocation2], 928
        %v4079 = vld [vmem:[%s4078] sm:$0xff]
        %v4080 = vld [vmem:[%s4078 + $0x8] sm:$0xff]
        %v4081 = vld [vmem:[%s4078 + $0x10] sm:$0xff]
        %v4082 = vld [vmem:[%s4078 + $0x18] sm:$0x3]
        %v4083 = vmul.f32 %v4074, %v1317
        %v4084 = vmul.f32 %v4075, %v1317
        %v4085 = vmul.f32 %v4076, %v1317
        %v4086 = vmul.f32 %v4077, %v1317
        %v4087 = vadd.f32 %v4083, %v1327
        %v4088 = vadd.f32 %v4084, %v1327
        %v4089 = vadd.f32 %v4085, %v1327
        %v4090 = vadd.f32 %v4086, %v1327
        %v4091 = vmax.f32 %v4087, 0.0
        %v4092 = vmax.f32 %v4088, 0.0
        %v4093 = vmax.f32 %v4089, 0.0
        %v4094 = vmax.f32 %v4090, 0.0
        %v4095 = vmul.f32 %v4079, %v1317
        %v4096 = vmul.f32 %v4080, %v1317
        %v4097 = vmul.f32 %v4081, %v1317
        %v4098 = vmul.f32 %v4082, %v1317
        %v4099 = vadd.f32 %v4095, %v1327
        %v4100 = vadd.f32 %v4096, %v1327
        %v4101 = vadd.f32 %v4097, %v1327
        %v4102 = vadd.f32 %v4098, %v1327
        %v4103 = vmax.f32 %v4099, 0.0
        %v4104 = vmax.f32 %v4100, 0.0
        %v4105 = vmax.f32 %v4101, 0.0
        %v4106 = vmax.f32 %v4102, 0.0
        %v4107 = vmax.f32 %v4091, %v4103
        %v4108 = vmax.f32 %v4092, %v4104
        %v4109 = vmax.f32 %v4093, %v4105
        %v4110 = vmax.f32 %v4094, %v4106
        %v4112 = vsel %vm1360, %v4110, 0
        %4114 = vmatprep.subr.mxu0 0.0
        %4115 = vmatpush1.msra.mxu0 0.0
        %4116 = vmatprep.subr.mxu0 0.0
        %4117 = vmatpush1.msra.mxu0 0.0
        %4118 = vmatprep.subr.mxu0 0.0
        %4119 = vmatpush1.msra.mxu0 0.0
        %4120 = vmatprep.subr.mxu0 0.0
        %4121 = vmatpush1.msra.mxu0 0.0
        %4122 = vmatprep.subr.mxu0 0.0
        %4123 = vmatpush1.msra.mxu0 0.0
        %4124 = vmatprep.subr.mxu0 0.0
        %4125 = vmatpush1.msra.mxu0 0.0
        %4126 = vmatprep.subr.mxu0 0.0
        %4127 = vmatpush1.msra.mxu0 0.0
        %4128 = vmatprep.subr.mxu0 0.0
        %4129 = vmatpush1.msra.mxu0 0.0
        %4130 = vmatprep.subr.mxu0 0.0
        %4131 = vmatpush1.msra.mxu0 0.0
        %4132 = vmatprep.subr.mxu0 0.0
        %4133 = vmatpush1.msra.mxu0 0.0
        %4134 = vmatprep.subr.mxu0 0.0
        %4135 = vmatpush1.msra.mxu0 0.0
        %4136 = vmatprep.subr.mxu0 0.0
        %4137 = vmatpush1.msra.mxu0 0.0
        %4138 = vmatprep.subr.mxu0 0.0
        %4139 = vmatpush1.msra.mxu0 %v4112
        %4140 = vmatprep.subr.mxu0 0.0
        %4141 = vmatpush1.msra.mxu0 %v4109
        %4142 = vmatprep.subr.mxu0 0.0
        %4143 = vmatpush1.msra.mxu0 %v4108
        %4144 = vmatprep.subr.mxu0 0.0
        %4145 = vmatpush1.msra.mxu0 %v4107
        %4146 = vmatprep.subr.mxu0 0.0
        %4147 = vmatpush2.msra.mxu0 0.0
        %4148 = vmatprep.subr.mxu0 0.0
        %4149 = vmatpush2.msra.mxu0 0.0
        %4150 = vmatprep.subr.mxu0 0.0
        %4151 = vmatpush2.msra.mxu0 0.0
        %4152 = vmatprep.subr.mxu0 0.0
        %4153 = vmatpush2.msra.mxu0 0.0
        %4154 = vmatprep.subr.mxu0 0.0
        %4155 = vmatpush2.msra.mxu0 0.0
        %4156 = vmatprep.subr.mxu0 0.0
        %4157 = vmatpush2.msra.mxu0 0.0
        %4158 = vmatprep.subr.mxu0 0.0
        %4159 = vmatpush2.msra.mxu0 0.0
        %4160 = vmatprep.subr.mxu0 0.0
        %4161 = vmatpush2.msra.mxu0 0.0
        %4162 = vmatprep.subr.mxu0 0.0
        %4163 = vmatpush2.msra.mxu0 0.0
        %4164 = vmatprep.subr.mxu0 0.0
        %4165 = vmatpush2.msra.mxu0 0.0
        %4166 = vmatprep.subr.mxu0 0.0
        %4167 = vmatpush2.msra.mxu0 0.0
        %4168 = vmatprep.subr.mxu0 0.0
        %4169 = vmatpush2.msra.mxu0 0.0
        %4170 = vmatprep.subr.mxu0 0.0
        %4171 = vmatpush2.msra.mxu0 0.0
        %4172 = vmatprep.subr.mxu0 0.0
        %4173 = vmatpush2.msra.mxu0 0.0
        %4174 = vmatprep.subr.mxu0 0.0
        %4175 = vmatpush2.msra.mxu0 0.0
        %4176 = vmatprep.subr.mxu0 0.0
        %4177 = vmatpush2.msra.mxu0 0.0
        %4178 = vmatprep.mubr.f32.mxu0 0.0
        %4179 = vmatmul.mubr.f32.gmra.mxu0 %v1355
        %v4180 = vpop.f32.mrf.mxu0
        %v4181 = vadd.f32 0.0, %v4180
        %v4182 = vpop.f32.mrf.mxu0
        %4183 = vmatprep.mubr.f32.mxu0 0.0
        %4184 = vmatmul.mubr.f32.gmra.mxu0 %v1358
        %v4185 = vpop.f32.mrf.mxu0
        %v4186 = vadd.f32 0.0, %v4185
        %v4187 = vpop.f32.mrf.mxu0
        %4188 = vdwg.mxu0
        %4189 = vmatprep.subr.mxu0 0.0
        %4190 = vmatpush1.msra.mxu0 0.0
        %4191 = vmatprep.subr.mxu0 0.0
        %4192 = vmatpush1.msra.mxu0 0.0
        %4193 = vmatprep.subr.mxu0 0.0
        %4194 = vmatpush1.msra.mxu0 0.0
        %4195 = vmatprep.subr.mxu0 0.0
        %4196 = vmatpush1.msra.mxu0 0.0
        %4197 = vmatprep.subr.mxu0 0.0
        %4198 = vmatpush1.msra.mxu0 0.0
        %4199 = vmatprep.subr.mxu0 0.0
        %4200 = vmatpush1.msra.mxu0 0.0
        %4201 = vmatprep.subr.mxu0 0.0
        %4202 = vmatpush1.msra.mxu0 0.0
        %4203 = vmatprep.subr.mxu0 0.0
        %4204 = vmatpush1.msra.mxu0 0.0
        %4205 = vmatprep.subr.mxu0 0.0
        %4206 = vmatpush1.msra.mxu0 0.0
        %4207 = vmatprep.subr.mxu0 0.0
        %4208 = vmatpush1.msra.mxu0 0.0
        %4209 = vmatprep.subr.mxu0 0.0
        %4210 = vmatpush1.msra.mxu0 0.0
        %4211 = vmatprep.subr.mxu0 0.0
        %4212 = vmatpush1.msra.mxu0 0.0
        %4213 = vmatprep.subr.mxu0 0.0
        %4214 = vmatpush1.msra.mxu0 %v4112
        %4215 = vmatprep.subr.mxu0 0.0
        %4216 = vmatpush1.msra.mxu0 %v4109
        %4217 = vmatprep.subr.mxu0 0.0
        %4218 = vmatpush1.msra.mxu0 %v4108
        %4219 = vmatprep.subr.mxu0 0.0
        %4220 = vmatpush1.msra.mxu0 %v4107
        %4221 = vmatprep.subr.mxu0 0.0
        %4222 = vmatpush2.msra.mxu0 0.0
        %4223 = vmatprep.subr.mxu0 0.0
        %4224 = vmatpush2.msra.mxu0 0.0
        %4225 = vmatprep.subr.mxu0 0.0
        %4226 = vmatpush2.msra.mxu0 0.0
        %4227 = vmatprep.subr.mxu0 0.0
        %4228 = vmatpush2.msra.mxu0 0.0
        %4229 = vmatprep.subr.mxu0 0.0
        %4230 = vmatpush2.msra.mxu0 0.0
        %4231 = vmatprep.subr.mxu0 0.0
        %4232 = vmatpush2.msra.mxu0 0.0
        %4233 = vmatprep.subr.mxu0 0.0
        %4234 = vmatpush2.msra.mxu0 0.0
        %4235 = vmatprep.subr.mxu0 0.0
        %4236 = vmatpush2.msra.mxu0 0.0
        %4237 = vmatprep.subr.mxu0 0.0
        %4238 = vmatpush2.msra.mxu0 0.0
        %4239 = vmatprep.subr.mxu0 0.0
        %4240 = vmatpush2.msra.mxu0 0.0
        %4241 = vmatprep.subr.mxu0 0.0
        %4242 = vmatpush2.msra.mxu0 0.0
        %4243 = vmatprep.subr.mxu0 0.0
        %4244 = vmatpush2.msra.mxu0 0.0
        %4245 = vmatprep.subr.mxu0 0.0
        %4246 = vmatpush2.msra.mxu0 0.0
        %4247 = vmatprep.subr.mxu0 0.0
        %4248 = vmatpush2.msra.mxu0 0.0
        %4249 = vmatprep.subr.mxu0 0.0
        %4250 = vmatpush2.msra.mxu0 0.0
        %4251 = vmatprep.subr.mxu0 0.0
        %4252 = vmatpush2.msra.mxu0 0.0
        %4253 = vmatprep.mubr.f32.mxu0 0.0
        %4254 = vmatmul.mubr.f32.gmra.mxu0 %v1440
        %v4255 = vpop.f32.mrf.mxu0
        %v4256 = vadd.f32 0.0, %v4255
        %v4257 = vpop.f32.mrf.mxu0
        %4258 = vmatprep.mubr.f32.mxu0 0.0
        %4259 = vmatmul.mubr.f32.gmra.mxu0 %v1443
        %v4260 = vpop.f32.mrf.mxu0
        %v4261 = vadd.f32 0.0, %v4260
        %v4262 = vpop.f32.mrf.mxu0
        %4263 = vdwg.mxu0
        %v4264 = vmax.f32 %v4181, %v4256
        %v4265 = vmax.f32 %v4186, %v4261
        %s4266 = scalar_lea.vmem %s5, 224
        %4267 = vst.msk [vmem:[%s4266] sm:$0xff] %vm1220, %v4264
        %4268 = vst.msk [vmem:[%s4266 + $0x8] sm:$0x1f] %vm1523, %v4265
        %s4269 = scalar_lea.vmem [#allocation2], 960
        %v4270 = vld [vmem:[%s4269] sm:$0xff]
        %v4271 = vld [vmem:[%s4269 + $0x8] sm:$0xff]
        %v4272 = vld [vmem:[%s4269 + $0x10] sm:$0xff]
        %v4273 = vld [vmem:[%s4269 + $0x18] sm:$0x3]
        %s4274 = scalar_lea.vmem [#allocation2], 992
        %v4275 = vld [vmem:[%s4274] sm:$0xff]
        %v4276 = vld [vmem:[%s4274 + $0x8] sm:$0xff]
        %v4277 = vld [vmem:[%s4274 + $0x10] sm:$0xff]
        %v4278 = vld [vmem:[%s4274 + $0x18] sm:$0x3]
        %v4279 = vmul.f32 %v4270, %v1317
        %v4280 = vmul.f32 %v4271, %v1317
        %v4281 = vmul.f32 %v4272, %v1317
        %v4282 = vmul.f32 %v4273, %v1317
        %v4283 = vadd.f32 %v4279, %v1327
        %v4284 = vadd.f32 %v4280, %v1327
        %v4285 = vadd.f32 %v4281, %v1327
        %v4286 = vadd.f32 %v4282, %v1327
        %v4287 = vmax.f32 %v4283, 0.0
        %v4288 = vmax.f32 %v4284, 0.0
        %v4289 = vmax.f32 %v4285, 0.0
        %v4290 = vmax.f32 %v4286, 0.0
        %v4291 = vmul.f32 %v4275, %v1317
        %v4292 = vmul.f32 %v4276, %v1317
        %v4293 = vmul.f32 %v4277, %v1317
        %v4294 = vmul.f32 %v4278, %v1317
        %v4295 = vadd.f32 %v4291, %v1327
        %v4296 = vadd.f32 %v4292, %v1327
        %v4297 = vadd.f32 %v4293, %v1327
        %v4298 = vadd.f32 %v4294, %v1327
        %v4299 = vmax.f32 %v4295, 0.0
        %v4300 = vmax.f32 %v4296, 0.0
        %v4301 = vmax.f32 %v4297, 0.0
        %v4302 = vmax.f32 %v4298, 0.0
        %v4303 = vmax.f32 %v4287, %v4299
        %v4304 = vmax.f32 %v4288, %v4300
        %v4305 = vmax.f32 %v4289, %v4301
        %v4306 = vmax.f32 %v4290, %v4302
        %v4308 = vsel %vm1360, %v4306, 0
        %4310 = vmatprep.subr.mxu0 0.0
        %4311 = vmatpush1.msra.mxu0 0.0
        %4312 = vmatprep.subr.mxu0 0.0
        %4313 = vmatpush1.msra.mxu0 0.0
        %4314 = vmatprep.subr.mxu0 0.0
        %4315 = vmatpush1.msra.mxu0 0.0
        %4316 = vmatprep.subr.mxu0 0.0
        %4317 = vmatpush1.msra.mxu0 0.0
        %4318 = vmatprep.subr.mxu0 0.0
        %4319 = vmatpush1.msra.mxu0 0.0
        %4320 = vmatprep.subr.mxu0 0.0
        %4321 = vmatpush1.msra.mxu0 0.0
        %4322 = vmatprep.subr.mxu0 0.0
        %4323 = vmatpush1.msra.mxu0 0.0
        %4324 = vmatprep.subr.mxu0 0.0
        %4325 = vmatpush1.msra.mxu0 0.0
        %4326 = vmatprep.subr.mxu0 0.0
        %4327 = vmatpush1.msra.mxu0 0.0
        %4328 = vmatprep.subr.mxu0 0.0
        %4329 = vmatpush1.msra.mxu0 0.0
        %4330 = vmatprep.subr.mxu0 0.0
        %4331 = vmatpush1.msra.mxu0 0.0
        %4332 = vmatprep.subr.mxu0 0.0
        %4333 = vmatpush1.msra.mxu0 0.0
        %4334 = vmatprep.subr.mxu0 0.0
        %4335 = vmatpush1.msra.mxu0 %v4308
        %4336 = vmatprep.subr.mxu0 0.0
        %4337 = vmatpush1.msra.mxu0 %v4305
        %4338 = vmatprep.subr.mxu0 0.0
        %4339 = vmatpush1.msra.mxu0 %v4304
        %4340 = vmatprep.subr.mxu0 0.0
        %4341 = vmatpush1.msra.mxu0 %v4303
        %4342 = vmatprep.subr.mxu0 0.0
        %4343 = vmatpush2.msra.mxu0 0.0
        %4344 = vmatprep.subr.mxu0 0.0
        %4345 = vmatpush2.msra.mxu0 0.0
        %4346 = vmatprep.subr.mxu0 0.0
        %4347 = vmatpush2.msra.mxu0 0.0
        %4348 = vmatprep.subr.mxu0 0.0
        %4349 = vmatpush2.msra.mxu0 0.0
        %4350 = vmatprep.subr.mxu0 0.0
        %4351 = vmatpush2.msra.mxu0 0.0
        %4352 = vmatprep.subr.mxu0 0.0
        %4353 = vmatpush2.msra.mxu0 0.0
        %4354 = vmatprep.subr.mxu0 0.0
        %4355 = vmatpush2.msra.mxu0 0.0
        %4356 = vmatprep.subr.mxu0 0.0
        %4357 = vmatpush2.msra.mxu0 0.0
        %4358 = vmatprep.subr.mxu0 0.0
        %4359 = vmatpush2.msra.mxu0 0.0
        %4360 = vmatprep.subr.mxu0 0.0
        %4361 = vmatpush2.msra.mxu0 0.0
        %4362 = vmatprep.subr.mxu0 0.0
        %4363 = vmatpush2.msra.mxu0 0.0
        %4364 = vmatprep.subr.mxu0 0.0
        %4365 = vmatpush2.msra.mxu0 0.0
        %4366 = vmatprep.subr.mxu0 0.0
        %4367 = vmatpush2.msra.mxu0 0.0
        %4368 = vmatprep.subr.mxu0 0.0
        %4369 = vmatpush2.msra.mxu0 0.0
        %4370 = vmatprep.subr.mxu0 0.0
        %4371 = vmatpush2.msra.mxu0 0.0
        %4372 = vmatprep.subr.mxu0 0.0
        %4373 = vmatpush2.msra.mxu0 0.0
        %4374 = vmatprep.mubr.f32.mxu0 0.0
        %4375 = vmatmul.mubr.f32.gmra.mxu0 %v1355
        %v4376 = vpop.f32.mrf.mxu0
        %v4377 = vadd.f32 0.0, %v4376
        %v4378 = vpop.f32.mrf.mxu0
        %4379 = vmatprep.mubr.f32.mxu0 0.0
        %4380 = vmatmul.mubr.f32.gmra.mxu0 %v1358
        %v4381 = vpop.f32.mrf.mxu0
        %v4382 = vadd.f32 0.0, %v4381
        %v4383 = vpop.f32.mrf.mxu0
        %4384 = vdwg.mxu0
        %4385 = vmatprep.subr.mxu0 0.0
        %4386 = vmatpush1.msra.mxu0 0.0
        %4387 = vmatprep.subr.mxu0 0.0
        %4388 = vmatpush1.msra.mxu0 0.0
        %4389 = vmatprep.subr.mxu0 0.0
        %4390 = vmatpush1.msra.mxu0 0.0
        %4391 = vmatprep.subr.mxu0 0.0
        %4392 = vmatpush1.msra.mxu0 0.0
        %4393 = vmatprep.subr.mxu0 0.0
        %4394 = vmatpush1.msra.mxu0 0.0
        %4395 = vmatprep.subr.mxu0 0.0
        %4396 = vmatpush1.msra.mxu0 0.0
        %4397 = vmatprep.subr.mxu0 0.0
        %4398 = vmatpush1.msra.mxu0 0.0
        %4399 = vmatprep.subr.mxu0 0.0
        %4400 = vmatpush1.msra.mxu0 0.0
        %4401 = vmatprep.subr.mxu0 0.0
        %4402 = vmatpush1.msra.mxu0 0.0
        %4403 = vmatprep.subr.mxu0 0.0
        %4404 = vmatpush1.msra.mxu0 0.0
        %4405 = vmatprep.subr.mxu0 0.0
        %4406 = vmatpush1.msra.mxu0 0.0
        %4407 = vmatprep.subr.mxu0 0.0
        %4408 = vmatpush1.msra.mxu0 0.0
        %4409 = vmatprep.subr.mxu0 0.0
        %4410 = vmatpush1.msra.mxu0 %v4308
        %4411 = vmatprep.subr.mxu0 0.0
        %4412 = vmatpush1.msra.mxu0 %v4305
        %4413 = vmatprep.subr.mxu0 0.0
        %4414 = vmatpush1.msra.mxu0 %v4304
        %4415 = vmatprep.subr.mxu0 0.0
        %4416 = vmatpush1.msra.mxu0 %v4303
        %4417 = vmatprep.subr.mxu0 0.0
        %4418 = vmatpush2.msra.mxu0 0.0
        %4419 = vmatprep.subr.mxu0 0.0
        %4420 = vmatpush2.msra.mxu0 0.0
        %4421 = vmatprep.subr.mxu0 0.0
        %4422 = vmatpush2.msra.mxu0 0.0
        %4423 = vmatprep.subr.mxu0 0.0
        %4424 = vmatpush2.msra.mxu0 0.0
        %4425 = vmatprep.subr.mxu0 0.0
        %4426 = vmatpush2.msra.mxu0 0.0
        %4427 = vmatprep.subr.mxu0 0.0
        %4428 = vmatpush2.msra.mxu0 0.0
        %4429 = vmatprep.subr.mxu0 0.0
        %4430 = vmatpush2.msra.mxu0 0.0
        %4431 = vmatprep.subr.mxu0 0.0
        %4432 = vmatpush2.msra.mxu0 0.0
        %4433 = vmatprep.subr.mxu0 0.0
        %4434 = vmatpush2.msra.mxu0 0.0
        %4435 = vmatprep.subr.mxu0 0.0
        %4436 = vmatpush2.msra.mxu0 0.0
        %4437 = vmatprep.subr.mxu0 0.0
        %4438 = vmatpush2.msra.mxu0 0.0
        %4439 = vmatprep.subr.mxu0 0.0
        %4440 = vmatpush2.msra.mxu0 0.0
        %4441 = vmatprep.subr.mxu0 0.0
        %4442 = vmatpush2.msra.mxu0 0.0
        %4443 = vmatprep.subr.mxu0 0.0
        %4444 = vmatpush2.msra.mxu0 0.0
        %4445 = vmatprep.subr.mxu0 0.0
        %4446 = vmatpush2.msra.mxu0 0.0
        %4447 = vmatprep.subr.mxu0 0.0
        %4448 = vmatpush2.msra.mxu0 0.0
        %4449 = vmatprep.mubr.f32.mxu0 0.0
        %4450 = vmatmul.mubr.f32.gmra.mxu0 %v1440
        %v4451 = vpop.f32.mrf.mxu0
        %v4452 = vadd.f32 0.0, %v4451
        %v4453 = vpop.f32.mrf.mxu0
        %4454 = vmatprep.mubr.f32.mxu0 0.0
        %4455 = vmatmul.mubr.f32.gmra.mxu0 %v1443
        %v4456 = vpop.f32.mrf.mxu0
        %v4457 = vadd.f32 0.0, %v4456
        %v4458 = vpop.f32.mrf.mxu0
        %4459 = vdwg.mxu0
        %v4460 = vmax.f32 %v4377, %v4452
        %v4461 = vmax.f32 %v4382, %v4457
        %s4462 = scalar_lea.vmem %s5, 240
        %4463 = vst.msk [vmem:[%s4462] sm:$0xff] %vm1220, %v4460
        %4464 = vst.msk [vmem:[%s4462 + $0x8] sm:$0x1f] %vm1523, %v4461
        %s4465 = scalar_lea.vmem [#allocation2], 1024
        %v4466 = vld [vmem:[%s4465] sm:$0xff]
        %v4467 = vld [vmem:[%s4465 + $0x8] sm:$0xff]
        %v4468 = vld [vmem:[%s4465 + $0x10] sm:$0xff]
        %v4469 = vld [vmem:[%s4465 + $0x18] sm:$0x3]
        %s4470 = scalar_lea.vmem [#allocation2], 1056
        %v4471 = vld [vmem:[%s4470] sm:$0xff]
        %v4472 = vld [vmem:[%s4470 + $0x8] sm:$0xff]
        %v4473 = vld [vmem:[%s4470 + $0x10] sm:$0xff]
        %v4474 = vld [vmem:[%s4470 + $0x18] sm:$0x3]
        %v4475 = vmul.f32 %v4466, %v1317
        %v4476 = vmul.f32 %v4467, %v1317
        %v4477 = vmul.f32 %v4468, %v1317
        %v4478 = vmul.f32 %v4469, %v1317
        %v4479 = vadd.f32 %v4475, %v1327
        %v4480 = vadd.f32 %v4476, %v1327
        %v4481 = vadd.f32 %v4477, %v1327
        %v4482 = vadd.f32 %v4478, %v1327
        %v4483 = vmax.f32 %v4479, 0.0
        %v4484 = vmax.f32 %v4480, 0.0
        %v4485 = vmax.f32 %v4481, 0.0
        %v4486 = vmax.f32 %v4482, 0.0
        %v4487 = vmul.f32 %v4471, %v1317
        %v4488 = vmul.f32 %v4472, %v1317
        %v4489 = vmul.f32 %v4473, %v1317
        %v4490 = vmul.f32 %v4474, %v1317
        %v4491 = vadd.f32 %v4487, %v1327
        %v4492 = vadd.f32 %v4488, %v1327
        %v4493 = vadd.f32 %v4489, %v1327
        %v4494 = vadd.f32 %v4490, %v1327
        %v4495 = vmax.f32 %v4491, 0.0
        %v4496 = vmax.f32 %v4492, 0.0
        %v4497 = vmax.f32 %v4493, 0.0
        %v4498 = vmax.f32 %v4494, 0.0
        %v4499 = vmax.f32 %v4483, %v4495
        %v4500 = vmax.f32 %v4484, %v4496
        %v4501 = vmax.f32 %v4485, %v4497
        %v4502 = vmax.f32 %v4486, %v4498
        %v4504 = vsel %vm1360, %v4502, 0
        %4506 = vmatprep.subr.mxu0 0.0
        %4507 = vmatpush1.msra.mxu0 0.0
        %4508 = vmatprep.subr.mxu0 0.0
        %4509 = vmatpush1.msra.mxu0 0.0
        %4510 = vmatprep.subr.mxu0 0.0
        %4511 = vmatpush1.msra.mxu0 0.0
        %4512 = vmatprep.subr.mxu0 0.0
        %4513 = vmatpush1.msra.mxu0 0.0
        %4514 = vmatprep.subr.mxu0 0.0
        %4515 = vmatpush1.msra.mxu0 0.0
        %4516 = vmatprep.subr.mxu0 0.0
        %4517 = vmatpush1.msra.mxu0 0.0
        %4518 = vmatprep.subr.mxu0 0.0
        %4519 = vmatpush1.msra.mxu0 0.0
        %4520 = vmatprep.subr.mxu0 0.0
        %4521 = vmatpush1.msra.mxu0 0.0
        %4522 = vmatprep.subr.mxu0 0.0
        %4523 = vmatpush1.msra.mxu0 0.0
        %4524 = vmatprep.subr.mxu0 0.0
        %4525 = vmatpush1.msra.mxu0 0.0
        %4526 = vmatprep.subr.mxu0 0.0
        %4527 = vmatpush1.msra.mxu0 0.0
        %4528 = vmatprep.subr.mxu0 0.0
        %4529 = vmatpush1.msra.mxu0 0.0
        %4530 = vmatprep.subr.mxu0 0.0
        %4531 = vmatpush1.msra.mxu0 %v4504
        %4532 = vmatprep.subr.mxu0 0.0
        %4533 = vmatpush1.msra.mxu0 %v4501
        %4534 = vmatprep.subr.mxu0 0.0
        %4535 = vmatpush1.msra.mxu0 %v4500
        %4536 = vmatprep.subr.mxu0 0.0
        %4537 = vmatpush1.msra.mxu0 %v4499
        %4538 = vmatprep.subr.mxu0 0.0
        %4539 = vmatpush2.msra.mxu0 0.0
        %4540 = vmatprep.subr.mxu0 0.0
        %4541 = vmatpush2.msra.mxu0 0.0
        %4542 = vmatprep.subr.mxu0 0.0
        %4543 = vmatpush2.msra.mxu0 0.0
        %4544 = vmatprep.subr.mxu0 0.0
        %4545 = vmatpush2.msra.mxu0 0.0
        %4546 = vmatprep.subr.mxu0 0.0
        %4547 = vmatpush2.msra.mxu0 0.0
        %4548 = vmatprep.subr.mxu0 0.0
        %4549 = vmatpush2.msra.mxu0 0.0
        %4550 = vmatprep.subr.mxu0 0.0
        %4551 = vmatpush2.msra.mxu0 0.0
        %4552 = vmatprep.subr.mxu0 0.0
        %4553 = vmatpush2.msra.mxu0 0.0
        %4554 = vmatprep.subr.mxu0 0.0
        %4555 = vmatpush2.msra.mxu0 0.0
        %4556 = vmatprep.subr.mxu0 0.0
        %4557 = vmatpush2.msra.mxu0 0.0
        %4558 = vmatprep.subr.mxu0 0.0
        %4559 = vmatpush2.msra.mxu0 0.0
        %4560 = vmatprep.subr.mxu0 0.0
        %4561 = vmatpush2.msra.mxu0 0.0
        %4562 = vmatprep.subr.mxu0 0.0
        %4563 = vmatpush2.msra.mxu0 0.0
        %4564 = vmatprep.subr.mxu0 0.0
        %4565 = vmatpush2.msra.mxu0 0.0
        %4566 = vmatprep.subr.mxu0 0.0
        %4567 = vmatpush2.msra.mxu0 0.0
        %4568 = vmatprep.subr.mxu0 0.0
        %4569 = vmatpush2.msra.mxu0 0.0
        %4570 = vmatprep.mubr.f32.mxu0 0.0
        %4571 = vmatmul.mubr.f32.gmra.mxu0 %v1355
        %v4572 = vpop.f32.mrf.mxu0
        %v4573 = vadd.f32 0.0, %v4572
        %v4574 = vpop.f32.mrf.mxu0
        %4575 = vmatprep.mubr.f32.mxu0 0.0
        %4576 = vmatmul.mubr.f32.gmra.mxu0 %v1358
        %v4577 = vpop.f32.mrf.mxu0
        %v4578 = vadd.f32 0.0, %v4577
        %v4579 = vpop.f32.mrf.mxu0
        %4580 = vdwg.mxu0
        %4581 = vmatprep.subr.mxu0 0.0
        %4582 = vmatpush1.msra.mxu0 0.0
        %4583 = vmatprep.subr.mxu0 0.0
        %4584 = vmatpush1.msra.mxu0 0.0
        %4585 = vmatprep.subr.mxu0 0.0
        %4586 = vmatpush1.msra.mxu0 0.0
        %4587 = vmatprep.subr.mxu0 0.0
        %4588 = vmatpush1.msra.mxu0 0.0
        %4589 = vmatprep.subr.mxu0 0.0
        %4590 = vmatpush1.msra.mxu0 0.0
        %4591 = vmatprep.subr.mxu0 0.0
        %4592 = vmatpush1.msra.mxu0 0.0
        %4593 = vmatprep.subr.mxu0 0.0
        %4594 = vmatpush1.msra.mxu0 0.0
        %4595 = vmatprep.subr.mxu0 0.0
        %4596 = vmatpush1.msra.mxu0 0.0
        %4597 = vmatprep.subr.mxu0 0.0
        %4598 = vmatpush1.msra.mxu0 0.0
        %4599 = vmatprep.subr.mxu0 0.0
        %4600 = vmatpush1.msra.mxu0 0.0
        %4601 = vmatprep.subr.mxu0 0.0
        %4602 = vmatpush1.msra.mxu0 0.0
        %4603 = vmatprep.subr.mxu0 0.0
        %4604 = vmatpush1.msra.mxu0 0.0
        %4605 = vmatprep.subr.mxu0 0.0
        %4606 = vmatpush1.msra.mxu0 %v4504
        %4607 = vmatprep.subr.mxu0 0.0
        %4608 = vmatpush1.msra.mxu0 %v4501
        %4609 = vmatprep.subr.mxu0 0.0
        %4610 = vmatpush1.msra.mxu0 %v4500
        %4611 = vmatprep.subr.mxu0 0.0
        %4612 = vmatpush1.msra.mxu0 %v4499
        %4613 = vmatprep.subr.mxu0 0.0
        %4614 = vmatpush2.msra.mxu0 0.0
        %4615 = vmatprep.subr.mxu0 0.0
        %4616 = vmatpush2.msra.mxu0 0.0
        %4617 = vmatprep.subr.mxu0 0.0
        %4618 = vmatpush2.msra.mxu0 0.0
        %4619 = vmatprep.subr.mxu0 0.0
        %4620 = vmatpush2.msra.mxu0 0.0
        %4621 = vmatprep.subr.mxu0 0.0
        %4622 = vmatpush2.msra.mxu0 0.0
        %4623 = vmatprep.subr.mxu0 0.0
        %4624 = vmatpush2.msra.mxu0 0.0
        %4625 = vmatprep.subr.mxu0 0.0
        %4626 = vmatpush2.msra.mxu0 0.0
        %4627 = vmatprep.subr.mxu0 0.0
        %4628 = vmatpush2.msra.mxu0 0.0
        %4629 = vmatprep.subr.mxu0 0.0
        %4630 = vmatpush2.msra.mxu0 0.0
        %4631 = vmatprep.subr.mxu0 0.0
        %4632 = vmatpush2.msra.mxu0 0.0
        %4633 = vmatprep.subr.mxu0 0.0
        %4634 = vmatpush2.msra.mxu0 0.0
        %4635 = vmatprep.subr.mxu0 0.0
        %4636 = vmatpush2.msra.mxu0 0.0
        %4637 = vmatprep.subr.mxu0 0.0
        %4638 = vmatpush2.msra.mxu0 0.0
        %4639 = vmatprep.subr.mxu0 0.0
        %4640 = vmatpush2.msra.mxu0 0.0
        %4641 = vmatprep.subr.mxu0 0.0
        %4642 = vmatpush2.msra.mxu0 0.0
        %4643 = vmatprep.subr.mxu0 0.0
        %4644 = vmatpush2.msra.mxu0 0.0
        %4645 = vmatprep.mubr.f32.mxu0 0.0
        %4646 = vmatmul.mubr.f32.gmra.mxu0 %v1440
        %v4647 = vpop.f32.mrf.mxu0
        %v4648 = vadd.f32 0.0, %v4647
        %v4649 = vpop.f32.mrf.mxu0
        %4650 = vmatprep.mubr.f32.mxu0 0.0
        %4651 = vmatmul.mubr.f32.gmra.mxu0 %v1443
        %v4652 = vpop.f32.mrf.mxu0
        %v4653 = vadd.f32 0.0, %v4652
        %v4654 = vpop.f32.mrf.mxu0
        %4655 = vdwg.mxu0
        %v4656 = vmax.f32 %v4573, %v4648
        %v4657 = vmax.f32 %v4578, %v4653
        %s4658 = scalar_lea.vmem %s5, 256
        %4659 = vst.msk [vmem:[%s4658] sm:$0xff] %vm1220, %v4656
        %4660 = vst.msk [vmem:[%s4658 + $0x8] sm:$0x1f] %vm1523, %v4657
        %s4661 = scalar_lea.vmem [#allocation2], 1088
        %v4662 = vld [vmem:[%s4661] sm:$0xff]
        %v4663 = vld [vmem:[%s4661 + $0x8] sm:$0xff]
        %v4664 = vld [vmem:[%s4661 + $0x10] sm:$0xff]
        %v4665 = vld [vmem:[%s4661 + $0x18] sm:$0x3]
        %s4666 = scalar_lea.vmem [#allocation2], 1120
        %v4667 = vld [vmem:[%s4666] sm:$0xff]
        %v4668 = vld [vmem:[%s4666 + $0x8] sm:$0xff]
        %v4669 = vld [vmem:[%s4666 + $0x10] sm:$0xff]
        %v4670 = vld [vmem:[%s4666 + $0x18] sm:$0x3]
        %v4671 = vmul.f32 %v4662, %v1317
        %v4672 = vmul.f32 %v4663, %v1317
        %v4673 = vmul.f32 %v4664, %v1317
        %v4674 = vmul.f32 %v4665, %v1317
        %v4675 = vadd.f32 %v4671, %v1327
        %v4676 = vadd.f32 %v4672, %v1327
        %v4677 = vadd.f32 %v4673, %v1327
        %v4678 = vadd.f32 %v4674, %v1327
        %v4679 = vmax.f32 %v4675, 0.0
        %v4680 = vmax.f32 %v4676, 0.0
        %v4681 = vmax.f32 %v4677, 0.0
        %v4682 = vmax.f32 %v4678, 0.0
        %v4683 = vmul.f32 %v4667, %v1317
        %v4684 = vmul.f32 %v4668, %v1317
        %v4685 = vmul.f32 %v4669, %v1317
        %v4686 = vmul.f32 %v4670, %v1317
        %v4687 = vadd.f32 %v4683, %v1327
        %v4688 = vadd.f32 %v4684, %v1327
        %v4689 = vadd.f32 %v4685, %v1327
        %v4690 = vadd.f32 %v4686, %v1327
        %v4691 = vmax.f32 %v4687, 0.0
        %v4692 = vmax.f32 %v4688, 0.0
        %v4693 = vmax.f32 %v4689, 0.0
        %v4694 = vmax.f32 %v4690, 0.0
        %v4695 = vmax.f32 %v4679, %v4691
        %v4696 = vmax.f32 %v4680, %v4692
        %v4697 = vmax.f32 %v4681, %v4693
        %v4698 = vmax.f32 %v4682, %v4694
        %v4700 = vsel %vm1360, %v4698, 0
        %4702 = vmatprep.subr.mxu0 0.0
        %4703 = vmatpush1.msra.mxu0 0.0
        %4704 = vmatprep.subr.mxu0 0.0
        %4705 = vmatpush1.msra.mxu0 0.0
        %4706 = vmatprep.subr.mxu0 0.0
        %4707 = vmatpush1.msra.mxu0 0.0
        %4708 = vmatprep.subr.mxu0 0.0
        %4709 = vmatpush1.msra.mxu0 0.0
        %4710 = vmatprep.subr.mxu0 0.0
        %4711 = vmatpush1.msra.mxu0 0.0
        %4712 = vmatprep.subr.mxu0 0.0
        %4713 = vmatpush1.msra.mxu0 0.0
        %4714 = vmatprep.subr.mxu0 0.0
        %4715 = vmatpush1.msra.mxu0 0.0
        %4716 = vmatprep.subr.mxu0 0.0
        %4717 = vmatpush1.msra.mxu0 0.0
        %4718 = vmatprep.subr.mxu0 0.0
        %4719 = vmatpush1.msra.mxu0 0.0
        %4720 = vmatprep.subr.mxu0 0.0
        %4721 = vmatpush1.msra.mxu0 0.0
        %4722 = vmatprep.subr.mxu0 0.0
        %4723 = vmatpush1.msra.mxu0 0.0
        %4724 = vmatprep.subr.mxu0 0.0
        %4725 = vmatpush1.msra.mxu0 0.0
        %4726 = vmatprep.subr.mxu0 0.0
        %4727 = vmatpush1.msra.mxu0 %v4700
        %4728 = vmatprep.subr.mxu0 0.0
        %4729 = vmatpush1.msra.mxu0 %v4697
        %4730 = vmatprep.subr.mxu0 0.0
        %4731 = vmatpush1.msra.mxu0 %v4696
        %4732 = vmatprep.subr.mxu0 0.0
        %4733 = vmatpush1.msra.mxu0 %v4695
        %4734 = vmatprep.subr.mxu0 0.0
        %4735 = vmatpush2.msra.mxu0 0.0
        %4736 = vmatprep.subr.mxu0 0.0
        %4737 = vmatpush2.msra.mxu0 0.0
        %4738 = vmatprep.subr.mxu0 0.0
        %4739 = vmatpush2.msra.mxu0 0.0
        %4740 = vmatprep.subr.mxu0 0.0
        %4741 = vmatpush2.msra.mxu0 0.0
        %4742 = vmatprep.subr.mxu0 0.0
        %4743 = vmatpush2.msra.mxu0 0.0
        %4744 = vmatprep.subr.mxu0 0.0
        %4745 = vmatpush2.msra.mxu0 0.0
        %4746 = vmatprep.subr.mxu0 0.0
        %4747 = vmatpush2.msra.mxu0 0.0
        %4748 = vmatprep.subr.mxu0 0.0
        %4749 = vmatpush2.msra.mxu0 0.0
        %4750 = vmatprep.subr.mxu0 0.0
        %4751 = vmatpush2.msra.mxu0 0.0
        %4752 = vmatprep.subr.mxu0 0.0
        %4753 = vmatpush2.msra.mxu0 0.0
        %4754 = vmatprep.subr.mxu0 0.0
        %4755 = vmatpush2.msra.mxu0 0.0
        %4756 = vmatprep.subr.mxu0 0.0
        %4757 = vmatpush2.msra.mxu0 0.0
        %4758 = vmatprep.subr.mxu0 0.0
        %4759 = vmatpush2.msra.mxu0 0.0
        %4760 = vmatprep.subr.mxu0 0.0
        %4761 = vmatpush2.msra.mxu0 0.0
        %4762 = vmatprep.subr.mxu0 0.0
        %4763 = vmatpush2.msra.mxu0 0.0
        %4764 = vmatprep.subr.mxu0 0.0
        %4765 = vmatpush2.msra.mxu0 0.0
        %4766 = vmatprep.mubr.f32.mxu0 0.0
        %4767 = vmatmul.mubr.f32.gmra.mxu0 %v1355
        %v4768 = vpop.f32.mrf.mxu0
        %v4769 = vadd.f32 0.0, %v4768
        %v4770 = vpop.f32.mrf.mxu0
        %4771 = vmatprep.mubr.f32.mxu0 0.0
        %4772 = vmatmul.mubr.f32.gmra.mxu0 %v1358
        %v4773 = vpop.f32.mrf.mxu0
        %v4774 = vadd.f32 0.0, %v4773
        %v4775 = vpop.f32.mrf.mxu0
        %4776 = vdwg.mxu0
        %4777 = vmatprep.subr.mxu0 0.0
        %4778 = vmatpush1.msra.mxu0 0.0
        %4779 = vmatprep.subr.mxu0 0.0
        %4780 = vmatpush1.msra.mxu0 0.0
        %4781 = vmatprep.subr.mxu0 0.0
        %4782 = vmatpush1.msra.mxu0 0.0
        %4783 = vmatprep.subr.mxu0 0.0
        %4784 = vmatpush1.msra.mxu0 0.0
        %4785 = vmatprep.subr.mxu0 0.0
        %4786 = vmatpush1.msra.mxu0 0.0
        %4787 = vmatprep.subr.mxu0 0.0
        %4788 = vmatpush1.msra.mxu0 0.0
        %4789 = vmatprep.subr.mxu0 0.0
        %4790 = vmatpush1.msra.mxu0 0.0
        %4791 = vmatprep.subr.mxu0 0.0
        %4792 = vmatpush1.msra.mxu0 0.0
        %4793 = vmatprep.subr.mxu0 0.0
        %4794 = vmatpush1.msra.mxu0 0.0
        %4795 = vmatprep.subr.mxu0 0.0
        %4796 = vmatpush1.msra.mxu0 0.0
        %4797 = vmatprep.subr.mxu0 0.0
        %4798 = vmatpush1.msra.mxu0 0.0
        %4799 = vmatprep.subr.mxu0 0.0
        %4800 = vmatpush1.msra.mxu0 0.0
        %4801 = vmatprep.subr.mxu0 0.0
        %4802 = vmatpush1.msra.mxu0 %v4700
        %4803 = vmatprep.subr.mxu0 0.0
        %4804 = vmatpush1.msra.mxu0 %v4697
        %4805 = vmatprep.subr.mxu0 0.0
        %4806 = vmatpush1.msra.mxu0 %v4696
        %4807 = vmatprep.subr.mxu0 0.0
        %4808 = vmatpush1.msra.mxu0 %v4695
        %4809 = vmatprep.subr.mxu0 0.0
        %4810 = vmatpush2.msra.mxu0 0.0
        %4811 = vmatprep.subr.mxu0 0.0
        %4812 = vmatpush2.msra.mxu0 0.0
        %4813 = vmatprep.subr.mxu0 0.0
        %4814 = vmatpush2.msra.mxu0 0.0
        %4815 = vmatprep.subr.mxu0 0.0
        %4816 = vmatpush2.msra.mxu0 0.0
        %4817 = vmatprep.subr.mxu0 0.0
        %4818 = vmatpush2.msra.mxu0 0.0
        %4819 = vmatprep.subr.mxu0 0.0
        %4820 = vmatpush2.msra.mxu0 0.0
        %4821 = vmatprep.subr.mxu0 0.0
        %4822 = vmatpush2.msra.mxu0 0.0
        %4823 = vmatprep.subr.mxu0 0.0
        %4824 = vmatpush2.msra.mxu0 0.0
        %4825 = vmatprep.subr.mxu0 0.0
        %4826 = vmatpush2.msra.mxu0 0.0
        %4827 = vmatprep.subr.mxu0 0.0
        %4828 = vmatpush2.msra.mxu0 0.0
        %4829 = vmatprep.subr.mxu0 0.0
        %4830 = vmatpush2.msra.mxu0 0.0
        %4831 = vmatprep.subr.mxu0 0.0
        %4832 = vmatpush2.msra.mxu0 0.0
        %4833 = vmatprep.subr.mxu0 0.0
        %4834 = vmatpush2.msra.mxu0 0.0
        %4835 = vmatprep.subr.mxu0 0.0
        %4836 = vmatpush2.msra.mxu0 0.0
        %4837 = vmatprep.subr.mxu0 0.0
        %4838 = vmatpush2.msra.mxu0 0.0
        %4839 = vmatprep.subr.mxu0 0.0
        %4840 = vmatpush2.msra.mxu0 0.0
        %4841 = vmatprep.mubr.f32.mxu0 0.0
        %4842 = vmatmul.mubr.f32.gmra.mxu0 %v1440
        %v4843 = vpop.f32.mrf.mxu0
        %v4844 = vadd.f32 0.0, %v4843
        %v4845 = vpop.f32.mrf.mxu0
        %4846 = vmatprep.mubr.f32.mxu0 0.0
        %4847 = vmatmul.mubr.f32.gmra.mxu0 %v1443
        %v4848 = vpop.f32.mrf.mxu0
        %v4849 = vadd.f32 0.0, %v4848
        %v4850 = vpop.f32.mrf.mxu0
        %4851 = vdwg.mxu0
        %v4852 = vmax.f32 %v4769, %v4844
        %v4853 = vmax.f32 %v4774, %v4849
        %s4854 = scalar_lea.vmem %s5, 272
        %4855 = vst.msk [vmem:[%s4854] sm:$0xff] %vm1220, %v4852
        %4856 = vst.msk [vmem:[%s4854 + $0x8] sm:$0x1f] %vm1523, %v4853
        %s4857 = scalar_lea.vmem [#allocation2], 1152
        %v4858 = vld [vmem:[%s4857] sm:$0xff]
        %v4859 = vld [vmem:[%s4857 + $0x8] sm:$0xff]
        %v4860 = vld [vmem:[%s4857 + $0x10] sm:$0xff]
        %v4861 = vld [vmem:[%s4857 + $0x18] sm:$0x3]
        %s4862 = scalar_lea.vmem [#allocation2], 1184
        %v4863 = vld [vmem:[%s4862] sm:$0xff]
        %v4864 = vld [vmem:[%s4862 + $0x8] sm:$0xff]
        %v4865 = vld [vmem:[%s4862 + $0x10] sm:$0xff]
        %v4866 = vld [vmem:[%s4862 + $0x18] sm:$0x3]
        %v4867 = vmul.f32 %v4858, %v1317
        %v4868 = vmul.f32 %v4859, %v1317
        %v4869 = vmul.f32 %v4860, %v1317
        %v4870 = vmul.f32 %v4861, %v1317
        %v4871 = vadd.f32 %v4867, %v1327
        %v4872 = vadd.f32 %v4868, %v1327
        %v4873 = vadd.f32 %v4869, %v1327
        %v4874 = vadd.f32 %v4870, %v1327
        %v4875 = vmax.f32 %v4871, 0.0
        %v4876 = vmax.f32 %v4872, 0.0
        %v4877 = vmax.f32 %v4873, 0.0
        %v4878 = vmax.f32 %v4874, 0.0
        %v4879 = vmul.f32 %v4863, %v1317
        %v4880 = vmul.f32 %v4864, %v1317
        %v4881 = vmul.f32 %v4865, %v1317
        %v4882 = vmul.f32 %v4866, %v1317
        %v4883 = vadd.f32 %v4879, %v1327
        %v4884 = vadd.f32 %v4880, %v1327
        %v4885 = vadd.f32 %v4881, %v1327
        %v4886 = vadd.f32 %v4882, %v1327
        %v4887 = vmax.f32 %v4883, 0.0
        %v4888 = vmax.f32 %v4884, 0.0
        %v4889 = vmax.f32 %v4885, 0.0
        %v4890 = vmax.f32 %v4886, 0.0
        %v4891 = vmax.f32 %v4875, %v4887
        %v4892 = vmax.f32 %v4876, %v4888
        %v4893 = vmax.f32 %v4877, %v4889
        %v4894 = vmax.f32 %v4878, %v4890
        %v4896 = vsel %vm1360, %v4894, 0
        %4898 = vmatprep.subr.mxu0 0.0
        %4899 = vmatpush1.msra.mxu0 0.0
        %4900 = vmatprep.subr.mxu0 0.0
        %4901 = vmatpush1.msra.mxu0 0.0
        %4902 = vmatprep.subr.mxu0 0.0
        %4903 = vmatpush1.msra.mxu0 0.0
        %4904 = vmatprep.subr.mxu0 0.0
        %4905 = vmatpush1.msra.mxu0 0.0
        %4906 = vmatprep.subr.mxu0 0.0
        %4907 = vmatpush1.msra.mxu0 0.0
        %4908 = vmatprep.subr.mxu0 0.0
        %4909 = vmatpush1.msra.mxu0 0.0
        %4910 = vmatprep.subr.mxu0 0.0
        %4911 = vmatpush1.msra.mxu0 0.0
        %4912 = vmatprep.subr.mxu0 0.0
        %4913 = vmatpush1.msra.mxu0 0.0
        %4914 = vmatprep.subr.mxu0 0.0
        %4915 = vmatpush1.msra.mxu0 0.0
        %4916 = vmatprep.subr.mxu0 0.0
        %4917 = vmatpush1.msra.mxu0 0.0
        %4918 = vmatprep.subr.mxu0 0.0
        %4919 = vmatpush1.msra.mxu0 0.0
        %4920 = vmatprep.subr.mxu0 0.0
        %4921 = vmatpush1.msra.mxu0 0.0
        %4922 = vmatprep.subr.mxu0 0.0
        %4923 = vmatpush1.msra.mxu0 %v4896
        %4924 = vmatprep.subr.mxu0 0.0
        %4925 = vmatpush1.msra.mxu0 %v4893
        %4926 = vmatprep.subr.mxu0 0.0
        %4927 = vmatpush1.msra.mxu0 %v4892
        %4928 = vmatprep.subr.mxu0 0.0
        %4929 = vmatpush1.msra.mxu0 %v4891
        %4930 = vmatprep.subr.mxu0 0.0
        %4931 = vmatpush2.msra.mxu0 0.0
        %4932 = vmatprep.subr.mxu0 0.0
        %4933 = vmatpush2.msra.mxu0 0.0
        %4934 = vmatprep.subr.mxu0 0.0
        %4935 = vmatpush2.msra.mxu0 0.0
        %4936 = vmatprep.subr.mxu0 0.0
        %4937 = vmatpush2.msra.mxu0 0.0
        %4938 = vmatprep.subr.mxu0 0.0
        %4939 = vmatpush2.msra.mxu0 0.0
        %4940 = vmatprep.subr.mxu0 0.0
        %4941 = vmatpush2.msra.mxu0 0.0
        %4942 = vmatprep.subr.mxu0 0.0
        %4943 = vmatpush2.msra.mxu0 0.0
        %4944 = vmatprep.subr.mxu0 0.0
        %4945 = vmatpush2.msra.mxu0 0.0
        %4946 = vmatprep.subr.mxu0 0.0
        %4947 = vmatpush2.msra.mxu0 0.0
        %4948 = vmatprep.subr.mxu0 0.0
        %4949 = vmatpush2.msra.mxu0 0.0
        %4950 = vmatprep.subr.mxu0 0.0
        %4951 = vmatpush2.msra.mxu0 0.0
        %4952 = vmatprep.subr.mxu0 0.0
        %4953 = vmatpush2.msra.mxu0 0.0
        %4954 = vmatprep.subr.mxu0 0.0
        %4955 = vmatpush2.msra.mxu0 0.0
        %4956 = vmatprep.subr.mxu0 0.0
        %4957 = vmatpush2.msra.mxu0 0.0
        %4958 = vmatprep.subr.mxu0 0.0
        %4959 = vmatpush2.msra.mxu0 0.0
        %4960 = vmatprep.subr.mxu0 0.0
        %4961 = vmatpush2.msra.mxu0 0.0
        %4962 = vmatprep.mubr.f32.mxu0 0.0
        %4963 = vmatmul.mubr.f32.gmra.mxu0 %v1355
        %v4964 = vpop.f32.mrf.mxu0
        %v4965 = vadd.f32 0.0, %v4964
        %v4966 = vpop.f32.mrf.mxu0
        %4967 = vmatprep.mubr.f32.mxu0 0.0
        %4968 = vmatmul.mubr.f32.gmra.mxu0 %v1358
        %v4969 = vpop.f32.mrf.mxu0
        %v4970 = vadd.f32 0.0, %v4969
        %v4971 = vpop.f32.mrf.mxu0
        %4972 = vdwg.mxu0
        %4973 = vmatprep.subr.mxu0 0.0
        %4974 = vmatpush1.msra.mxu0 0.0
        %4975 = vmatprep.subr.mxu0 0.0
        %4976 = vmatpush1.msra.mxu0 0.0
        %4977 = vmatprep.subr.mxu0 0.0
        %4978 = vmatpush1.msra.mxu0 0.0
        %4979 = vmatprep.subr.mxu0 0.0
        %4980 = vmatpush1.msra.mxu0 0.0
        %4981 = vmatprep.subr.mxu0 0.0
        %4982 = vmatpush1.msra.mxu0 0.0
        %4983 = vmatprep.subr.mxu0 0.0
        %4984 = vmatpush1.msra.mxu0 0.0
        %4985 = vmatprep.subr.mxu0 0.0
        %4986 = vmatpush1.msra.mxu0 0.0
        %4987 = vmatprep.subr.mxu0 0.0
        %4988 = vmatpush1.msra.mxu0 0.0
        %4989 = vmatprep.subr.mxu0 0.0
        %4990 = vmatpush1.msra.mxu0 0.0
        %4991 = vmatprep.subr.mxu0 0.0
        %4992 = vmatpush1.msra.mxu0 0.0
        %4993 = vmatprep.subr.mxu0 0.0
        %4994 = vmatpush1.msra.mxu0 0.0
        %4995 = vmatprep.subr.mxu0 0.0
        %4996 = vmatpush1.msra.mxu0 0.0
        %4997 = vmatprep.subr.mxu0 0.0
        %4998 = vmatpush1.msra.mxu0 %v4896
        %4999 = vmatprep.subr.mxu0 0.0
        %5000 = vmatpush1.msra.mxu0 %v4893
        %5001 = vmatprep.subr.mxu0 0.0
        %5002 = vmatpush1.msra.mxu0 %v4892
        %5003 = vmatprep.subr.mxu0 0.0
        %5004 = vmatpush1.msra.mxu0 %v4891
        %5005 = vmatprep.subr.mxu0 0.0
        %5006 = vmatpush2.msra.mxu0 0.0
        %5007 = vmatprep.subr.mxu0 0.0
        %5008 = vmatpush2.msra.mxu0 0.0
        %5009 = vmatprep.subr.mxu0 0.0
        %5010 = vmatpush2.msra.mxu0 0.0
        %5011 = vmatprep.subr.mxu0 0.0
        %5012 = vmatpush2.msra.mxu0 0.0
        %5013 = vmatprep.subr.mxu0 0.0
        %5014 = vmatpush2.msra.mxu0 0.0
        %5015 = vmatprep.subr.mxu0 0.0
        %5016 = vmatpush2.msra.mxu0 0.0
        %5017 = vmatprep.subr.mxu0 0.0
        %5018 = vmatpush2.msra.mxu0 0.0
        %5019 = vmatprep.subr.mxu0 0.0
        %5020 = vmatpush2.msra.mxu0 0.0
        %5021 = vmatprep.subr.mxu0 0.0
        %5022 = vmatpush2.msra.mxu0 0.0
        %5023 = vmatprep.subr.mxu0 0.0
        %5024 = vmatpush2.msra.mxu0 0.0
        %5025 = vmatprep.subr.mxu0 0.0
        %5026 = vmatpush2.msra.mxu0 0.0
        %5027 = vmatprep.subr.mxu0 0.0
        %5028 = vmatpush2.msra.mxu0 0.0
        %5029 = vmatprep.subr.mxu0 0.0
        %5030 = vmatpush2.msra.mxu0 0.0
        %5031 = vmatprep.subr.mxu0 0.0
        %5032 = vmatpush2.msra.mxu0 0.0
        %5033 = vmatprep.subr.mxu0 0.0
        %5034 = vmatpush2.msra.mxu0 0.0
        %5035 = vmatprep.subr.mxu0 0.0
        %5036 = vmatpush2.msra.mxu0 0.0
        %5037 = vmatprep.mubr.f32.mxu0 0.0
        %5038 = vmatmul.mubr.f32.gmra.mxu0 %v1440
        %v5039 = vpop.f32.mrf.mxu0
        %v5040 = vadd.f32 0.0, %v5039
        %v5041 = vpop.f32.mrf.mxu0
        %5042 = vmatprep.mubr.f32.mxu0 0.0
        %5043 = vmatmul.mubr.f32.gmra.mxu0 %v1443
        %v5044 = vpop.f32.mrf.mxu0
        %v5045 = vadd.f32 0.0, %v5044
        %v5046 = vpop.f32.mrf.mxu0
        %5047 = vdwg.mxu0
        %v5048 = vmax.f32 %v4965, %v5040
        %v5049 = vmax.f32 %v4970, %v5045
        %s5050 = scalar_lea.vmem %s5, 288
        %5051 = vst.msk [vmem:[%s5050] sm:$0xff] %vm1220, %v5048
        %5052 = vst.msk [vmem:[%s5050 + $0x8] sm:$0x1f] %vm1523, %v5049
        %s5053 = scalar_lea.vmem [#allocation2], 1216
        %v5054 = vld [vmem:[%s5053] sm:$0xff]
        %v5055 = vld [vmem:[%s5053 + $0x8] sm:$0xff]
        %v5056 = vld [vmem:[%s5053 + $0x10] sm:$0xff]
        %v5057 = vld [vmem:[%s5053 + $0x18] sm:$0x3]
        %s5058 = scalar_lea.vmem [#allocation2], 1248
        %v5059 = vld [vmem:[%s5058] sm:$0xff]
        %v5060 = vld [vmem:[%s5058 + $0x8] sm:$0xff]
        %v5061 = vld [vmem:[%s5058 + $0x10] sm:$0xff]
        %v5062 = vld [vmem:[%s5058 + $0x18] sm:$0x3]
        %v5063 = vmul.f32 %v5054, %v1317
        %v5064 = vmul.f32 %v5055, %v1317
        %v5065 = vmul.f32 %v5056, %v1317
        %v5066 = vmul.f32 %v5057, %v1317
        %v5067 = vadd.f32 %v5063, %v1327
        %v5068 = vadd.f32 %v5064, %v1327
        %v5069 = vadd.f32 %v5065, %v1327
        %v5070 = vadd.f32 %v5066, %v1327
        %v5071 = vmax.f32 %v5067, 0.0
        %v5072 = vmax.f32 %v5068, 0.0
        %v5073 = vmax.f32 %v5069, 0.0
        %v5074 = vmax.f32 %v5070, 0.0
        %v5075 = vmul.f32 %v5059, %v1317
        %v5076 = vmul.f32 %v5060, %v1317
        %v5077 = vmul.f32 %v5061, %v1317
        %v5078 = vmul.f32 %v5062, %v1317
        %v5079 = vadd.f32 %v5075, %v1327
        %v5080 = vadd.f32 %v5076, %v1327
        %v5081 = vadd.f32 %v5077, %v1327
        %v5082 = vadd.f32 %v5078, %v1327
        %v5083 = vmax.f32 %v5079, 0.0
        %v5084 = vmax.f32 %v5080, 0.0
        %v5085 = vmax.f32 %v5081, 0.0
        %v5086 = vmax.f32 %v5082, 0.0
        %v5087 = vmax.f32 %v5071, %v5083
        %v5088 = vmax.f32 %v5072, %v5084
        %v5089 = vmax.f32 %v5073, %v5085
        %v5090 = vmax.f32 %v5074, %v5086
        %v5092 = vsel %vm1360, %v5090, 0
        %5094 = vmatprep.subr.mxu0 0.0
        %5095 = vmatpush1.msra.mxu0 0.0
        %5096 = vmatprep.subr.mxu0 0.0
        %5097 = vmatpush1.msra.mxu0 0.0
        %5098 = vmatprep.subr.mxu0 0.0
        %5099 = vmatpush1.msra.mxu0 0.0
        %5100 = vmatprep.subr.mxu0 0.0
        %5101 = vmatpush1.msra.mxu0 0.0
        %5102 = vmatprep.subr.mxu0 0.0
        %5103 = vmatpush1.msra.mxu0 0.0
        %5104 = vmatprep.subr.mxu0 0.0
        %5105 = vmatpush1.msra.mxu0 0.0
        %5106 = vmatprep.subr.mxu0 0.0
        %5107 = vmatpush1.msra.mxu0 0.0
        %5108 = vmatprep.subr.mxu0 0.0
        %5109 = vmatpush1.msra.mxu0 0.0
        %5110 = vmatprep.subr.mxu0 0.0
        %5111 = vmatpush1.msra.mxu0 0.0
        %5112 = vmatprep.subr.mxu0 0.0
        %5113 = vmatpush1.msra.mxu0 0.0
        %5114 = vmatprep.subr.mxu0 0.0
        %5115 = vmatpush1.msra.mxu0 0.0
        %5116 = vmatprep.subr.mxu0 0.0
        %5117 = vmatpush1.msra.mxu0 0.0
        %5118 = vmatprep.subr.mxu0 0.0
        %5119 = vmatpush1.msra.mxu0 %v5092
        %5120 = vmatprep.subr.mxu0 0.0
        %5121 = vmatpush1.msra.mxu0 %v5089
        %5122 = vmatprep.subr.mxu0 0.0
        %5123 = vmatpush1.msra.mxu0 %v5088
        %5124 = vmatprep.subr.mxu0 0.0
        %5125 = vmatpush1.msra.mxu0 %v5087
        %5126 = vmatprep.subr.mxu0 0.0
        %5127 = vmatpush2.msra.mxu0 0.0
        %5128 = vmatprep.subr.mxu0 0.0
        %5129 = vmatpush2.msra.mxu0 0.0
        %5130 = vmatprep.subr.mxu0 0.0
        %5131 = vmatpush2.msra.mxu0 0.0
        %5132 = vmatprep.subr.mxu0 0.0
        %5133 = vmatpush2.msra.mxu0 0.0
        %5134 = vmatprep.subr.mxu0 0.0
        %5135 = vmatpush2.msra.mxu0 0.0
        %5136 = vmatprep.subr.mxu0 0.0
        %5137 = vmatpush2.msra.mxu0 0.0
        %5138 = vmatprep.subr.mxu0 0.0
        %5139 = vmatpush2.msra.mxu0 0.0
        %5140 = vmatprep.subr.mxu0 0.0
        %5141 = vmatpush2.msra.mxu0 0.0
        %5142 = vmatprep.subr.mxu0 0.0
        %5143 = vmatpush2.msra.mxu0 0.0
        %5144 = vmatprep.subr.mxu0 0.0
        %5145 = vmatpush2.msra.mxu0 0.0
        %5146 = vmatprep.subr.mxu0 0.0
        %5147 = vmatpush2.msra.mxu0 0.0
        %5148 = vmatprep.subr.mxu0 0.0
        %5149 = vmatpush2.msra.mxu0 0.0
        %5150 = vmatprep.subr.mxu0 0.0
        %5151 = vmatpush2.msra.mxu0 0.0
        %5152 = vmatprep.subr.mxu0 0.0
        %5153 = vmatpush2.msra.mxu0 0.0
        %5154 = vmatprep.subr.mxu0 0.0
        %5155 = vmatpush2.msra.mxu0 0.0
        %5156 = vmatprep.subr.mxu0 0.0
        %5157 = vmatpush2.msra.mxu0 0.0
        %5158 = vmatprep.mubr.f32.mxu0 0.0
        %5159 = vmatmul.mubr.f32.gmra.mxu0 %v1355
        %v5160 = vpop.f32.mrf.mxu0
        %v5161 = vadd.f32 0.0, %v5160
        %v5162 = vpop.f32.mrf.mxu0
        %5163 = vmatprep.mubr.f32.mxu0 0.0
        %5164 = vmatmul.mubr.f32.gmra.mxu0 %v1358
        %v5165 = vpop.f32.mrf.mxu0
        %v5166 = vadd.f32 0.0, %v5165
        %v5167 = vpop.f32.mrf.mxu0
        %5168 = vdwg.mxu0
        %5169 = vmatprep.subr.mxu0 0.0
        %5170 = vmatpush1.msra.mxu0 0.0
        %5171 = vmatprep.subr.mxu0 0.0
        %5172 = vmatpush1.msra.mxu0 0.0
        %5173 = vmatprep.subr.mxu0 0.0
        %5174 = vmatpush1.msra.mxu0 0.0
        %5175 = vmatprep.subr.mxu0 0.0
        %5176 = vmatpush1.msra.mxu0 0.0
        %5177 = vmatprep.subr.mxu0 0.0
        %5178 = vmatpush1.msra.mxu0 0.0
        %5179 = vmatprep.subr.mxu0 0.0
        %5180 = vmatpush1.msra.mxu0 0.0
        %5181 = vmatprep.subr.mxu0 0.0
        %5182 = vmatpush1.msra.mxu0 0.0
        %5183 = vmatprep.subr.mxu0 0.0
        %5184 = vmatpush1.msra.mxu0 0.0
        %5185 = vmatprep.subr.mxu0 0.0
        %5186 = vmatpush1.msra.mxu0 0.0
        %5187 = vmatprep.subr.mxu0 0.0
        %5188 = vmatpush1.msra.mxu0 0.0
        %5189 = vmatprep.subr.mxu0 0.0
        %5190 = vmatpush1.msra.mxu0 0.0
        %5191 = vmatprep.subr.mxu0 0.0
        %5192 = vmatpush1.msra.mxu0 0.0
        %5193 = vmatprep.subr.mxu0 0.0
        %5194 = vmatpush1.msra.mxu0 %v5092
        %5195 = vmatprep.subr.mxu0 0.0
        %5196 = vmatpush1.msra.mxu0 %v5089
        %5197 = vmatprep.subr.mxu0 0.0
        %5198 = vmatpush1.msra.mxu0 %v5088
        %5199 = vmatprep.subr.mxu0 0.0
        %5200 = vmatpush1.msra.mxu0 %v5087
        %5201 = vmatprep.subr.mxu0 0.0
        %5202 = vmatpush2.msra.mxu0 0.0
        %5203 = vmatprep.subr.mxu0 0.0
        %5204 = vmatpush2.msra.mxu0 0.0
        %5205 = vmatprep.subr.mxu0 0.0
        %5206 = vmatpush2.msra.mxu0 0.0
        %5207 = vmatprep.subr.mxu0 0.0
        %5208 = vmatpush2.msra.mxu0 0.0
        %5209 = vmatprep.subr.mxu0 0.0
        %5210 = vmatpush2.msra.mxu0 0.0
        %5211 = vmatprep.subr.mxu0 0.0
        %5212 = vmatpush2.msra.mxu0 0.0
        %5213 = vmatprep.subr.mxu0 0.0
        %5214 = vmatpush2.msra.mxu0 0.0
        %5215 = vmatprep.subr.mxu0 0.0
        %5216 = vmatpush2.msra.mxu0 0.0
        %5217 = vmatprep.subr.mxu0 0.0
        %5218 = vmatpush2.msra.mxu0 0.0
        %5219 = vmatprep.subr.mxu0 0.0
        %5220 = vmatpush2.msra.mxu0 0.0
        %5221 = vmatprep.subr.mxu0 0.0
        %5222 = vmatpush2.msra.mxu0 0.0
        %5223 = vmatprep.subr.mxu0 0.0
        %5224 = vmatpush2.msra.mxu0 0.0
        %5225 = vmatprep.subr.mxu0 0.0
        %5226 = vmatpush2.msra.mxu0 0.0
        %5227 = vmatprep.subr.mxu0 0.0
        %5228 = vmatpush2.msra.mxu0 0.0
        %5229 = vmatprep.subr.mxu0 0.0
        %5230 = vmatpush2.msra.mxu0 0.0
        %5231 = vmatprep.subr.mxu0 0.0
        %5232 = vmatpush2.msra.mxu0 0.0
        %5233 = vmatprep.mubr.f32.mxu0 0.0
        %5234 = vmatmul.mubr.f32.gmra.mxu0 %v1440
        %v5235 = vpop.f32.mrf.mxu0
        %v5236 = vadd.f32 0.0, %v5235
        %v5237 = vpop.f32.mrf.mxu0
        %5238 = vmatprep.mubr.f32.mxu0 0.0
        %5239 = vmatmul.mubr.f32.gmra.mxu0 %v1443
        %v5240 = vpop.f32.mrf.mxu0
        %v5241 = vadd.f32 0.0, %v5240
        %v5242 = vpop.f32.mrf.mxu0
        %5243 = vdwg.mxu0
        %v5244 = vmax.f32 %v5161, %v5236
        %v5245 = vmax.f32 %v5166, %v5241
        %s5246 = scalar_lea.vmem %s5, 304
        %5247 = vst.msk [vmem:[%s5246] sm:$0xff] %vm1220, %v5244
        %5248 = vst.msk [vmem:[%s5246 + $0x8] sm:$0x1f] %vm1523, %v5245
        %s5249 = scalar_lea.vmem [#allocation2], 1280
        %v5250 = vld [vmem:[%s5249] sm:$0xff]
        %v5251 = vld [vmem:[%s5249 + $0x8] sm:$0xff]
        %v5252 = vld [vmem:[%s5249 + $0x10] sm:$0xff]
        %v5253 = vld [vmem:[%s5249 + $0x18] sm:$0x3]
        %s5254 = scalar_lea.vmem [#allocation2], 1312
        %v5255 = vld [vmem:[%s5254] sm:$0xff]
        %v5256 = vld [vmem:[%s5254 + $0x8] sm:$0xff]
        %v5257 = vld [vmem:[%s5254 + $0x10] sm:$0xff]
        %v5258 = vld [vmem:[%s5254 + $0x18] sm:$0x3]
        %v5259 = vmul.f32 %v5250, %v1317
        %v5260 = vmul.f32 %v5251, %v1317
        %v5261 = vmul.f32 %v5252, %v1317
        %v5262 = vmul.f32 %v5253, %v1317
        %v5263 = vadd.f32 %v5259, %v1327
        %v5264 = vadd.f32 %v5260, %v1327
        %v5265 = vadd.f32 %v5261, %v1327
        %v5266 = vadd.f32 %v5262, %v1327
        %v5267 = vmax.f32 %v5263, 0.0
        %v5268 = vmax.f32 %v5264, 0.0
        %v5269 = vmax.f32 %v5265, 0.0
        %v5270 = vmax.f32 %v5266, 0.0
        %v5271 = vmul.f32 %v5255, %v1317
        %v5272 = vmul.f32 %v5256, %v1317
        %v5273 = vmul.f32 %v5257, %v1317
        %v5274 = vmul.f32 %v5258, %v1317
        %v5275 = vadd.f32 %v5271, %v1327
        %v5276 = vadd.f32 %v5272, %v1327
        %v5277 = vadd.f32 %v5273, %v1327
        %v5278 = vadd.f32 %v5274, %v1327
        %v5279 = vmax.f32 %v5275, 0.0
        %v5280 = vmax.f32 %v5276, 0.0
        %v5281 = vmax.f32 %v5277, 0.0
        %v5282 = vmax.f32 %v5278, 0.0
        %v5283 = vmax.f32 %v5267, %v5279
        %v5284 = vmax.f32 %v5268, %v5280
        %v5285 = vmax.f32 %v5269, %v5281
        %v5286 = vmax.f32 %v5270, %v5282
        %v5288 = vsel %vm1360, %v5286, 0
        %5290 = vmatprep.subr.mxu0 0.0
        %5291 = vmatpush1.msra.mxu0 0.0
        %5292 = vmatprep.subr.mxu0 0.0
        %5293 = vmatpush1.msra.mxu0 0.0
        %5294 = vmatprep.subr.mxu0 0.0
        %5295 = vmatpush1.msra.mxu0 0.0
        %5296 = vmatprep.subr.mxu0 0.0
        %5297 = vmatpush1.msra.mxu0 0.0
        %5298 = vmatprep.subr.mxu0 0.0
        %5299 = vmatpush1.msra.mxu0 0.0
        %5300 = vmatprep.subr.mxu0 0.0
        %5301 = vmatpush1.msra.mxu0 0.0
        %5302 = vmatprep.subr.mxu0 0.0
        %5303 = vmatpush1.msra.mxu0 0.0
        %5304 = vmatprep.subr.mxu0 0.0
        %5305 = vmatpush1.msra.mxu0 0.0
        %5306 = vmatprep.subr.mxu0 0.0
        %5307 = vmatpush1.msra.mxu0 0.0
        %5308 = vmatprep.subr.mxu0 0.0
        %5309 = vmatpush1.msra.mxu0 0.0
        %5310 = vmatprep.subr.mxu0 0.0
        %5311 = vmatpush1.msra.mxu0 0.0
        %5312 = vmatprep.subr.mxu0 0.0
        %5313 = vmatpush1.msra.mxu0 0.0
        %5314 = vmatprep.subr.mxu0 0.0
        %5315 = vmatpush1.msra.mxu0 %v5288
        %5316 = vmatprep.subr.mxu0 0.0
        %5317 = vmatpush1.msra.mxu0 %v5285
        %5318 = vmatprep.subr.mxu0 0.0
        %5319 = vmatpush1.msra.mxu0 %v5284
        %5320 = vmatprep.subr.mxu0 0.0
        %5321 = vmatpush1.msra.mxu0 %v5283
        %5322 = vmatprep.subr.mxu0 0.0
        %5323 = vmatpush2.msra.mxu0 0.0
        %5324 = vmatprep.subr.mxu0 0.0
        %5325 = vmatpush2.msra.mxu0 0.0
        %5326 = vmatprep.subr.mxu0 0.0
        %5327 = vmatpush2.msra.mxu0 0.0
        %5328 = vmatprep.subr.mxu0 0.0
        %5329 = vmatpush2.msra.mxu0 0.0
        %5330 = vmatprep.subr.mxu0 0.0
        %5331 = vmatpush2.msra.mxu0 0.0
        %5332 = vmatprep.subr.mxu0 0.0
        %5333 = vmatpush2.msra.mxu0 0.0
        %5334 = vmatprep.subr.mxu0 0.0
        %5335 = vmatpush2.msra.mxu0 0.0
        %5336 = vmatprep.subr.mxu0 0.0
        %5337 = vmatpush2.msra.mxu0 0.0
        %5338 = vmatprep.subr.mxu0 0.0
        %5339 = vmatpush2.msra.mxu0 0.0
        %5340 = vmatprep.subr.mxu0 0.0
        %5341 = vmatpush2.msra.mxu0 0.0
        %5342 = vmatprep.subr.mxu0 0.0
        %5343 = vmatpush2.msra.mxu0 0.0
        %5344 = vmatprep.subr.mxu0 0.0
        %5345 = vmatpush2.msra.mxu0 0.0
        %5346 = vmatprep.subr.mxu0 0.0
        %5347 = vmatpush2.msra.mxu0 0.0
        %5348 = vmatprep.subr.mxu0 0.0
        %5349 = vmatpush2.msra.mxu0 0.0
        %5350 = vmatprep.subr.mxu0 0.0
        %5351 = vmatpush2.msra.mxu0 0.0
        %5352 = vmatprep.subr.mxu0 0.0
        %5353 = vmatpush2.msra.mxu0 0.0
        %5354 = vmatprep.mubr.f32.mxu0 0.0
        %5355 = vmatmul.mubr.f32.gmra.mxu0 %v1355
        %v5356 = vpop.f32.mrf.mxu0
        %v5357 = vadd.f32 0.0, %v5356
        %v5358 = vpop.f32.mrf.mxu0
        %5359 = vmatprep.mubr.f32.mxu0 0.0
        %5360 = vmatmul.mubr.f32.gmra.mxu0 %v1358
        %v5361 = vpop.f32.mrf.mxu0
        %v5362 = vadd.f32 0.0, %v5361
        %v5363 = vpop.f32.mrf.mxu0
        %5364 = vdwg.mxu0
        %5365 = vmatprep.subr.mxu0 0.0
        %5366 = vmatpush1.msra.mxu0 0.0
        %5367 = vmatprep.subr.mxu0 0.0
        %5368 = vmatpush1.msra.mxu0 0.0
        %5369 = vmatprep.subr.mxu0 0.0
        %5370 = vmatpush1.msra.mxu0 0.0
        %5371 = vmatprep.subr.mxu0 0.0
        %5372 = vmatpush1.msra.mxu0 0.0
        %5373 = vmatprep.subr.mxu0 0.0
        %5374 = vmatpush1.msra.mxu0 0.0
        %5375 = vmatprep.subr.mxu0 0.0
        %5376 = vmatpush1.msra.mxu0 0.0
        %5377 = vmatprep.subr.mxu0 0.0
        %5378 = vmatpush1.msra.mxu0 0.0
        %5379 = vmatprep.subr.mxu0 0.0
        %5380 = vmatpush1.msra.mxu0 0.0
        %5381 = vmatprep.subr.mxu0 0.0
        %5382 = vmatpush1.msra.mxu0 0.0
        %5383 = vmatprep.subr.mxu0 0.0
        %5384 = vmatpush1.msra.mxu0 0.0
        %5385 = vmatprep.subr.mxu0 0.0
        %5386 = vmatpush1.msra.mxu0 0.0
        %5387 = vmatprep.subr.mxu0 0.0
        %5388 = vmatpush1.msra.mxu0 0.0
        %5389 = vmatprep.subr.mxu0 0.0
        %5390 = vmatpush1.msra.mxu0 %v5288
        %5391 = vmatprep.subr.mxu0 0.0
        %5392 = vmatpush1.msra.mxu0 %v5285
        %5393 = vmatprep.subr.mxu0 0.0
        %5394 = vmatpush1.msra.mxu0 %v5284
        %5395 = vmatprep.subr.mxu0 0.0
        %5396 = vmatpush1.msra.mxu0 %v5283
        %5397 = vmatprep.subr.mxu0 0.0
        %5398 = vmatpush2.msra.mxu0 0.0
        %5399 = vmatprep.subr.mxu0 0.0
        %5400 = vmatpush2.msra.mxu0 0.0
        %5401 = vmatprep.subr.mxu0 0.0
        %5402 = vmatpush2.msra.mxu0 0.0
        %5403 = vmatprep.subr.mxu0 0.0
        %5404 = vmatpush2.msra.mxu0 0.0
        %5405 = vmatprep.subr.mxu0 0.0
        %5406 = vmatpush2.msra.mxu0 0.0
        %5407 = vmatprep.subr.mxu0 0.0
        %5408 = vmatpush2.msra.mxu0 0.0
        %5409 = vmatprep.subr.mxu0 0.0
        %5410 = vmatpush2.msra.mxu0 0.0
        %5411 = vmatprep.subr.mxu0 0.0
        %5412 = vmatpush2.msra.mxu0 0.0
        %5413 = vmatprep.subr.mxu0 0.0
        %5414 = vmatpush2.msra.mxu0 0.0
        %5415 = vmatprep.subr.mxu0 0.0
        %5416 = vmatpush2.msra.mxu0 0.0
        %5417 = vmatprep.subr.mxu0 0.0
        %5418 = vmatpush2.msra.mxu0 0.0
        %5419 = vmatprep.subr.mxu0 0.0
        %5420 = vmatpush2.msra.mxu0 0.0
        %5421 = vmatprep.subr.mxu0 0.0
        %5422 = vmatpush2.msra.mxu0 0.0
        %5423 = vmatprep.subr.mxu0 0.0
        %5424 = vmatpush2.msra.mxu0 0.0
        %5425 = vmatprep.subr.mxu0 0.0
        %5426 = vmatpush2.msra.mxu0 0.0
        %5427 = vmatprep.subr.mxu0 0.0
        %5428 = vmatpush2.msra.mxu0 0.0
        %5429 = vmatprep.mubr.f32.mxu0 0.0
        %5430 = vmatmul.mubr.f32.gmra.mxu0 %v1440
        %v5431 = vpop.f32.mrf.mxu0
        %v5432 = vadd.f32 0.0, %v5431
        %v5433 = vpop.f32.mrf.mxu0
        %5434 = vmatprep.mubr.f32.mxu0 0.0
        %5435 = vmatmul.mubr.f32.gmra.mxu0 %v1443
        %v5436 = vpop.f32.mrf.mxu0
        %v5437 = vadd.f32 0.0, %v5436
        %v5438 = vpop.f32.mrf.mxu0
        %5439 = vdwg.mxu0
        %v5440 = vmax.f32 %v5357, %v5432
        %v5441 = vmax.f32 %v5362, %v5437
        %s5442 = scalar_lea.vmem %s5, 320
        %5443 = vst.msk [vmem:[%s5442] sm:$0xff] %vm1220, %v5440
        %5444 = vst.msk [vmem:[%s5442 + $0x8] sm:$0x1f] %vm1523, %v5441
        %s5445 = scalar_lea.vmem [#allocation2], 1344
        %v5446 = vld [vmem:[%s5445] sm:$0xff]
        %v5447 = vld [vmem:[%s5445 + $0x8] sm:$0xff]
        %v5448 = vld [vmem:[%s5445 + $0x10] sm:$0xff]
        %v5449 = vld [vmem:[%s5445 + $0x18] sm:$0x3]
        %s5450 = scalar_lea.vmem [#allocation2], 1376
        %v5451 = vld [vmem:[%s5450] sm:$0xff]
        %v5452 = vld [vmem:[%s5450 + $0x8] sm:$0xff]
        %v5453 = vld [vmem:[%s5450 + $0x10] sm:$0xff]
        %v5454 = vld [vmem:[%s5450 + $0x18] sm:$0x3]
        %v5455 = vmul.f32 %v5446, %v1317
        %v5456 = vmul.f32 %v5447, %v1317
        %v5457 = vmul.f32 %v5448, %v1317
        %v5458 = vmul.f32 %v5449, %v1317
        %v5459 = vadd.f32 %v5455, %v1327
        %v5460 = vadd.f32 %v5456, %v1327
        %v5461 = vadd.f32 %v5457, %v1327
        %v5462 = vadd.f32 %v5458, %v1327
        %v5463 = vmax.f32 %v5459, 0.0
        %v5464 = vmax.f32 %v5460, 0.0
        %v5465 = vmax.f32 %v5461, 0.0
        %v5466 = vmax.f32 %v5462, 0.0
        %v5467 = vmul.f32 %v5451, %v1317
        %v5468 = vmul.f32 %v5452, %v1317
        %v5469 = vmul.f32 %v5453, %v1317
        %v5470 = vmul.f32 %v5454, %v1317
        %v5471 = vadd.f32 %v5467, %v1327
        %v5472 = vadd.f32 %v5468, %v1327
        %v5473 = vadd.f32 %v5469, %v1327
        %v5474 = vadd.f32 %v5470, %v1327
        %v5475 = vmax.f32 %v5471, 0.0
        %v5476 = vmax.f32 %v5472, 0.0
        %v5477 = vmax.f32 %v5473, 0.0
        %v5478 = vmax.f32 %v5474, 0.0
        %v5479 = vmax.f32 %v5463, %v5475
        %v5480 = vmax.f32 %v5464, %v5476
        %v5481 = vmax.f32 %v5465, %v5477
        %v5482 = vmax.f32 %v5466, %v5478
        %v5484 = vsel %vm1360, %v5482, 0
        %5486 = vmatprep.subr.mxu0 0.0
        %5487 = vmatpush1.msra.mxu0 0.0
        %5488 = vmatprep.subr.mxu0 0.0
        %5489 = vmatpush1.msra.mxu0 0.0
        %5490 = vmatprep.subr.mxu0 0.0
        %5491 = vmatpush1.msra.mxu0 0.0
        %5492 = vmatprep.subr.mxu0 0.0
        %5493 = vmatpush1.msra.mxu0 0.0
        %5494 = vmatprep.subr.mxu0 0.0
        %5495 = vmatpush1.msra.mxu0 0.0
        %5496 = vmatprep.subr.mxu0 0.0
        %5497 = vmatpush1.msra.mxu0 0.0
        %5498 = vmatprep.subr.mxu0 0.0
        %5499 = vmatpush1.msra.mxu0 0.0
        %5500 = vmatprep.subr.mxu0 0.0
        %5501 = vmatpush1.msra.mxu0 0.0
        %5502 = vmatprep.subr.mxu0 0.0
        %5503 = vmatpush1.msra.mxu0 0.0
        %5504 = vmatprep.subr.mxu0 0.0
        %5505 = vmatpush1.msra.mxu0 0.0
        %5506 = vmatprep.subr.mxu0 0.0
        %5507 = vmatpush1.msra.mxu0 0.0
        %5508 = vmatprep.subr.mxu0 0.0
        %5509 = vmatpush1.msra.mxu0 0.0
        %5510 = vmatprep.subr.mxu0 0.0
        %5511 = vmatpush1.msra.mxu0 %v5484
        %5512 = vmatprep.subr.mxu0 0.0
        %5513 = vmatpush1.msra.mxu0 %v5481
        %5514 = vmatprep.subr.mxu0 0.0
        %5515 = vmatpush1.msra.mxu0 %v5480
        %5516 = vmatprep.subr.mxu0 0.0
        %5517 = vmatpush1.msra.mxu0 %v5479
        %5518 = vmatprep.subr.mxu0 0.0
        %5519 = vmatpush2.msra.mxu0 0.0
        %5520 = vmatprep.subr.mxu0 0.0
        %5521 = vmatpush2.msra.mxu0 0.0
        %5522 = vmatprep.subr.mxu0 0.0
        %5523 = vmatpush2.msra.mxu0 0.0
        %5524 = vmatprep.subr.mxu0 0.0
        %5525 = vmatpush2.msra.mxu0 0.0
        %5526 = vmatprep.subr.mxu0 0.0
        %5527 = vmatpush2.msra.mxu0 0.0
        %5528 = vmatprep.subr.mxu0 0.0
        %5529 = vmatpush2.msra.mxu0 0.0
        %5530 = vmatprep.subr.mxu0 0.0
        %5531 = vmatpush2.msra.mxu0 0.0
        %5532 = vmatprep.subr.mxu0 0.0
        %5533 = vmatpush2.msra.mxu0 0.0
        %5534 = vmatprep.subr.mxu0 0.0
        %5535 = vmatpush2.msra.mxu0 0.0
        %5536 = vmatprep.subr.mxu0 0.0
        %5537 = vmatpush2.msra.mxu0 0.0
        %5538 = vmatprep.subr.mxu0 0.0
        %5539 = vmatpush2.msra.mxu0 0.0
        %5540 = vmatprep.subr.mxu0 0.0
        %5541 = vmatpush2.msra.mxu0 0.0
        %5542 = vmatprep.subr.mxu0 0.0
        %5543 = vmatpush2.msra.mxu0 0.0
        %5544 = vmatprep.subr.mxu0 0.0
        %5545 = vmatpush2.msra.mxu0 0.0
        %5546 = vmatprep.subr.mxu0 0.0
        %5547 = vmatpush2.msra.mxu0 0.0
        %5548 = vmatprep.subr.mxu0 0.0
        %5549 = vmatpush2.msra.mxu0 0.0
        %5550 = vmatprep.mubr.f32.mxu0 0.0
        %5551 = vmatmul.mubr.f32.gmra.mxu0 %v1355
        %v5552 = vpop.f32.mrf.mxu0
        %v5553 = vadd.f32 0.0, %v5552
        %v5554 = vpop.f32.mrf.mxu0
        %5555 = vmatprep.mubr.f32.mxu0 0.0
        %5556 = vmatmul.mubr.f32.gmra.mxu0 %v1358
        %v5557 = vpop.f32.mrf.mxu0
        %v5558 = vadd.f32 0.0, %v5557
        %v5559 = vpop.f32.mrf.mxu0
        %5560 = vdwg.mxu0
        %5561 = vmatprep.subr.mxu0 0.0
        %5562 = vmatpush1.msra.mxu0 0.0
        %5563 = vmatprep.subr.mxu0 0.0
        %5564 = vmatpush1.msra.mxu0 0.0
        %5565 = vmatprep.subr.mxu0 0.0
        %5566 = vmatpush1.msra.mxu0 0.0
        %5567 = vmatprep.subr.mxu0 0.0
        %5568 = vmatpush1.msra.mxu0 0.0
        %5569 = vmatprep.subr.mxu0 0.0
        %5570 = vmatpush1.msra.mxu0 0.0
        %5571 = vmatprep.subr.mxu0 0.0
        %5572 = vmatpush1.msra.mxu0 0.0
        %5573 = vmatprep.subr.mxu0 0.0
        %5574 = vmatpush1.msra.mxu0 0.0
        %5575 = vmatprep.subr.mxu0 0.0
        %5576 = vmatpush1.msra.mxu0 0.0
        %5577 = vmatprep.subr.mxu0 0.0
        %5578 = vmatpush1.msra.mxu0 0.0
        %5579 = vmatprep.subr.mxu0 0.0
        %5580 = vmatpush1.msra.mxu0 0.0
        %5581 = vmatprep.subr.mxu0 0.0
        %5582 = vmatpush1.msra.mxu0 0.0
        %5583 = vmatprep.subr.mxu0 0.0
        %5584 = vmatpush1.msra.mxu0 0.0
        %5585 = vmatprep.subr.mxu0 0.0
        %5586 = vmatpush1.msra.mxu0 %v5484
        %5587 = vmatprep.subr.mxu0 0.0
        %5588 = vmatpush1.msra.mxu0 %v5481
        %5589 = vmatprep.subr.mxu0 0.0
        %5590 = vmatpush1.msra.mxu0 %v5480
        %5591 = vmatprep.subr.mxu0 0.0
        %5592 = vmatpush1.msra.mxu0 %v5479
        %5593 = vmatprep.subr.mxu0 0.0
        %5594 = vmatpush2.msra.mxu0 0.0
        %5595 = vmatprep.subr.mxu0 0.0
        %5596 = vmatpush2.msra.mxu0 0.0
        %5597 = vmatprep.subr.mxu0 0.0
        %5598 = vmatpush2.msra.mxu0 0.0
        %5599 = vmatprep.subr.mxu0 0.0
        %5600 = vmatpush2.msra.mxu0 0.0
        %5601 = vmatprep.subr.mxu0 0.0
        %5602 = vmatpush2.msra.mxu0 0.0
        %5603 = vmatprep.subr.mxu0 0.0
        %5604 = vmatpush2.msra.mxu0 0.0
        %5605 = vmatprep.subr.mxu0 0.0
        %5606 = vmatpush2.msra.mxu0 0.0
        %5607 = vmatprep.subr.mxu0 0.0
        %5608 = vmatpush2.msra.mxu0 0.0
        %5609 = vmatprep.subr.mxu0 0.0
        %5610 = vmatpush2.msra.mxu0 0.0
        %5611 = vmatprep.subr.mxu0 0.0
        %5612 = vmatpush2.msra.mxu0 0.0
        %5613 = vmatprep.subr.mxu0 0.0
        %5614 = vmatpush2.msra.mxu0 0.0
        %5615 = vmatprep.subr.mxu0 0.0
        %5616 = vmatpush2.msra.mxu0 0.0
        %5617 = vmatprep.subr.mxu0 0.0
        %5618 = vmatpush2.msra.mxu0 0.0
        %5619 = vmatprep.subr.mxu0 0.0
        %5620 = vmatpush2.msra.mxu0 0.0
        %5621 = vmatprep.subr.mxu0 0.0
        %5622 = vmatpush2.msra.mxu0 0.0
        %5623 = vmatprep.subr.mxu0 0.0
        %5624 = vmatpush2.msra.mxu0 0.0
        %5625 = vmatprep.mubr.f32.mxu0 0.0
        %5626 = vmatmul.mubr.f32.gmra.mxu0 %v1440
        %v5627 = vpop.f32.mrf.mxu0
        %v5628 = vadd.f32 0.0, %v5627
        %v5629 = vpop.f32.mrf.mxu0
        %5630 = vmatprep.mubr.f32.mxu0 0.0
        %5631 = vmatmul.mubr.f32.gmra.mxu0 %v1443
        %v5632 = vpop.f32.mrf.mxu0
        %v5633 = vadd.f32 0.0, %v5632
        %v5634 = vpop.f32.mrf.mxu0
        %5635 = vdwg.mxu0
        %v5636 = vmax.f32 %v5553, %v5628
        %v5637 = vmax.f32 %v5558, %v5633
        %s5638 = scalar_lea.vmem %s5, 336
        %5639 = vst.msk [vmem:[%s5638] sm:$0xff] %vm1220, %v5636
        %5640 = vst.msk [vmem:[%s5638 + $0x8] sm:$0x1f] %vm1523, %v5637
        %s5641 = scalar_lea.vmem [#allocation2], 1408
        %v5642 = vld [vmem:[%s5641] sm:$0xff]
        %v5643 = vld [vmem:[%s5641 + $0x8] sm:$0xff]
        %v5644 = vld [vmem:[%s5641 + $0x10] sm:$0xff]
        %v5645 = vld [vmem:[%s5641 + $0x18] sm:$0x3]
        %s5646 = scalar_lea.vmem [#allocation2], 1440
        %v5647 = vld [vmem:[%s5646] sm:$0xff]
        %v5648 = vld [vmem:[%s5646 + $0x8] sm:$0xff]
        %v5649 = vld [vmem:[%s5646 + $0x10] sm:$0xff]
        %v5650 = vld [vmem:[%s5646 + $0x18] sm:$0x3]
        %v5651 = vmul.f32 %v5642, %v1317
        %v5652 = vmul.f32 %v5643, %v1317
        %v5653 = vmul.f32 %v5644, %v1317
        %v5654 = vmul.f32 %v5645, %v1317
        %v5655 = vadd.f32 %v5651, %v1327
        %v5656 = vadd.f32 %v5652, %v1327
        %v5657 = vadd.f32 %v5653, %v1327
        %v5658 = vadd.f32 %v5654, %v1327
        %v5659 = vmax.f32 %v5655, 0.0
        %v5660 = vmax.f32 %v5656, 0.0
        %v5661 = vmax.f32 %v5657, 0.0
        %v5662 = vmax.f32 %v5658, 0.0
        %v5663 = vmul.f32 %v5647, %v1317
        %v5664 = vmul.f32 %v5648, %v1317
        %v5665 = vmul.f32 %v5649, %v1317
        %v5666 = vmul.f32 %v5650, %v1317
        %v5667 = vadd.f32 %v5663, %v1327
        %v5668 = vadd.f32 %v5664, %v1327
        %v5669 = vadd.f32 %v5665, %v1327
        %v5670 = vadd.f32 %v5666, %v1327
        %v5671 = vmax.f32 %v5667, 0.0
        %v5672 = vmax.f32 %v5668, 0.0
        %v5673 = vmax.f32 %v5669, 0.0
        %v5674 = vmax.f32 %v5670, 0.0
        %v5675 = vmax.f32 %v5659, %v5671
        %v5676 = vmax.f32 %v5660, %v5672
        %v5677 = vmax.f32 %v5661, %v5673
        %v5678 = vmax.f32 %v5662, %v5674
        %v5680 = vsel %vm1360, %v5678, 0
        %5682 = vmatprep.subr.mxu0 0.0
        %5683 = vmatpush1.msra.mxu0 0.0
        %5684 = vmatprep.subr.mxu0 0.0
        %5685 = vmatpush1.msra.mxu0 0.0
        %5686 = vmatprep.subr.mxu0 0.0
        %5687 = vmatpush1.msra.mxu0 0.0
        %5688 = vmatprep.subr.mxu0 0.0
        %5689 = vmatpush1.msra.mxu0 0.0
        %5690 = vmatprep.subr.mxu0 0.0
        %5691 = vmatpush1.msra.mxu0 0.0
        %5692 = vmatprep.subr.mxu0 0.0
        %5693 = vmatpush1.msra.mxu0 0.0
        %5694 = vmatprep.subr.mxu0 0.0
        %5695 = vmatpush1.msra.mxu0 0.0
        %5696 = vmatprep.subr.mxu0 0.0
        %5697 = vmatpush1.msra.mxu0 0.0
        %5698 = vmatprep.subr.mxu0 0.0
        %5699 = vmatpush1.msra.mxu0 0.0
        %5700 = vmatprep.subr.mxu0 0.0
        %5701 = vmatpush1.msra.mxu0 0.0
        %5702 = vmatprep.subr.mxu0 0.0
        %5703 = vmatpush1.msra.mxu0 0.0
        %5704 = vmatprep.subr.mxu0 0.0
        %5705 = vmatpush1.msra.mxu0 0.0
        %5706 = vmatprep.subr.mxu0 0.0
        %5707 = vmatpush1.msra.mxu0 %v5680
        %5708 = vmatprep.subr.mxu0 0.0
        %5709 = vmatpush1.msra.mxu0 %v5677
        %5710 = vmatprep.subr.mxu0 0.0
        %5711 = vmatpush1.msra.mxu0 %v5676
        %5712 = vmatprep.subr.mxu0 0.0
        %5713 = vmatpush1.msra.mxu0 %v5675
        %5714 = vmatprep.subr.mxu0 0.0
        %5715 = vmatpush2.msra.mxu0 0.0
        %5716 = vmatprep.subr.mxu0 0.0
        %5717 = vmatpush2.msra.mxu0 0.0
        %5718 = vmatprep.subr.mxu0 0.0
        %5719 = vmatpush2.msra.mxu0 0.0
        %5720 = vmatprep.subr.mxu0 0.0
        %5721 = vmatpush2.msra.mxu0 0.0
        %5722 = vmatprep.subr.mxu0 0.0
        %5723 = vmatpush2.msra.mxu0 0.0
        %5724 = vmatprep.subr.mxu0 0.0
        %5725 = vmatpush2.msra.mxu0 0.0
        %5726 = vmatprep.subr.mxu0 0.0
        %5727 = vmatpush2.msra.mxu0 0.0
        %5728 = vmatprep.subr.mxu0 0.0
        %5729 = vmatpush2.msra.mxu0 0.0
        %5730 = vmatprep.subr.mxu0 0.0
        %5731 = vmatpush2.msra.mxu0 0.0
        %5732 = vmatprep.subr.mxu0 0.0
        %5733 = vmatpush2.msra.mxu0 0.0
        %5734 = vmatprep.subr.mxu0 0.0
        %5735 = vmatpush2.msra.mxu0 0.0
        %5736 = vmatprep.subr.mxu0 0.0
        %5737 = vmatpush2.msra.mxu0 0.0
        %5738 = vmatprep.subr.mxu0 0.0
        %5739 = vmatpush2.msra.mxu0 0.0
        %5740 = vmatprep.subr.mxu0 0.0
        %5741 = vmatpush2.msra.mxu0 0.0
        %5742 = vmatprep.subr.mxu0 0.0
        %5743 = vmatpush2.msra.mxu0 0.0
        %5744 = vmatprep.subr.mxu0 0.0
        %5745 = vmatpush2.msra.mxu0 0.0
        %5746 = vmatprep.mubr.f32.mxu0 0.0
        %5747 = vmatmul.mubr.f32.gmra.mxu0 %v1355
        %v5748 = vpop.f32.mrf.mxu0
        %v5749 = vadd.f32 0.0, %v5748
        %v5750 = vpop.f32.mrf.mxu0
        %5751 = vmatprep.mubr.f32.mxu0 0.0
        %5752 = vmatmul.mubr.f32.gmra.mxu0 %v1358
        %v5753 = vpop.f32.mrf.mxu0
        %v5754 = vadd.f32 0.0, %v5753
        %v5755 = vpop.f32.mrf.mxu0
        %5756 = vdwg.mxu0
        %5757 = vmatprep.subr.mxu0 0.0
        %5758 = vmatpush1.msra.mxu0 0.0
        %5759 = vmatprep.subr.mxu0 0.0
        %5760 = vmatpush1.msra.mxu0 0.0
        %5761 = vmatprep.subr.mxu0 0.0
        %5762 = vmatpush1.msra.mxu0 0.0
        %5763 = vmatprep.subr.mxu0 0.0
        %5764 = vmatpush1.msra.mxu0 0.0
        %5765 = vmatprep.subr.mxu0 0.0
        %5766 = vmatpush1.msra.mxu0 0.0
        %5767 = vmatprep.subr.mxu0 0.0
        %5768 = vmatpush1.msra.mxu0 0.0
        %5769 = vmatprep.subr.mxu0 0.0
        %5770 = vmatpush1.msra.mxu0 0.0
        %5771 = vmatprep.subr.mxu0 0.0
        %5772 = vmatpush1.msra.mxu0 0.0
        %5773 = vmatprep.subr.mxu0 0.0
        %5774 = vmatpush1.msra.mxu0 0.0
        %5775 = vmatprep.subr.mxu0 0.0
        %5776 = vmatpush1.msra.mxu0 0.0
        %5777 = vmatprep.subr.mxu0 0.0
        %5778 = vmatpush1.msra.mxu0 0.0
        %5779 = vmatprep.subr.mxu0 0.0
        %5780 = vmatpush1.msra.mxu0 0.0
        %5781 = vmatprep.subr.mxu0 0.0
        %5782 = vmatpush1.msra.mxu0 %v5680
        %5783 = vmatprep.subr.mxu0 0.0
        %5784 = vmatpush1.msra.mxu0 %v5677
        %5785 = vmatprep.subr.mxu0 0.0
        %5786 = vmatpush1.msra.mxu0 %v5676
        %5787 = vmatprep.subr.mxu0 0.0
        %5788 = vmatpush1.msra.mxu0 %v5675
        %5789 = vmatprep.subr.mxu0 0.0
        %5790 = vmatpush2.msra.mxu0 0.0
        %5791 = vmatprep.subr.mxu0 0.0
        %5792 = vmatpush2.msra.mxu0 0.0
        %5793 = vmatprep.subr.mxu0 0.0
        %5794 = vmatpush2.msra.mxu0 0.0
        %5795 = vmatprep.subr.mxu0 0.0
        %5796 = vmatpush2.msra.mxu0 0.0
        %5797 = vmatprep.subr.mxu0 0.0
        %5798 = vmatpush2.msra.mxu0 0.0
        %5799 = vmatprep.subr.mxu0 0.0
        %5800 = vmatpush2.msra.mxu0 0.0
        %5801 = vmatprep.subr.mxu0 0.0
        %5802 = vmatpush2.msra.mxu0 0.0
        %5803 = vmatprep.subr.mxu0 0.0
        %5804 = vmatpush2.msra.mxu0 0.0
        %5805 = vmatprep.subr.mxu0 0.0
        %5806 = vmatpush2.msra.mxu0 0.0
        %5807 = vmatprep.subr.mxu0 0.0
        %5808 = vmatpush2.msra.mxu0 0.0
        %5809 = vmatprep.subr.mxu0 0.0
        %5810 = vmatpush2.msra.mxu0 0.0
        %5811 = vmatprep.subr.mxu0 0.0
        %5812 = vmatpush2.msra.mxu0 0.0
        %5813 = vmatprep.subr.mxu0 0.0
        %5814 = vmatpush2.msra.mxu0 0.0
        %5815 = vmatprep.subr.mxu0 0.0
        %5816 = vmatpush2.msra.mxu0 0.0
        %5817 = vmatprep.subr.mxu0 0.0
        %5818 = vmatpush2.msra.mxu0 0.0
        %5819 = vmatprep.subr.mxu0 0.0
        %5820 = vmatpush2.msra.mxu0 0.0
        %5821 = vmatprep.mubr.f32.mxu0 0.0
        %5822 = vmatmul.mubr.f32.gmra.mxu0 %v1440
        %v5823 = vpop.f32.mrf.mxu0
        %v5824 = vadd.f32 0.0, %v5823
        %v5825 = vpop.f32.mrf.mxu0
        %5826 = vmatprep.mubr.f32.mxu0 0.0
        %5827 = vmatmul.mubr.f32.gmra.mxu0 %v1443
        %v5828 = vpop.f32.mrf.mxu0
        %v5829 = vadd.f32 0.0, %v5828
        %v5830 = vpop.f32.mrf.mxu0
        %5831 = vdwg.mxu0
        %v5832 = vmax.f32 %v5749, %v5824
        %v5833 = vmax.f32 %v5754, %v5829
        %s5834 = scalar_lea.vmem %s5, 352
        %5835 = vst.msk [vmem:[%s5834] sm:$0xff] %vm1220, %v5832
        %5836 = vst.msk [vmem:[%s5834 + $0x8] sm:$0x1f] %vm1523, %v5833
        %s5837 = scalar_lea.vmem [#allocation2], 1472
        %v5838 = vld [vmem:[%s5837] sm:$0xff]
        %v5839 = vld [vmem:[%s5837 + $0x8] sm:$0xff]
        %v5840 = vld [vmem:[%s5837 + $0x10] sm:$0xff]
        %v5841 = vld [vmem:[%s5837 + $0x18] sm:$0x3]
        %s5842 = scalar_lea.vmem [#allocation2], 1504
        %v5843 = vld [vmem:[%s5842] sm:$0xff]
        %v5844 = vld [vmem:[%s5842 + $0x8] sm:$0xff]
        %v5845 = vld [vmem:[%s5842 + $0x10] sm:$0xff]
        %v5846 = vld [vmem:[%s5842 + $0x18] sm:$0x3]
        %v5847 = vmul.f32 %v5838, %v1317
        %v5848 = vmul.f32 %v5839, %v1317
        %v5849 = vmul.f32 %v5840, %v1317
        %v5850 = vmul.f32 %v5841, %v1317
        %v5851 = vadd.f32 %v5847, %v1327
        %v5852 = vadd.f32 %v5848, %v1327
        %v5853 = vadd.f32 %v5849, %v1327
        %v5854 = vadd.f32 %v5850, %v1327
        %v5855 = vmax.f32 %v5851, 0.0
        %v5856 = vmax.f32 %v5852, 0.0
        %v5857 = vmax.f32 %v5853, 0.0
        %v5858 = vmax.f32 %v5854, 0.0
        %v5859 = vmul.f32 %v5843, %v1317
        %v5860 = vmul.f32 %v5844, %v1317
        %v5861 = vmul.f32 %v5845, %v1317
        %v5862 = vmul.f32 %v5846, %v1317
        %v5863 = vadd.f32 %v5859, %v1327
        %v5864 = vadd.f32 %v5860, %v1327
        %v5865 = vadd.f32 %v5861, %v1327
        %v5866 = vadd.f32 %v5862, %v1327
        %v5867 = vmax.f32 %v5863, 0.0
        %v5868 = vmax.f32 %v5864, 0.0
        %v5869 = vmax.f32 %v5865, 0.0
        %v5870 = vmax.f32 %v5866, 0.0
        %v5871 = vmax.f32 %v5855, %v5867
        %v5872 = vmax.f32 %v5856, %v5868
        %v5873 = vmax.f32 %v5857, %v5869
        %v5874 = vmax.f32 %v5858, %v5870
        %v5876 = vsel %vm1360, %v5874, 0
        %5878 = vmatprep.subr.mxu0 0.0
        %5879 = vmatpush1.msra.mxu0 0.0
        %5880 = vmatprep.subr.mxu0 0.0
        %5881 = vmatpush1.msra.mxu0 0.0
        %5882 = vmatprep.subr.mxu0 0.0
        %5883 = vmatpush1.msra.mxu0 0.0
        %5884 = vmatprep.subr.mxu0 0.0
        %5885 = vmatpush1.msra.mxu0 0.0
        %5886 = vmatprep.subr.mxu0 0.0
        %5887 = vmatpush1.msra.mxu0 0.0
        %5888 = vmatprep.subr.mxu0 0.0
        %5889 = vmatpush1.msra.mxu0 0.0
        %5890 = vmatprep.subr.mxu0 0.0
        %5891 = vmatpush1.msra.mxu0 0.0
        %5892 = vmatprep.subr.mxu0 0.0
        %5893 = vmatpush1.msra.mxu0 0.0
        %5894 = vmatprep.subr.mxu0 0.0
        %5895 = vmatpush1.msra.mxu0 0.0
        %5896 = vmatprep.subr.mxu0 0.0
        %5897 = vmatpush1.msra.mxu0 0.0
        %5898 = vmatprep.subr.mxu0 0.0
        %5899 = vmatpush1.msra.mxu0 0.0
        %5900 = vmatprep.subr.mxu0 0.0
        %5901 = vmatpush1.msra.mxu0 0.0
        %5902 = vmatprep.subr.mxu0 0.0
        %5903 = vmatpush1.msra.mxu0 %v5876
        %5904 = vmatprep.subr.mxu0 0.0
        %5905 = vmatpush1.msra.mxu0 %v5873
        %5906 = vmatprep.subr.mxu0 0.0
        %5907 = vmatpush1.msra.mxu0 %v5872
        %5908 = vmatprep.subr.mxu0 0.0
        %5909 = vmatpush1.msra.mxu0 %v5871
        %5910 = vmatprep.subr.mxu0 0.0
        %5911 = vmatpush2.msra.mxu0 0.0
        %5912 = vmatprep.subr.mxu0 0.0
        %5913 = vmatpush2.msra.mxu0 0.0
        %5914 = vmatprep.subr.mxu0 0.0
        %5915 = vmatpush2.msra.mxu0 0.0
        %5916 = vmatprep.subr.mxu0 0.0
        %5917 = vmatpush2.msra.mxu0 0.0
        %5918 = vmatprep.subr.mxu0 0.0
        %5919 = vmatpush2.msra.mxu0 0.0
        %5920 = vmatprep.subr.mxu0 0.0
        %5921 = vmatpush2.msra.mxu0 0.0
        %5922 = vmatprep.subr.mxu0 0.0
        %5923 = vmatpush2.msra.mxu0 0.0
        %5924 = vmatprep.subr.mxu0 0.0
        %5925 = vmatpush2.msra.mxu0 0.0
        %5926 = vmatprep.subr.mxu0 0.0
        %5927 = vmatpush2.msra.mxu0 0.0
        %5928 = vmatprep.subr.mxu0 0.0
        %5929 = vmatpush2.msra.mxu0 0.0
        %5930 = vmatprep.subr.mxu0 0.0
        %5931 = vmatpush2.msra.mxu0 0.0
        %5932 = vmatprep.subr.mxu0 0.0
        %5933 = vmatpush2.msra.mxu0 0.0
        %5934 = vmatprep.subr.mxu0 0.0
        %5935 = vmatpush2.msra.mxu0 0.0
        %5936 = vmatprep.subr.mxu0 0.0
        %5937 = vmatpush2.msra.mxu0 0.0
        %5938 = vmatprep.subr.mxu0 0.0
        %5939 = vmatpush2.msra.mxu0 0.0
        %5940 = vmatprep.subr.mxu0 0.0
        %5941 = vmatpush2.msra.mxu0 0.0
        %5942 = vmatprep.mubr.f32.mxu0 0.0
        %5943 = vmatmul.mubr.f32.gmra.mxu0 %v1355
        %v5944 = vpop.f32.mrf.mxu0
        %v5945 = vadd.f32 0.0, %v5944
        %v5946 = vpop.f32.mrf.mxu0
        %5947 = vmatprep.mubr.f32.mxu0 0.0
        %5948 = vmatmul.mubr.f32.gmra.mxu0 %v1358
        %v5949 = vpop.f32.mrf.mxu0
        %v5950 = vadd.f32 0.0, %v5949
        %v5951 = vpop.f32.mrf.mxu0
        %5952 = vdwg.mxu0
        %5953 = vmatprep.subr.mxu0 0.0
        %5954 = vmatpush1.msra.mxu0 0.0
        %5955 = vmatprep.subr.mxu0 0.0
        %5956 = vmatpush1.msra.mxu0 0.0
        %5957 = vmatprep.subr.mxu0 0.0
        %5958 = vmatpush1.msra.mxu0 0.0
        %5959 = vmatprep.subr.mxu0 0.0
        %5960 = vmatpush1.msra.mxu0 0.0
        %5961 = vmatprep.subr.mxu0 0.0
        %5962 = vmatpush1.msra.mxu0 0.0
        %5963 = vmatprep.subr.mxu0 0.0
        %5964 = vmatpush1.msra.mxu0 0.0
        %5965 = vmatprep.subr.mxu0 0.0
        %5966 = vmatpush1.msra.mxu0 0.0
        %5967 = vmatprep.subr.mxu0 0.0
        %5968 = vmatpush1.msra.mxu0 0.0
        %5969 = vmatprep.subr.mxu0 0.0
        %5970 = vmatpush1.msra.mxu0 0.0
        %5971 = vmatprep.subr.mxu0 0.0
        %5972 = vmatpush1.msra.mxu0 0.0
        %5973 = vmatprep.subr.mxu0 0.0
        %5974 = vmatpush1.msra.mxu0 0.0
        %5975 = vmatprep.subr.mxu0 0.0
        %5976 = vmatpush1.msra.mxu0 0.0
        %5977 = vmatprep.subr.mxu0 0.0
        %5978 = vmatpush1.msra.mxu0 %v5876
        %5979 = vmatprep.subr.mxu0 0.0
        %5980 = vmatpush1.msra.mxu0 %v5873
        %5981 = vmatprep.subr.mxu0 0.0
        %5982 = vmatpush1.msra.mxu0 %v5872
        %5983 = vmatprep.subr.mxu0 0.0
        %5984 = vmatpush1.msra.mxu0 %v5871
        %5985 = vmatprep.subr.mxu0 0.0
        %5986 = vmatpush2.msra.mxu0 0.0
        %5987 = vmatprep.subr.mxu0 0.0
        %5988 = vmatpush2.msra.mxu0 0.0
        %5989 = vmatprep.subr.mxu0 0.0
        %5990 = vmatpush2.msra.mxu0 0.0
        %5991 = vmatprep.subr.mxu0 0.0
        %5992 = vmatpush2.msra.mxu0 0.0
        %5993 = vmatprep.subr.mxu0 0.0
        %5994 = vmatpush2.msra.mxu0 0.0
        %5995 = vmatprep.subr.mxu0 0.0
        %5996 = vmatpush2.msra.mxu0 0.0
        %5997 = vmatprep.subr.mxu0 0.0
        %5998 = vmatpush2.msra.mxu0 0.0
        %5999 = vmatprep.subr.mxu0 0.0
        %6000 = vmatpush2.msra.mxu0 0.0
        %6001 = vmatprep.subr.mxu0 0.0
        %6002 = vmatpush2.msra.mxu0 0.0
        %6003 = vmatprep.subr.mxu0 0.0
        %6004 = vmatpush2.msra.mxu0 0.0
        %6005 = vmatprep.subr.mxu0 0.0
        %6006 = vmatpush2.msra.mxu0 0.0
        %6007 = vmatprep.subr.mxu0 0.0
        %6008 = vmatpush2.msra.mxu0 0.0
        %6009 = vmatprep.subr.mxu0 0.0
        %6010 = vmatpush2.msra.mxu0 0.0
        %6011 = vmatprep.subr.mxu0 0.0
        %6012 = vmatpush2.msra.mxu0 0.0
        %6013 = vmatprep.subr.mxu0 0.0
        %6014 = vmatpush2.msra.mxu0 0.0
        %6015 = vmatprep.subr.mxu0 0.0
        %6016 = vmatpush2.msra.mxu0 0.0
        %6017 = vmatprep.mubr.f32.mxu0 0.0
        %6018 = vmatmul.mubr.f32.gmra.mxu0 %v1440
        %v6019 = vpop.f32.mrf.mxu0
        %v6020 = vadd.f32 0.0, %v6019
        %v6021 = vpop.f32.mrf.mxu0
        %6022 = vmatprep.mubr.f32.mxu0 0.0
        %6023 = vmatmul.mubr.f32.gmra.mxu0 %v1443
        %v6024 = vpop.f32.mrf.mxu0
        %v6025 = vadd.f32 0.0, %v6024
        %v6026 = vpop.f32.mrf.mxu0
        %6027 = vdwg.mxu0
        %v6028 = vmax.f32 %v5945, %v6020
        %v6029 = vmax.f32 %v5950, %v6025
        %s6030 = scalar_lea.vmem %s5, 368
        %6031 = vst.msk [vmem:[%s6030] sm:$0xff] %vm1220, %v6028
        %6032 = vst.msk [vmem:[%s6030 + $0x8] sm:$0x1f] %vm1523, %v6029
        %s6033 = scalar_lea.vmem [#allocation2], 1536
        %v6034 = vld [vmem:[%s6033] sm:$0xff]
        %v6035 = vld [vmem:[%s6033 + $0x8] sm:$0xff]
        %v6036 = vld [vmem:[%s6033 + $0x10] sm:$0xff]
        %v6037 = vld [vmem:[%s6033 + $0x18] sm:$0x3]
        %s6038 = scalar_lea.vmem [#allocation2], 1568
        %v6039 = vld [vmem:[%s6038] sm:$0xff]
        %v6040 = vld [vmem:[%s6038 + $0x8] sm:$0xff]
        %v6041 = vld [vmem:[%s6038 + $0x10] sm:$0xff]
        %v6042 = vld [vmem:[%s6038 + $0x18] sm:$0x3]
        %v6043 = vmul.f32 %v6034, %v1317
        %v6044 = vmul.f32 %v6035, %v1317
        %v6045 = vmul.f32 %v6036, %v1317
        %v6046 = vmul.f32 %v6037, %v1317
        %v6047 = vadd.f32 %v6043, %v1327
        %v6048 = vadd.f32 %v6044, %v1327
        %v6049 = vadd.f32 %v6045, %v1327
        %v6050 = vadd.f32 %v6046, %v1327
        %v6051 = vmax.f32 %v6047, 0.0
        %v6052 = vmax.f32 %v6048, 0.0
        %v6053 = vmax.f32 %v6049, 0.0
        %v6054 = vmax.f32 %v6050, 0.0
        %v6055 = vmul.f32 %v6039, %v1317
        %v6056 = vmul.f32 %v6040, %v1317
        %v6057 = vmul.f32 %v6041, %v1317
        %v6058 = vmul.f32 %v6042, %v1317
        %v6059 = vadd.f32 %v6055, %v1327
        %v6060 = vadd.f32 %v6056, %v1327
        %v6061 = vadd.f32 %v6057, %v1327
        %v6062 = vadd.f32 %v6058, %v1327
        %v6063 = vmax.f32 %v6059, 0.0
        %v6064 = vmax.f32 %v6060, 0.0
        %v6065 = vmax.f32 %v6061, 0.0
        %v6066 = vmax.f32 %v6062, 0.0
        %v6067 = vmax.f32 %v6051, %v6063
        %v6068 = vmax.f32 %v6052, %v6064
        %v6069 = vmax.f32 %v6053, %v6065
        %v6070 = vmax.f32 %v6054, %v6066
        %v6072 = vsel %vm1360, %v6070, 0
        %6074 = vmatprep.subr.mxu0 0.0
        %6075 = vmatpush1.msra.mxu0 0.0
        %6076 = vmatprep.subr.mxu0 0.0
        %6077 = vmatpush1.msra.mxu0 0.0
        %6078 = vmatprep.subr.mxu0 0.0
        %6079 = vmatpush1.msra.mxu0 0.0
        %6080 = vmatprep.subr.mxu0 0.0
        %6081 = vmatpush1.msra.mxu0 0.0
        %6082 = vmatprep.subr.mxu0 0.0
        %6083 = vmatpush1.msra.mxu0 0.0
        %6084 = vmatprep.subr.mxu0 0.0
        %6085 = vmatpush1.msra.mxu0 0.0
        %6086 = vmatprep.subr.mxu0 0.0
        %6087 = vmatpush1.msra.mxu0 0.0
        %6088 = vmatprep.subr.mxu0 0.0
        %6089 = vmatpush1.msra.mxu0 0.0
        %6090 = vmatprep.subr.mxu0 0.0
        %6091 = vmatpush1.msra.mxu0 0.0
        %6092 = vmatprep.subr.mxu0 0.0
        %6093 = vmatpush1.msra.mxu0 0.0
        %6094 = vmatprep.subr.mxu0 0.0
        %6095 = vmatpush1.msra.mxu0 0.0
        %6096 = vmatprep.subr.mxu0 0.0
        %6097 = vmatpush1.msra.mxu0 0.0
        %6098 = vmatprep.subr.mxu0 0.0
        %6099 = vmatpush1.msra.mxu0 %v6072
        %6100 = vmatprep.subr.mxu0 0.0
        %6101 = vmatpush1.msra.mxu0 %v6069
        %6102 = vmatprep.subr.mxu0 0.0
        %6103 = vmatpush1.msra.mxu0 %v6068
        %6104 = vmatprep.subr.mxu0 0.0
        %6105 = vmatpush1.msra.mxu0 %v6067
        %6106 = vmatprep.subr.mxu0 0.0
        %6107 = vmatpush2.msra.mxu0 0.0
        %6108 = vmatprep.subr.mxu0 0.0
        %6109 = vmatpush2.msra.mxu0 0.0
        %6110 = vmatprep.subr.mxu0 0.0
        %6111 = vmatpush2.msra.mxu0 0.0
        %6112 = vmatprep.subr.mxu0 0.0
        %6113 = vmatpush2.msra.mxu0 0.0
        %6114 = vmatprep.subr.mxu0 0.0
        %6115 = vmatpush2.msra.mxu0 0.0
        %6116 = vmatprep.subr.mxu0 0.0
        %6117 = vmatpush2.msra.mxu0 0.0
        %6118 = vmatprep.subr.mxu0 0.0
        %6119 = vmatpush2.msra.mxu0 0.0
        %6120 = vmatprep.subr.mxu0 0.0
        %6121 = vmatpush2.msra.mxu0 0.0
        %6122 = vmatprep.subr.mxu0 0.0
        %6123 = vmatpush2.msra.mxu0 0.0
        %6124 = vmatprep.subr.mxu0 0.0
        %6125 = vmatpush2.msra.mxu0 0.0
        %6126 = vmatprep.subr.mxu0 0.0
        %6127 = vmatpush2.msra.mxu0 0.0
        %6128 = vmatprep.subr.mxu0 0.0
        %6129 = vmatpush2.msra.mxu0 0.0
        %6130 = vmatprep.subr.mxu0 0.0
        %6131 = vmatpush2.msra.mxu0 0.0
        %6132 = vmatprep.subr.mxu0 0.0
        %6133 = vmatpush2.msra.mxu0 0.0
        %6134 = vmatprep.subr.mxu0 0.0
        %6135 = vmatpush2.msra.mxu0 0.0
        %6136 = vmatprep.subr.mxu0 0.0
        %6137 = vmatpush2.msra.mxu0 0.0
        %6138 = vmatprep.mubr.f32.mxu0 0.0
        %6139 = vmatmul.mubr.f32.gmra.mxu0 %v1355
        %v6140 = vpop.f32.mrf.mxu0
        %v6141 = vadd.f32 0.0, %v6140
        %v6142 = vpop.f32.mrf.mxu0
        %6143 = vmatprep.mubr.f32.mxu0 0.0
        %6144 = vmatmul.mubr.f32.gmra.mxu0 %v1358
        %v6145 = vpop.f32.mrf.mxu0
        %v6146 = vadd.f32 0.0, %v6145
        %v6147 = vpop.f32.mrf.mxu0
        %6148 = vdwg.mxu0
        %6149 = vmatprep.subr.mxu0 0.0
        %6150 = vmatpush1.msra.mxu0 0.0
        %6151 = vmatprep.subr.mxu0 0.0
        %6152 = vmatpush1.msra.mxu0 0.0
        %6153 = vmatprep.subr.mxu0 0.0
        %6154 = vmatpush1.msra.mxu0 0.0
        %6155 = vmatprep.subr.mxu0 0.0
        %6156 = vmatpush1.msra.mxu0 0.0
        %6157 = vmatprep.subr.mxu0 0.0
        %6158 = vmatpush1.msra.mxu0 0.0
        %6159 = vmatprep.subr.mxu0 0.0
        %6160 = vmatpush1.msra.mxu0 0.0
        %6161 = vmatprep.subr.mxu0 0.0
        %6162 = vmatpush1.msra.mxu0 0.0
        %6163 = vmatprep.subr.mxu0 0.0
        %6164 = vmatpush1.msra.mxu0 0.0
        %6165 = vmatprep.subr.mxu0 0.0
        %6166 = vmatpush1.msra.mxu0 0.0
        %6167 = vmatprep.subr.mxu0 0.0
        %6168 = vmatpush1.msra.mxu0 0.0
        %6169 = vmatprep.subr.mxu0 0.0
        %6170 = vmatpush1.msra.mxu0 0.0
        %6171 = vmatprep.subr.mxu0 0.0
        %6172 = vmatpush1.msra.mxu0 0.0
        %6173 = vmatprep.subr.mxu0 0.0
        %6174 = vmatpush1.msra.mxu0 %v6072
        %6175 = vmatprep.subr.mxu0 0.0
        %6176 = vmatpush1.msra.mxu0 %v6069
        %6177 = vmatprep.subr.mxu0 0.0
        %6178 = vmatpush1.msra.mxu0 %v6068
        %6179 = vmatprep.subr.mxu0 0.0
        %6180 = vmatpush1.msra.mxu0 %v6067
        %6181 = vmatprep.subr.mxu0 0.0
        %6182 = vmatpush2.msra.mxu0 0.0
        %6183 = vmatprep.subr.mxu0 0.0
        %6184 = vmatpush2.msra.mxu0 0.0
        %6185 = vmatprep.subr.mxu0 0.0
        %6186 = vmatpush2.msra.mxu0 0.0
        %6187 = vmatprep.subr.mxu0 0.0
        %6188 = vmatpush2.msra.mxu0 0.0
        %6189 = vmatprep.subr.mxu0 0.0
        %6190 = vmatpush2.msra.mxu0 0.0
        %6191 = vmatprep.subr.mxu0 0.0
        %6192 = vmatpush2.msra.mxu0 0.0
        %6193 = vmatprep.subr.mxu0 0.0
        %6194 = vmatpush2.msra.mxu0 0.0
        %6195 = vmatprep.subr.mxu0 0.0
        %6196 = vmatpush2.msra.mxu0 0.0
        %6197 = vmatprep.subr.mxu0 0.0
        %6198 = vmatpush2.msra.mxu0 0.0
        %6199 = vmatprep.subr.mxu0 0.0
        %6200 = vmatpush2.msra.mxu0 0.0
        %6201 = vmatprep.subr.mxu0 0.0
        %6202 = vmatpush2.msra.mxu0 0.0
        %6203 = vmatprep.subr.mxu0 0.0
        %6204 = vmatpush2.msra.mxu0 0.0
        %6205 = vmatprep.subr.mxu0 0.0
        %6206 = vmatpush2.msra.mxu0 0.0
        %6207 = vmatprep.subr.mxu0 0.0
        %6208 = vmatpush2.msra.mxu0 0.0
        %6209 = vmatprep.subr.mxu0 0.0
        %6210 = vmatpush2.msra.mxu0 0.0
        %6211 = vmatprep.subr.mxu0 0.0
        %6212 = vmatpush2.msra.mxu0 0.0
        %6213 = vmatprep.mubr.f32.mxu0 0.0
        %6214 = vmatmul.mubr.f32.gmra.mxu0 %v1440
        %v6215 = vpop.f32.mrf.mxu0
        %v6216 = vadd.f32 0.0, %v6215
        %v6217 = vpop.f32.mrf.mxu0
        %6218 = vmatprep.mubr.f32.mxu0 0.0
        %6219 = vmatmul.mubr.f32.gmra.mxu0 %v1443
        %v6220 = vpop.f32.mrf.mxu0
        %v6221 = vadd.f32 0.0, %v6220
        %v6222 = vpop.f32.mrf.mxu0
        %6223 = vdwg.mxu0
        %v6224 = vmax.f32 %v6141, %v6216
        %v6225 = vmax.f32 %v6146, %v6221
        %s6226 = scalar_lea.vmem %s5, 384
        %6227 = vst.msk [vmem:[%s6226] sm:$0xff] %vm1220, %v6224
        %6228 = vst.msk [vmem:[%s6226 + $0x8] sm:$0x1f] %vm1523, %v6225
        %s6229 = scalar_lea.vmem [#allocation2], 1600
        %v6230 = vld [vmem:[%s6229] sm:$0xff]
        %v6231 = vld [vmem:[%s6229 + $0x8] sm:$0xff]
        %v6232 = vld [vmem:[%s6229 + $0x10] sm:$0xff]
        %v6233 = vld [vmem:[%s6229 + $0x18] sm:$0x3]
        %s6234 = scalar_lea.vmem [#allocation2], 1632
        %v6235 = vld [vmem:[%s6234] sm:$0xff]
        %v6236 = vld [vmem:[%s6234 + $0x8] sm:$0xff]
        %v6237 = vld [vmem:[%s6234 + $0x10] sm:$0xff]
        %v6238 = vld [vmem:[%s6234 + $0x18] sm:$0x3]
        %v6239 = vmul.f32 %v6230, %v1317
        %v6240 = vmul.f32 %v6231, %v1317
        %v6241 = vmul.f32 %v6232, %v1317
        %v6242 = vmul.f32 %v6233, %v1317
        %v6243 = vadd.f32 %v6239, %v1327
        %v6244 = vadd.f32 %v6240, %v1327
        %v6245 = vadd.f32 %v6241, %v1327
        %v6246 = vadd.f32 %v6242, %v1327
        %v6247 = vmax.f32 %v6243, 0.0
        %v6248 = vmax.f32 %v6244, 0.0
        %v6249 = vmax.f32 %v6245, 0.0
        %v6250 = vmax.f32 %v6246, 0.0
        %v6251 = vmul.f32 %v6235, %v1317
        %v6252 = vmul.f32 %v6236, %v1317
        %v6253 = vmul.f32 %v6237, %v1317
        %v6254 = vmul.f32 %v6238, %v1317
        %v6255 = vadd.f32 %v6251, %v1327
        %v6256 = vadd.f32 %v6252, %v1327
        %v6257 = vadd.f32 %v6253, %v1327
        %v6258 = vadd.f32 %v6254, %v1327
        %v6259 = vmax.f32 %v6255, 0.0
        %v6260 = vmax.f32 %v6256, 0.0
        %v6261 = vmax.f32 %v6257, 0.0
        %v6262 = vmax.f32 %v6258, 0.0
        %v6263 = vmax.f32 %v6247, %v6259
        %v6264 = vmax.f32 %v6248, %v6260
        %v6265 = vmax.f32 %v6249, %v6261
        %v6266 = vmax.f32 %v6250, %v6262
        %v6268 = vsel %vm1360, %v6266, 0
        %6270 = vmatprep.subr.mxu0 0.0
        %6271 = vmatpush1.msra.mxu0 0.0
        %6272 = vmatprep.subr.mxu0 0.0
        %6273 = vmatpush1.msra.mxu0 0.0
        %6274 = vmatprep.subr.mxu0 0.0
        %6275 = vmatpush1.msra.mxu0 0.0
        %6276 = vmatprep.subr.mxu0 0.0
        %6277 = vmatpush1.msra.mxu0 0.0
        %6278 = vmatprep.subr.mxu0 0.0
        %6279 = vmatpush1.msra.mxu0 0.0
        %6280 = vmatprep.subr.mxu0 0.0
        %6281 = vmatpush1.msra.mxu0 0.0
        %6282 = vmatprep.subr.mxu0 0.0
        %6283 = vmatpush1.msra.mxu0 0.0
        %6284 = vmatprep.subr.mxu0 0.0
        %6285 = vmatpush1.msra.mxu0 0.0
        %6286 = vmatprep.subr.mxu0 0.0
        %6287 = vmatpush1.msra.mxu0 0.0
        %6288 = vmatprep.subr.mxu0 0.0
        %6289 = vmatpush1.msra.mxu0 0.0
        %6290 = vmatprep.subr.mxu0 0.0
        %6291 = vmatpush1.msra.mxu0 0.0
        %6292 = vmatprep.subr.mxu0 0.0
        %6293 = vmatpush1.msra.mxu0 0.0
        %6294 = vmatprep.subr.mxu0 0.0
        %6295 = vmatpush1.msra.mxu0 %v6268
        %6296 = vmatprep.subr.mxu0 0.0
        %6297 = vmatpush1.msra.mxu0 %v6265
        %6298 = vmatprep.subr.mxu0 0.0
        %6299 = vmatpush1.msra.mxu0 %v6264
        %6300 = vmatprep.subr.mxu0 0.0
        %6301 = vmatpush1.msra.mxu0 %v6263
        %6302 = vmatprep.subr.mxu0 0.0
        %6303 = vmatpush2.msra.mxu0 0.0
        %6304 = vmatprep.subr.mxu0 0.0
        %6305 = vmatpush2.msra.mxu0 0.0
        %6306 = vmatprep.subr.mxu0 0.0
        %6307 = vmatpush2.msra.mxu0 0.0
        %6308 = vmatprep.subr.mxu0 0.0
        %6309 = vmatpush2.msra.mxu0 0.0
        %6310 = vmatprep.subr.mxu0 0.0
        %6311 = vmatpush2.msra.mxu0 0.0
        %6312 = vmatprep.subr.mxu0 0.0
        %6313 = vmatpush2.msra.mxu0 0.0
        %6314 = vmatprep.subr.mxu0 0.0
        %6315 = vmatpush2.msra.mxu0 0.0
        %6316 = vmatprep.subr.mxu0 0.0
        %6317 = vmatpush2.msra.mxu0 0.0
        %6318 = vmatprep.subr.mxu0 0.0
        %6319 = vmatpush2.msra.mxu0 0.0
        %6320 = vmatprep.subr.mxu0 0.0
        %6321 = vmatpush2.msra.mxu0 0.0
        %6322 = vmatprep.subr.mxu0 0.0
        %6323 = vmatpush2.msra.mxu0 0.0
        %6324 = vmatprep.subr.mxu0 0.0
        %6325 = vmatpush2.msra.mxu0 0.0
        %6326 = vmatprep.subr.mxu0 0.0
        %6327 = vmatpush2.msra.mxu0 0.0
        %6328 = vmatprep.subr.mxu0 0.0
        %6329 = vmatpush2.msra.mxu0 0.0
        %6330 = vmatprep.subr.mxu0 0.0
        %6331 = vmatpush2.msra.mxu0 0.0
        %6332 = vmatprep.subr.mxu0 0.0
        %6333 = vmatpush2.msra.mxu0 0.0
        %6334 = vmatprep.mubr.f32.mxu0 0.0
        %6335 = vmatmul.mubr.f32.gmra.mxu0 %v1355
        %v6336 = vpop.f32.mrf.mxu0
        %v6337 = vadd.f32 0.0, %v6336
        %v6338 = vpop.f32.mrf.mxu0
        %6339 = vmatprep.mubr.f32.mxu0 0.0
        %6340 = vmatmul.mubr.f32.gmra.mxu0 %v1358
        %v6341 = vpop.f32.mrf.mxu0
        %v6342 = vadd.f32 0.0, %v6341
        %v6343 = vpop.f32.mrf.mxu0
        %6344 = vdwg.mxu0
        %6345 = vmatprep.subr.mxu0 0.0
        %6346 = vmatpush1.msra.mxu0 0.0
        %6347 = vmatprep.subr.mxu0 0.0
        %6348 = vmatpush1.msra.mxu0 0.0
        %6349 = vmatprep.subr.mxu0 0.0
        %6350 = vmatpush1.msra.mxu0 0.0
        %6351 = vmatprep.subr.mxu0 0.0
        %6352 = vmatpush1.msra.mxu0 0.0
        %6353 = vmatprep.subr.mxu0 0.0
        %6354 = vmatpush1.msra.mxu0 0.0
        %6355 = vmatprep.subr.mxu0 0.0
        %6356 = vmatpush1.msra.mxu0 0.0
        %6357 = vmatprep.subr.mxu0 0.0
        %6358 = vmatpush1.msra.mxu0 0.0
        %6359 = vmatprep.subr.mxu0 0.0
        %6360 = vmatpush1.msra.mxu0 0.0
        %6361 = vmatprep.subr.mxu0 0.0
        %6362 = vmatpush1.msra.mxu0 0.0
        %6363 = vmatprep.subr.mxu0 0.0
        %6364 = vmatpush1.msra.mxu0 0.0
        %6365 = vmatprep.subr.mxu0 0.0
        %6366 = vmatpush1.msra.mxu0 0.0
        %6367 = vmatprep.subr.mxu0 0.0
        %6368 = vmatpush1.msra.mxu0 0.0
        %6369 = vmatprep.subr.mxu0 0.0
        %6370 = vmatpush1.msra.mxu0 %v6268
        %6371 = vmatprep.subr.mxu0 0.0
        %6372 = vmatpush1.msra.mxu0 %v6265
        %6373 = vmatprep.subr.mxu0 0.0
        %6374 = vmatpush1.msra.mxu0 %v6264
        %6375 = vmatprep.subr.mxu0 0.0
        %6376 = vmatpush1.msra.mxu0 %v6263
        %6377 = vmatprep.subr.mxu0 0.0
        %6378 = vmatpush2.msra.mxu0 0.0
        %6379 = vmatprep.subr.mxu0 0.0
        %6380 = vmatpush2.msra.mxu0 0.0
        %6381 = vmatprep.subr.mxu0 0.0
        %6382 = vmatpush2.msra.mxu0 0.0
        %6383 = vmatprep.subr.mxu0 0.0
        %6384 = vmatpush2.msra.mxu0 0.0
        %6385 = vmatprep.subr.mxu0 0.0
        %6386 = vmatpush2.msra.mxu0 0.0
        %6387 = vmatprep.subr.mxu0 0.0
        %6388 = vmatpush2.msra.mxu0 0.0
        %6389 = vmatprep.subr.mxu0 0.0
        %6390 = vmatpush2.msra.mxu0 0.0
        %6391 = vmatprep.subr.mxu0 0.0
        %6392 = vmatpush2.msra.mxu0 0.0
        %6393 = vmatprep.subr.mxu0 0.0
        %6394 = vmatpush2.msra.mxu0 0.0
        %6395 = vmatprep.subr.mxu0 0.0
        %6396 = vmatpush2.msra.mxu0 0.0
        %6397 = vmatprep.subr.mxu0 0.0
        %6398 = vmatpush2.msra.mxu0 0.0
        %6399 = vmatprep.subr.mxu0 0.0
        %6400 = vmatpush2.msra.mxu0 0.0
        %6401 = vmatprep.subr.mxu0 0.0
        %6402 = vmatpush2.msra.mxu0 0.0
        %6403 = vmatprep.subr.mxu0 0.0
        %6404 = vmatpush2.msra.mxu0 0.0
        %6405 = vmatprep.subr.mxu0 0.0
        %6406 = vmatpush2.msra.mxu0 0.0
        %6407 = vmatprep.subr.mxu0 0.0
        %6408 = vmatpush2.msra.mxu0 0.0
        %6409 = vmatprep.mubr.f32.mxu0 0.0
        %6410 = vmatmul.mubr.f32.gmra.mxu0 %v1440
        %v6411 = vpop.f32.mrf.mxu0
        %v6412 = vadd.f32 0.0, %v6411
        %v6413 = vpop.f32.mrf.mxu0
        %6414 = vmatprep.mubr.f32.mxu0 0.0
        %6415 = vmatmul.mubr.f32.gmra.mxu0 %v1443
        %v6416 = vpop.f32.mrf.mxu0
        %v6417 = vadd.f32 0.0, %v6416
        %v6418 = vpop.f32.mrf.mxu0
        %6419 = vdwg.mxu0
        %v6420 = vmax.f32 %v6337, %v6412
        %v6421 = vmax.f32 %v6342, %v6417
        %s6422 = scalar_lea.vmem %s5, 400
        %6423 = vst.msk [vmem:[%s6422] sm:$0xff] %vm1220, %v6420
        %6424 = vst.msk [vmem:[%s6422 + $0x8] sm:$0x1f] %vm1523, %v6421
      $region48: #{tpu_custom_call.1} parent=39 // pred_fallthru
        _
      // Predicated region
      $region49: #{tpu_custom_call.1} parent=39 // pred_check
        %p6425 = pneg %p146
      $region50: #{tpu_custom_call.1} parent=39 // pred_check_branch
        %6427 = sbr.rel (%p6425) target = $region52
      $region51: #{tpu_custom_call.1} parent=39 // pred_region
        _
      $region52: #{tpu_custom_call.1} parent=39 // pred_fallthru
        _
      // Predicated region
      $region53: #{tpu_custom_call.1} parent=39 // pred_check
        %p6428 = pneg %p146
      $region54: #{tpu_custom_call.1} parent=39 // pred_check_branch
        %6430 = sbr.rel (%p6428) target = $region56
      $region55: #{tpu_custom_call.1} parent=39 // pred_region
        _
      $region56: #{tpu_custom_call.1} parent=39 // pred_fallthru
        _
    $region40: #{tpu_custom_call.1} parent=5 // pred_fallthru
      _
    %p6431 = scmp.le.s32.totalorder 2, %s11
    // Predicated region
    $region57: #{tpu_custom_call.1} parent=5 // pred_check
      %p6432 = pneg %p6431
    $region58: #{tpu_custom_call.1} parent=5 // pred_check_branch
      %6434 = sbr.rel (%p6432) target = $region60
    $region59: #{tpu_custom_call.1} parent=5 // pred_region
      %s6435 = ssub.s32 %s11, 2
    $region60: #{tpu_custom_call.1} parent=5 // pred_fallthru
      _
  $region6: #{tpu_custom_call.1} parent=0 // loop_footer
    %s15 = sadd.s32 1, %s11
  $region7: #{tpu_custom_call.1} parent=0 // loop_footer_branch
    %10 = sbr.rel target = $region3
  $region8: #{tpu_custom_call.1} parent=0 // loop_exit
    _

</llo_original>
